<compile_context>
chip_gen: v7x
topology: tpu7x:2x2x1
jax: 0.10.0
libtpu: 0.0.40
codegen_flags: <defaults>
</compile_context>

<pallas_src>
import functools

import jax
import jax.numpy as jnp
from jax.experimental import pallas as pl
from jax.experimental.pallas import tpu as pltpu


def _phase_conv_sinh_kernel(x_ref, w_ref, o_ref, *, kmax, m_rows, m_cols, off):
    """One grid step handles one (phase, batch) pair.

    x_ref : (H_pad*Mw, Kmax*C_in)    bf16  W-im2col'd padded input of batch n
    w_ref : (Kmax, Kmax*C_in, C_out) bf16  parity-sliced, flipped, zero-padded phase weight
    o_ref : (Mh*Mw, C_out)           f32   phase output block (flattened (mh, mw))
    """
    m = m_rows * m_cols
    acc = jnp.zeros((m, o_ref.shape[-1]), jnp.float32)
    for uh in range(kmax):                         # static unroll over kernel rows
        start = (off + uh) * m_cols                # sublane-aligned (multiple of Mw)
        lhs = x_ref[start:start + m, :]            # (Mh*Mw, Kmax*C_in) bf16
        acc = acc + jnp.dot(lhs, w_ref[uh], preferred_element_type=jnp.float32)

    # sinh(a), numerically safe:
    #   |a| >= 0.5 : sign(a) * 0.5 * (exp(|a|) - 1/exp(|a|))   (no cancellation there)
    #   |a| <  0.5 : odd Taylor series a + a^3/6 + a^5/120 + a^7/5040
    a = acc
    abs_a = jnp.abs(a)
    e = jnp.exp(abs_a)                                         # EUP
    half = 0.5 * (e - pl.reciprocal(e, approx=True))           # exp(-|a|) from EUP recip
    big = jnp.where(a >= 0, half, -half)
    a2 = a * a
    small = a * (1.0 + a2 * (1.0 / 6.0 + a2 * (1.0 / 120.0 + a2 * (1.0 / 5040.0))))
    o_ref[...] = jnp.where(abs_a < 0.5, small, big).astype(o_ref.dtype)


def conv_transpose_sinh(x_nchw, weight, *, stride=2, padding=7):
    """x_nchw: (N, C_in, H, W); weight: (C_in, C_out, KH, KW) (PyTorch ConvTranspose2d layout)."""
    N, C_in, H, W = x_nchw.shape
    wc_in, C_out, KH, KW = weight.shape
    assert wc_in == C_in and KH == KW
    K, s, p = KH, stride, padding
    H_out = (H - 1) * s - 2 * p + K
    W_out = (W - 1) * s - 2 * p + K
    Kmax = -(-K // s)            # longest parity sub-kernel (8)
    Mh = -(-H_out // s)          # output rows computed per row-parity (8)
    Mw = -(-W_out // s)          # output cols computed per col-parity (8)

    # Per output parity b: kernel residue r, sub-kernel length Kr, window base (x coords).
    def parity(b):
        r = (b + p) % s
        kr = -(-(K - r) // s)
        base = (b + p - r) // s - kr + 1
        return r, kr, base

    bases = {parity(b)[2] for b in range(s)}
    assert len(bases) == 1, "unequal phase window bases not supported"  # holds for K=15,s=2,p=7
    base = bases.pop()
    pad_lo = max(0, -base)
    off = base + pad_lo                              # uniform window offset in padded coords
    pad_hi_h = max(0, off + (Mh - 1) + (Kmax - 1) + 1 - (H + pad_lo))
    pad_hi_w = max(0, off + (Mw - 1) + (Kmax - 1) + 1 - (W + pad_lo))
    H_pad, W_pad = H + pad_lo + pad_hi_h, W + pad_lo + pad_hi_w

    # ---- layout plumbing (XLA): NCHW -> NHWC, pad, W-axis im2col, bf16 cast ----
    x = jnp.transpose(x_nchw, (0, 2, 3, 1))                         # (N, H, W, Cin)
    xpad = jnp.pad(x, ((0, 0), (pad_lo, pad_hi_h), (pad_lo, pad_hi_w), (0, 0)))
    cols = [xpad[:, :, off + uw: off + uw + Mw, :] for uw in range(Kmax)]
    xcol = jnp.stack(cols, axis=3)                                  # (N, H_pad, Mw, Kmax, Cin)
    xcol = xcol.reshape(N, H_pad * Mw, Kmax * C_in).astype(jnp.bfloat16)

    # ---- phase weights: parity-slice, flip, zero-pad to (Kmax, Kmax), fold (uw, ci) ----
    wt = jnp.transpose(weight, (2, 3, 0, 1))                        # (K, K, Cin, Cout)
    wph = []
    for bh in range(s):
        rh, krh, _ = parity(bh)
        for bw in range(s):
            rw, krw, _ = parity(bw)
            sub = wt[rh::s, rw::s][::-1, ::-1]                      # (Krh, Krw, Cin, Cout), flipped
            sub = jnp.pad(sub, ((0, Kmax - krh), (0, Kmax - krw), (0, 0), (0, 0)))
            wph.append(sub.reshape(Kmax, Kmax * C_in, C_out))
    wk = jnp.stack(wph, axis=0).astype(jnp.bfloat16)                # (s*s, Kmax, Kmax*Cin, Cout)

    kernel = functools.partial(_phase_conv_sinh_kernel,
                               kmax=Kmax, m_rows=Mh, m_cols=Mw, off=off)

    out = pl.pallas_call(
        kernel,
        out_shape=jax.ShapeDtypeStruct((s * s, N, Mh * Mw, C_out), jnp.float32),
        grid_spec=pltpu.PrefetchScalarGridSpec(
            num_scalar_prefetch=0,
            grid=(s * s, N),          # phase OUTER -> each phase-weight block DMA'd once
            in_specs=[
                pl.BlockSpec((None, H_pad * Mw, Kmax * C_in), lambda ph, n: (n, 0, 0)),
                pl.BlockSpec((None, Kmax, Kmax * C_in, C_out), lambda ph, n: (ph, 0, 0, 0)),
            ],
            out_specs=pl.BlockSpec((None, None, Mh * Mw, C_out), lambda ph, n: (ph, n, 0, 0)),
        ),
        compiler_params=pltpu.CompilerParams(
            dimension_semantics=("parallel", "parallel")),
    )(xcol, wk)

    # ---- interleave the s*s phase outputs back to (N, H_out, W_out, C_out) ----
    out = out.reshape(s, s, N, Mh, Mw, C_out)
    out = jnp.transpose(out, (2, 3, 0, 4, 1, 5)).reshape(N, Mh * s, Mw * s, C_out)
    out = out[:, :H_out, :W_out, :]
    return jnp.transpose(out, (0, 3, 1, 2))                         # back to NCHW


if __name__ == "__main__":
    key = jax.random.PRNGKey(0)
    k_x, k_w = jax.random.split(key)

    # Small shapes consistent with the module: C_in = C_out = 128, kernel 15, stride 2, padding 7.
    N, C_in, C_out, H, W, K = 2, 128, 128, 8, 8, 15
    x = jax.random.normal(k_x, (N, C_in, H, W), dtype=jnp.float32)
    w = 0.01 * jax.random.normal(k_w, (C_in, C_out, K, K), dtype=jnp.float32)

    y = conv_transpose_sinh(x, w, stride=2, padding=7)
    y = jax.block_until_ready(y)
    assert y.shape == (N, C_out, 2 * H - 1, 2 * W - 1)

    # Reference: lhs-dilated conv (== ConvTranspose2d) + sinh in plain XLA, fed the same
    # bf16-rounded operands the kernel consumes (isolates kernel error from quantization).
    xb = x.astype(jnp.bfloat16).astype(jnp.float32)
    wb = w.astype(jnp.bfloat16).astype(jnp.float32)
    wf = jnp.transpose(wb[:, :, ::-1, ::-1], (2, 3, 0, 1))
    ref = jax.lax.conv_general_dilated(
        jnp.transpose(xb, (0, 2, 3, 1)), wf,
        window_strides=(1, 1), padding=[(K - 1 - 7, K - 1 - 7)] * 2,
        lhs_dilation=(2, 2), rhs_dilation=(1, 1),
        dimension_numbers=("NHWC", "HWIO", "NHWC"),
        precision=jax.lax.Precision.HIGHEST)
    ref = jnp.sinh(jnp.transpose(ref, (0, 3, 1, 2)))
    err = float(jnp.max(jnp.abs(y - ref)))
    assert jnp.allclose(y, ref, atol=1e-2, rtol=1e-2), err

    print("KERNEL_OK")
</pallas_src>

<mosaic_0001>
module attributes {stable_mosaic.version = 11 : i64} {
  func.func @_phase_conv_sinh_kernel(%arg0: i32, %arg1: i32, %arg2: memref<1x120x1024xbf16, #tpu.memory_space<vmem>>, %arg3: memref<1x8x1024x128xbf16, #tpu.memory_space<vmem>>, %arg4: memref<1x1x64x128xf32, #tpu.memory_space<vmem>>) attributes {dimension_semantics = [#tpu.dimension_semantics<parallel>, #tpu.dimension_semantics<parallel>], iteration_bounds = array<i64: 4, 2>, scalar_prefetch = 0 : i64, scratch_operands = 0 : i64, tpu.core_type = #tpu.core_type<tc>, window_params = [{transform_indices = @transform_0, window_bounds = array<i64: 1, 120, 1024>}, {transform_indices = @transform_1, window_bounds = array<i64: 1, 8, 1024, 128>}, {transform_indices = @transform_2, window_bounds = array<i64: 1, 1, 64, 128>}]} {
    %cst = arith.constant 0.000000e+00 : f32
    %0 = vector.broadcast %cst : f32 to vector<64x128xf32>
    %c0 = arith.constant 0 : index
    %c0_0 = arith.constant 0 : index
    %c0_1 = arith.constant 0 : index
    %1 = vector.load %arg2[%c0, %c0_0, %c0_1] : memref<1x120x1024xbf16, #tpu.memory_space<vmem>>, vector<1x64x1024xbf16>
    %2 = vector.shape_cast %1 : vector<1x64x1024xbf16> to vector<64x1024xbf16>
    %c0_2 = arith.constant 0 : index
    %c0_3 = arith.constant 0 : index
    %c0_4 = arith.constant 0 : index
    %c0_5 = arith.constant 0 : index
    %3 = vector.load %arg3[%c0_2, %c0_3, %c0_4, %c0_5] : memref<1x8x1024x128xbf16, #tpu.memory_space<vmem>>, vector<1x1x1024x128xbf16>
    %4 = vector.shape_cast %3 : vector<1x1x1024x128xbf16> to vector<1024x128xbf16>
    %cst_6 = arith.constant dense<0.000000e+00> : vector<64x128xf32>
    %5 = tpu.matmul %2, %4, %cst_6 {dimension_numbers = #tpu.dot_dimension_numbers<[1], [0], [0], [1], [0, 0, 1, 1], [], []>} : vector<64x1024xbf16>, vector<1024x128xbf16>, vector<64x128xf32> -> vector<64x128xf32>
    %6 = arith.addf %0, %5 : vector<64x128xf32>
    %c0_7 = arith.constant 0 : index
    %c8 = arith.constant 8 : index
    %c0_8 = arith.constant 0 : index
    %7 = vector.load %arg2[%c0_7, %c8, %c0_8] : memref<1x120x1024xbf16, #tpu.memory_space<vmem>>, vector<1x64x1024xbf16>
    %8 = vector.shape_cast %7 : vector<1x64x1024xbf16> to vector<64x1024xbf16>
    %c0_9 = arith.constant 0 : index
    %c1 = arith.constant 1 : index
    %c0_10 = arith.constant 0 : index
    %c0_11 = arith.constant 0 : index
    %9 = vector.load %arg3[%c0_9, %c1, %c0_10, %c0_11] : memref<1x8x1024x128xbf16, #tpu.memory_space<vmem>>, vector<1x1x1024x128xbf16>
    %10 = vector.shape_cast %9 : vector<1x1x1024x128xbf16> to vector<1024x128xbf16>
    %cst_12 = arith.constant dense<0.000000e+00> : vector<64x128xf32>
    %11 = tpu.matmul %8, %10, %cst_12 {dimension_numbers = #tpu.dot_dimension_numbers<[1], [0], [0], [1], [0, 0, 1, 1], [], []>} : vector<64x1024xbf16>, vector<1024x128xbf16>, vector<64x128xf32> -> vector<64x128xf32>
    %12 = arith.addf %6, %11 : vector<64x128xf32>
    %c0_13 = arith.constant 0 : index
    %c16 = arith.constant 16 : index
    %c0_14 = arith.constant 0 : index
    %13 = vector.load %arg2[%c0_13, %c16, %c0_14] : memref<1x120x1024xbf16, #tpu.memory_space<vmem>>, vector<1x64x1024xbf16>
    %14 = vector.shape_cast %13 : vector<1x64x1024xbf16> to vector<64x1024xbf16>
    %c0_15 = arith.constant 0 : index
    %c2 = arith.constant 2 : index
    %c0_16 = arith.constant 0 : index
    %c0_17 = arith.constant 0 : index
    %15 = vector.load %arg3[%c0_15, %c2, %c0_16, %c0_17] : memref<1x8x1024x128xbf16, #tpu.memory_space<vmem>>, vector<1x1x1024x128xbf16>
    %16 = vector.shape_cast %15 : vector<1x1x1024x128xbf16> to vector<1024x128xbf16>
    %cst_18 = arith.constant dense<0.000000e+00> : vector<64x128xf32>
    %17 = tpu.matmul %14, %16, %cst_18 {dimension_numbers = #tpu.dot_dimension_numbers<[1], [0], [0], [1], [0, 0, 1, 1], [], []>} : vector<64x1024xbf16>, vector<1024x128xbf16>, vector<64x128xf32> -> vector<64x128xf32>
    %18 = arith.addf %12, %17 : vector<64x128xf32>
    %c0_19 = arith.constant 0 : index
    %c24 = arith.constant 24 : index
    %c0_20 = arith.constant 0 : index
    %19 = vector.load %arg2[%c0_19, %c24, %c0_20] : memref<1x120x1024xbf16, #tpu.memory_space<vmem>>, vector<1x64x1024xbf16>
    %20 = vector.shape_cast %19 : vector<1x64x1024xbf16> to vector<64x1024xbf16>
    %c0_21 = arith.constant 0 : index
    %c3 = arith.constant 3 : index
    %c0_22 = arith.constant 0 : index
    %c0_23 = arith.constant 0 : index
    %21 = vector.load %arg3[%c0_21, %c3, %c0_22, %c0_23] : memref<1x8x1024x128xbf16, #tpu.memory_space<vmem>>, vector<1x1x1024x128xbf16>
    %22 = vector.shape_cast %21 : vector<1x1x1024x128xbf16> to vector<1024x128xbf16>
    %cst_24 = arith.constant dense<0.000000e+00> : vector<64x128xf32>
    %23 = tpu.matmul %20, %22, %cst_24 {dimension_numbers = #tpu.dot_dimension_numbers<[1], [0], [0], [1], [0, 0, 1, 1], [], []>} : vector<64x1024xbf16>, vector<1024x128xbf16>, vector<64x128xf32> -> vector<64x128xf32>
    %24 = arith.addf %18, %23 : vector<64x128xf32>
    %c0_25 = arith.constant 0 : index
    %c32 = arith.constant 32 : index
    %c0_26 = arith.constant 0 : index
    %25 = vector.load %arg2[%c0_25, %c32, %c0_26] : memref<1x120x1024xbf16, #tpu.memory_space<vmem>>, vector<1x64x1024xbf16>
    %26 = vector.shape_cast %25 : vector<1x64x1024xbf16> to vector<64x1024xbf16>
    %c0_27 = arith.constant 0 : index
    %c4 = arith.constant 4 : index
    %c0_28 = arith.constant 0 : index
    %c0_29 = arith.constant 0 : index
    %27 = vector.load %arg3[%c0_27, %c4, %c0_28, %c0_29] : memref<1x8x1024x128xbf16, #tpu.memory_space<vmem>>, vector<1x1x1024x128xbf16>
    %28 = vector.shape_cast %27 : vector<1x1x1024x128xbf16> to vector<1024x128xbf16>
    %cst_30 = arith.constant dense<0.000000e+00> : vector<64x128xf32>
    %29 = tpu.matmul %26, %28, %cst_30 {dimension_numbers = #tpu.dot_dimension_numbers<[1], [0], [0], [1], [0, 0, 1, 1], [], []>} : vector<64x1024xbf16>, vector<1024x128xbf16>, vector<64x128xf32> -> vector<64x128xf32>
    %30 = arith.addf %24, %29 : vector<64x128xf32>
    %c0_31 = arith.constant 0 : index
    %c40 = arith.constant 40 : index
    %c0_32 = arith.constant 0 : index
    %31 = vector.load %arg2[%c0_31, %c40, %c0_32] : memref<1x120x1024xbf16, #tpu.memory_space<vmem>>, vector<1x64x1024xbf16>
    %32 = vector.shape_cast %31 : vector<1x64x1024xbf16> to vector<64x1024xbf16>
    %c0_33 = arith.constant 0 : index
    %c5 = arith.constant 5 : index
    %c0_34 = arith.constant 0 : index
    %c0_35 = arith.constant 0 : index
    %33 = vector.load %arg3[%c0_33, %c5, %c0_34, %c0_35] : memref<1x8x1024x128xbf16, #tpu.memory_space<vmem>>, vector<1x1x1024x128xbf16>
    %34 = vector.shape_cast %33 : vector<1x1x1024x128xbf16> to vector<1024x128xbf16>
    %cst_36 = arith.constant dense<0.000000e+00> : vector<64x128xf32>
    %35 = tpu.matmul %32, %34, %cst_36 {dimension_numbers = #tpu.dot_dimension_numbers<[1], [0], [0], [1], [0, 0, 1, 1], [], []>} : vector<64x1024xbf16>, vector<1024x128xbf16>, vector<64x128xf32> -> vector<64x128xf32>
    %36 = arith.addf %30, %35 : vector<64x128xf32>
    %c0_37 = arith.constant 0 : index
    %c48 = arith.constant 48 : index
    %c0_38 = arith.constant 0 : index
    %37 = vector.load %arg2[%c0_37, %c48, %c0_38] : memref<1x120x1024xbf16, #tpu.memory_space<vmem>>, vector<1x64x1024xbf16>
    %38 = vector.shape_cast %37 : vector<1x64x1024xbf16> to vector<64x1024xbf16>
    %c0_39 = arith.constant 0 : index
    %c6 = arith.constant 6 : index
    %c0_40 = arith.constant 0 : index
    %c0_41 = arith.constant 0 : index
    %39 = vector.load %arg3[%c0_39, %c6, %c0_40, %c0_41] : memref<1x8x1024x128xbf16, #tpu.memory_space<vmem>>, vector<1x1x1024x128xbf16>
    %40 = vector.shape_cast %39 : vector<1x1x1024x128xbf16> to vector<1024x128xbf16>
    %cst_42 = arith.constant dense<0.000000e+00> : vector<64x128xf32>
    %41 = tpu.matmul %38, %40, %cst_42 {dimension_numbers = #tpu.dot_dimension_numbers<[1], [0], [0], [1], [0, 0, 1, 1], [], []>} : vector<64x1024xbf16>, vector<1024x128xbf16>, vector<64x128xf32> -> vector<64x128xf32>
    %42 = arith.addf %36, %41 : vector<64x128xf32>
    %c0_43 = arith.constant 0 : index
    %c56 = arith.constant 56 : index
    %c0_44 = arith.constant 0 : index
    %43 = vector.load %arg2[%c0_43, %c56, %c0_44] : memref<1x120x1024xbf16, #tpu.memory_space<vmem>>, vector<1x64x1024xbf16>
    %44 = vector.shape_cast %43 : vector<1x64x1024xbf16> to vector<64x1024xbf16>
    %c0_45 = arith.constant 0 : index
    %c7 = arith.constant 7 : index
    %c0_46 = arith.constant 0 : index
    %c0_47 = arith.constant 0 : index
    %45 = vector.load %arg3[%c0_45, %c7, %c0_46, %c0_47] : memref<1x8x1024x128xbf16, #tpu.memory_space<vmem>>, vector<1x1x1024x128xbf16>
    %46 = vector.shape_cast %45 : vector<1x1x1024x128xbf16> to vector<1024x128xbf16>
    %cst_48 = arith.constant dense<0.000000e+00> : vector<64x128xf32>
    %47 = tpu.matmul %44, %46, %cst_48 {dimension_numbers = #tpu.dot_dimension_numbers<[1], [0], [0], [1], [0, 0, 1, 1], [], []>} : vector<64x1024xbf16>, vector<1024x128xbf16>, vector<64x128xf32> -> vector<64x128xf32>
    %48 = arith.addf %42, %47 : vector<64x128xf32>
    %49 = math.absf %48 : vector<64x128xf32>
    %50 = math.exp %49 : vector<64x128xf32>
    %51 = tpu.reciprocal %50 {approx = true} : vector<64x128xf32> -> vector<64x128xf32>
    %52 = arith.subf %50, %51 : vector<64x128xf32>
    %cst_49 = arith.constant 5.000000e-01 : f32
    %53 = vector.broadcast %cst_49 : f32 to vector<64x128xf32>
    %54 = arith.mulf %53, %52 : vector<64x128xf32>
    %cst_50 = arith.constant 0.000000e+00 : f32
    %55 = vector.broadcast %cst_50 : f32 to vector<64x128xf32>
    %56 = arith.cmpf oge, %48, %55 : vector<64x128xf32>
    %cst_51 = arith.constant 0.000000e+00 : f32
    %57 = vector.broadcast %cst_51 : f32 to vector<64x128xf32>
    %58 = arith.subf %57, %54 : vector<64x128xf32>
    %59 = arith.select %56, %54, %58 : vector<64x128xi1>, vector<64x128xf32>
    %60 = arith.mulf %48, %48 : vector<64x128xf32>
    %cst_52 = arith.constant 1.98412701E-4 : f32
    %61 = vector.broadcast %cst_52 : f32 to vector<64x128xf32>
    %62 = arith.mulf %60, %61 : vector<64x128xf32>
    %cst_53 = arith.constant 0.00833333377 : f32
    %63 = vector.broadcast %cst_53 : f32 to vector<64x128xf32>
    %64 = arith.addf %63, %62 : vector<64x128xf32>
    %65 = arith.mulf %60, %64 : vector<64x128xf32>
    %cst_54 = arith.constant 0.166666672 : f32
    %66 = vector.broadcast %cst_54 : f32 to vector<64x128xf32>
    %67 = arith.addf %66, %65 : vector<64x128xf32>
    %68 = arith.mulf %60, %67 : vector<64x128xf32>
    %cst_55 = arith.constant 1.000000e+00 : f32
    %69 = vector.broadcast %cst_55 : f32 to vector<64x128xf32>
    %70 = arith.addf %69, %68 : vector<64x128xf32>
    %71 = arith.mulf %48, %70 : vector<64x128xf32>
    %cst_56 = arith.constant 5.000000e-01 : f32
    %72 = vector.broadcast %cst_56 : f32 to vector<64x128xf32>
    %73 = arith.cmpf olt, %49, %72 : vector<64x128xf32>
    %74 = arith.select %73, %71, %59 : vector<64x128xi1>, vector<64x128xf32>
    %c0_57 = arith.constant 0 : index
    %c0_58 = arith.constant 0 : index
    %c0_59 = arith.constant 0 : index
    %c0_60 = arith.constant 0 : index
    %75 = vector.load %arg4[%c0_57, %c0_58, %c0_59, %c0_60] : memref<1x1x64x128xf32, #tpu.memory_space<vmem>>, vector<1x1x64x128xf32>
    %76 = vector.shape_cast %75 : vector<1x1x64x128xf32> to vector<64x128xf32>
    %77 = vector.shape_cast %74 : vector<64x128xf32> to vector<1x1x64x128xf32>
    tpu.vector_store %arg4[%c0_57, %c0_58, %c0_59, %c0_60], %77 {strides = array<i32>} : memref<1x1x64x128xf32, #tpu.memory_space<vmem>>, vector<1x1x64x128xf32>,
    return
  }
  func.func @transform_0(%arg0: i32, %arg1: i32) -> (i32, i32, i32) {
    %c0_i32 = arith.constant 0 : i32
    %c0_i32_0 = arith.constant 0 : i32
    %c0_i32_1 = arith.constant 0 : i32
    return %arg1, %c0_i32, %c0_i32_0 : i32, i32, i32
  }
  func.func @transform_1(%arg0: i32, %arg1: i32) -> (i32, i32, i32, i32) {
    %c0_i32 = arith.constant 0 : i32
    %c0_i32_0 = arith.constant 0 : i32
    %c0_i32_1 = arith.constant 0 : i32
    %c0_i32_2 = arith.constant 0 : i32
    return %arg0, %c0_i32, %c0_i32_0, %c0_i32_1 : i32, i32, i32, i32
  }
  func.func @transform_2(%arg0: i32, %arg1: i32) -> (i32, i32, i32, i32) {
    %c0_i32 = arith.constant 0 : i32
    %c0_i32_0 = arith.constant 0 : i32
    %c0_i32_1 = arith.constant 0 : i32
    return %arg0, %arg1, %c0_i32, %c0_i32_0 : i32, i32, i32, i32
  }
}

</mosaic_0001>

<llo_original>
// kernel: tpu_custom_call.1
$region0: #{tpu_custom_call.1}
  #allocation0 [shape = 'u32[]', space=smem, size = 0x4, offset = 0x4, fixed_abs, tag = 'smem constant byte address 0x4 - core index']
  #allocation1 [shape = 'u32[144,128]{1,0:T(1,128)}', space=vmem, size = 0x12000, scoped, tag = 'internal scratch']
  %s0 = inlined_call_operand.hbm [shape: bf16[2,120,1024], index: 0, kind: input, shape index: {}]
  %s1 = inlined_call_operand.hbm [shape: bf16[4,8,1024,128], index: 1, kind: input, shape index: {}]
  %s2 = inlined_call_operand.hbm [shape: f32[4,2,64,128], index: 2, kind: output, shape index: {}]
  %s3 = sld [smem:[#allocation0]]
  $region49: #{tpu_custom_call.1} parent=0
    _
  %s5 = ssub.s32 1, %s3
  %s6 = scalar_select 0, %s5, %s3
  $region1: #{tpu_custom_call.1} parent=0
    #allocation2 [shape = 'u8[491520]{0}', space=vmem, size = 0x78000, scoped, tag = 'input window, operand 0']
    #allocation3 [shape = 's32[2]{0}', space=sflag, size = 0x8, scoped, tag = 'scoped memory for tpu_custom_call.1']
    #allocation4 [shape = 's32[2]{0}', space=sflag, size = 0x8, scoped, tag = 'scoped memory for tpu_custom_call.1']
    #allocation5 [shape = 'u8[4194304]{0}', space=vmem, size = 0x400000, scoped, tag = 'input window, operand 1']
    #allocation6 [shape = 's32[2]{0}', space=sflag, size = 0x8, scoped, tag = 'scoped memory for tpu_custom_call.1']
    #allocation7 [shape = 'u8[65536]{0}', space=vmem, size = 0x10000, scoped, tag = 'output window, operand 0']
    %7 = vsyncpa [#allocation3], 0
    %s8 = scalar_lea.sflag [#allocation3], 1
    %9 = vsyncpa %s8, 0
    %10 = vsyncpa [#allocation6], 0
    %s11 = scalar_lea.sflag [#allocation6], 1
    %12 = vsyncpa %s11, 0
    %13 = vsyncpa [#allocation4], 0
    %s14 = scalar_lea.sflag [#allocation4], 1
    %15 = vsyncpa %s14, 0
    loop: start=0, step=1, limit=10
    $region2: #{tpu_custom_call.1} parent=1 // loop_pre_header
      _
    $region3: #{tpu_custom_call.1} parent=1 // loop_header
      %s17 = sphi 0, %s21
      %p18 = scmp.ge.s32.totalorder %s17, 10
      %s24 = sphi 0, %s36
      %s25 = sphi 0, %s32
      %s26 = sphi 0, %s24
      %s27 = sphi 0, %s25
      %s28 = sphi 0, %s26
      %s29 = sphi 0, %s27
      %s39 = sphi 0, %s41
      %s42 = sphi 0, %s39
      %s43 = sphi 0, %s42
      %s59 = sphi 0, %s43
      %s65 = sphi 0, %s67
      %s68 = sphi 0, %s65
      %s69 = sphi 0, %s68
      %s85 = sphi 0, %s69
      %s93 = sphi 0, %s95
      %s96 = sphi 0, %s93
      %s97 = sphi 0, %s96
      %s113 = sphi 0, %s97
    $region4: #{tpu_custom_call.1} parent=1 // loop_header_branch
      %20 = sbr.rel (%p18) target = $region8
    $region5: #{tpu_custom_call.1} parent=1 // loop_body
      %s22 = ssub.s32 %s17, 1
      %s23 = ssub.s32 %s17, 2
      %s30 = sadd.s32 1, %s25
      %p31 = scmp.ge.s32.totalorder %s30, 2
      %s32 = scalar_select %p31, 0, %s30
      %s33 = sadd.s32 1, %s24
      %s34 = scalar_select %p31, %s33, %s24
      %p35 = scmp.ge.s32.totalorder %s34, 4
      %s36 = scalar_select %p35, 0, %s34
      %s37 = ssub.s32 %s25, %s32
      %p38 = scmp.eq.s32.totalorder %s37, 0
      %s40 = sadd.s32 %s39, 1
      %s41 = scalar_select %p38, %s39, %s40
      %p44 = pneg %p38
      %p45 = scmp.eq.s32.totalorder %s17, 7
      %p46 = por %p44, %p45
      %p47 = scmp.ne.s32.totalorder %s39, %s42
      %p48 = scmp.eq.s32.totalorder %s17, 0
      %p49 = por %p47, %p48
      %p50 = scmp.ne.s32.totalorder %s39, %s42
      %p51 = scmp.eq.s32.totalorder %s22, 7
      %p52 = por %p50, %p51
      %p53 = scmp.ne.s32.totalorder %s42, %s43
      %p54 = scmp.eq.s32.totalorder %s22, 0
      %p55 = por %p53, %p54
      %p56 = scmp.ne.s32.totalorder %s42, %s43
      %p57 = scmp.eq.s32.totalorder %s23, 7
      %p58 = por %p56, %p57
      %p60 = scmp.ne.s32.totalorder %s43, %s59
      %p61 = scmp.eq.s32.totalorder %s23, 0
      %p62 = por %p60, %p61
      %s63 = ssub.s32 %s24, %s36
      %p64 = scmp.eq.s32.totalorder %s63, 0
      %s66 = sadd.s32 %s65, 1
      %s67 = scalar_select %p64, %s65, %s66
      %p70 = pneg %p64
      %p71 = scmp.eq.s32.totalorder %s17, 7
      %p72 = por %p70, %p71
      %p73 = scmp.ne.s32.totalorder %s65, %s68
      %p74 = scmp.eq.s32.totalorder %s17, 0
      %p75 = por %p73, %p74
      %p76 = scmp.ne.s32.totalorder %s65, %s68
      %p77 = scmp.eq.s32.totalorder %s22, 7
      %p78 = por %p76, %p77
      %p79 = scmp.ne.s32.totalorder %s68, %s69
      %p80 = scmp.eq.s32.totalorder %s22, 0
      %p81 = por %p79, %p80
      %p82 = scmp.ne.s32.totalorder %s68, %s69
      %p83 = scmp.eq.s32.totalorder %s23, 7
      %p84 = por %p82, %p83
      %p86 = scmp.ne.s32.totalorder %s69, %s85
      %p87 = scmp.eq.s32.totalorder %s23, 0
      %p88 = por %p86, %p87
      %s89 = ssub.s32 %s24, %s36
      %s90 = ssub.s32 %s25, %s32
      %s91 = sor.u32 %s89, %s90
      %p92 = scmp.eq.s32.totalorder %s91, 0
      %s94 = sadd.s32 %s93, 1
      %s95 = scalar_select %p92, %s93, %s94
      %p98 = pneg %p92
      %p99 = scmp.eq.s32.totalorder %s17, 7
      %p100 = por %p98, %p99
      %p101 = scmp.ne.s32.totalorder %s93, %s96
      %p102 = scmp.eq.s32.totalorder %s17, 0
      %p103 = por %p101, %p102
      %p104 = scmp.ne.s32.totalorder %s93, %s96
      %p105 = scmp.eq.s32.totalorder %s22, 7
      %p106 = por %p104, %p105
      %p107 = scmp.ne.s32.totalorder %s96, %s97
      %p108 = scmp.eq.s32.totalorder %s22, 0
      %p109 = por %p107, %p108
      %p110 = scmp.ne.s32.totalorder %s96, %s97
      %p111 = scmp.eq.s32.totalorder %s23, 7
      %p112 = por %p110, %p111
      %p114 = scmp.ne.s32.totalorder %s97, %s113
      %p115 = scmp.eq.s32.totalorder %s23, 0
      %p116 = por %p114, %p115
      %p117 = scmp.le.s32.totalorder 1, %s17
      %p118 = scmp.lt.s32.totalorder %s17, 9
      %p119 = pnand %p117, %p118
      %p120 = pneg %p119
      // Predicated region
      $region9: #{tpu_custom_call.1} parent=5 // pred_check
        _
      $region10: #{tpu_custom_call.1} parent=5 // pred_check_branch
        %122 = sbr.rel (%p119) target = $region12
      $region11: #{tpu_custom_call.1} parent=5 // pred_region
        %s123 = ssub.s32 %s17, 1
      $region12: #{tpu_custom_call.1} parent=5 // pred_fallthru
        _
      %p124 = scmp.lt.s32.totalorder %s17, 8
      // Predicated region
      $region13: #{tpu_custom_call.1} parent=5 // pred_check
        %p125 = pneg %p124
      $region14: #{tpu_custom_call.1} parent=5 // pred_check_branch
        %127 = sbr.rel (%p125) target = $region16
      $region15: #{tpu_custom_call.1} parent=5 // pred_region
        // Predicated region
        $region17: #{tpu_custom_call.1} parent=15 // pred_check
          %p128 = pneg %p49
        $region18: #{tpu_custom_call.1} parent=15 // pred_check_branch
          %130 = sbr.rel (%p128) target = $region20
        $region19: #{tpu_custom_call.1} parent=15 // pred_region
          %s131 = sand.u32 %s39, 1
          %s132 = scalar_lea.sflag [#allocation3], %s131
          %s133 = sand.u32 %s39, 1
          %s134 = smul.addr %s133, 480
          %s135 = scalar_lea.vmem [#allocation2], %s134
          %s137 = ssub.s32 7680, 7680
          %138 = vsyncadd %s132, %s137
          %s139 = smul.addr %s25, 120
          %s140 = smul.addr %s139, 64
          %s141 = scalar_lea.hbm %s0, %s140
          %s142 = sshll.u32 %s135, 4
          %s143 = int_to_ptr.vmem [resolvable:$true] %s142
          %148 = dma.hbm_to_vmem [thread:$0]  %s141, 7680, %s143, %s132, 512, 512, 32
        $region20: #{tpu_custom_call.1} parent=15 // pred_fallthru
          _
        // Predicated region
        $region21: #{tpu_custom_call.1} parent=15 // pred_check
          %p149 = pneg %p75
        $region22: #{tpu_custom_call.1} parent=15 // pred_check_branch
          %151 = sbr.rel (%p149) target = $region24
        $region23: #{tpu_custom_call.1} parent=15 // pred_region
          %s152 = sand.u32 %s65, 1
          %s153 = scalar_lea.sflag [#allocation6], %s152
          %s154 = sand.u32 %s65, 1
          %s155 = smul.addr %s154, 4096
          %s156 = scalar_lea.vmem [#allocation5], %s155
          %s158 = ssub.s32 65536, 65536
          %159 = vsyncadd %s153, %s158
          %s160 = smul.addr %s24, 1024
          %s161 = smul.addr %s160, 64
          %s162 = scalar_lea.hbm %s1, %s161
          %s163 = sshll.u32 %s156, 4
          %s164 = int_to_ptr.vmem [resolvable:$true] %s163
          %169 = dma.hbm_to_vmem [thread:$0]  %s162, 65536, %s164, %s153, 64, 64, 4
        $region24: #{tpu_custom_call.1} parent=15 // pred_fallthru
          _
      $region16: #{tpu_custom_call.1} parent=5 // pred_fallthru
        _
      %p170 = scmp.le.s32.totalorder 1, %s17
      %p171 = scmp.lt.s32.totalorder %s17, 9
      %p172 = pnand %p170, %p171
      %p173 = pneg %p172
      // Predicated region
      $region25: #{tpu_custom_call.1} parent=5 // pred_check
        _
      $region26: #{tpu_custom_call.1} parent=5 // pred_check_branch
        %175 = sbr.rel (%p172) target = $region28
      $region27: #{tpu_custom_call.1} parent=5 // pred_region
        %s176 = ssub.s32 %s17, 1
        %s177 = sand.u32 %s42, 1
        %s178 = scalar_lea.sflag [#allocation3], %s177
        %s179 = sand.u32 %s42, 1
        %s180 = smul.addr %s179, 480
        %s181 = scalar_lea.vmem [#allocation2], %s180
        // Predicated region
        $region29: #{tpu_custom_call.1} parent=27 // pred_check
          %p182 = pneg %p55
        $region30: #{tpu_custom_call.1} parent=27 // pred_check_branch
          %184 = sbr.rel (%p182) target = $region32
        $region31: #{tpu_custom_call.1} parent=27 // pred_region
          %185 = dma.done %s178, 7680
        $region32: #{tpu_custom_call.1} parent=27 // pred_fallthru
          _
        %s186 = sand.u32 %s68, 1
        %s187 = scalar_lea.sflag [#allocation6], %s186
        %s188 = sand.u32 %s68, 1
        %s189 = smul.addr %s188, 4096
        %s190 = scalar_lea.vmem [#allocation5], %s189
        // Predicated region
        $region33: #{tpu_custom_call.1} parent=27 // pred_check
          %p191 = pneg %p81
        $region34: #{tpu_custom_call.1} parent=27 // pred_check_branch
          %193 = sbr.rel (%p191) target = $region36
        $region35: #{tpu_custom_call.1} parent=27 // pred_region
          %194 = dma.done %s187, 65536
        $region36: #{tpu_custom_call.1} parent=27 // pred_fallthru
          _
        %s195 = sand.u32 %s42, 1
        %s196 = scalar_lea.sflag [#allocation3], %s195
        %s197 = sand.u32 %s42, 1
        %s198 = smul.addr %s197, 480
        %s199 = scalar_lea.vmem [#allocation2], %s198
        %p200 = pneg %p55
        %p201 = pneg %p52
        %s202 = sand.u32 %s68, 1
        %s203 = scalar_lea.sflag [#allocation6], %s202
        %s204 = sand.u32 %s68, 1
        %s205 = smul.addr %s204, 4096
        %s206 = scalar_lea.vmem [#allocation5], %s205
        %p207 = pneg %p81
        %p208 = pneg %p78
        %p209 = pneg %p109
        %p210 = pneg %p106
        %s211 = sand.u32 %s96, 1
        %s212 = scalar_lea.sflag [#allocation4], %s211
        %s213 = sand.u32 %s96, 1
        %s214 = smul.addr %s213, 64
        %s215 = scalar_lea.vmem [#allocation7], %s214
        %v217 = vld [vmem:[%s181] sm:$0xff]
        %v218 = vld [vmem:[%s181 + $0x8] sm:$0xff]
        %v219 = vld [vmem:[%s181 + $0x10] sm:$0xff]
        %v220 = vld [vmem:[%s181 + $0x18] sm:$0xff]
        %v221 = vld [vmem:[%s181 + $0x20] sm:$0xff]
        %v222 = vld [vmem:[%s181 + $0x28] sm:$0xff]
        %v223 = vld [vmem:[%s181 + $0x30] sm:$0xff]
        %v224 = vld [vmem:[%s181 + $0x38] sm:$0xff]
        %v225 = vld [vmem:[%s181 + $0x40] sm:$0xff]
        %v226 = vld [vmem:[%s181 + $0x48] sm:$0xff]
        %v227 = vld [vmem:[%s181 + $0x50] sm:$0xff]
        %v228 = vld [vmem:[%s181 + $0x58] sm:$0xff]
        %v229 = vld [vmem:[%s181 + $0x60] sm:$0xff]
        %v230 = vld [vmem:[%s181 + $0x68] sm:$0xff]
        %v231 = vld [vmem:[%s181 + $0x70] sm:$0xff]
        %v232 = vld [vmem:[%s181 + $0x78] sm:$0xff]
        %v233 = vld [vmem:[%s181 + $0x80] sm:$0xff]
        %v234 = vld [vmem:[%s181 + $0x88] sm:$0xff]
        %v235 = vld [vmem:[%s181 + $0x90] sm:$0xff]
        %v236 = vld [vmem:[%s181 + $0x98] sm:$0xff]
        %v237 = vld [vmem:[%s181 + $0xa0] sm:$0xff]
        %v238 = vld [vmem:[%s181 + $0xa8] sm:$0xff]
        %v239 = vld [vmem:[%s181 + $0xb0] sm:$0xff]
        %v240 = vld [vmem:[%s181 + $0xb8] sm:$0xff]
        %v241 = vld [vmem:[%s181 + $0xc0] sm:$0xff]
        %v242 = vld [vmem:[%s181 + $0xc8] sm:$0xff]
        %v243 = vld [vmem:[%s181 + $0xd0] sm:$0xff]
        %v244 = vld [vmem:[%s181 + $0xd8] sm:$0xff]
        %v245 = vld [vmem:[%s181 + $0xe0] sm:$0xff]
        %v246 = vld [vmem:[%s181 + $0xe8] sm:$0xff]
        %v247 = vld [vmem:[%s181 + $0xf0] sm:$0xff]
        %v248 = vld [vmem:[%s181 + $0xf8] sm:$0xff]
        %v249 = vld [vmem:[%s190] sm:$0xf]
        %v250 = vld [vmem:[%s190 + $0x4] sm:$0xf]
        %v251 = vld [vmem:[%s190 + $0x8] sm:$0xf]
        %v252 = vld [vmem:[%s190 + $0xc] sm:$0xf]
        %v253 = vld [vmem:[%s190 + $0x10] sm:$0xf]
        %v254 = vld [vmem:[%s190 + $0x14] sm:$0xf]
        %v255 = vld [vmem:[%s190 + $0x18] sm:$0xf]
        %v256 = vld [vmem:[%s190 + $0x1c] sm:$0xf]
        %v257 = vld [vmem:[%s190 + $0x20] sm:$0xf]
        %v258 = vld [vmem:[%s190 + $0x24] sm:$0xf]
        %v259 = vld [vmem:[%s190 + $0x28] sm:$0xf]
        %v260 = vld [vmem:[%s190 + $0x2c] sm:$0xf]
        %v261 = vld [vmem:[%s190 + $0x30] sm:$0xf]
        %v262 = vld [vmem:[%s190 + $0x34] sm:$0xf]
        %v263 = vld [vmem:[%s190 + $0x38] sm:$0xf]
        %v264 = vld [vmem:[%s190 + $0x3c] sm:$0xf]
        %v265 = vld [vmem:[%s190 + $0x40] sm:$0xf]
        %v266 = vld [vmem:[%s190 + $0x44] sm:$0xf]
        %v267 = vld [vmem:[%s190 + $0x48] sm:$0xf]
        %v268 = vld [vmem:[%s190 + $0x4c] sm:$0xf]
        %v269 = vld [vmem:[%s190 + $0x50] sm:$0xf]
        %v270 = vld [vmem:[%s190 + $0x54] sm:$0xf]
        %v271 = vld [vmem:[%s190 + $0x58] sm:$0xf]
        %v272 = vld [vmem:[%s190 + $0x5c] sm:$0xf]
        %v273 = vld [vmem:[%s190 + $0x60] sm:$0xf]
        %v274 = vld [vmem:[%s190 + $0x64] sm:$0xf]
        %v275 = vld [vmem:[%s190 + $0x68] sm:$0xf]
        %v276 = vld [vmem:[%s190 + $0x6c] sm:$0xf]
        %v277 = vld [vmem:[%s190 + $0x70] sm:$0xf]
        %v278 = vld [vmem:[%s190 + $0x74] sm:$0xf]
        %v279 = vld [vmem:[%s190 + $0x78] sm:$0xf]
        %v280 = vld [vmem:[%s190 + $0x7c] sm:$0xf]
        %v281 = vld [vmem:[%s190 + $0x80] sm:$0xf]
        %v282 = vld [vmem:[%s190 + $0x84] sm:$0xf]
        %v283 = vld [vmem:[%s190 + $0x88] sm:$0xf]
        %v284 = vld [vmem:[%s190 + $0x8c] sm:$0xf]
        %v285 = vld [vmem:[%s190 + $0x90] sm:$0xf]
        %v286 = vld [vmem:[%s190 + $0x94] sm:$0xf]
        %v287 = vld [vmem:[%s190 + $0x98] sm:$0xf]
        %v288 = vld [vmem:[%s190 + $0x9c] sm:$0xf]
        %v289 = vld [vmem:[%s190 + $0xa0] sm:$0xf]
        %v290 = vld [vmem:[%s190 + $0xa4] sm:$0xf]
        %v291 = vld [vmem:[%s190 + $0xa8] sm:$0xf]
        %v292 = vld [vmem:[%s190 + $0xac] sm:$0xf]
        %v293 = vld [vmem:[%s190 + $0xb0] sm:$0xf]
        %v294 = vld [vmem:[%s190 + $0xb4] sm:$0xf]
        %v295 = vld [vmem:[%s190 + $0xb8] sm:$0xf]
        %v296 = vld [vmem:[%s190 + $0xbc] sm:$0xf]
        %v297 = vld [vmem:[%s190 + $0xc0] sm:$0xf]
        %v298 = vld [vmem:[%s190 + $0xc4] sm:$0xf]
        %v299 = vld [vmem:[%s190 + $0xc8] sm:$0xf]
        %v300 = vld [vmem:[%s190 + $0xcc] sm:$0xf]
        %v301 = vld [vmem:[%s190 + $0xd0] sm:$0xf]
        %v302 = vld [vmem:[%s190 + $0xd4] sm:$0xf]
        %v303 = vld [vmem:[%s190 + $0xd8] sm:$0xf]
        %v304 = vld [vmem:[%s190 + $0xdc] sm:$0xf]
        %v305 = vld [vmem:[%s190 + $0xe0] sm:$0xf]
        %v306 = vld [vmem:[%s190 + $0xe4] sm:$0xf]
        %v307 = vld [vmem:[%s190 + $0xe8] sm:$0xf]
        %v308 = vld [vmem:[%s190 + $0xec] sm:$0xf]
        %v309 = vld [vmem:[%s190 + $0xf0] sm:$0xf]
        %v310 = vld [vmem:[%s190 + $0xf4] sm:$0xf]
        %v311 = vld [vmem:[%s190 + $0xf8] sm:$0xf]
        %v312 = vld [vmem:[%s190 + $0xfc] sm:$0xf]
        %v313 = vld [vmem:[%s190 + $0x100] sm:$0xf]
        %v314 = vld [vmem:[%s190 + $0x104] sm:$0xf]
        %v315 = vld [vmem:[%s190 + $0x108] sm:$0xf]
        %v316 = vld [vmem:[%s190 + $0x10c] sm:$0xf]
        %v317 = vld [vmem:[%s190 + $0x110] sm:$0xf]
        %v318 = vld [vmem:[%s190 + $0x114] sm:$0xf]
        %v319 = vld [vmem:[%s190 + $0x118] sm:$0xf]
        %v320 = vld [vmem:[%s190 + $0x11c] sm:$0xf]
        %v321 = vld [vmem:[%s190 + $0x120] sm:$0xf]
        %v322 = vld [vmem:[%s190 + $0x124] sm:$0xf]
        %v323 = vld [vmem:[%s190 + $0x128] sm:$0xf]
        %v324 = vld [vmem:[%s190 + $0x12c] sm:$0xf]
        %v325 = vld [vmem:[%s190 + $0x130] sm:$0xf]
        %v326 = vld [vmem:[%s190 + $0x134] sm:$0xf]
        %v327 = vld [vmem:[%s190 + $0x138] sm:$0xf]
        %v328 = vld [vmem:[%s190 + $0x13c] sm:$0xf]
        %v329 = vld [vmem:[%s190 + $0x140] sm:$0xf]
        %v330 = vld [vmem:[%s190 + $0x144] sm:$0xf]
        %v331 = vld [vmem:[%s190 + $0x148] sm:$0xf]
        %v332 = vld [vmem:[%s190 + $0x14c] sm:$0xf]
        %v333 = vld [vmem:[%s190 + $0x150] sm:$0xf]
        %v334 = vld [vmem:[%s190 + $0x154] sm:$0xf]
        %v335 = vld [vmem:[%s190 + $0x158] sm:$0xf]
        %v336 = vld [vmem:[%s190 + $0x15c] sm:$0xf]
        %v337 = vld [vmem:[%s190 + $0x160] sm:$0xf]
        %v338 = vld [vmem:[%s190 + $0x164] sm:$0xf]
        %v339 = vld [vmem:[%s190 + $0x168] sm:$0xf]
        %v340 = vld [vmem:[%s190 + $0x16c] sm:$0xf]
        %v341 = vld [vmem:[%s190 + $0x170] sm:$0xf]
        %v342 = vld [vmem:[%s190 + $0x174] sm:$0xf]
        %v343 = vld [vmem:[%s190 + $0x178] sm:$0xf]
        %v344 = vld [vmem:[%s190 + $0x17c] sm:$0xf]
        %v345 = vld [vmem:[%s190 + $0x180] sm:$0xf]
        %v346 = vld [vmem:[%s190 + $0x184] sm:$0xf]
        %v347 = vld [vmem:[%s190 + $0x188] sm:$0xf]
        %v348 = vld [vmem:[%s190 + $0x18c] sm:$0xf]
        %v349 = vld [vmem:[%s190 + $0x190] sm:$0xf]
        %v350 = vld [vmem:[%s190 + $0x194] sm:$0xf]
        %v351 = vld [vmem:[%s190 + $0x198] sm:$0xf]
        %v352 = vld [vmem:[%s190 + $0x19c] sm:$0xf]
        %v353 = vld [vmem:[%s190 + $0x1a0] sm:$0xf]
        %v354 = vld [vmem:[%s190 + $0x1a4] sm:$0xf]
        %v355 = vld [vmem:[%s190 + $0x1a8] sm:$0xf]
        %v356 = vld [vmem:[%s190 + $0x1ac] sm:$0xf]
        %v357 = vld [vmem:[%s190 + $0x1b0] sm:$0xf]
        %v358 = vld [vmem:[%s190 + $0x1b4] sm:$0xf]
        %v359 = vld [vmem:[%s190 + $0x1b8] sm:$0xf]
        %v360 = vld [vmem:[%s190 + $0x1bc] sm:$0xf]
        %v361 = vld [vmem:[%s190 + $0x1c0] sm:$0xf]
        %v362 = vld [vmem:[%s190 + $0x1c4] sm:$0xf]
        %v363 = vld [vmem:[%s190 + $0x1c8] sm:$0xf]
        %v364 = vld [vmem:[%s190 + $0x1cc] sm:$0xf]
        %v365 = vld [vmem:[%s190 + $0x1d0] sm:$0xf]
        %v366 = vld [vmem:[%s190 + $0x1d4] sm:$0xf]
        %v367 = vld [vmem:[%s190 + $0x1d8] sm:$0xf]
        %v368 = vld [vmem:[%s190 + $0x1dc] sm:$0xf]
        %v369 = vld [vmem:[%s190 + $0x1e0] sm:$0xf]
        %v370 = vld [vmem:[%s190 + $0x1e4] sm:$0xf]
        %v371 = vld [vmem:[%s190 + $0x1e8] sm:$0xf]
        %v372 = vld [vmem:[%s190 + $0x1ec] sm:$0xf]
        %v373 = vld [vmem:[%s190 + $0x1f0] sm:$0xf]
        %v374 = vld [vmem:[%s190 + $0x1f4] sm:$0xf]
        %v375 = vld [vmem:[%s190 + $0x1f8] sm:$0xf]
        %v376 = vld [vmem:[%s190 + $0x1fc] sm:$0xf]
        %v377 = vld [vmem:[%s181 + $0x100] sm:$0xff]
        %v378 = vld [vmem:[%s181 + $0x108] sm:$0xff]
        %v379 = vld [vmem:[%s181 + $0x110] sm:$0xff]
        %v380 = vld [vmem:[%s181 + $0x118] sm:$0xff]
        %s381 = scalar_lea.vmem %s190, 512 [#allocation5]
        %v382 = vld [vmem:[%s381] sm:$0xf]
        %v383 = vld [vmem:[%s381 + $0x4] sm:$0xf]
        %v384 = vld [vmem:[%s381 + $0x8] sm:$0xf]
        %v385 = vld [vmem:[%s381 + $0xc] sm:$0xf]
        %v386 = vld [vmem:[%s381 + $0x10] sm:$0xf]
        %v387 = vld [vmem:[%s381 + $0x14] sm:$0xf]
        %v388 = vld [vmem:[%s381 + $0x18] sm:$0xf]
        %v389 = vld [vmem:[%s381 + $0x1c] sm:$0xf]
        %v390 = vld [vmem:[%s381 + $0x20] sm:$0xf]
        %v391 = vld [vmem:[%s381 + $0x24] sm:$0xf]
        %v392 = vld [vmem:[%s381 + $0x28] sm:$0xf]
        %v393 = vld [vmem:[%s381 + $0x2c] sm:$0xf]
        %v394 = vld [vmem:[%s381 + $0x30] sm:$0xf]
        %v395 = vld [vmem:[%s381 + $0x34] sm:$0xf]
        %v396 = vld [vmem:[%s381 + $0x38] sm:$0xf]
        %v397 = vld [vmem:[%s381 + $0x3c] sm:$0xf]
        %v398 = vld [vmem:[%s381 + $0x40] sm:$0xf]
        %v399 = vld [vmem:[%s381 + $0x44] sm:$0xf]
        %v400 = vld [vmem:[%s381 + $0x48] sm:$0xf]
        %v401 = vld [vmem:[%s381 + $0x4c] sm:$0xf]
        %v402 = vld [vmem:[%s381 + $0x50] sm:$0xf]
        %v403 = vld [vmem:[%s381 + $0x54] sm:$0xf]
        %v404 = vld [vmem:[%s381 + $0x58] sm:$0xf]
        %v405 = vld [vmem:[%s381 + $0x5c] sm:$0xf]
        %v406 = vld [vmem:[%s381 + $0x60] sm:$0xf]
        %v407 = vld [vmem:[%s381 + $0x64] sm:$0xf]
        %v408 = vld [vmem:[%s381 + $0x68] sm:$0xf]
        %v409 = vld [vmem:[%s381 + $0x6c] sm:$0xf]
        %v410 = vld [vmem:[%s381 + $0x70] sm:$0xf]
        %v411 = vld [vmem:[%s381 + $0x74] sm:$0xf]
        %v412 = vld [vmem:[%s381 + $0x78] sm:$0xf]
        %v413 = vld [vmem:[%s381 + $0x7c] sm:$0xf]
        %v414 = vld [vmem:[%s381 + $0x80] sm:$0xf]
        %v415 = vld [vmem:[%s381 + $0x84] sm:$0xf]
        %v416 = vld [vmem:[%s381 + $0x88] sm:$0xf]
        %v417 = vld [vmem:[%s381 + $0x8c] sm:$0xf]
        %v418 = vld [vmem:[%s381 + $0x90] sm:$0xf]
        %v419 = vld [vmem:[%s381 + $0x94] sm:$0xf]
        %v420 = vld [vmem:[%s381 + $0x98] sm:$0xf]
        %v421 = vld [vmem:[%s381 + $0x9c] sm:$0xf]
        %v422 = vld [vmem:[%s381 + $0xa0] sm:$0xf]
        %v423 = vld [vmem:[%s381 + $0xa4] sm:$0xf]
        %v424 = vld [vmem:[%s381 + $0xa8] sm:$0xf]
        %v425 = vld [vmem:[%s381 + $0xac] sm:$0xf]
        %v426 = vld [vmem:[%s381 + $0xb0] sm:$0xf]
        %v427 = vld [vmem:[%s381 + $0xb4] sm:$0xf]
        %v428 = vld [vmem:[%s381 + $0xb8] sm:$0xf]
        %v429 = vld [vmem:[%s381 + $0xbc] sm:$0xf]
        %v430 = vld [vmem:[%s381 + $0xc0] sm:$0xf]
        %v431 = vld [vmem:[%s381 + $0xc4] sm:$0xf]
        %v432 = vld [vmem:[%s381 + $0xc8] sm:$0xf]
        %v433 = vld [vmem:[%s381 + $0xcc] sm:$0xf]
        %v434 = vld [vmem:[%s381 + $0xd0] sm:$0xf]
        %v435 = vld [vmem:[%s381 + $0xd4] sm:$0xf]
        %v436 = vld [vmem:[%s381 + $0xd8] sm:$0xf]
        %v437 = vld [vmem:[%s381 + $0xdc] sm:$0xf]
        %v438 = vld [vmem:[%s381 + $0xe0] sm:$0xf]
        %v439 = vld [vmem:[%s381 + $0xe4] sm:$0xf]
        %v440 = vld [vmem:[%s381 + $0xe8] sm:$0xf]
        %v441 = vld [vmem:[%s381 + $0xec] sm:$0xf]
        %v442 = vld [vmem:[%s381 + $0xf0] sm:$0xf]
        %v443 = vld [vmem:[%s381 + $0xf4] sm:$0xf]
        %v444 = vld [vmem:[%s381 + $0xf8] sm:$0xf]
        %v445 = vld [vmem:[%s381 + $0xfc] sm:$0xf]
        %v446 = vld [vmem:[%s381 + $0x100] sm:$0xf]
        %v447 = vld [vmem:[%s381 + $0x104] sm:$0xf]
        %v448 = vld [vmem:[%s381 + $0x108] sm:$0xf]
        %v449 = vld [vmem:[%s381 + $0x10c] sm:$0xf]
        %v450 = vld [vmem:[%s381 + $0x110] sm:$0xf]
        %v451 = vld [vmem:[%s381 + $0x114] sm:$0xf]
        %v452 = vld [vmem:[%s381 + $0x118] sm:$0xf]
        %v453 = vld [vmem:[%s381 + $0x11c] sm:$0xf]
        %v454 = vld [vmem:[%s381 + $0x120] sm:$0xf]
        %v455 = vld [vmem:[%s381 + $0x124] sm:$0xf]
        %v456 = vld [vmem:[%s381 + $0x128] sm:$0xf]
        %v457 = vld [vmem:[%s381 + $0x12c] sm:$0xf]
        %v458 = vld [vmem:[%s381 + $0x130] sm:$0xf]
        %v459 = vld [vmem:[%s381 + $0x134] sm:$0xf]
        %v460 = vld [vmem:[%s381 + $0x138] sm:$0xf]
        %v461 = vld [vmem:[%s381 + $0x13c] sm:$0xf]
        %v462 = vld [vmem:[%s381 + $0x140] sm:$0xf]
        %v463 = vld [vmem:[%s381 + $0x144] sm:$0xf]
        %v464 = vld [vmem:[%s381 + $0x148] sm:$0xf]
        %v465 = vld [vmem:[%s381 + $0x14c] sm:$0xf]
        %v466 = vld [vmem:[%s381 + $0x150] sm:$0xf]
        %v467 = vld [vmem:[%s381 + $0x154] sm:$0xf]
        %v468 = vld [vmem:[%s381 + $0x158] sm:$0xf]
        %v469 = vld [vmem:[%s381 + $0x15c] sm:$0xf]
        %v470 = vld [vmem:[%s381 + $0x160] sm:$0xf]
        %v471 = vld [vmem:[%s381 + $0x164] sm:$0xf]
        %v472 = vld [vmem:[%s381 + $0x168] sm:$0xf]
        %v473 = vld [vmem:[%s381 + $0x16c] sm:$0xf]
        %v474 = vld [vmem:[%s381 + $0x170] sm:$0xf]
        %v475 = vld [vmem:[%s381 + $0x174] sm:$0xf]
        %v476 = vld [vmem:[%s381 + $0x178] sm:$0xf]
        %v477 = vld [vmem:[%s381 + $0x17c] sm:$0xf]
        %v478 = vld [vmem:[%s381 + $0x180] sm:$0xf]
        %v479 = vld [vmem:[%s381 + $0x184] sm:$0xf]
        %v480 = vld [vmem:[%s381 + $0x188] sm:$0xf]
        %v481 = vld [vmem:[%s381 + $0x18c] sm:$0xf]
        %v482 = vld [vmem:[%s381 + $0x190] sm:$0xf]
        %v483 = vld [vmem:[%s381 + $0x194] sm:$0xf]
        %v484 = vld [vmem:[%s381 + $0x198] sm:$0xf]
        %v485 = vld [vmem:[%s381 + $0x19c] sm:$0xf]
        %v486 = vld [vmem:[%s381 + $0x1a0] sm:$0xf]
        %v487 = vld [vmem:[%s381 + $0x1a4] sm:$0xf]
        %v488 = vld [vmem:[%s381 + $0x1a8] sm:$0xf]
        %v489 = vld [vmem:[%s381 + $0x1ac] sm:$0xf]
        %v490 = vld [vmem:[%s381 + $0x1b0] sm:$0xf]
        %v491 = vld [vmem:[%s381 + $0x1b4] sm:$0xf]
        %v492 = vld [vmem:[%s381 + $0x1b8] sm:$0xf]
        %v493 = vld [vmem:[%s381 + $0x1bc] sm:$0xf]
        %v494 = vld [vmem:[%s381 + $0x1c0] sm:$0xf]
        %v495 = vld [vmem:[%s381 + $0x1c4] sm:$0xf]
        %v496 = vld [vmem:[%s381 + $0x1c8] sm:$0xf]
        %v497 = vld [vmem:[%s381 + $0x1cc] sm:$0xf]
        %v498 = vld [vmem:[%s381 + $0x1d0] sm:$0xf]
        %v499 = vld [vmem:[%s381 + $0x1d4] sm:$0xf]
        %v500 = vld [vmem:[%s381 + $0x1d8] sm:$0xf]
        %v501 = vld [vmem:[%s381 + $0x1dc] sm:$0xf]
        %v502 = vld [vmem:[%s381 + $0x1e0] sm:$0xf]
        %v503 = vld [vmem:[%s381 + $0x1e4] sm:$0xf]
        %v504 = vld [vmem:[%s381 + $0x1e8] sm:$0xf]
        %v505 = vld [vmem:[%s381 + $0x1ec] sm:$0xf]
        %v506 = vld [vmem:[%s381 + $0x1f0] sm:$0xf]
        %v507 = vld [vmem:[%s381 + $0x1f4] sm:$0xf]
        %v508 = vld [vmem:[%s381 + $0x1f8] sm:$0xf]
        %v509 = vld [vmem:[%s381 + $0x1fc] sm:$0xf]
        %v542 = vunpack.c.l.b16 %v221
        %v543 = vunpack.c.h.b16 %v221
        %v544 = vunpack.c.l.b16 %v222
        %v545 = vunpack.c.h.b16 %v222
        %v546 = vunpack.c.l.b16 %v223
        %v547 = vunpack.c.h.b16 %v223
        %v548 = vunpack.c.l.b16 %v224
        %v549 = vunpack.c.h.b16 %v224
        %v550 = vunpack.c.l.b16 %v225
        %v551 = vunpack.c.h.b16 %v225
        %v552 = vunpack.c.l.b16 %v226
        %v553 = vunpack.c.h.b16 %v226
        %v554 = vunpack.c.l.b16 %v227
        %v555 = vunpack.c.h.b16 %v227
        %v556 = vunpack.c.l.b16 %v228
        %v557 = vunpack.c.h.b16 %v228
        %v558 = vunpack.c.l.b16 %v229
        %v559 = vunpack.c.h.b16 %v229
        %v560 = vunpack.c.l.b16 %v230
        %v561 = vunpack.c.h.b16 %v230
        %v562 = vunpack.c.l.b16 %v231
        %v563 = vunpack.c.h.b16 %v231
        %v564 = vunpack.c.l.b16 %v232
        %v565 = vunpack.c.h.b16 %v232
        %v566 = vunpack.c.l.b16 %v233
        %v567 = vunpack.c.h.b16 %v233
        %v568 = vunpack.c.l.b16 %v234
        %v569 = vunpack.c.h.b16 %v234
        %v570 = vunpack.c.l.b16 %v235
        %v571 = vunpack.c.h.b16 %v235
        %v572 = vunpack.c.l.b16 %v236
        %v573 = vunpack.c.h.b16 %v236
        %v574 = vunpack.c.l.b16 %v237
        %v575 = vunpack.c.h.b16 %v237
        %v576 = vunpack.c.l.b16 %v238
        %v577 = vunpack.c.h.b16 %v238
        %v578 = vunpack.c.l.b16 %v239
        %v579 = vunpack.c.h.b16 %v239
        %v580 = vunpack.c.l.b16 %v240
        %v581 = vunpack.c.h.b16 %v240
        %v582 = vunpack.c.l.b16 %v241
        %v583 = vunpack.c.h.b16 %v241
        %v584 = vunpack.c.l.b16 %v242
        %v585 = vunpack.c.h.b16 %v242
        %v586 = vunpack.c.l.b16 %v243
        %v587 = vunpack.c.h.b16 %v243
        %v588 = vunpack.c.l.b16 %v244
        %v589 = vunpack.c.h.b16 %v244
        %v590 = vunpack.c.l.b16 %v245
        %v591 = vunpack.c.h.b16 %v245
        %v592 = vunpack.c.l.b16 %v246
        %v593 = vunpack.c.h.b16 %v246
        %v594 = vunpack.c.l.b16 %v247
        %v595 = vunpack.c.h.b16 %v247
        %v596 = vunpack.c.l.b16 %v248
        %v597 = vunpack.c.h.b16 %v248
        %v598 = vunpack.c.l.b16 %v377
        %v599 = vunpack.c.h.b16 %v377
        %v600 = vunpack.c.l.b16 %v378
        %v601 = vunpack.c.h.b16 %v378
        %v602 = vunpack.c.l.b16 %v379
        %v603 = vunpack.c.h.b16 %v379
        %v604 = vunpack.c.l.b16 %v380
        %v605 = vunpack.c.h.b16 %v380
        %v606 = vpack.c.b16 %v550, %v542
        %v607 = vpack.c.b16 %v551, %v543
        %v608 = vpack.c.b16 %v552, %v544
        %v609 = vpack.c.b16 %v553, %v545
        %v610 = vpack.c.b16 %v554, %v546
        %v611 = vpack.c.b16 %v555, %v547
        %v612 = vpack.c.b16 %v556, %v548
        %v613 = vpack.c.b16 %v557, %v549
        %v614 = vpack.c.b16 %v566, %v558
        %v615 = vpack.c.b16 %v567, %v559
        %v616 = vpack.c.b16 %v568, %v560
        %v617 = vpack.c.b16 %v569, %v561
        %v618 = vpack.c.b16 %v570, %v562
        %v619 = vpack.c.b16 %v571, %v563
        %v620 = vpack.c.b16 %v572, %v564
        %v621 = vpack.c.b16 %v573, %v565
        %v622 = vpack.c.b16 %v582, %v574
        %v623 = vpack.c.b16 %v583, %v575
        %v624 = vpack.c.b16 %v584, %v576
        %v625 = vpack.c.b16 %v585, %v577
        %v626 = vpack.c.b16 %v586, %v578
        %v627 = vpack.c.b16 %v587, %v579
        %v628 = vpack.c.b16 %v588, %v580
        %v629 = vpack.c.b16 %v589, %v581
        %v630 = vpack.c.b16 %v598, %v590
        %v631 = vpack.c.b16 %v599, %v591
        %v632 = vpack.c.b16 %v600, %v592
        %v633 = vpack.c.b16 %v601, %v593
        %v634 = vpack.c.b16 %v602, %v594
        %v635 = vpack.c.b16 %v603, %v595
        %v636 = vpack.c.b16 %v604, %v596
        %v637 = vpack.c.b16 %v605, %v597
        %v798 = vunpack.c.l.b16 %v382
        %v799 = vunpack.c.l.b16 %v383
        %v800 = vunpack.c.l.b16 %v384
        %v801 = vunpack.c.l.b16 %v385
        %v802 = vunpack.c.l.b16 %v386
        %v803 = vunpack.c.l.b16 %v387
        %v804 = vunpack.c.l.b16 %v388
        %v805 = vunpack.c.l.b16 %v389
        %v806 = vunpack.c.l.b16 %v390
        %v807 = vunpack.c.l.b16 %v391
        %v808 = vunpack.c.l.b16 %v392
        %v809 = vunpack.c.l.b16 %v393
        %v810 = vunpack.c.l.b16 %v394
        %v811 = vunpack.c.l.b16 %v395
        %v812 = vunpack.c.l.b16 %v396
        %v813 = vunpack.c.l.b16 %v397
        %v814 = vunpack.c.l.b16 %v398
        %v815 = vunpack.c.l.b16 %v399
        %v816 = vunpack.c.l.b16 %v400
        %v817 = vunpack.c.l.b16 %v401
        %v818 = vunpack.c.l.b16 %v402
        %v819 = vunpack.c.l.b16 %v403
        %v820 = vunpack.c.l.b16 %v404
        %v821 = vunpack.c.l.b16 %v405
        %v822 = vunpack.c.l.b16 %v406
        %v823 = vunpack.c.l.b16 %v407
        %v824 = vunpack.c.l.b16 %v408
        %v825 = vunpack.c.l.b16 %v409
        %v826 = vunpack.c.l.b16 %v410
        %v827 = vunpack.c.l.b16 %v411
        %v828 = vunpack.c.l.b16 %v412
        %v829 = vunpack.c.l.b16 %v413
        %v830 = vunpack.c.l.b16 %v414
        %v831 = vunpack.c.l.b16 %v415
        %v832 = vunpack.c.l.b16 %v416
        %v833 = vunpack.c.l.b16 %v417
        %v834 = vunpack.c.l.b16 %v418
        %v835 = vunpack.c.l.b16 %v419
        %v836 = vunpack.c.l.b16 %v420
        %v837 = vunpack.c.l.b16 %v421
        %v838 = vunpack.c.l.b16 %v422
        %v839 = vunpack.c.l.b16 %v423
        %v840 = vunpack.c.l.b16 %v424
        %v841 = vunpack.c.l.b16 %v425
        %v842 = vunpack.c.l.b16 %v426
        %v843 = vunpack.c.l.b16 %v427
        %v844 = vunpack.c.l.b16 %v428
        %v845 = vunpack.c.l.b16 %v429
        %v846 = vunpack.c.l.b16 %v430
        %v847 = vunpack.c.l.b16 %v431
        %v848 = vunpack.c.l.b16 %v432
        %v849 = vunpack.c.l.b16 %v433
        %v850 = vunpack.c.l.b16 %v434
        %v851 = vunpack.c.l.b16 %v435
        %v852 = vunpack.c.l.b16 %v436
        %v853 = vunpack.c.l.b16 %v437
        %v854 = vunpack.c.l.b16 %v438
        %v855 = vunpack.c.l.b16 %v439
        %v856 = vunpack.c.l.b16 %v440
        %v857 = vunpack.c.l.b16 %v441
        %v858 = vunpack.c.l.b16 %v442
        %v859 = vunpack.c.l.b16 %v443
        %v860 = vunpack.c.l.b16 %v444
        %v861 = vunpack.c.l.b16 %v445
        %v862 = vunpack.c.l.b16 %v446
        %v863 = vunpack.c.l.b16 %v447
        %v864 = vunpack.c.l.b16 %v448
        %v865 = vunpack.c.l.b16 %v449
        %v866 = vunpack.c.l.b16 %v450
        %v867 = vunpack.c.l.b16 %v451
        %v868 = vunpack.c.l.b16 %v452
        %v869 = vunpack.c.l.b16 %v453
        %v870 = vunpack.c.l.b16 %v454
        %v871 = vunpack.c.l.b16 %v455
        %v872 = vunpack.c.l.b16 %v456
        %v873 = vunpack.c.l.b16 %v457
        %v874 = vunpack.c.l.b16 %v458
        %v875 = vunpack.c.l.b16 %v459
        %v876 = vunpack.c.l.b16 %v460
        %v877 = vunpack.c.l.b16 %v461
        %v878 = vunpack.c.l.b16 %v462
        %v879 = vunpack.c.l.b16 %v463
        %v880 = vunpack.c.l.b16 %v464
        %v881 = vunpack.c.l.b16 %v465
        %v882 = vunpack.c.l.b16 %v466
        %v883 = vunpack.c.l.b16 %v467
        %v884 = vunpack.c.l.b16 %v468
        %v885 = vunpack.c.l.b16 %v469
        %v886 = vunpack.c.l.b16 %v470
        %v887 = vunpack.c.l.b16 %v471
        %v888 = vunpack.c.l.b16 %v472
        %v889 = vunpack.c.l.b16 %v473
        %v890 = vunpack.c.l.b16 %v474
        %v891 = vunpack.c.l.b16 %v475
        %v892 = vunpack.c.l.b16 %v476
        %v893 = vunpack.c.l.b16 %v477
        %v894 = vunpack.c.l.b16 %v478
        %v895 = vunpack.c.l.b16 %v479
        %v896 = vunpack.c.l.b16 %v480
        %v897 = vunpack.c.l.b16 %v481
        %v898 = vunpack.c.l.b16 %v482
        %v899 = vunpack.c.l.b16 %v483
        %v900 = vunpack.c.l.b16 %v484
        %v901 = vunpack.c.l.b16 %v485
        %v902 = vunpack.c.l.b16 %v486
        %v903 = vunpack.c.l.b16 %v487
        %v904 = vunpack.c.l.b16 %v488
        %v905 = vunpack.c.l.b16 %v489
        %v906 = vunpack.c.l.b16 %v490
        %v907 = vunpack.c.l.b16 %v491
        %v908 = vunpack.c.l.b16 %v492
        %v909 = vunpack.c.l.b16 %v493
        %v910 = vunpack.c.l.b16 %v494
        %v911 = vunpack.c.l.b16 %v495
        %v912 = vunpack.c.l.b16 %v496
        %v913 = vunpack.c.l.b16 %v497
        %v914 = vunpack.c.l.b16 %v498
        %v915 = vunpack.c.l.b16 %v499
        %v916 = vunpack.c.l.b16 %v500
        %v917 = vunpack.c.l.b16 %v501
        %v918 = vunpack.c.l.b16 %v502
        %v919 = vunpack.c.l.b16 %v503
        %v920 = vunpack.c.l.b16 %v504
        %v921 = vunpack.c.l.b16 %v505
        %v922 = vunpack.c.l.b16 %v506
        %v923 = vunpack.c.l.b16 %v507
        %v924 = vunpack.c.l.b16 %v508
        %v925 = vunpack.c.l.b16 %v509
        %v926 = vpack.c.b16 %v799, %v798
        %v927 = vpack.c.b16 %v801, %v800
        %v928 = vpack.c.b16 %v803, %v802
        %v929 = vpack.c.b16 %v805, %v804
        %v930 = vpack.c.b16 %v807, %v806
        %v931 = vpack.c.b16 %v809, %v808
        %v932 = vpack.c.b16 %v811, %v810
        %v933 = vpack.c.b16 %v813, %v812
        %v934 = vpack.c.b16 %v815, %v814
        %v935 = vpack.c.b16 %v817, %v816
        %v936 = vpack.c.b16 %v819, %v818
        %v937 = vpack.c.b16 %v821, %v820
        %v938 = vpack.c.b16 %v823, %v822
        %v939 = vpack.c.b16 %v825, %v824
        %v940 = vpack.c.b16 %v827, %v826
        %v941 = vpack.c.b16 %v829, %v828
        %v942 = vpack.c.b16 %v831, %v830
        %v943 = vpack.c.b16 %v833, %v832
        %v944 = vpack.c.b16 %v835, %v834
        %v945 = vpack.c.b16 %v837, %v836
        %v946 = vpack.c.b16 %v839, %v838
        %v947 = vpack.c.b16 %v841, %v840
        %v948 = vpack.c.b16 %v843, %v842
        %v949 = vpack.c.b16 %v845, %v844
        %v950 = vpack.c.b16 %v847, %v846
        %v951 = vpack.c.b16 %v849, %v848
        %v952 = vpack.c.b16 %v851, %v850
        %v953 = vpack.c.b16 %v853, %v852
        %v954 = vpack.c.b16 %v855, %v854
        %v955 = vpack.c.b16 %v857, %v856
        %v956 = vpack.c.b16 %v859, %v858
        %v957 = vpack.c.b16 %v861, %v860
        %v958 = vpack.c.b16 %v863, %v862
        %v959 = vpack.c.b16 %v865, %v864
        %v960 = vpack.c.b16 %v867, %v866
        %v961 = vpack.c.b16 %v869, %v868
        %v962 = vpack.c.b16 %v871, %v870
        %v963 = vpack.c.b16 %v873, %v872
        %v964 = vpack.c.b16 %v875, %v874
        %v965 = vpack.c.b16 %v877, %v876
        %v966 = vpack.c.b16 %v879, %v878
        %v967 = vpack.c.b16 %v881, %v880
        %v968 = vpack.c.b16 %v883, %v882
        %v969 = vpack.c.b16 %v885, %v884
        %v970 = vpack.c.b16 %v887, %v886
        %v971 = vpack.c.b16 %v889, %v888
        %v972 = vpack.c.b16 %v891, %v890
        %v973 = vpack.c.b16 %v893, %v892
        %v974 = vpack.c.b16 %v895, %v894
        %v975 = vpack.c.b16 %v897, %v896
        %v976 = vpack.c.b16 %v899, %v898
        %v977 = vpack.c.b16 %v901, %v900
        %v978 = vpack.c.b16 %v903, %v902
        %v979 = vpack.c.b16 %v905, %v904
        %v980 = vpack.c.b16 %v907, %v906
        %v981 = vpack.c.b16 %v909, %v908
        %v982 = vpack.c.b16 %v911, %v910
        %v983 = vpack.c.b16 %v913, %v912
        %v984 = vpack.c.b16 %v915, %v914
        %v985 = vpack.c.b16 %v917, %v916
        %v986 = vpack.c.b16 %v919, %v918
        %v987 = vpack.c.b16 %v921, %v920
        %v988 = vpack.c.b16 %v923, %v922
        %v989 = vpack.c.b16 %v925, %v924
        %1054 = vmatprep.subr.bf16.mxu0 0
        %1055 = vmatpush1.bf16.msra.mxu0 %v926
        %1056 = vmatprep.subr.bf16.mxu0 0
        %1057 = vmatpush1.bf16.msra.mxu0 %v927
        %1058 = vmatprep.subr.bf16.mxu0 0
        %1059 = vmatpush1.bf16.msra.mxu0 %v928
        %1060 = vmatprep.subr.bf16.mxu0 0
        %1061 = vmatpush1.bf16.msra.mxu0 %v929
        %1062 = vmatprep.subr.bf16.mxu0 0
        %1063 = vmatpush1.bf16.msra.mxu0 %v930
        %1064 = vmatprep.subr.bf16.mxu0 0
        %1065 = vmatpush1.bf16.msra.mxu0 %v931
        %1066 = vmatprep.subr.bf16.mxu0 0
        %1067 = vmatpush1.bf16.msra.mxu0 %v932
        %1068 = vmatprep.subr.bf16.mxu0 0
        %1069 = vmatpush1.bf16.msra.mxu0 %v933
        %1070 = vmatprep.subr.bf16.mxu0 0
        %1071 = vmatpush1.bf16.msra.mxu0 %v934
        %1072 = vmatprep.subr.bf16.mxu0 0
        %1073 = vmatpush1.bf16.msra.mxu0 %v935
        %1074 = vmatprep.subr.bf16.mxu0 0
        %1075 = vmatpush1.bf16.msra.mxu0 %v936
        %1076 = vmatprep.subr.bf16.mxu0 0
        %1077 = vmatpush1.bf16.msra.mxu0 %v937
        %1078 = vmatprep.subr.bf16.mxu0 0
        %1079 = vmatpush1.bf16.msra.mxu0 %v938
        %1080 = vmatprep.subr.bf16.mxu0 0
        %1081 = vmatpush1.bf16.msra.mxu0 %v939
        %1082 = vmatprep.subr.bf16.mxu0 0
        %1083 = vmatpush1.bf16.msra.mxu0 %v940
        %1084 = vmatprep.subr.bf16.mxu0 0
        %1085 = vmatpush1.bf16.msra.mxu0 %v941
        %1086 = vmatprep.mubr.bf16.mxu0 %v607
        %1087 = vmatmul.mubr.bf16.gmra.mrb[0].mxu0 %v606
        %v1088 = vpop.f32.mrb[0].mxu0
        %v1089 = vadd.f32 0.0, %v1088
        %v1090 = vpop.f32.mrb[0].mxu0
        %v1091 = vpop.f32.mrb[0].mxu0
        %v1092 = vadd.f32 0.0, %v1091
        %v1093 = vpop.f32.mrb[0].mxu0
        %1094 = vmatprep.mubr.bf16.mxu0 %v615
        %1095 = vmatmul.mubr.bf16.gmra.mrb[0].mxu0 %v614
        %v1096 = vpop.f32.mrb[0].mxu0
        %v1097 = vadd.f32 0.0, %v1096
        %v1098 = vpop.f32.mrb[0].mxu0
        %v1099 = vpop.f32.mrb[0].mxu0
        %v1100 = vadd.f32 0.0, %v1099
        %v1101 = vpop.f32.mrb[0].mxu0
        %1102 = vmatprep.mubr.bf16.mxu0 %v623
        %1103 = vmatmul.mubr.bf16.gmra.mrb[0].mxu0 %v622
        %v1104 = vpop.f32.mrb[0].mxu0
        %v1105 = vadd.f32 0.0, %v1104
        %v1106 = vpop.f32.mrb[0].mxu0
        %v1107 = vpop.f32.mrb[0].mxu0
        %v1108 = vadd.f32 0.0, %v1107
        %v1109 = vpop.f32.mrb[0].mxu0
        %1110 = vmatprep.mubr.bf16.mxu0 %v631
        %1111 = vmatmul.mubr.bf16.gmra.mrb[0].mxu0 %v630
        %v1112 = vpop.f32.mrb[0].mxu0
        %v1113 = vadd.f32 0.0, %v1112
        %v1114 = vpop.f32.mrb[0].mxu0
        %v1115 = vpop.f32.mrb[0].mxu0
        %v1116 = vadd.f32 0.0, %v1115
        %v1117 = vpop.f32.mrb[0].mxu0
        %1118 = vdwg.mxu0
        %1119 = vmatprep.subr.bf16.mxu0 0
        %1120 = vmatpush1.bf16.msra.mxu0 %v942
        %1121 = vmatprep.subr.bf16.mxu0 0
        %1122 = vmatpush1.bf16.msra.mxu0 %v943
        %1123 = vmatprep.subr.bf16.mxu0 0
        %1124 = vmatpush1.bf16.msra.mxu0 %v944
        %1125 = vmatprep.subr.bf16.mxu0 0
        %1126 = vmatpush1.bf16.msra.mxu0 %v945
        %1127 = vmatprep.subr.bf16.mxu0 0
        %1128 = vmatpush1.bf16.msra.mxu0 %v946
        %1129 = vmatprep.subr.bf16.mxu0 0
        %1130 = vmatpush1.bf16.msra.mxu0 %v947
        %1131 = vmatprep.subr.bf16.mxu0 0
        %1132 = vmatpush1.bf16.msra.mxu0 %v948
        %1133 = vmatprep.subr.bf16.mxu0 0
        %1134 = vmatpush1.bf16.msra.mxu0 %v949
        %1135 = vmatprep.subr.bf16.mxu0 0
        %1136 = vmatpush1.bf16.msra.mxu0 %v950
        %1137 = vmatprep.subr.bf16.mxu0 0
        %1138 = vmatpush1.bf16.msra.mxu0 %v951
        %1139 = vmatprep.subr.bf16.mxu0 0
        %1140 = vmatpush1.bf16.msra.mxu0 %v952
        %1141 = vmatprep.subr.bf16.mxu0 0
        %1142 = vmatpush1.bf16.msra.mxu0 %v953
        %1143 = vmatprep.subr.bf16.mxu0 0
        %1144 = vmatpush1.bf16.msra.mxu0 %v954
        %1145 = vmatprep.subr.bf16.mxu0 0
        %1146 = vmatpush1.bf16.msra.mxu0 %v955
        %1147 = vmatprep.subr.bf16.mxu0 0
        %1148 = vmatpush1.bf16.msra.mxu0 %v956
        %1149 = vmatprep.subr.bf16.mxu0 0
        %1150 = vmatpush1.bf16.msra.mxu0 %v957
        %1151 = vmatprep.mubr.bf16.mxu0 %v609
        %1152 = vmatmul.mubr.bf16.gmra.mrb[0].mxu0 %v608
        %v1153 = vpop.f32.mrb[0].mxu0
        %v1154 = vadd.f32 %v1089, %v1153
        %v1155 = vpop.f32.mrb[0].mxu0
        %v1156 = vpop.f32.mrb[0].mxu0
        %v1157 = vadd.f32 %v1092, %v1156
        %v1158 = vpop.f32.mrb[0].mxu0
        %1159 = vmatprep.mubr.bf16.mxu0 %v617
        %1160 = vmatmul.mubr.bf16.gmra.mrb[0].mxu0 %v616
        %v1161 = vpop.f32.mrb[0].mxu0
        %v1162 = vadd.f32 %v1097, %v1161
        %v1163 = vpop.f32.mrb[0].mxu0
        %v1164 = vpop.f32.mrb[0].mxu0
        %v1165 = vadd.f32 %v1100, %v1164
        %v1166 = vpop.f32.mrb[0].mxu0
        %1167 = vmatprep.mubr.bf16.mxu0 %v625
        %1168 = vmatmul.mubr.bf16.gmra.mrb[0].mxu0 %v624
        %v1169 = vpop.f32.mrb[0].mxu0
        %v1170 = vadd.f32 %v1105, %v1169
        %v1171 = vpop.f32.mrb[0].mxu0
        %v1172 = vpop.f32.mrb[0].mxu0
        %v1173 = vadd.f32 %v1108, %v1172
        %v1174 = vpop.f32.mrb[0].mxu0
        %1175 = vmatprep.mubr.bf16.mxu0 %v633
        %1176 = vmatmul.mubr.bf16.gmra.mrb[0].mxu0 %v632
        %v1177 = vpop.f32.mrb[0].mxu0
        %v1178 = vadd.f32 %v1113, %v1177
        %v1179 = vpop.f32.mrb[0].mxu0
        %v1180 = vpop.f32.mrb[0].mxu0
        %v1181 = vadd.f32 %v1116, %v1180
        %v1182 = vpop.f32.mrb[0].mxu0
        %1183 = vdwg.mxu0
        %1184 = vmatprep.subr.bf16.mxu0 0
        %1185 = vmatpush1.bf16.msra.mxu0 %v958
        %1186 = vmatprep.subr.bf16.mxu0 0
        %1187 = vmatpush1.bf16.msra.mxu0 %v959
        %1188 = vmatprep.subr.bf16.mxu0 0
        %1189 = vmatpush1.bf16.msra.mxu0 %v960
        %1190 = vmatprep.subr.bf16.mxu0 0
        %1191 = vmatpush1.bf16.msra.mxu0 %v961
        %1192 = vmatprep.subr.bf16.mxu0 0
        %1193 = vmatpush1.bf16.msra.mxu0 %v962
        %1194 = vmatprep.subr.bf16.mxu0 0
        %1195 = vmatpush1.bf16.msra.mxu0 %v963
        %1196 = vmatprep.subr.bf16.mxu0 0
        %1197 = vmatpush1.bf16.msra.mxu0 %v964
        %1198 = vmatprep.subr.bf16.mxu0 0
        %1199 = vmatpush1.bf16.msra.mxu0 %v965
        %1200 = vmatprep.subr.bf16.mxu0 0
        %1201 = vmatpush1.bf16.msra.mxu0 %v966
        %1202 = vmatprep.subr.bf16.mxu0 0
        %1203 = vmatpush1.bf16.msra.mxu0 %v967
        %1204 = vmatprep.subr.bf16.mxu0 0
        %1205 = vmatpush1.bf16.msra.mxu0 %v968
        %1206 = vmatprep.subr.bf16.mxu0 0
        %1207 = vmatpush1.bf16.msra.mxu0 %v969
        %1208 = vmatprep.subr.bf16.mxu0 0
        %1209 = vmatpush1.bf16.msra.mxu0 %v970
        %1210 = vmatprep.subr.bf16.mxu0 0
        %1211 = vmatpush1.bf16.msra.mxu0 %v971
        %1212 = vmatprep.subr.bf16.mxu0 0
        %1213 = vmatpush1.bf16.msra.mxu0 %v972
        %1214 = vmatprep.subr.bf16.mxu0 0
        %1215 = vmatpush1.bf16.msra.mxu0 %v973
        %1216 = vmatprep.mubr.bf16.mxu0 %v611
        %1217 = vmatmul.mubr.bf16.gmra.mrb[0].mxu0 %v610
        %v1218 = vpop.f32.mrb[0].mxu0
        %v1219 = vadd.f32 %v1154, %v1218
        %v1220 = vpop.f32.mrb[0].mxu0
        %v1221 = vpop.f32.mrb[0].mxu0
        %v1222 = vadd.f32 %v1157, %v1221
        %v1223 = vpop.f32.mrb[0].mxu0
        %1224 = vmatprep.mubr.bf16.mxu0 %v619
        %1225 = vmatmul.mubr.bf16.gmra.mrb[0].mxu0 %v618
        %v1226 = vpop.f32.mrb[0].mxu0
        %v1227 = vadd.f32 %v1162, %v1226
        %v1228 = vpop.f32.mrb[0].mxu0
        %v1229 = vpop.f32.mrb[0].mxu0
        %v1230 = vadd.f32 %v1165, %v1229
        %v1231 = vpop.f32.mrb[0].mxu0
        %1232 = vmatprep.mubr.bf16.mxu0 %v627
        %1233 = vmatmul.mubr.bf16.gmra.mrb[0].mxu0 %v626
        %v1234 = vpop.f32.mrb[0].mxu0
        %v1235 = vadd.f32 %v1170, %v1234
        %v1236 = vpop.f32.mrb[0].mxu0
        %v1237 = vpop.f32.mrb[0].mxu0
        %v1238 = vadd.f32 %v1173, %v1237
        %v1239 = vpop.f32.mrb[0].mxu0
        %1240 = vmatprep.mubr.bf16.mxu0 %v635
        %1241 = vmatmul.mubr.bf16.gmra.mrb[0].mxu0 %v634
        %v1242 = vpop.f32.mrb[0].mxu0
        %v1243 = vadd.f32 %v1178, %v1242
        %v1244 = vpop.f32.mrb[0].mxu0
        %v1245 = vpop.f32.mrb[0].mxu0
        %v1246 = vadd.f32 %v1181, %v1245
        %v1247 = vpop.f32.mrb[0].mxu0
        %1248 = vdwg.mxu0
        %1249 = vmatprep.subr.bf16.mxu0 0
        %1250 = vmatpush1.bf16.msra.mxu0 %v974
        %1251 = vmatprep.subr.bf16.mxu0 0
        %1252 = vmatpush1.bf16.msra.mxu0 %v975
        %1253 = vmatprep.subr.bf16.mxu0 0
        %1254 = vmatpush1.bf16.msra.mxu0 %v976
        %1255 = vmatprep.subr.bf16.mxu0 0
        %1256 = vmatpush1.bf16.msra.mxu0 %v977
        %1257 = vmatprep.subr.bf16.mxu0 0
        %1258 = vmatpush1.bf16.msra.mxu0 %v978
        %1259 = vmatprep.subr.bf16.mxu0 0
        %1260 = vmatpush1.bf16.msra.mxu0 %v979
        %1261 = vmatprep.subr.bf16.mxu0 0
        %1262 = vmatpush1.bf16.msra.mxu0 %v980
        %1263 = vmatprep.subr.bf16.mxu0 0
        %1264 = vmatpush1.bf16.msra.mxu0 %v981
        %1265 = vmatprep.subr.bf16.mxu0 0
        %1266 = vmatpush1.bf16.msra.mxu0 %v982
        %1267 = vmatprep.subr.bf16.mxu0 0
        %1268 = vmatpush1.bf16.msra.mxu0 %v983
        %1269 = vmatprep.subr.bf16.mxu0 0
        %1270 = vmatpush1.bf16.msra.mxu0 %v984
        %1271 = vmatprep.subr.bf16.mxu0 0
        %1272 = vmatpush1.bf16.msra.mxu0 %v985
        %1273 = vmatprep.subr.bf16.mxu0 0
        %1274 = vmatpush1.bf16.msra.mxu0 %v986
        %1275 = vmatprep.subr.bf16.mxu0 0
        %1276 = vmatpush1.bf16.msra.mxu0 %v987
        %1277 = vmatprep.subr.bf16.mxu0 0
        %1278 = vmatpush1.bf16.msra.mxu0 %v988
        %1279 = vmatprep.subr.bf16.mxu0 0
        %1280 = vmatpush1.bf16.msra.mxu0 %v989
        %1281 = vmatprep.mubr.bf16.mxu0 %v613
        %1282 = vmatmul.mubr.bf16.gmra.mrb[0].mxu0 %v612
        %v1283 = vpop.f32.mrb[0].mxu0
        %v1284 = vadd.f32 %v1219, %v1283
        %v1285 = vpop.f32.mrb[0].mxu0
        %v1286 = vpop.f32.mrb[0].mxu0
        %v1287 = vadd.f32 %v1222, %v1286
        %v1288 = vpop.f32.mrb[0].mxu0
        %1289 = vmatprep.mubr.bf16.mxu0 %v621
        %1290 = vmatmul.mubr.bf16.gmra.mrb[0].mxu0 %v620
        %v1291 = vpop.f32.mrb[0].mxu0
        %v1292 = vadd.f32 %v1227, %v1291
        %v1293 = vpop.f32.mrb[0].mxu0
        %v1294 = vpop.f32.mrb[0].mxu0
        %v1295 = vadd.f32 %v1230, %v1294
        %v1296 = vpop.f32.mrb[0].mxu0
        %1297 = vmatprep.mubr.bf16.mxu0 %v629
        %1298 = vmatmul.mubr.bf16.gmra.mrb[0].mxu0 %v628
        %v1299 = vpop.f32.mrb[0].mxu0
        %v1300 = vadd.f32 %v1235, %v1299
        %v1301 = vpop.f32.mrb[0].mxu0
        %v1302 = vpop.f32.mrb[0].mxu0
        %v1303 = vadd.f32 %v1238, %v1302
        %v1304 = vpop.f32.mrb[0].mxu0
        %1305 = vmatprep.mubr.bf16.mxu0 %v637
        %1306 = vmatmul.mubr.bf16.gmra.mrb[0].mxu0 %v636
        %v1307 = vpop.f32.mrb[0].mxu0
        %v1308 = vadd.f32 %v1243, %v1307
        %v1309 = vpop.f32.mrb[0].mxu0
        %v1310 = vpop.f32.mrb[0].mxu0
        %v1311 = vadd.f32 %v1246, %v1310
        %v1312 = vpop.f32.mrb[0].mxu0
        %1313 = vdwg.mxu0
        %v1318 = vunpack.c.l.b16 %v217
        %v1319 = vunpack.c.h.b16 %v217
        %v1320 = vunpack.c.l.b16 %v218
        %v1321 = vunpack.c.h.b16 %v218
        %v1322 = vunpack.c.l.b16 %v219
        %v1323 = vunpack.c.h.b16 %v219
        %v1324 = vunpack.c.l.b16 %v220
        %v1325 = vunpack.c.h.b16 %v220
        %v1326 = vpack.c.b16 %v542, %v1318
        %v1327 = vpack.c.b16 %v543, %v1319
        %v1328 = vpack.c.b16 %v544, %v1320
        %v1329 = vpack.c.b16 %v545, %v1321
        %v1330 = vpack.c.b16 %v546, %v1322
        %v1331 = vpack.c.b16 %v547, %v1323
        %v1332 = vpack.c.b16 %v548, %v1324
        %v1333 = vpack.c.b16 %v549, %v1325
        %v1334 = vpack.c.b16 %v558, %v550
        %v1335 = vpack.c.b16 %v559, %v551
        %v1336 = vpack.c.b16 %v560, %v552
        %v1337 = vpack.c.b16 %v561, %v553
        %v1338 = vpack.c.b16 %v562, %v554
        %v1339 = vpack.c.b16 %v563, %v555
        %v1340 = vpack.c.b16 %v564, %v556
        %v1341 = vpack.c.b16 %v565, %v557
        %v1342 = vpack.c.b16 %v574, %v566
        %v1343 = vpack.c.b16 %v575, %v567
        %v1344 = vpack.c.b16 %v576, %v568
        %v1345 = vpack.c.b16 %v577, %v569
        %v1346 = vpack.c.b16 %v578, %v570
        %v1347 = vpack.c.b16 %v579, %v571
        %v1348 = vpack.c.b16 %v580, %v572
        %v1349 = vpack.c.b16 %v581, %v573
        %v1350 = vpack.c.b16 %v590, %v582
        %v1351 = vpack.c.b16 %v591, %v583
        %v1352 = vpack.c.b16 %v592, %v584
        %v1353 = vpack.c.b16 %v593, %v585
        %v1354 = vpack.c.b16 %v594, %v586
        %v1355 = vpack.c.b16 %v595, %v587
        %v1356 = vpack.c.b16 %v596, %v588
        %v1357 = vpack.c.b16 %v597, %v589
        %v1518 = vunpack.c.l.b16 %v249
        %v1519 = vunpack.c.l.b16 %v250
        %v1520 = vunpack.c.l.b16 %v251
        %v1521 = vunpack.c.l.b16 %v252
        %v1522 = vunpack.c.l.b16 %v253
        %v1523 = vunpack.c.l.b16 %v254
        %v1524 = vunpack.c.l.b16 %v255
        %v1525 = vunpack.c.l.b16 %v256
        %v1526 = vunpack.c.l.b16 %v257
        %v1527 = vunpack.c.l.b16 %v258
        %v1528 = vunpack.c.l.b16 %v259
        %v1529 = vunpack.c.l.b16 %v260
        %v1530 = vunpack.c.l.b16 %v261
        %v1531 = vunpack.c.l.b16 %v262
        %v1532 = vunpack.c.l.b16 %v263
        %v1533 = vunpack.c.l.b16 %v264
        %v1534 = vunpack.c.l.b16 %v265
        %v1535 = vunpack.c.l.b16 %v266
        %v1536 = vunpack.c.l.b16 %v267
        %v1537 = vunpack.c.l.b16 %v268
        %v1538 = vunpack.c.l.b16 %v269
        %v1539 = vunpack.c.l.b16 %v270
        %v1540 = vunpack.c.l.b16 %v271
        %v1541 = vunpack.c.l.b16 %v272
        %v1542 = vunpack.c.l.b16 %v273
        %v1543 = vunpack.c.l.b16 %v274
        %v1544 = vunpack.c.l.b16 %v275
        %v1545 = vunpack.c.l.b16 %v276
        %v1546 = vunpack.c.l.b16 %v277
        %v1547 = vunpack.c.l.b16 %v278
        %v1548 = vunpack.c.l.b16 %v279
        %v1549 = vunpack.c.l.b16 %v280
        %v1550 = vunpack.c.l.b16 %v281
        %v1551 = vunpack.c.l.b16 %v282
        %v1552 = vunpack.c.l.b16 %v283
        %v1553 = vunpack.c.l.b16 %v284
        %v1554 = vunpack.c.l.b16 %v285
        %v1555 = vunpack.c.l.b16 %v286
        %v1556 = vunpack.c.l.b16 %v287
        %v1557 = vunpack.c.l.b16 %v288
        %v1558 = vunpack.c.l.b16 %v289
        %v1559 = vunpack.c.l.b16 %v290
        %v1560 = vunpack.c.l.b16 %v291
        %v1561 = vunpack.c.l.b16 %v292
        %v1562 = vunpack.c.l.b16 %v293
        %v1563 = vunpack.c.l.b16 %v294
        %v1564 = vunpack.c.l.b16 %v295
        %v1565 = vunpack.c.l.b16 %v296
        %v1566 = vunpack.c.l.b16 %v297
        %v1567 = vunpack.c.l.b16 %v298
        %v1568 = vunpack.c.l.b16 %v299
        %v1569 = vunpack.c.l.b16 %v300
        %v1570 = vunpack.c.l.b16 %v301
        %v1571 = vunpack.c.l.b16 %v302
        %v1572 = vunpack.c.l.b16 %v303
        %v1573 = vunpack.c.l.b16 %v304
        %v1574 = vunpack.c.l.b16 %v305
        %v1575 = vunpack.c.l.b16 %v306
        %v1576 = vunpack.c.l.b16 %v307
        %v1577 = vunpack.c.l.b16 %v308
        %v1578 = vunpack.c.l.b16 %v309
        %v1579 = vunpack.c.l.b16 %v310
        %v1580 = vunpack.c.l.b16 %v311
        %v1581 = vunpack.c.l.b16 %v312
        %v1582 = vunpack.c.l.b16 %v313
        %v1583 = vunpack.c.l.b16 %v314
        %v1584 = vunpack.c.l.b16 %v315
        %v1585 = vunpack.c.l.b16 %v316
        %v1586 = vunpack.c.l.b16 %v317
        %v1587 = vunpack.c.l.b16 %v318
        %v1588 = vunpack.c.l.b16 %v319
        %v1589 = vunpack.c.l.b16 %v320
        %v1590 = vunpack.c.l.b16 %v321
        %v1591 = vunpack.c.l.b16 %v322
        %v1592 = vunpack.c.l.b16 %v323
        %v1593 = vunpack.c.l.b16 %v324
        %v1594 = vunpack.c.l.b16 %v325
        %v1595 = vunpack.c.l.b16 %v326
        %v1596 = vunpack.c.l.b16 %v327
        %v1597 = vunpack.c.l.b16 %v328
        %v1598 = vunpack.c.l.b16 %v329
        %v1599 = vunpack.c.l.b16 %v330
        %v1600 = vunpack.c.l.b16 %v331
        %v1601 = vunpack.c.l.b16 %v332
        %v1602 = vunpack.c.l.b16 %v333
        %v1603 = vunpack.c.l.b16 %v334
        %v1604 = vunpack.c.l.b16 %v335
        %v1605 = vunpack.c.l.b16 %v336
        %v1606 = vunpack.c.l.b16 %v337
        %v1607 = vunpack.c.l.b16 %v338
        %v1608 = vunpack.c.l.b16 %v339
        %v1609 = vunpack.c.l.b16 %v340
        %v1610 = vunpack.c.l.b16 %v341
        %v1611 = vunpack.c.l.b16 %v342
        %v1612 = vunpack.c.l.b16 %v343
        %v1613 = vunpack.c.l.b16 %v344
        %v1614 = vunpack.c.l.b16 %v345
        %v1615 = vunpack.c.l.b16 %v346
        %v1616 = vunpack.c.l.b16 %v347
        %v1617 = vunpack.c.l.b16 %v348
        %v1618 = vunpack.c.l.b16 %v349
        %v1619 = vunpack.c.l.b16 %v350
        %v1620 = vunpack.c.l.b16 %v351
        %v1621 = vunpack.c.l.b16 %v352
        %v1622 = vunpack.c.l.b16 %v353
        %v1623 = vunpack.c.l.b16 %v354
        %v1624 = vunpack.c.l.b16 %v355
        %v1625 = vunpack.c.l.b16 %v356
        %v1626 = vunpack.c.l.b16 %v357
        %v1627 = vunpack.c.l.b16 %v358
        %v1628 = vunpack.c.l.b16 %v359
        %v1629 = vunpack.c.l.b16 %v360
        %v1630 = vunpack.c.l.b16 %v361
        %v1631 = vunpack.c.l.b16 %v362
        %v1632 = vunpack.c.l.b16 %v363
        %v1633 = vunpack.c.l.b16 %v364
        %v1634 = vunpack.c.l.b16 %v365
        %v1635 = vunpack.c.l.b16 %v366
        %v1636 = vunpack.c.l.b16 %v367
        %v1637 = vunpack.c.l.b16 %v368
        %v1638 = vunpack.c.l.b16 %v369
        %v1639 = vunpack.c.l.b16 %v370
        %v1640 = vunpack.c.l.b16 %v371
        %v1641 = vunpack.c.l.b16 %v372
        %v1642 = vunpack.c.l.b16 %v373
        %v1643 = vunpack.c.l.b16 %v374
        %v1644 = vunpack.c.l.b16 %v375
        %v1645 = vunpack.c.l.b16 %v376
        %v1646 = vpack.c.b16 %v1519, %v1518
        %v1647 = vpack.c.b16 %v1521, %v1520
        %v1648 = vpack.c.b16 %v1523, %v1522
        %v1649 = vpack.c.b16 %v1525, %v1524
        %v1650 = vpack.c.b16 %v1527, %v1526
        %v1651 = vpack.c.b16 %v1529, %v1528
        %v1652 = vpack.c.b16 %v1531, %v1530
        %v1653 = vpack.c.b16 %v1533, %v1532
        %v1654 = vpack.c.b16 %v1535, %v1534
        %v1655 = vpack.c.b16 %v1537, %v1536
        %v1656 = vpack.c.b16 %v1539, %v1538
        %v1657 = vpack.c.b16 %v1541, %v1540
        %v1658 = vpack.c.b16 %v1543, %v1542
        %v1659 = vpack.c.b16 %v1545, %v1544
        %v1660 = vpack.c.b16 %v1547, %v1546
        %v1661 = vpack.c.b16 %v1549, %v1548
        %v1662 = vpack.c.b16 %v1551, %v1550
        %v1663 = vpack.c.b16 %v1553, %v1552
        %v1664 = vpack.c.b16 %v1555, %v1554
        %v1665 = vpack.c.b16 %v1557, %v1556
        %v1666 = vpack.c.b16 %v1559, %v1558
        %v1667 = vpack.c.b16 %v1561, %v1560
        %v1668 = vpack.c.b16 %v1563, %v1562
        %v1669 = vpack.c.b16 %v1565, %v1564
        %v1670 = vpack.c.b16 %v1567, %v1566
        %v1671 = vpack.c.b16 %v1569, %v1568
        %v1672 = vpack.c.b16 %v1571, %v1570
        %v1673 = vpack.c.b16 %v1573, %v1572
        %v1674 = vpack.c.b16 %v1575, %v1574
        %v1675 = vpack.c.b16 %v1577, %v1576
        %v1676 = vpack.c.b16 %v1579, %v1578
        %v1677 = vpack.c.b16 %v1581, %v1580
        %v1678 = vpack.c.b16 %v1583, %v1582
        %v1679 = vpack.c.b16 %v1585, %v1584
        %v1680 = vpack.c.b16 %v1587, %v1586
        %v1681 = vpack.c.b16 %v1589, %v1588
        %v1682 = vpack.c.b16 %v1591, %v1590
        %v1683 = vpack.c.b16 %v1593, %v1592
        %v1684 = vpack.c.b16 %v1595, %v1594
        %v1685 = vpack.c.b16 %v1597, %v1596
        %v1686 = vpack.c.b16 %v1599, %v1598
        %v1687 = vpack.c.b16 %v1601, %v1600
        %v1688 = vpack.c.b16 %v1603, %v1602
        %v1689 = vpack.c.b16 %v1605, %v1604
        %v1690 = vpack.c.b16 %v1607, %v1606
        %v1691 = vpack.c.b16 %v1609, %v1608
        %v1692 = vpack.c.b16 %v1611, %v1610
        %v1693 = vpack.c.b16 %v1613, %v1612
        %v1694 = vpack.c.b16 %v1615, %v1614
        %v1695 = vpack.c.b16 %v1617, %v1616
        %v1696 = vpack.c.b16 %v1619, %v1618
        %v1697 = vpack.c.b16 %v1621, %v1620
        %v1698 = vpack.c.b16 %v1623, %v1622
        %v1699 = vpack.c.b16 %v1625, %v1624
        %v1700 = vpack.c.b16 %v1627, %v1626
        %v1701 = vpack.c.b16 %v1629, %v1628
        %v1702 = vpack.c.b16 %v1631, %v1630
        %v1703 = vpack.c.b16 %v1633, %v1632
        %v1704 = vpack.c.b16 %v1635, %v1634
        %v1705 = vpack.c.b16 %v1637, %v1636
        %v1706 = vpack.c.b16 %v1639, %v1638
        %v1707 = vpack.c.b16 %v1641, %v1640
        %v1708 = vpack.c.b16 %v1643, %v1642
        %v1709 = vpack.c.b16 %v1645, %v1644
        %1774 = vmatprep.subr.bf16.mxu0 0
        %1775 = vmatpush1.bf16.msra.mxu0 %v1646
        %1776 = vmatprep.subr.bf16.mxu0 0
        %1777 = vmatpush1.bf16.msra.mxu0 %v1647
        %1778 = vmatprep.subr.bf16.mxu0 0
        %1779 = vmatpush1.bf16.msra.mxu0 %v1648
        %1780 = vmatprep.subr.bf16.mxu0 0
        %1781 = vmatpush1.bf16.msra.mxu0 %v1649
        %1782 = vmatprep.subr.bf16.mxu0 0
        %1783 = vmatpush1.bf16.msra.mxu0 %v1650
        %1784 = vmatprep.subr.bf16.mxu0 0
        %1785 = vmatpush1.bf16.msra.mxu0 %v1651
        %1786 = vmatprep.subr.bf16.mxu0 0
        %1787 = vmatpush1.bf16.msra.mxu0 %v1652
        %1788 = vmatprep.subr.bf16.mxu0 0
        %1789 = vmatpush1.bf16.msra.mxu0 %v1653
        %1790 = vmatprep.subr.bf16.mxu0 0
        %1791 = vmatpush1.bf16.msra.mxu0 %v1654
        %1792 = vmatprep.subr.bf16.mxu0 0
        %1793 = vmatpush1.bf16.msra.mxu0 %v1655
        %1794 = vmatprep.subr.bf16.mxu0 0
        %1795 = vmatpush1.bf16.msra.mxu0 %v1656
        %1796 = vmatprep.subr.bf16.mxu0 0
        %1797 = vmatpush1.bf16.msra.mxu0 %v1657
        %1798 = vmatprep.subr.bf16.mxu0 0
        %1799 = vmatpush1.bf16.msra.mxu0 %v1658
        %1800 = vmatprep.subr.bf16.mxu0 0
        %1801 = vmatpush1.bf16.msra.mxu0 %v1659
        %1802 = vmatprep.subr.bf16.mxu0 0
        %1803 = vmatpush1.bf16.msra.mxu0 %v1660
        %1804 = vmatprep.subr.bf16.mxu0 0
        %1805 = vmatpush1.bf16.msra.mxu0 %v1661
        %1806 = vmatprep.mubr.bf16.mxu0 %v1327
        %1807 = vmatmul.mubr.bf16.gmra.mrb[0].mxu0 %v1326
        %v1808 = vpop.f32.mrb[0].mxu0
        %v1809 = vadd.f32 %v1284, %v1808
        %v1810 = vpop.f32.mrb[0].mxu0
        %v1811 = vpop.f32.mrb[0].mxu0
        %v1812 = vadd.f32 %v1287, %v1811
        %v1813 = vpop.f32.mrb[0].mxu0
        %1814 = vmatprep.mubr.bf16.mxu0 %v1335
        %1815 = vmatmul.mubr.bf16.gmra.mrb[0].mxu0 %v1334
        %v1816 = vpop.f32.mrb[0].mxu0
        %v1817 = vadd.f32 %v1292, %v1816
        %v1818 = vpop.f32.mrb[0].mxu0
        %v1819 = vpop.f32.mrb[0].mxu0
        %v1820 = vadd.f32 %v1295, %v1819
        %v1821 = vpop.f32.mrb[0].mxu0
        %1822 = vmatprep.mubr.bf16.mxu0 %v1343
        %1823 = vmatmul.mubr.bf16.gmra.mrb[0].mxu0 %v1342
        %v1824 = vpop.f32.mrb[0].mxu0
        %v1825 = vadd.f32 %v1300, %v1824
        %v1826 = vpop.f32.mrb[0].mxu0
        %v1827 = vpop.f32.mrb[0].mxu0
        %v1828 = vadd.f32 %v1303, %v1827
        %v1829 = vpop.f32.mrb[0].mxu0
        %1830 = vmatprep.mubr.bf16.mxu0 %v1351
        %1831 = vmatmul.mubr.bf16.gmra.mrb[0].mxu0 %v1350
        %v1832 = vpop.f32.mrb[0].mxu0
        %v1833 = vadd.f32 %v1308, %v1832
        %v1834 = vpop.f32.mrb[0].mxu0
        %v1835 = vpop.f32.mrb[0].mxu0
        %v1836 = vadd.f32 %v1311, %v1835
        %v1837 = vpop.f32.mrb[0].mxu0
        %1838 = vdwg.mxu0
        %1839 = vmatprep.subr.bf16.mxu0 0
        %1840 = vmatpush1.bf16.msra.mxu0 %v1662
        %1841 = vmatprep.subr.bf16.mxu0 0
        %1842 = vmatpush1.bf16.msra.mxu0 %v1663
        %1843 = vmatprep.subr.bf16.mxu0 0
        %1844 = vmatpush1.bf16.msra.mxu0 %v1664
        %1845 = vmatprep.subr.bf16.mxu0 0
        %1846 = vmatpush1.bf16.msra.mxu0 %v1665
        %1847 = vmatprep.subr.bf16.mxu0 0
        %1848 = vmatpush1.bf16.msra.mxu0 %v1666
        %1849 = vmatprep.subr.bf16.mxu0 0
        %1850 = vmatpush1.bf16.msra.mxu0 %v1667
        %1851 = vmatprep.subr.bf16.mxu0 0
        %1852 = vmatpush1.bf16.msra.mxu0 %v1668
        %1853 = vmatprep.subr.bf16.mxu0 0
        %1854 = vmatpush1.bf16.msra.mxu0 %v1669
        %1855 = vmatprep.subr.bf16.mxu0 0
        %1856 = vmatpush1.bf16.msra.mxu0 %v1670
        %1857 = vmatprep.subr.bf16.mxu0 0
        %1858 = vmatpush1.bf16.msra.mxu0 %v1671
        %1859 = vmatprep.subr.bf16.mxu0 0
        %1860 = vmatpush1.bf16.msra.mxu0 %v1672
        %1861 = vmatprep.subr.bf16.mxu0 0
        %1862 = vmatpush1.bf16.msra.mxu0 %v1673
        %1863 = vmatprep.subr.bf16.mxu0 0
        %1864 = vmatpush1.bf16.msra.mxu0 %v1674
        %1865 = vmatprep.subr.bf16.mxu0 0
        %1866 = vmatpush1.bf16.msra.mxu0 %v1675
        %1867 = vmatprep.subr.bf16.mxu0 0
        %1868 = vmatpush1.bf16.msra.mxu0 %v1676
        %1869 = vmatprep.subr.bf16.mxu0 0
        %1870 = vmatpush1.bf16.msra.mxu0 %v1677
        %1871 = vmatprep.mubr.bf16.mxu0 %v1329
        %1872 = vmatmul.mubr.bf16.gmra.mrb[0].mxu0 %v1328
        %v1873 = vpop.f32.mrb[0].mxu0
        %v1874 = vadd.f32 %v1809, %v1873
        %v1875 = vpop.f32.mrb[0].mxu0
        %v1876 = vpop.f32.mrb[0].mxu0
        %v1877 = vadd.f32 %v1812, %v1876
        %v1878 = vpop.f32.mrb[0].mxu0
        %1879 = vmatprep.mubr.bf16.mxu0 %v1337
        %1880 = vmatmul.mubr.bf16.gmra.mrb[0].mxu0 %v1336
        %v1881 = vpop.f32.mrb[0].mxu0
        %v1882 = vadd.f32 %v1817, %v1881
        %v1883 = vpop.f32.mrb[0].mxu0
        %v1884 = vpop.f32.mrb[0].mxu0
        %v1885 = vadd.f32 %v1820, %v1884
        %v1886 = vpop.f32.mrb[0].mxu0
        %1887 = vmatprep.mubr.bf16.mxu0 %v1345
        %1888 = vmatmul.mubr.bf16.gmra.mrb[0].mxu0 %v1344
        %v1889 = vpop.f32.mrb[0].mxu0
        %v1890 = vadd.f32 %v1825, %v1889
        %v1891 = vpop.f32.mrb[0].mxu0
        %v1892 = vpop.f32.mrb[0].mxu0
        %v1893 = vadd.f32 %v1828, %v1892
        %v1894 = vpop.f32.mrb[0].mxu0
        %1895 = vmatprep.mubr.bf16.mxu0 %v1353
        %1896 = vmatmul.mubr.bf16.gmra.mrb[0].mxu0 %v1352
        %v1897 = vpop.f32.mrb[0].mxu0
        %v1898 = vadd.f32 %v1833, %v1897
        %v1899 = vpop.f32.mrb[0].mxu0
        %v1900 = vpop.f32.mrb[0].mxu0
        %v1901 = vadd.f32 %v1836, %v1900
        %v1902 = vpop.f32.mrb[0].mxu0
        %1903 = vdwg.mxu0
        %1904 = vmatprep.subr.bf16.mxu0 0
        %1905 = vmatpush1.bf16.msra.mxu0 %v1678
        %1906 = vmatprep.subr.bf16.mxu0 0
        %1907 = vmatpush1.bf16.msra.mxu0 %v1679
        %1908 = vmatprep.subr.bf16.mxu0 0
        %1909 = vmatpush1.bf16.msra.mxu0 %v1680
        %1910 = vmatprep.subr.bf16.mxu0 0
        %1911 = vmatpush1.bf16.msra.mxu0 %v1681
        %1912 = vmatprep.subr.bf16.mxu0 0
        %1913 = vmatpush1.bf16.msra.mxu0 %v1682
        %1914 = vmatprep.subr.bf16.mxu0 0
        %1915 = vmatpush1.bf16.msra.mxu0 %v1683
        %1916 = vmatprep.subr.bf16.mxu0 0
        %1917 = vmatpush1.bf16.msra.mxu0 %v1684
        %1918 = vmatprep.subr.bf16.mxu0 0
        %1919 = vmatpush1.bf16.msra.mxu0 %v1685
        %1920 = vmatprep.subr.bf16.mxu0 0
        %1921 = vmatpush1.bf16.msra.mxu0 %v1686
        %1922 = vmatprep.subr.bf16.mxu0 0
        %1923 = vmatpush1.bf16.msra.mxu0 %v1687
        %1924 = vmatprep.subr.bf16.mxu0 0
        %1925 = vmatpush1.bf16.msra.mxu0 %v1688
        %1926 = vmatprep.subr.bf16.mxu0 0
        %1927 = vmatpush1.bf16.msra.mxu0 %v1689
        %1928 = vmatprep.subr.bf16.mxu0 0
        %1929 = vmatpush1.bf16.msra.mxu0 %v1690
        %1930 = vmatprep.subr.bf16.mxu0 0
        %1931 = vmatpush1.bf16.msra.mxu0 %v1691
        %1932 = vmatprep.subr.bf16.mxu0 0
        %1933 = vmatpush1.bf16.msra.mxu0 %v1692
        %1934 = vmatprep.subr.bf16.mxu0 0
        %1935 = vmatpush1.bf16.msra.mxu0 %v1693
        %1936 = vmatprep.mubr.bf16.mxu0 %v1331
        %1937 = vmatmul.mubr.bf16.gmra.mrb[0].mxu0 %v1330
        %v1938 = vpop.f32.mrb[0].mxu0
        %v1939 = vadd.f32 %v1874, %v1938
        %v1940 = vpop.f32.mrb[0].mxu0
        %v1941 = vpop.f32.mrb[0].mxu0
        %v1942 = vadd.f32 %v1877, %v1941
        %v1943 = vpop.f32.mrb[0].mxu0
        %1944 = vmatprep.mubr.bf16.mxu0 %v1339
        %1945 = vmatmul.mubr.bf16.gmra.mrb[0].mxu0 %v1338
        %v1946 = vpop.f32.mrb[0].mxu0
        %v1947 = vadd.f32 %v1882, %v1946
        %v1948 = vpop.f32.mrb[0].mxu0
        %v1949 = vpop.f32.mrb[0].mxu0
        %v1950 = vadd.f32 %v1885, %v1949
        %v1951 = vpop.f32.mrb[0].mxu0
        %1952 = vmatprep.mubr.bf16.mxu0 %v1347
        %1953 = vmatmul.mubr.bf16.gmra.mrb[0].mxu0 %v1346
        %v1954 = vpop.f32.mrb[0].mxu0
        %v1955 = vadd.f32 %v1890, %v1954
        %v1956 = vpop.f32.mrb[0].mxu0
        %v1957 = vpop.f32.mrb[0].mxu0
        %v1958 = vadd.f32 %v1893, %v1957
        %v1959 = vpop.f32.mrb[0].mxu0
        %1960 = vmatprep.mubr.bf16.mxu0 %v1355
        %1961 = vmatmul.mubr.bf16.gmra.mrb[0].mxu0 %v1354
        %v1962 = vpop.f32.mrb[0].mxu0
        %v1963 = vadd.f32 %v1898, %v1962
        %v1964 = vpop.f32.mrb[0].mxu0
        %v1965 = vpop.f32.mrb[0].mxu0
        %v1966 = vadd.f32 %v1901, %v1965
        %v1967 = vpop.f32.mrb[0].mxu0
        %1968 = vdwg.mxu0
        %1969 = vmatprep.subr.bf16.mxu0 0
        %1970 = vmatpush1.bf16.msra.mxu0 %v1694
        %1971 = vmatprep.subr.bf16.mxu0 0
        %1972 = vmatpush1.bf16.msra.mxu0 %v1695
        %1973 = vmatprep.subr.bf16.mxu0 0
        %1974 = vmatpush1.bf16.msra.mxu0 %v1696
        %1975 = vmatprep.subr.bf16.mxu0 0
        %1976 = vmatpush1.bf16.msra.mxu0 %v1697
        %1977 = vmatprep.subr.bf16.mxu0 0
        %1978 = vmatpush1.bf16.msra.mxu0 %v1698
        %1979 = vmatprep.subr.bf16.mxu0 0
        %1980 = vmatpush1.bf16.msra.mxu0 %v1699
        %1981 = vmatprep.subr.bf16.mxu0 0
        %1982 = vmatpush1.bf16.msra.mxu0 %v1700
        %1983 = vmatprep.subr.bf16.mxu0 0
        %1984 = vmatpush1.bf16.msra.mxu0 %v1701
        %1985 = vmatprep.subr.bf16.mxu0 0
        %1986 = vmatpush1.bf16.msra.mxu0 %v1702
        %1987 = vmatprep.subr.bf16.mxu0 0
        %1988 = vmatpush1.bf16.msra.mxu0 %v1703
        %1989 = vmatprep.subr.bf16.mxu0 0
        %1990 = vmatpush1.bf16.msra.mxu0 %v1704
        %1991 = vmatprep.subr.bf16.mxu0 0
        %1992 = vmatpush1.bf16.msra.mxu0 %v1705
        %1993 = vmatprep.subr.bf16.mxu0 0
        %1994 = vmatpush1.bf16.msra.mxu0 %v1706
        %1995 = vmatprep.subr.bf16.mxu0 0
        %1996 = vmatpush1.bf16.msra.mxu0 %v1707
        %1997 = vmatprep.subr.bf16.mxu0 0
        %1998 = vmatpush1.bf16.msra.mxu0 %v1708
        %1999 = vmatprep.subr.bf16.mxu0 0
        %2000 = vmatpush1.bf16.msra.mxu0 %v1709
        %2001 = vmatprep.mubr.bf16.mxu0 %v1333
        %2002 = vmatmul.mubr.bf16.gmra.mrb[0].mxu0 %v1332
        %v2003 = vpop.f32.mrb[0].mxu0
        %v2004 = vadd.f32 %v1939, %v2003
        %v2005 = vpop.f32.mrb[0].mxu0
        %v2006 = vpop.f32.mrb[0].mxu0
        %v2007 = vadd.f32 %v1942, %v2006
        %v2008 = vpop.f32.mrb[0].mxu0
        %2009 = vmatprep.mubr.bf16.mxu0 %v1341
        %2010 = vmatmul.mubr.bf16.gmra.mrb[0].mxu0 %v1340
        %v2011 = vpop.f32.mrb[0].mxu0
        %v2012 = vadd.f32 %v1947, %v2011
        %v2013 = vpop.f32.mrb[0].mxu0
        %v2014 = vpop.f32.mrb[0].mxu0
        %v2015 = vadd.f32 %v1950, %v2014
        %v2016 = vpop.f32.mrb[0].mxu0
        %2017 = vmatprep.mubr.bf16.mxu0 %v1349
        %2018 = vmatmul.mubr.bf16.gmra.mrb[0].mxu0 %v1348
        %v2019 = vpop.f32.mrb[0].mxu0
        %v2020 = vadd.f32 %v1955, %v2019
        %v2021 = vpop.f32.mrb[0].mxu0
        %v2022 = vpop.f32.mrb[0].mxu0
        %v2023 = vadd.f32 %v1958, %v2022
        %v2024 = vpop.f32.mrb[0].mxu0
        %2025 = vmatprep.mubr.bf16.mxu0 %v1357
        %2026 = vmatmul.mubr.bf16.gmra.mrb[0].mxu0 %v1356
        %v2027 = vpop.f32.mrb[0].mxu0
        %v2028 = vadd.f32 %v1963, %v2027
        %v2029 = vpop.f32.mrb[0].mxu0
        %v2030 = vpop.f32.mrb[0].mxu0
        %v2031 = vadd.f32 %v1966, %v2030
        %v2032 = vpop.f32.mrb[0].mxu0
        %2033 = vdwg.mxu0
        %v2034 = vld [vmem:[%s181 + $0x40] sm:$0xff]
        %v2035 = vld [vmem:[%s181 + $0x48] sm:$0xff]
        %v2036 = vld [vmem:[%s181 + $0x50] sm:$0xff]
        %v2037 = vld [vmem:[%s181 + $0x58] sm:$0xff]
        %v2038 = vld [vmem:[%s181 + $0x60] sm:$0xff]
        %v2039 = vld [vmem:[%s181 + $0x68] sm:$0xff]
        %v2040 = vld [vmem:[%s181 + $0x70] sm:$0xff]
        %v2041 = vld [vmem:[%s181 + $0x78] sm:$0xff]
        %v2042 = vld [vmem:[%s181 + $0x80] sm:$0xff]
        %v2043 = vld [vmem:[%s181 + $0x88] sm:$0xff]
        %v2044 = vld [vmem:[%s181 + $0x90] sm:$0xff]
        %v2045 = vld [vmem:[%s181 + $0x98] sm:$0xff]
        %v2046 = vld [vmem:[%s181 + $0xa0] sm:$0xff]
        %v2047 = vld [vmem:[%s181 + $0xa8] sm:$0xff]
        %v2048 = vld [vmem:[%s181 + $0xb0] sm:$0xff]
        %v2049 = vld [vmem:[%s181 + $0xb8] sm:$0xff]
        %v2050 = vld [vmem:[%s181 + $0xc0] sm:$0xff]
        %v2051 = vld [vmem:[%s181 + $0xc8] sm:$0xff]
        %v2052 = vld [vmem:[%s181 + $0xd0] sm:$0xff]
        %v2053 = vld [vmem:[%s181 + $0xd8] sm:$0xff]
        %v2054 = vld [vmem:[%s181 + $0xe0] sm:$0xff]
        %v2055 = vld [vmem:[%s181 + $0xe8] sm:$0xff]
        %v2056 = vld [vmem:[%s181 + $0xf0] sm:$0xff]
        %v2057 = vld [vmem:[%s181 + $0xf8] sm:$0xff]
        %v2058 = vld [vmem:[%s181 + $0x100] sm:$0xff]
        %v2059 = vld [vmem:[%s181 + $0x108] sm:$0xff]
        %v2060 = vld [vmem:[%s181 + $0x110] sm:$0xff]
        %v2061 = vld [vmem:[%s181 + $0x118] sm:$0xff]
        %v2062 = vld [vmem:[%s181 + $0x120] sm:$0xff]
        %v2063 = vld [vmem:[%s181 + $0x128] sm:$0xff]
        %v2064 = vld [vmem:[%s181 + $0x130] sm:$0xff]
        %v2065 = vld [vmem:[%s181 + $0x138] sm:$0xff]
        %s2066 = scalar_lea.vmem %s190, 1024 [#allocation5]
        %v2067 = vld [vmem:[%s2066] sm:$0xf]
        %v2068 = vld [vmem:[%s2066 + $0x4] sm:$0xf]
        %v2069 = vld [vmem:[%s2066 + $0x8] sm:$0xf]
        %v2070 = vld [vmem:[%s2066 + $0xc] sm:$0xf]
        %v2071 = vld [vmem:[%s2066 + $0x10] sm:$0xf]
        %v2072 = vld [vmem:[%s2066 + $0x14] sm:$0xf]
        %v2073 = vld [vmem:[%s2066 + $0x18] sm:$0xf]
        %v2074 = vld [vmem:[%s2066 + $0x1c] sm:$0xf]
        %v2075 = vld [vmem:[%s2066 + $0x20] sm:$0xf]
        %v2076 = vld [vmem:[%s2066 + $0x24] sm:$0xf]
        %v2077 = vld [vmem:[%s2066 + $0x28] sm:$0xf]
        %v2078 = vld [vmem:[%s2066 + $0x2c] sm:$0xf]
        %v2079 = vld [vmem:[%s2066 + $0x30] sm:$0xf]
        %v2080 = vld [vmem:[%s2066 + $0x34] sm:$0xf]
        %v2081 = vld [vmem:[%s2066 + $0x38] sm:$0xf]
        %v2082 = vld [vmem:[%s2066 + $0x3c] sm:$0xf]
        %v2083 = vld [vmem:[%s2066 + $0x40] sm:$0xf]
        %v2084 = vld [vmem:[%s2066 + $0x44] sm:$0xf]
        %v2085 = vld [vmem:[%s2066 + $0x48] sm:$0xf]
        %v2086 = vld [vmem:[%s2066 + $0x4c] sm:$0xf]
        %v2087 = vld [vmem:[%s2066 + $0x50] sm:$0xf]
        %v2088 = vld [vmem:[%s2066 + $0x54] sm:$0xf]
        %v2089 = vld [vmem:[%s2066 + $0x58] sm:$0xf]
        %v2090 = vld [vmem:[%s2066 + $0x5c] sm:$0xf]
        %v2091 = vld [vmem:[%s2066 + $0x60] sm:$0xf]
        %v2092 = vld [vmem:[%s2066 + $0x64] sm:$0xf]
        %v2093 = vld [vmem:[%s2066 + $0x68] sm:$0xf]
        %v2094 = vld [vmem:[%s2066 + $0x6c] sm:$0xf]
        %v2095 = vld [vmem:[%s2066 + $0x70] sm:$0xf]
        %v2096 = vld [vmem:[%s2066 + $0x74] sm:$0xf]
        %v2097 = vld [vmem:[%s2066 + $0x78] sm:$0xf]
        %v2098 = vld [vmem:[%s2066 + $0x7c] sm:$0xf]
        %v2099 = vld [vmem:[%s2066 + $0x80] sm:$0xf]
        %v2100 = vld [vmem:[%s2066 + $0x84] sm:$0xf]
        %v2101 = vld [vmem:[%s2066 + $0x88] sm:$0xf]
        %v2102 = vld [vmem:[%s2066 + $0x8c] sm:$0xf]
        %v2103 = vld [vmem:[%s2066 + $0x90] sm:$0xf]
        %v2104 = vld [vmem:[%s2066 + $0x94] sm:$0xf]
        %v2105 = vld [vmem:[%s2066 + $0x98] sm:$0xf]
        %v2106 = vld [vmem:[%s2066 + $0x9c] sm:$0xf]
        %v2107 = vld [vmem:[%s2066 + $0xa0] sm:$0xf]
        %v2108 = vld [vmem:[%s2066 + $0xa4] sm:$0xf]
        %v2109 = vld [vmem:[%s2066 + $0xa8] sm:$0xf]
        %v2110 = vld [vmem:[%s2066 + $0xac] sm:$0xf]
        %v2111 = vld [vmem:[%s2066 + $0xb0] sm:$0xf]
        %v2112 = vld [vmem:[%s2066 + $0xb4] sm:$0xf]
        %v2113 = vld [vmem:[%s2066 + $0xb8] sm:$0xf]
        %v2114 = vld [vmem:[%s2066 + $0xbc] sm:$0xf]
        %v2115 = vld [vmem:[%s2066 + $0xc0] sm:$0xf]
        %v2116 = vld [vmem:[%s2066 + $0xc4] sm:$0xf]
        %v2117 = vld [vmem:[%s2066 + $0xc8] sm:$0xf]
        %v2118 = vld [vmem:[%s2066 + $0xcc] sm:$0xf]
        %v2119 = vld [vmem:[%s2066 + $0xd0] sm:$0xf]
        %v2120 = vld [vmem:[%s2066 + $0xd4] sm:$0xf]
        %v2121 = vld [vmem:[%s2066 + $0xd8] sm:$0xf]
        %v2122 = vld [vmem:[%s2066 + $0xdc] sm:$0xf]
        %v2123 = vld [vmem:[%s2066 + $0xe0] sm:$0xf]
        %v2124 = vld [vmem:[%s2066 + $0xe4] sm:$0xf]
        %v2125 = vld [vmem:[%s2066 + $0xe8] sm:$0xf]
        %v2126 = vld [vmem:[%s2066 + $0xec] sm:$0xf]
        %v2127 = vld [vmem:[%s2066 + $0xf0] sm:$0xf]
        %v2128 = vld [vmem:[%s2066 + $0xf4] sm:$0xf]
        %v2129 = vld [vmem:[%s2066 + $0xf8] sm:$0xf]
        %v2130 = vld [vmem:[%s2066 + $0xfc] sm:$0xf]
        %v2131 = vld [vmem:[%s2066 + $0x100] sm:$0xf]
        %v2132 = vld [vmem:[%s2066 + $0x104] sm:$0xf]
        %v2133 = vld [vmem:[%s2066 + $0x108] sm:$0xf]
        %v2134 = vld [vmem:[%s2066 + $0x10c] sm:$0xf]
        %v2135 = vld [vmem:[%s2066 + $0x110] sm:$0xf]
        %v2136 = vld [vmem:[%s2066 + $0x114] sm:$0xf]
        %v2137 = vld [vmem:[%s2066 + $0x118] sm:$0xf]
        %v2138 = vld [vmem:[%s2066 + $0x11c] sm:$0xf]
        %v2139 = vld [vmem:[%s2066 + $0x120] sm:$0xf]
        %v2140 = vld [vmem:[%s2066 + $0x124] sm:$0xf]
        %v2141 = vld [vmem:[%s2066 + $0x128] sm:$0xf]
        %v2142 = vld [vmem:[%s2066 + $0x12c] sm:$0xf]
        %v2143 = vld [vmem:[%s2066 + $0x130] sm:$0xf]
        %v2144 = vld [vmem:[%s2066 + $0x134] sm:$0xf]
        %v2145 = vld [vmem:[%s2066 + $0x138] sm:$0xf]
        %v2146 = vld [vmem:[%s2066 + $0x13c] sm:$0xf]
        %v2147 = vld [vmem:[%s2066 + $0x140] sm:$0xf]
        %v2148 = vld [vmem:[%s2066 + $0x144] sm:$0xf]
        %v2149 = vld [vmem:[%s2066 + $0x148] sm:$0xf]
        %v2150 = vld [vmem:[%s2066 + $0x14c] sm:$0xf]
        %v2151 = vld [vmem:[%s2066 + $0x150] sm:$0xf]
        %v2152 = vld [vmem:[%s2066 + $0x154] sm:$0xf]
        %v2153 = vld [vmem:[%s2066 + $0x158] sm:$0xf]
        %v2154 = vld [vmem:[%s2066 + $0x15c] sm:$0xf]
        %v2155 = vld [vmem:[%s2066 + $0x160] sm:$0xf]
        %v2156 = vld [vmem:[%s2066 + $0x164] sm:$0xf]
        %v2157 = vld [vmem:[%s2066 + $0x168] sm:$0xf]
        %v2158 = vld [vmem:[%s2066 + $0x16c] sm:$0xf]
        %v2159 = vld [vmem:[%s2066 + $0x170] sm:$0xf]
        %v2160 = vld [vmem:[%s2066 + $0x174] sm:$0xf]
        %v2161 = vld [vmem:[%s2066 + $0x178] sm:$0xf]
        %v2162 = vld [vmem:[%s2066 + $0x17c] sm:$0xf]
        %v2163 = vld [vmem:[%s2066 + $0x180] sm:$0xf]
        %v2164 = vld [vmem:[%s2066 + $0x184] sm:$0xf]
        %v2165 = vld [vmem:[%s2066 + $0x188] sm:$0xf]
        %v2166 = vld [vmem:[%s2066 + $0x18c] sm:$0xf]
        %v2167 = vld [vmem:[%s2066 + $0x190] sm:$0xf]
        %v2168 = vld [vmem:[%s2066 + $0x194] sm:$0xf]
        %v2169 = vld [vmem:[%s2066 + $0x198] sm:$0xf]
        %v2170 = vld [vmem:[%s2066 + $0x19c] sm:$0xf]
        %v2171 = vld [vmem:[%s2066 + $0x1a0] sm:$0xf]
        %v2172 = vld [vmem:[%s2066 + $0x1a4] sm:$0xf]
        %v2173 = vld [vmem:[%s2066 + $0x1a8] sm:$0xf]
        %v2174 = vld [vmem:[%s2066 + $0x1ac] sm:$0xf]
        %v2175 = vld [vmem:[%s2066 + $0x1b0] sm:$0xf]
        %v2176 = vld [vmem:[%s2066 + $0x1b4] sm:$0xf]
        %v2177 = vld [vmem:[%s2066 + $0x1b8] sm:$0xf]
        %v2178 = vld [vmem:[%s2066 + $0x1bc] sm:$0xf]
        %v2179 = vld [vmem:[%s2066 + $0x1c0] sm:$0xf]
        %v2180 = vld [vmem:[%s2066 + $0x1c4] sm:$0xf]
        %v2181 = vld [vmem:[%s2066 + $0x1c8] sm:$0xf]
        %v2182 = vld [vmem:[%s2066 + $0x1cc] sm:$0xf]
        %v2183 = vld [vmem:[%s2066 + $0x1d0] sm:$0xf]
        %v2184 = vld [vmem:[%s2066 + $0x1d4] sm:$0xf]
        %v2185 = vld [vmem:[%s2066 + $0x1d8] sm:$0xf]
        %v2186 = vld [vmem:[%s2066 + $0x1dc] sm:$0xf]
        %v2187 = vld [vmem:[%s2066 + $0x1e0] sm:$0xf]
        %v2188 = vld [vmem:[%s2066 + $0x1e4] sm:$0xf]
        %v2189 = vld [vmem:[%s2066 + $0x1e8] sm:$0xf]
        %v2190 = vld [vmem:[%s2066 + $0x1ec] sm:$0xf]
        %v2191 = vld [vmem:[%s2066 + $0x1f0] sm:$0xf]
        %v2192 = vld [vmem:[%s2066 + $0x1f4] sm:$0xf]
        %v2193 = vld [vmem:[%s2066 + $0x1f8] sm:$0xf]
        %v2194 = vld [vmem:[%s2066 + $0x1fc] sm:$0xf]
        %v2227 = vunpack.c.l.b16 %v2034
        %v2228 = vunpack.c.h.b16 %v2034
        %v2229 = vunpack.c.l.b16 %v2035
        %v2230 = vunpack.c.h.b16 %v2035
        %v2231 = vunpack.c.l.b16 %v2036
        %v2232 = vunpack.c.h.b16 %v2036
        %v2233 = vunpack.c.l.b16 %v2037
        %v2234 = vunpack.c.h.b16 %v2037
        %v2235 = vunpack.c.l.b16 %v2038
        %v2236 = vunpack.c.h.b16 %v2038
        %v2237 = vunpack.c.l.b16 %v2039
        %v2238 = vunpack.c.h.b16 %v2039
        %v2239 = vunpack.c.l.b16 %v2040
        %v2240 = vunpack.c.h.b16 %v2040
        %v2241 = vunpack.c.l.b16 %v2041
        %v2242 = vunpack.c.h.b16 %v2041
        %v2243 = vunpack.c.l.b16 %v2042
        %v2244 = vunpack.c.h.b16 %v2042
        %v2245 = vunpack.c.l.b16 %v2043
        %v2246 = vunpack.c.h.b16 %v2043
        %v2247 = vunpack.c.l.b16 %v2044
        %v2248 = vunpack.c.h.b16 %v2044
        %v2249 = vunpack.c.l.b16 %v2045
        %v2250 = vunpack.c.h.b16 %v2045
        %v2251 = vunpack.c.l.b16 %v2046
        %v2252 = vunpack.c.h.b16 %v2046
        %v2253 = vunpack.c.l.b16 %v2047
        %v2254 = vunpack.c.h.b16 %v2047
        %v2255 = vunpack.c.l.b16 %v2048
        %v2256 = vunpack.c.h.b16 %v2048
        %v2257 = vunpack.c.l.b16 %v2049
        %v2258 = vunpack.c.h.b16 %v2049
        %v2259 = vunpack.c.l.b16 %v2050
        %v2260 = vunpack.c.h.b16 %v2050
        %v2261 = vunpack.c.l.b16 %v2051
        %v2262 = vunpack.c.h.b16 %v2051
        %v2263 = vunpack.c.l.b16 %v2052
        %v2264 = vunpack.c.h.b16 %v2052
        %v2265 = vunpack.c.l.b16 %v2053
        %v2266 = vunpack.c.h.b16 %v2053
        %v2267 = vunpack.c.l.b16 %v2054
        %v2268 = vunpack.c.h.b16 %v2054
        %v2269 = vunpack.c.l.b16 %v2055
        %v2270 = vunpack.c.h.b16 %v2055
        %v2271 = vunpack.c.l.b16 %v2056
        %v2272 = vunpack.c.h.b16 %v2056
        %v2273 = vunpack.c.l.b16 %v2057
        %v2274 = vunpack.c.h.b16 %v2057
        %v2275 = vunpack.c.l.b16 %v2058
        %v2276 = vunpack.c.h.b16 %v2058
        %v2277 = vunpack.c.l.b16 %v2059
        %v2278 = vunpack.c.h.b16 %v2059
        %v2279 = vunpack.c.l.b16 %v2060
        %v2280 = vunpack.c.h.b16 %v2060
        %v2281 = vunpack.c.l.b16 %v2061
        %v2282 = vunpack.c.h.b16 %v2061
        %v2283 = vunpack.c.l.b16 %v2062
        %v2284 = vunpack.c.h.b16 %v2062
        %v2285 = vunpack.c.l.b16 %v2063
        %v2286 = vunpack.c.h.b16 %v2063
        %v2287 = vunpack.c.l.b16 %v2064
        %v2288 = vunpack.c.h.b16 %v2064
        %v2289 = vunpack.c.l.b16 %v2065
        %v2290 = vunpack.c.h.b16 %v2065
        %v2291 = vpack.c.b16 %v2235, %v2227
        %v2292 = vpack.c.b16 %v2236, %v2228
        %v2293 = vpack.c.b16 %v2237, %v2229
        %v2294 = vpack.c.b16 %v2238, %v2230
        %v2295 = vpack.c.b16 %v2239, %v2231
        %v2296 = vpack.c.b16 %v2240, %v2232
        %v2297 = vpack.c.b16 %v2241, %v2233
        %v2298 = vpack.c.b16 %v2242, %v2234
        %v2299 = vpack.c.b16 %v2251, %v2243
        %v2300 = vpack.c.b16 %v2252, %v2244
        %v2301 = vpack.c.b16 %v2253, %v2245
        %v2302 = vpack.c.b16 %v2254, %v2246
        %v2303 = vpack.c.b16 %v2255, %v2247
        %v2304 = vpack.c.b16 %v2256, %v2248
        %v2305 = vpack.c.b16 %v2257, %v2249
        %v2306 = vpack.c.b16 %v2258, %v2250
        %v2307 = vpack.c.b16 %v2267, %v2259
        %v2308 = vpack.c.b16 %v2268, %v2260
        %v2309 = vpack.c.b16 %v2269, %v2261
        %v2310 = vpack.c.b16 %v2270, %v2262
        %v2311 = vpack.c.b16 %v2271, %v2263
        %v2312 = vpack.c.b16 %v2272, %v2264
        %v2313 = vpack.c.b16 %v2273, %v2265
        %v2314 = vpack.c.b16 %v2274, %v2266
        %v2315 = vpack.c.b16 %v2283, %v2275
        %v2316 = vpack.c.b16 %v2284, %v2276
        %v2317 = vpack.c.b16 %v2285, %v2277
        %v2318 = vpack.c.b16 %v2286, %v2278
        %v2319 = vpack.c.b16 %v2287, %v2279
        %v2320 = vpack.c.b16 %v2288, %v2280
        %v2321 = vpack.c.b16 %v2289, %v2281
        %v2322 = vpack.c.b16 %v2290, %v2282
        %v2483 = vunpack.c.l.b16 %v2067
        %v2484 = vunpack.c.l.b16 %v2068
        %v2485 = vunpack.c.l.b16 %v2069
        %v2486 = vunpack.c.l.b16 %v2070
        %v2487 = vunpack.c.l.b16 %v2071
        %v2488 = vunpack.c.l.b16 %v2072
        %v2489 = vunpack.c.l.b16 %v2073
        %v2490 = vunpack.c.l.b16 %v2074
        %v2491 = vunpack.c.l.b16 %v2075
        %v2492 = vunpack.c.l.b16 %v2076
        %v2493 = vunpack.c.l.b16 %v2077
        %v2494 = vunpack.c.l.b16 %v2078
        %v2495 = vunpack.c.l.b16 %v2079
        %v2496 = vunpack.c.l.b16 %v2080
        %v2497 = vunpack.c.l.b16 %v2081
        %v2498 = vunpack.c.l.b16 %v2082
        %v2499 = vunpack.c.l.b16 %v2083
        %v2500 = vunpack.c.l.b16 %v2084
        %v2501 = vunpack.c.l.b16 %v2085
        %v2502 = vunpack.c.l.b16 %v2086
        %v2503 = vunpack.c.l.b16 %v2087
        %v2504 = vunpack.c.l.b16 %v2088
        %v2505 = vunpack.c.l.b16 %v2089
        %v2506 = vunpack.c.l.b16 %v2090
        %v2507 = vunpack.c.l.b16 %v2091
        %v2508 = vunpack.c.l.b16 %v2092
        %v2509 = vunpack.c.l.b16 %v2093
        %v2510 = vunpack.c.l.b16 %v2094
        %v2511 = vunpack.c.l.b16 %v2095
        %v2512 = vunpack.c.l.b16 %v2096
        %v2513 = vunpack.c.l.b16 %v2097
        %v2514 = vunpack.c.l.b16 %v2098
        %v2515 = vunpack.c.l.b16 %v2099
        %v2516 = vunpack.c.l.b16 %v2100
        %v2517 = vunpack.c.l.b16 %v2101
        %v2518 = vunpack.c.l.b16 %v2102
        %v2519 = vunpack.c.l.b16 %v2103
        %v2520 = vunpack.c.l.b16 %v2104
        %v2521 = vunpack.c.l.b16 %v2105
        %v2522 = vunpack.c.l.b16 %v2106
        %v2523 = vunpack.c.l.b16 %v2107
        %v2524 = vunpack.c.l.b16 %v2108
        %v2525 = vunpack.c.l.b16 %v2109
        %v2526 = vunpack.c.l.b16 %v2110
        %v2527 = vunpack.c.l.b16 %v2111
        %v2528 = vunpack.c.l.b16 %v2112
        %v2529 = vunpack.c.l.b16 %v2113
        %v2530 = vunpack.c.l.b16 %v2114
        %v2531 = vunpack.c.l.b16 %v2115
        %v2532 = vunpack.c.l.b16 %v2116
        %v2533 = vunpack.c.l.b16 %v2117
        %v2534 = vunpack.c.l.b16 %v2118
        %v2535 = vunpack.c.l.b16 %v2119
        %v2536 = vunpack.c.l.b16 %v2120
        %v2537 = vunpack.c.l.b16 %v2121
        %v2538 = vunpack.c.l.b16 %v2122
        %v2539 = vunpack.c.l.b16 %v2123
        %v2540 = vunpack.c.l.b16 %v2124
        %v2541 = vunpack.c.l.b16 %v2125
        %v2542 = vunpack.c.l.b16 %v2126
        %v2543 = vunpack.c.l.b16 %v2127
        %v2544 = vunpack.c.l.b16 %v2128
        %v2545 = vunpack.c.l.b16 %v2129
        %v2546 = vunpack.c.l.b16 %v2130
        %v2547 = vunpack.c.l.b16 %v2131
        %v2548 = vunpack.c.l.b16 %v2132
        %v2549 = vunpack.c.l.b16 %v2133
        %v2550 = vunpack.c.l.b16 %v2134
        %v2551 = vunpack.c.l.b16 %v2135
        %v2552 = vunpack.c.l.b16 %v2136
        %v2553 = vunpack.c.l.b16 %v2137
        %v2554 = vunpack.c.l.b16 %v2138
        %v2555 = vunpack.c.l.b16 %v2139
        %v2556 = vunpack.c.l.b16 %v2140
        %v2557 = vunpack.c.l.b16 %v2141
        %v2558 = vunpack.c.l.b16 %v2142
        %v2559 = vunpack.c.l.b16 %v2143
        %v2560 = vunpack.c.l.b16 %v2144
        %v2561 = vunpack.c.l.b16 %v2145
        %v2562 = vunpack.c.l.b16 %v2146
        %v2563 = vunpack.c.l.b16 %v2147
        %v2564 = vunpack.c.l.b16 %v2148
        %v2565 = vunpack.c.l.b16 %v2149
        %v2566 = vunpack.c.l.b16 %v2150
        %v2567 = vunpack.c.l.b16 %v2151
        %v2568 = vunpack.c.l.b16 %v2152
        %v2569 = vunpack.c.l.b16 %v2153
        %v2570 = vunpack.c.l.b16 %v2154
        %v2571 = vunpack.c.l.b16 %v2155
        %v2572 = vunpack.c.l.b16 %v2156
        %v2573 = vunpack.c.l.b16 %v2157
        %v2574 = vunpack.c.l.b16 %v2158
        %v2575 = vunpack.c.l.b16 %v2159
        %v2576 = vunpack.c.l.b16 %v2160
        %v2577 = vunpack.c.l.b16 %v2161
        %v2578 = vunpack.c.l.b16 %v2162
        %v2579 = vunpack.c.l.b16 %v2163
        %v2580 = vunpack.c.l.b16 %v2164
        %v2581 = vunpack.c.l.b16 %v2165
        %v2582 = vunpack.c.l.b16 %v2166
        %v2583 = vunpack.c.l.b16 %v2167
        %v2584 = vunpack.c.l.b16 %v2168
        %v2585 = vunpack.c.l.b16 %v2169
        %v2586 = vunpack.c.l.b16 %v2170
        %v2587 = vunpack.c.l.b16 %v2171
        %v2588 = vunpack.c.l.b16 %v2172
        %v2589 = vunpack.c.l.b16 %v2173
        %v2590 = vunpack.c.l.b16 %v2174
        %v2591 = vunpack.c.l.b16 %v2175
        %v2592 = vunpack.c.l.b16 %v2176
        %v2593 = vunpack.c.l.b16 %v2177
        %v2594 = vunpack.c.l.b16 %v2178
        %v2595 = vunpack.c.l.b16 %v2179
        %v2596 = vunpack.c.l.b16 %v2180
        %v2597 = vunpack.c.l.b16 %v2181
        %v2598 = vunpack.c.l.b16 %v2182
        %v2599 = vunpack.c.l.b16 %v2183
        %v2600 = vunpack.c.l.b16 %v2184
        %v2601 = vunpack.c.l.b16 %v2185
        %v2602 = vunpack.c.l.b16 %v2186
        %v2603 = vunpack.c.l.b16 %v2187
        %v2604 = vunpack.c.l.b16 %v2188
        %v2605 = vunpack.c.l.b16 %v2189
        %v2606 = vunpack.c.l.b16 %v2190
        %v2607 = vunpack.c.l.b16 %v2191
        %v2608 = vunpack.c.l.b16 %v2192
        %v2609 = vunpack.c.l.b16 %v2193
        %v2610 = vunpack.c.l.b16 %v2194
        %v2611 = vpack.c.b16 %v2484, %v2483
        %v2612 = vpack.c.b16 %v2486, %v2485
        %v2613 = vpack.c.b16 %v2488, %v2487
        %v2614 = vpack.c.b16 %v2490, %v2489
        %v2615 = vpack.c.b16 %v2492, %v2491
        %v2616 = vpack.c.b16 %v2494, %v2493
        %v2617 = vpack.c.b16 %v2496, %v2495
        %v2618 = vpack.c.b16 %v2498, %v2497
        %v2619 = vpack.c.b16 %v2500, %v2499
        %v2620 = vpack.c.b16 %v2502, %v2501
        %v2621 = vpack.c.b16 %v2504, %v2503
        %v2622 = vpack.c.b16 %v2506, %v2505
        %v2623 = vpack.c.b16 %v2508, %v2507
        %v2624 = vpack.c.b16 %v2510, %v2509
        %v2625 = vpack.c.b16 %v2512, %v2511
        %v2626 = vpack.c.b16 %v2514, %v2513
        %v2627 = vpack.c.b16 %v2516, %v2515
        %v2628 = vpack.c.b16 %v2518, %v2517
        %v2629 = vpack.c.b16 %v2520, %v2519
        %v2630 = vpack.c.b16 %v2522, %v2521
        %v2631 = vpack.c.b16 %v2524, %v2523
        %v2632 = vpack.c.b16 %v2526, %v2525
        %v2633 = vpack.c.b16 %v2528, %v2527
        %v2634 = vpack.c.b16 %v2530, %v2529
        %v2635 = vpack.c.b16 %v2532, %v2531
        %v2636 = vpack.c.b16 %v2534, %v2533
        %v2637 = vpack.c.b16 %v2536, %v2535
        %v2638 = vpack.c.b16 %v2538, %v2537
        %v2639 = vpack.c.b16 %v2540, %v2539
        %v2640 = vpack.c.b16 %v2542, %v2541
        %v2641 = vpack.c.b16 %v2544, %v2543
        %v2642 = vpack.c.b16 %v2546, %v2545
        %v2643 = vpack.c.b16 %v2548, %v2547
        %v2644 = vpack.c.b16 %v2550, %v2549
        %v2645 = vpack.c.b16 %v2552, %v2551
        %v2646 = vpack.c.b16 %v2554, %v2553
        %v2647 = vpack.c.b16 %v2556, %v2555
        %v2648 = vpack.c.b16 %v2558, %v2557
        %v2649 = vpack.c.b16 %v2560, %v2559
        %v2650 = vpack.c.b16 %v2562, %v2561
        %v2651 = vpack.c.b16 %v2564, %v2563
        %v2652 = vpack.c.b16 %v2566, %v2565
        %v2653 = vpack.c.b16 %v2568, %v2567
        %v2654 = vpack.c.b16 %v2570, %v2569
        %v2655 = vpack.c.b16 %v2572, %v2571
        %v2656 = vpack.c.b16 %v2574, %v2573
        %v2657 = vpack.c.b16 %v2576, %v2575
        %v2658 = vpack.c.b16 %v2578, %v2577
        %v2659 = vpack.c.b16 %v2580, %v2579
        %v2660 = vpack.c.b16 %v2582, %v2581
        %v2661 = vpack.c.b16 %v2584, %v2583
        %v2662 = vpack.c.b16 %v2586, %v2585
        %v2663 = vpack.c.b16 %v2588, %v2587
        %v2664 = vpack.c.b16 %v2590, %v2589
        %v2665 = vpack.c.b16 %v2592, %v2591
        %v2666 = vpack.c.b16 %v2594, %v2593
        %v2667 = vpack.c.b16 %v2596, %v2595
        %v2668 = vpack.c.b16 %v2598, %v2597
        %v2669 = vpack.c.b16 %v2600, %v2599
        %v2670 = vpack.c.b16 %v2602, %v2601
        %v2671 = vpack.c.b16 %v2604, %v2603
        %v2672 = vpack.c.b16 %v2606, %v2605
        %v2673 = vpack.c.b16 %v2608, %v2607
        %v2674 = vpack.c.b16 %v2610, %v2609
        %2739 = vmatprep.subr.bf16.mxu0 0
        %2740 = vmatpush1.bf16.msra.mxu0 %v2611
        %2741 = vmatprep.subr.bf16.mxu0 0
        %2742 = vmatpush1.bf16.msra.mxu0 %v2612
        %2743 = vmatprep.subr.bf16.mxu0 0
        %2744 = vmatpush1.bf16.msra.mxu0 %v2613
        %2745 = vmatprep.subr.bf16.mxu0 0
        %2746 = vmatpush1.bf16.msra.mxu0 %v2614
        %2747 = vmatprep.subr.bf16.mxu0 0
        %2748 = vmatpush1.bf16.msra.mxu0 %v2615
        %2749 = vmatprep.subr.bf16.mxu0 0
        %2750 = vmatpush1.bf16.msra.mxu0 %v2616
        %2751 = vmatprep.subr.bf16.mxu0 0
        %2752 = vmatpush1.bf16.msra.mxu0 %v2617
        %2753 = vmatprep.subr.bf16.mxu0 0
        %2754 = vmatpush1.bf16.msra.mxu0 %v2618
        %2755 = vmatprep.subr.bf16.mxu0 0
        %2756 = vmatpush1.bf16.msra.mxu0 %v2619
        %2757 = vmatprep.subr.bf16.mxu0 0
        %2758 = vmatpush1.bf16.msra.mxu0 %v2620
        %2759 = vmatprep.subr.bf16.mxu0 0
        %2760 = vmatpush1.bf16.msra.mxu0 %v2621
        %2761 = vmatprep.subr.bf16.mxu0 0
        %2762 = vmatpush1.bf16.msra.mxu0 %v2622
        %2763 = vmatprep.subr.bf16.mxu0 0
        %2764 = vmatpush1.bf16.msra.mxu0 %v2623
        %2765 = vmatprep.subr.bf16.mxu0 0
        %2766 = vmatpush1.bf16.msra.mxu0 %v2624
        %2767 = vmatprep.subr.bf16.mxu0 0
        %2768 = vmatpush1.bf16.msra.mxu0 %v2625
        %2769 = vmatprep.subr.bf16.mxu0 0
        %2770 = vmatpush1.bf16.msra.mxu0 %v2626
        %2771 = vmatprep.mubr.bf16.mxu0 %v2292
        %2772 = vmatmul.mubr.bf16.gmra.mrb[0].mxu0 %v2291
        %v2773 = vpop.f32.mrb[0].mxu0
        %v2774 = vadd.f32 0.0, %v2773
        %v2775 = vpop.f32.mrb[0].mxu0
        %v2776 = vpop.f32.mrb[0].mxu0
        %v2777 = vadd.f32 0.0, %v2776
        %v2778 = vpop.f32.mrb[0].mxu0
        %2779 = vmatprep.mubr.bf16.mxu0 %v2300
        %2780 = vmatmul.mubr.bf16.gmra.mrb[0].mxu0 %v2299
        %v2781 = vpop.f32.mrb[0].mxu0
        %v2782 = vadd.f32 0.0, %v2781
        %v2783 = vpop.f32.mrb[0].mxu0
        %v2784 = vpop.f32.mrb[0].mxu0
        %v2785 = vadd.f32 0.0, %v2784
        %v2786 = vpop.f32.mrb[0].mxu0
        %2787 = vmatprep.mubr.bf16.mxu0 %v2308
        %2788 = vmatmul.mubr.bf16.gmra.mrb[0].mxu0 %v2307
        %v2789 = vpop.f32.mrb[0].mxu0
        %v2790 = vadd.f32 0.0, %v2789
        %v2791 = vpop.f32.mrb[0].mxu0
        %v2792 = vpop.f32.mrb[0].mxu0
        %v2793 = vadd.f32 0.0, %v2792
        %v2794 = vpop.f32.mrb[0].mxu0
        %2795 = vmatprep.mubr.bf16.mxu0 %v2316
        %2796 = vmatmul.mubr.bf16.gmra.mrb[0].mxu0 %v2315
        %v2797 = vpop.f32.mrb[0].mxu0
        %v2798 = vadd.f32 0.0, %v2797
        %v2799 = vpop.f32.mrb[0].mxu0
        %v2800 = vpop.f32.mrb[0].mxu0
        %v2801 = vadd.f32 0.0, %v2800
        %v2802 = vpop.f32.mrb[0].mxu0
        %2803 = vdwg.mxu0
        %2804 = vmatprep.subr.bf16.mxu0 0
        %2805 = vmatpush1.bf16.msra.mxu0 %v2627
        %2806 = vmatprep.subr.bf16.mxu0 0
        %2807 = vmatpush1.bf16.msra.mxu0 %v2628
        %2808 = vmatprep.subr.bf16.mxu0 0
        %2809 = vmatpush1.bf16.msra.mxu0 %v2629
        %2810 = vmatprep.subr.bf16.mxu0 0
        %2811 = vmatpush1.bf16.msra.mxu0 %v2630
        %2812 = vmatprep.subr.bf16.mxu0 0
        %2813 = vmatpush1.bf16.msra.mxu0 %v2631
        %2814 = vmatprep.subr.bf16.mxu0 0
        %2815 = vmatpush1.bf16.msra.mxu0 %v2632
        %2816 = vmatprep.subr.bf16.mxu0 0
        %2817 = vmatpush1.bf16.msra.mxu0 %v2633
        %2818 = vmatprep.subr.bf16.mxu0 0
        %2819 = vmatpush1.bf16.msra.mxu0 %v2634
        %2820 = vmatprep.subr.bf16.mxu0 0
        %2821 = vmatpush1.bf16.msra.mxu0 %v2635
        %2822 = vmatprep.subr.bf16.mxu0 0
        %2823 = vmatpush1.bf16.msra.mxu0 %v2636
        %2824 = vmatprep.subr.bf16.mxu0 0
        %2825 = vmatpush1.bf16.msra.mxu0 %v2637
        %2826 = vmatprep.subr.bf16.mxu0 0
        %2827 = vmatpush1.bf16.msra.mxu0 %v2638
        %2828 = vmatprep.subr.bf16.mxu0 0
        %2829 = vmatpush1.bf16.msra.mxu0 %v2639
        %2830 = vmatprep.subr.bf16.mxu0 0
        %2831 = vmatpush1.bf16.msra.mxu0 %v2640
        %2832 = vmatprep.subr.bf16.mxu0 0
        %2833 = vmatpush1.bf16.msra.mxu0 %v2641
        %2834 = vmatprep.subr.bf16.mxu0 0
        %2835 = vmatpush1.bf16.msra.mxu0 %v2642
        %2836 = vmatprep.mubr.bf16.mxu0 %v2294
        %2837 = vmatmul.mubr.bf16.gmra.mrb[0].mxu0 %v2293
        %v2838 = vpop.f32.mrb[0].mxu0
        %v2839 = vadd.f32 %v2774, %v2838
        %v2840 = vpop.f32.mrb[0].mxu0
        %v2841 = vpop.f32.mrb[0].mxu0
        %v2842 = vadd.f32 %v2777, %v2841
        %v2843 = vpop.f32.mrb[0].mxu0
        %2844 = vmatprep.mubr.bf16.mxu0 %v2302
        %2845 = vmatmul.mubr.bf16.gmra.mrb[0].mxu0 %v2301
        %v2846 = vpop.f32.mrb[0].mxu0
        %v2847 = vadd.f32 %v2782, %v2846
        %v2848 = vpop.f32.mrb[0].mxu0
        %v2849 = vpop.f32.mrb[0].mxu0
        %v2850 = vadd.f32 %v2785, %v2849
        %v2851 = vpop.f32.mrb[0].mxu0
        %2852 = vmatprep.mubr.bf16.mxu0 %v2310
        %2853 = vmatmul.mubr.bf16.gmra.mrb[0].mxu0 %v2309
        %v2854 = vpop.f32.mrb[0].mxu0
        %v2855 = vadd.f32 %v2790, %v2854
        %v2856 = vpop.f32.mrb[0].mxu0
        %v2857 = vpop.f32.mrb[0].mxu0
        %v2858 = vadd.f32 %v2793, %v2857
        %v2859 = vpop.f32.mrb[0].mxu0
        %2860 = vmatprep.mubr.bf16.mxu0 %v2318
        %2861 = vmatmul.mubr.bf16.gmra.mrb[0].mxu0 %v2317
        %v2862 = vpop.f32.mrb[0].mxu0
        %v2863 = vadd.f32 %v2798, %v2862
        %v2864 = vpop.f32.mrb[0].mxu0
        %v2865 = vpop.f32.mrb[0].mxu0
        %v2866 = vadd.f32 %v2801, %v2865
        %v2867 = vpop.f32.mrb[0].mxu0
        %2868 = vdwg.mxu0
        %2869 = vmatprep.subr.bf16.mxu0 0
        %2870 = vmatpush1.bf16.msra.mxu0 %v2643
        %2871 = vmatprep.subr.bf16.mxu0 0
        %2872 = vmatpush1.bf16.msra.mxu0 %v2644
        %2873 = vmatprep.subr.bf16.mxu0 0
        %2874 = vmatpush1.bf16.msra.mxu0 %v2645
        %2875 = vmatprep.subr.bf16.mxu0 0
        %2876 = vmatpush1.bf16.msra.mxu0 %v2646
        %2877 = vmatprep.subr.bf16.mxu0 0
        %2878 = vmatpush1.bf16.msra.mxu0 %v2647
        %2879 = vmatprep.subr.bf16.mxu0 0
        %2880 = vmatpush1.bf16.msra.mxu0 %v2648
        %2881 = vmatprep.subr.bf16.mxu0 0
        %2882 = vmatpush1.bf16.msra.mxu0 %v2649
        %2883 = vmatprep.subr.bf16.mxu0 0
        %2884 = vmatpush1.bf16.msra.mxu0 %v2650
        %2885 = vmatprep.subr.bf16.mxu0 0
        %2886 = vmatpush1.bf16.msra.mxu0 %v2651
        %2887 = vmatprep.subr.bf16.mxu0 0
        %2888 = vmatpush1.bf16.msra.mxu0 %v2652
        %2889 = vmatprep.subr.bf16.mxu0 0
        %2890 = vmatpush1.bf16.msra.mxu0 %v2653
        %2891 = vmatprep.subr.bf16.mxu0 0
        %2892 = vmatpush1.bf16.msra.mxu0 %v2654
        %2893 = vmatprep.subr.bf16.mxu0 0
        %2894 = vmatpush1.bf16.msra.mxu0 %v2655
        %2895 = vmatprep.subr.bf16.mxu0 0
        %2896 = vmatpush1.bf16.msra.mxu0 %v2656
        %2897 = vmatprep.subr.bf16.mxu0 0
        %2898 = vmatpush1.bf16.msra.mxu0 %v2657
        %2899 = vmatprep.subr.bf16.mxu0 0
        %2900 = vmatpush1.bf16.msra.mxu0 %v2658
        %2901 = vmatprep.mubr.bf16.mxu0 %v2296
        %2902 = vmatmul.mubr.bf16.gmra.mrb[0].mxu0 %v2295
        %v2903 = vpop.f32.mrb[0].mxu0
        %v2904 = vadd.f32 %v2839, %v2903
        %v2905 = vpop.f32.mrb[0].mxu0
        %v2906 = vpop.f32.mrb[0].mxu0
        %v2907 = vadd.f32 %v2842, %v2906
        %v2908 = vpop.f32.mrb[0].mxu0
        %2909 = vmatprep.mubr.bf16.mxu0 %v2304
        %2910 = vmatmul.mubr.bf16.gmra.mrb[0].mxu0 %v2303
        %v2911 = vpop.f32.mrb[0].mxu0
        %v2912 = vadd.f32 %v2847, %v2911
        %v2913 = vpop.f32.mrb[0].mxu0
        %v2914 = vpop.f32.mrb[0].mxu0
        %v2915 = vadd.f32 %v2850, %v2914
        %v2916 = vpop.f32.mrb[0].mxu0
        %2917 = vmatprep.mubr.bf16.mxu0 %v2312
        %2918 = vmatmul.mubr.bf16.gmra.mrb[0].mxu0 %v2311
        %v2919 = vpop.f32.mrb[0].mxu0
        %v2920 = vadd.f32 %v2855, %v2919
        %v2921 = vpop.f32.mrb[0].mxu0
        %v2922 = vpop.f32.mrb[0].mxu0
        %v2923 = vadd.f32 %v2858, %v2922
        %v2924 = vpop.f32.mrb[0].mxu0
        %2925 = vmatprep.mubr.bf16.mxu0 %v2320
        %2926 = vmatmul.mubr.bf16.gmra.mrb[0].mxu0 %v2319
        %v2927 = vpop.f32.mrb[0].mxu0
        %v2928 = vadd.f32 %v2863, %v2927
        %v2929 = vpop.f32.mrb[0].mxu0
        %v2930 = vpop.f32.mrb[0].mxu0
        %v2931 = vadd.f32 %v2866, %v2930
        %v2932 = vpop.f32.mrb[0].mxu0
        %2933 = vdwg.mxu0
        %2934 = vmatprep.subr.bf16.mxu0 0
        %2935 = vmatpush1.bf16.msra.mxu0 %v2659
        %2936 = vmatprep.subr.bf16.mxu0 0
        %2937 = vmatpush1.bf16.msra.mxu0 %v2660
        %2938 = vmatprep.subr.bf16.mxu0 0
        %2939 = vmatpush1.bf16.msra.mxu0 %v2661
        %2940 = vmatprep.subr.bf16.mxu0 0
        %2941 = vmatpush1.bf16.msra.mxu0 %v2662
        %2942 = vmatprep.subr.bf16.mxu0 0
        %2943 = vmatpush1.bf16.msra.mxu0 %v2663
        %2944 = vmatprep.subr.bf16.mxu0 0
        %2945 = vmatpush1.bf16.msra.mxu0 %v2664
        %2946 = vmatprep.subr.bf16.mxu0 0
        %2947 = vmatpush1.bf16.msra.mxu0 %v2665
        %2948 = vmatprep.subr.bf16.mxu0 0
        %2949 = vmatpush1.bf16.msra.mxu0 %v2666
        %2950 = vmatprep.subr.bf16.mxu0 0
        %2951 = vmatpush1.bf16.msra.mxu0 %v2667
        %2952 = vmatprep.subr.bf16.mxu0 0
        %2953 = vmatpush1.bf16.msra.mxu0 %v2668
        %2954 = vmatprep.subr.bf16.mxu0 0
        %2955 = vmatpush1.bf16.msra.mxu0 %v2669
        %2956 = vmatprep.subr.bf16.mxu0 0
        %2957 = vmatpush1.bf16.msra.mxu0 %v2670
        %2958 = vmatprep.subr.bf16.mxu0 0
        %2959 = vmatpush1.bf16.msra.mxu0 %v2671
        %2960 = vmatprep.subr.bf16.mxu0 0
        %2961 = vmatpush1.bf16.msra.mxu0 %v2672
        %2962 = vmatprep.subr.bf16.mxu0 0
        %2963 = vmatpush1.bf16.msra.mxu0 %v2673
        %2964 = vmatprep.subr.bf16.mxu0 0
        %2965 = vmatpush1.bf16.msra.mxu0 %v2674
        %2966 = vmatprep.mubr.bf16.mxu0 %v2298
        %2967 = vmatmul.mubr.bf16.gmra.mrb[0].mxu0 %v2297
        %v2968 = vpop.f32.mrb[0].mxu0
        %v2969 = vadd.f32 %v2904, %v2968
        %v2970 = vpop.f32.mrb[0].mxu0
        %v2971 = vpop.f32.mrb[0].mxu0
        %v2972 = vadd.f32 %v2907, %v2971
        %v2973 = vpop.f32.mrb[0].mxu0
        %2974 = vmatprep.mubr.bf16.mxu0 %v2306
        %2975 = vmatmul.mubr.bf16.gmra.mrb[0].mxu0 %v2305
        %v2976 = vpop.f32.mrb[0].mxu0
        %v2977 = vadd.f32 %v2912, %v2976
        %v2978 = vpop.f32.mrb[0].mxu0
        %v2979 = vpop.f32.mrb[0].mxu0
        %v2980 = vadd.f32 %v2915, %v2979
        %v2981 = vpop.f32.mrb[0].mxu0
        %2982 = vmatprep.mubr.bf16.mxu0 %v2314
        %2983 = vmatmul.mubr.bf16.gmra.mrb[0].mxu0 %v2313
        %v2984 = vpop.f32.mrb[0].mxu0
        %v2985 = vadd.f32 %v2920, %v2984
        %v2986 = vpop.f32.mrb[0].mxu0
        %v2987 = vpop.f32.mrb[0].mxu0
        %v2988 = vadd.f32 %v2923, %v2987
        %v2989 = vpop.f32.mrb[0].mxu0
        %2990 = vmatprep.mubr.bf16.mxu0 %v2322
        %2991 = vmatmul.mubr.bf16.gmra.mrb[0].mxu0 %v2321
        %v2992 = vpop.f32.mrb[0].mxu0
        %v2993 = vadd.f32 %v2928, %v2992
        %v2994 = vpop.f32.mrb[0].mxu0
        %v2995 = vpop.f32.mrb[0].mxu0
        %v2996 = vadd.f32 %v2931, %v2995
        %v2997 = vpop.f32.mrb[0].mxu0
        %2998 = vdwg.mxu0
        %v2999 = vadd.f32 %v2004, %v2969
        %v3000 = vadd.f32 %v2007, %v2972
        %v3001 = vadd.f32 %v2012, %v2977
        %v3002 = vadd.f32 %v2015, %v2980
        %v3003 = vadd.f32 %v2020, %v2985
        %v3004 = vadd.f32 %v2023, %v2988
        %v3005 = vadd.f32 %v2028, %v2993
        %v3006 = vadd.f32 %v2031, %v2996
        %v3007 = vld [vmem:[%s181 + $0x60] sm:$0xff]
        %v3008 = vld [vmem:[%s181 + $0x68] sm:$0xff]
        %v3009 = vld [vmem:[%s181 + $0x70] sm:$0xff]
        %v3010 = vld [vmem:[%s181 + $0x78] sm:$0xff]
        %v3011 = vld [vmem:[%s181 + $0x80] sm:$0xff]
        %v3012 = vld [vmem:[%s181 + $0x88] sm:$0xff]
        %v3013 = vld [vmem:[%s181 + $0x90] sm:$0xff]
        %v3014 = vld [vmem:[%s181 + $0x98] sm:$0xff]
        %v3015 = vld [vmem:[%s181 + $0xa0] sm:$0xff]
        %v3016 = vld [vmem:[%s181 + $0xa8] sm:$0xff]
        %v3017 = vld [vmem:[%s181 + $0xb0] sm:$0xff]
        %v3018 = vld [vmem:[%s181 + $0xb8] sm:$0xff]
        %v3019 = vld [vmem:[%s181 + $0xc0] sm:$0xff]
        %v3020 = vld [vmem:[%s181 + $0xc8] sm:$0xff]
        %v3021 = vld [vmem:[%s181 + $0xd0] sm:$0xff]
        %v3022 = vld [vmem:[%s181 + $0xd8] sm:$0xff]
        %v3023 = vld [vmem:[%s181 + $0xe0] sm:$0xff]
        %v3024 = vld [vmem:[%s181 + $0xe8] sm:$0xff]
        %v3025 = vld [vmem:[%s181 + $0xf0] sm:$0xff]
        %v3026 = vld [vmem:[%s181 + $0xf8] sm:$0xff]
        %v3027 = vld [vmem:[%s181 + $0x100] sm:$0xff]
        %v3028 = vld [vmem:[%s181 + $0x108] sm:$0xff]
        %v3029 = vld [vmem:[%s181 + $0x110] sm:$0xff]
        %v3030 = vld [vmem:[%s181 + $0x118] sm:$0xff]
        %v3031 = vld [vmem:[%s181 + $0x120] sm:$0xff]
        %v3032 = vld [vmem:[%s181 + $0x128] sm:$0xff]
        %v3033 = vld [vmem:[%s181 + $0x130] sm:$0xff]
        %v3034 = vld [vmem:[%s181 + $0x138] sm:$0xff]
        %v3035 = vld [vmem:[%s181 + $0x140] sm:$0xff]
        %v3036 = vld [vmem:[%s181 + $0x148] sm:$0xff]
        %v3037 = vld [vmem:[%s181 + $0x150] sm:$0xff]
        %v3038 = vld [vmem:[%s181 + $0x158] sm:$0xff]
        %s3039 = scalar_lea.vmem %s190, 1536 [#allocation5]
        %v3040 = vld [vmem:[%s3039] sm:$0xf]
        %v3041 = vld [vmem:[%s3039 + $0x4] sm:$0xf]
        %v3042 = vld [vmem:[%s3039 + $0x8] sm:$0xf]
        %v3043 = vld [vmem:[%s3039 + $0xc] sm:$0xf]
        %v3044 = vld [vmem:[%s3039 + $0x10] sm:$0xf]
        %v3045 = vld [vmem:[%s3039 + $0x14] sm:$0xf]
        %v3046 = vld [vmem:[%s3039 + $0x18] sm:$0xf]
        %v3047 = vld [vmem:[%s3039 + $0x1c] sm:$0xf]
        %v3048 = vld [vmem:[%s3039 + $0x20] sm:$0xf]
        %v3049 = vld [vmem:[%s3039 + $0x24] sm:$0xf]
        %v3050 = vld [vmem:[%s3039 + $0x28] sm:$0xf]
        %v3051 = vld [vmem:[%s3039 + $0x2c] sm:$0xf]
        %v3052 = vld [vmem:[%s3039 + $0x30] sm:$0xf]
        %v3053 = vld [vmem:[%s3039 + $0x34] sm:$0xf]
        %v3054 = vld [vmem:[%s3039 + $0x38] sm:$0xf]
        %v3055 = vld [vmem:[%s3039 + $0x3c] sm:$0xf]
        %v3056 = vld [vmem:[%s3039 + $0x40] sm:$0xf]
        %v3057 = vld [vmem:[%s3039 + $0x44] sm:$0xf]
        %v3058 = vld [vmem:[%s3039 + $0x48] sm:$0xf]
        %v3059 = vld [vmem:[%s3039 + $0x4c] sm:$0xf]
        %v3060 = vld [vmem:[%s3039 + $0x50] sm:$0xf]
        %v3061 = vld [vmem:[%s3039 + $0x54] sm:$0xf]
        %v3062 = vld [vmem:[%s3039 + $0x58] sm:$0xf]
        %v3063 = vld [vmem:[%s3039 + $0x5c] sm:$0xf]
        %v3064 = vld [vmem:[%s3039 + $0x60] sm:$0xf]
        %v3065 = vld [vmem:[%s3039 + $0x64] sm:$0xf]
        %v3066 = vld [vmem:[%s3039 + $0x68] sm:$0xf]
        %v3067 = vld [vmem:[%s3039 + $0x6c] sm:$0xf]
        %v3068 = vld [vmem:[%s3039 + $0x70] sm:$0xf]
        %v3069 = vld [vmem:[%s3039 + $0x74] sm:$0xf]
        %v3070 = vld [vmem:[%s3039 + $0x78] sm:$0xf]
        %v3071 = vld [vmem:[%s3039 + $0x7c] sm:$0xf]
        %v3072 = vld [vmem:[%s3039 + $0x80] sm:$0xf]
        %v3073 = vld [vmem:[%s3039 + $0x84] sm:$0xf]
        %v3074 = vld [vmem:[%s3039 + $0x88] sm:$0xf]
        %v3075 = vld [vmem:[%s3039 + $0x8c] sm:$0xf]
        %v3076 = vld [vmem:[%s3039 + $0x90] sm:$0xf]
        %v3077 = vld [vmem:[%s3039 + $0x94] sm:$0xf]
        %v3078 = vld [vmem:[%s3039 + $0x98] sm:$0xf]
        %v3079 = vld [vmem:[%s3039 + $0x9c] sm:$0xf]
        %v3080 = vld [vmem:[%s3039 + $0xa0] sm:$0xf]
        %v3081 = vld [vmem:[%s3039 + $0xa4] sm:$0xf]
        %v3082 = vld [vmem:[%s3039 + $0xa8] sm:$0xf]
        %v3083 = vld [vmem:[%s3039 + $0xac] sm:$0xf]
        %v3084 = vld [vmem:[%s3039 + $0xb0] sm:$0xf]
        %v3085 = vld [vmem:[%s3039 + $0xb4] sm:$0xf]
        %v3086 = vld [vmem:[%s3039 + $0xb8] sm:$0xf]
        %v3087 = vld [vmem:[%s3039 + $0xbc] sm:$0xf]
        %v3088 = vld [vmem:[%s3039 + $0xc0] sm:$0xf]
        %v3089 = vld [vmem:[%s3039 + $0xc4] sm:$0xf]
        %v3090 = vld [vmem:[%s3039 + $0xc8] sm:$0xf]
        %v3091 = vld [vmem:[%s3039 + $0xcc] sm:$0xf]
        %v3092 = vld [vmem:[%s3039 + $0xd0] sm:$0xf]
        %v3093 = vld [vmem:[%s3039 + $0xd4] sm:$0xf]
        %v3094 = vld [vmem:[%s3039 + $0xd8] sm:$0xf]
        %v3095 = vld [vmem:[%s3039 + $0xdc] sm:$0xf]
        %v3096 = vld [vmem:[%s3039 + $0xe0] sm:$0xf]
        %v3097 = vld [vmem:[%s3039 + $0xe4] sm:$0xf]
        %v3098 = vld [vmem:[%s3039 + $0xe8] sm:$0xf]
        %v3099 = vld [vmem:[%s3039 + $0xec] sm:$0xf]
        %v3100 = vld [vmem:[%s3039 + $0xf0] sm:$0xf]
        %v3101 = vld [vmem:[%s3039 + $0xf4] sm:$0xf]
        %v3102 = vld [vmem:[%s3039 + $0xf8] sm:$0xf]
        %v3103 = vld [vmem:[%s3039 + $0xfc] sm:$0xf]
        %v3104 = vld [vmem:[%s3039 + $0x100] sm:$0xf]
        %v3105 = vld [vmem:[%s3039 + $0x104] sm:$0xf]
        %v3106 = vld [vmem:[%s3039 + $0x108] sm:$0xf]
        %v3107 = vld [vmem:[%s3039 + $0x10c] sm:$0xf]
        %v3108 = vld [vmem:[%s3039 + $0x110] sm:$0xf]
        %v3109 = vld [vmem:[%s3039 + $0x114] sm:$0xf]
        %v3110 = vld [vmem:[%s3039 + $0x118] sm:$0xf]
        %v3111 = vld [vmem:[%s3039 + $0x11c] sm:$0xf]
        %v3112 = vld [vmem:[%s3039 + $0x120] sm:$0xf]
        %v3113 = vld [vmem:[%s3039 + $0x124] sm:$0xf]
        %v3114 = vld [vmem:[%s3039 + $0x128] sm:$0xf]
        %v3115 = vld [vmem:[%s3039 + $0x12c] sm:$0xf]
        %v3116 = vld [vmem:[%s3039 + $0x130] sm:$0xf]
        %v3117 = vld [vmem:[%s3039 + $0x134] sm:$0xf]
        %v3118 = vld [vmem:[%s3039 + $0x138] sm:$0xf]
        %v3119 = vld [vmem:[%s3039 + $0x13c] sm:$0xf]
        %v3120 = vld [vmem:[%s3039 + $0x140] sm:$0xf]
        %v3121 = vld [vmem:[%s3039 + $0x144] sm:$0xf]
        %v3122 = vld [vmem:[%s3039 + $0x148] sm:$0xf]
        %v3123 = vld [vmem:[%s3039 + $0x14c] sm:$0xf]
        %v3124 = vld [vmem:[%s3039 + $0x150] sm:$0xf]
        %v3125 = vld [vmem:[%s3039 + $0x154] sm:$0xf]
        %v3126 = vld [vmem:[%s3039 + $0x158] sm:$0xf]
        %v3127 = vld [vmem:[%s3039 + $0x15c] sm:$0xf]
        %v3128 = vld [vmem:[%s3039 + $0x160] sm:$0xf]
        %v3129 = vld [vmem:[%s3039 + $0x164] sm:$0xf]
        %v3130 = vld [vmem:[%s3039 + $0x168] sm:$0xf]
        %v3131 = vld [vmem:[%s3039 + $0x16c] sm:$0xf]
        %v3132 = vld [vmem:[%s3039 + $0x170] sm:$0xf]
        %v3133 = vld [vmem:[%s3039 + $0x174] sm:$0xf]
        %v3134 = vld [vmem:[%s3039 + $0x178] sm:$0xf]
        %v3135 = vld [vmem:[%s3039 + $0x17c] sm:$0xf]
        %v3136 = vld [vmem:[%s3039 + $0x180] sm:$0xf]
        %v3137 = vld [vmem:[%s3039 + $0x184] sm:$0xf]
        %v3138 = vld [vmem:[%s3039 + $0x188] sm:$0xf]
        %v3139 = vld [vmem:[%s3039 + $0x18c] sm:$0xf]
        %v3140 = vld [vmem:[%s3039 + $0x190] sm:$0xf]
        %v3141 = vld [vmem:[%s3039 + $0x194] sm:$0xf]
        %v3142 = vld [vmem:[%s3039 + $0x198] sm:$0xf]
        %v3143 = vld [vmem:[%s3039 + $0x19c] sm:$0xf]
        %v3144 = vld [vmem:[%s3039 + $0x1a0] sm:$0xf]
        %v3145 = vld [vmem:[%s3039 + $0x1a4] sm:$0xf]
        %v3146 = vld [vmem:[%s3039 + $0x1a8] sm:$0xf]
        %v3147 = vld [vmem:[%s3039 + $0x1ac] sm:$0xf]
        %v3148 = vld [vmem:[%s3039 + $0x1b0] sm:$0xf]
        %v3149 = vld [vmem:[%s3039 + $0x1b4] sm:$0xf]
        %v3150 = vld [vmem:[%s3039 + $0x1b8] sm:$0xf]
        %v3151 = vld [vmem:[%s3039 + $0x1bc] sm:$0xf]
        %v3152 = vld [vmem:[%s3039 + $0x1c0] sm:$0xf]
        %v3153 = vld [vmem:[%s3039 + $0x1c4] sm:$0xf]
        %v3154 = vld [vmem:[%s3039 + $0x1c8] sm:$0xf]
        %v3155 = vld [vmem:[%s3039 + $0x1cc] sm:$0xf]
        %v3156 = vld [vmem:[%s3039 + $0x1d0] sm:$0xf]
        %v3157 = vld [vmem:[%s3039 + $0x1d4] sm:$0xf]
        %v3158 = vld [vmem:[%s3039 + $0x1d8] sm:$0xf]
        %v3159 = vld [vmem:[%s3039 + $0x1dc] sm:$0xf]
        %v3160 = vld [vmem:[%s3039 + $0x1e0] sm:$0xf]
        %v3161 = vld [vmem:[%s3039 + $0x1e4] sm:$0xf]
        %v3162 = vld [vmem:[%s3039 + $0x1e8] sm:$0xf]
        %v3163 = vld [vmem:[%s3039 + $0x1ec] sm:$0xf]
        %v3164 = vld [vmem:[%s3039 + $0x1f0] sm:$0xf]
        %v3165 = vld [vmem:[%s3039 + $0x1f4] sm:$0xf]
        %v3166 = vld [vmem:[%s3039 + $0x1f8] sm:$0xf]
        %v3167 = vld [vmem:[%s3039 + $0x1fc] sm:$0xf]
        %v3200 = vunpack.c.l.b16 %v3007
        %v3201 = vunpack.c.h.b16 %v3007
        %v3202 = vunpack.c.l.b16 %v3008
        %v3203 = vunpack.c.h.b16 %v3008
        %v3204 = vunpack.c.l.b16 %v3009
        %v3205 = vunpack.c.h.b16 %v3009
        %v3206 = vunpack.c.l.b16 %v3010
        %v3207 = vunpack.c.h.b16 %v3010
        %v3208 = vunpack.c.l.b16 %v3011
        %v3209 = vunpack.c.h.b16 %v3011
        %v3210 = vunpack.c.l.b16 %v3012
        %v3211 = vunpack.c.h.b16 %v3012
        %v3212 = vunpack.c.l.b16 %v3013
        %v3213 = vunpack.c.h.b16 %v3013
        %v3214 = vunpack.c.l.b16 %v3014
        %v3215 = vunpack.c.h.b16 %v3014
        %v3216 = vunpack.c.l.b16 %v3015
        %v3217 = vunpack.c.h.b16 %v3015
        %v3218 = vunpack.c.l.b16 %v3016
        %v3219 = vunpack.c.h.b16 %v3016
        %v3220 = vunpack.c.l.b16 %v3017
        %v3221 = vunpack.c.h.b16 %v3017
        %v3222 = vunpack.c.l.b16 %v3018
        %v3223 = vunpack.c.h.b16 %v3018
        %v3224 = vunpack.c.l.b16 %v3019
        %v3225 = vunpack.c.h.b16 %v3019
        %v3226 = vunpack.c.l.b16 %v3020
        %v3227 = vunpack.c.h.b16 %v3020
        %v3228 = vunpack.c.l.b16 %v3021
        %v3229 = vunpack.c.h.b16 %v3021
        %v3230 = vunpack.c.l.b16 %v3022
        %v3231 = vunpack.c.h.b16 %v3022
        %v3232 = vunpack.c.l.b16 %v3023
        %v3233 = vunpack.c.h.b16 %v3023
        %v3234 = vunpack.c.l.b16 %v3024
        %v3235 = vunpack.c.h.b16 %v3024
        %v3236 = vunpack.c.l.b16 %v3025
        %v3237 = vunpack.c.h.b16 %v3025
        %v3238 = vunpack.c.l.b16 %v3026
        %v3239 = vunpack.c.h.b16 %v3026
        %v3240 = vunpack.c.l.b16 %v3027
        %v3241 = vunpack.c.h.b16 %v3027
        %v3242 = vunpack.c.l.b16 %v3028
        %v3243 = vunpack.c.h.b16 %v3028
        %v3244 = vunpack.c.l.b16 %v3029
        %v3245 = vunpack.c.h.b16 %v3029
        %v3246 = vunpack.c.l.b16 %v3030
        %v3247 = vunpack.c.h.b16 %v3030
        %v3248 = vunpack.c.l.b16 %v3031
        %v3249 = vunpack.c.h.b16 %v3031
        %v3250 = vunpack.c.l.b16 %v3032
        %v3251 = vunpack.c.h.b16 %v3032
        %v3252 = vunpack.c.l.b16 %v3033
        %v3253 = vunpack.c.h.b16 %v3033
        %v3254 = vunpack.c.l.b16 %v3034
        %v3255 = vunpack.c.h.b16 %v3034
        %v3256 = vunpack.c.l.b16 %v3035
        %v3257 = vunpack.c.h.b16 %v3035
        %v3258 = vunpack.c.l.b16 %v3036
        %v3259 = vunpack.c.h.b16 %v3036
        %v3260 = vunpack.c.l.b16 %v3037
        %v3261 = vunpack.c.h.b16 %v3037
        %v3262 = vunpack.c.l.b16 %v3038
        %v3263 = vunpack.c.h.b16 %v3038
        %v3264 = vpack.c.b16 %v3208, %v3200
        %v3265 = vpack.c.b16 %v3209, %v3201
        %v3266 = vpack.c.b16 %v3210, %v3202
        %v3267 = vpack.c.b16 %v3211, %v3203
        %v3268 = vpack.c.b16 %v3212, %v3204
        %v3269 = vpack.c.b16 %v3213, %v3205
        %v3270 = vpack.c.b16 %v3214, %v3206
        %v3271 = vpack.c.b16 %v3215, %v3207
        %v3272 = vpack.c.b16 %v3224, %v3216
        %v3273 = vpack.c.b16 %v3225, %v3217
        %v3274 = vpack.c.b16 %v3226, %v3218
        %v3275 = vpack.c.b16 %v3227, %v3219
        %v3276 = vpack.c.b16 %v3228, %v3220
        %v3277 = vpack.c.b16 %v3229, %v3221
        %v3278 = vpack.c.b16 %v3230, %v3222
        %v3279 = vpack.c.b16 %v3231, %v3223
        %v3280 = vpack.c.b16 %v3240, %v3232
        %v3281 = vpack.c.b16 %v3241, %v3233
        %v3282 = vpack.c.b16 %v3242, %v3234
        %v3283 = vpack.c.b16 %v3243, %v3235
        %v3284 = vpack.c.b16 %v3244, %v3236
        %v3285 = vpack.c.b16 %v3245, %v3237
        %v3286 = vpack.c.b16 %v3246, %v3238
        %v3287 = vpack.c.b16 %v3247, %v3239
        %v3288 = vpack.c.b16 %v3256, %v3248
        %v3289 = vpack.c.b16 %v3257, %v3249
        %v3290 = vpack.c.b16 %v3258, %v3250
        %v3291 = vpack.c.b16 %v3259, %v3251
        %v3292 = vpack.c.b16 %v3260, %v3252
        %v3293 = vpack.c.b16 %v3261, %v3253
        %v3294 = vpack.c.b16 %v3262, %v3254
        %v3295 = vpack.c.b16 %v3263, %v3255
        %v3456 = vunpack.c.l.b16 %v3040
        %v3457 = vunpack.c.l.b16 %v3041
        %v3458 = vunpack.c.l.b16 %v3042
        %v3459 = vunpack.c.l.b16 %v3043
        %v3460 = vunpack.c.l.b16 %v3044
        %v3461 = vunpack.c.l.b16 %v3045
        %v3462 = vunpack.c.l.b16 %v3046
        %v3463 = vunpack.c.l.b16 %v3047
        %v3464 = vunpack.c.l.b16 %v3048
        %v3465 = vunpack.c.l.b16 %v3049
        %v3466 = vunpack.c.l.b16 %v3050
        %v3467 = vunpack.c.l.b16 %v3051
        %v3468 = vunpack.c.l.b16 %v3052
        %v3469 = vunpack.c.l.b16 %v3053
        %v3470 = vunpack.c.l.b16 %v3054
        %v3471 = vunpack.c.l.b16 %v3055
        %v3472 = vunpack.c.l.b16 %v3056
        %v3473 = vunpack.c.l.b16 %v3057
        %v3474 = vunpack.c.l.b16 %v3058
        %v3475 = vunpack.c.l.b16 %v3059
        %v3476 = vunpack.c.l.b16 %v3060
        %v3477 = vunpack.c.l.b16 %v3061
        %v3478 = vunpack.c.l.b16 %v3062
        %v3479 = vunpack.c.l.b16 %v3063
        %v3480 = vunpack.c.l.b16 %v3064
        %v3481 = vunpack.c.l.b16 %v3065
        %v3482 = vunpack.c.l.b16 %v3066
        %v3483 = vunpack.c.l.b16 %v3067
        %v3484 = vunpack.c.l.b16 %v3068
        %v3485 = vunpack.c.l.b16 %v3069
        %v3486 = vunpack.c.l.b16 %v3070
        %v3487 = vunpack.c.l.b16 %v3071
        %v3488 = vunpack.c.l.b16 %v3072
        %v3489 = vunpack.c.l.b16 %v3073
        %v3490 = vunpack.c.l.b16 %v3074
        %v3491 = vunpack.c.l.b16 %v3075
        %v3492 = vunpack.c.l.b16 %v3076
        %v3493 = vunpack.c.l.b16 %v3077
        %v3494 = vunpack.c.l.b16 %v3078
        %v3495 = vunpack.c.l.b16 %v3079
        %v3496 = vunpack.c.l.b16 %v3080
        %v3497 = vunpack.c.l.b16 %v3081
        %v3498 = vunpack.c.l.b16 %v3082
        %v3499 = vunpack.c.l.b16 %v3083
        %v3500 = vunpack.c.l.b16 %v3084
        %v3501 = vunpack.c.l.b16 %v3085
        %v3502 = vunpack.c.l.b16 %v3086
        %v3503 = vunpack.c.l.b16 %v3087
        %v3504 = vunpack.c.l.b16 %v3088
        %v3505 = vunpack.c.l.b16 %v3089
        %v3506 = vunpack.c.l.b16 %v3090
        %v3507 = vunpack.c.l.b16 %v3091
        %v3508 = vunpack.c.l.b16 %v3092
        %v3509 = vunpack.c.l.b16 %v3093
        %v3510 = vunpack.c.l.b16 %v3094
        %v3511 = vunpack.c.l.b16 %v3095
        %v3512 = vunpack.c.l.b16 %v3096
        %v3513 = vunpack.c.l.b16 %v3097
        %v3514 = vunpack.c.l.b16 %v3098
        %v3515 = vunpack.c.l.b16 %v3099
        %v3516 = vunpack.c.l.b16 %v3100
        %v3517 = vunpack.c.l.b16 %v3101
        %v3518 = vunpack.c.l.b16 %v3102
        %v3519 = vunpack.c.l.b16 %v3103
        %v3520 = vunpack.c.l.b16 %v3104
        %v3521 = vunpack.c.l.b16 %v3105
        %v3522 = vunpack.c.l.b16 %v3106
        %v3523 = vunpack.c.l.b16 %v3107
        %v3524 = vunpack.c.l.b16 %v3108
        %v3525 = vunpack.c.l.b16 %v3109
        %v3526 = vunpack.c.l.b16 %v3110
        %v3527 = vunpack.c.l.b16 %v3111
        %v3528 = vunpack.c.l.b16 %v3112
        %v3529 = vunpack.c.l.b16 %v3113
        %v3530 = vunpack.c.l.b16 %v3114
        %v3531 = vunpack.c.l.b16 %v3115
        %v3532 = vunpack.c.l.b16 %v3116
        %v3533 = vunpack.c.l.b16 %v3117
        %v3534 = vunpack.c.l.b16 %v3118
        %v3535 = vunpack.c.l.b16 %v3119
        %v3536 = vunpack.c.l.b16 %v3120
        %v3537 = vunpack.c.l.b16 %v3121
        %v3538 = vunpack.c.l.b16 %v3122
        %v3539 = vunpack.c.l.b16 %v3123
        %v3540 = vunpack.c.l.b16 %v3124
        %v3541 = vunpack.c.l.b16 %v3125
        %v3542 = vunpack.c.l.b16 %v3126
        %v3543 = vunpack.c.l.b16 %v3127
        %v3544 = vunpack.c.l.b16 %v3128
        %v3545 = vunpack.c.l.b16 %v3129
        %v3546 = vunpack.c.l.b16 %v3130
        %v3547 = vunpack.c.l.b16 %v3131
        %v3548 = vunpack.c.l.b16 %v3132
        %v3549 = vunpack.c.l.b16 %v3133
        %v3550 = vunpack.c.l.b16 %v3134
        %v3551 = vunpack.c.l.b16 %v3135
        %v3552 = vunpack.c.l.b16 %v3136
        %v3553 = vunpack.c.l.b16 %v3137
        %v3554 = vunpack.c.l.b16 %v3138
        %v3555 = vunpack.c.l.b16 %v3139
        %v3556 = vunpack.c.l.b16 %v3140
        %v3557 = vunpack.c.l.b16 %v3141
        %v3558 = vunpack.c.l.b16 %v3142
        %v3559 = vunpack.c.l.b16 %v3143
        %v3560 = vunpack.c.l.b16 %v3144
        %v3561 = vunpack.c.l.b16 %v3145
        %v3562 = vunpack.c.l.b16 %v3146
        %v3563 = vunpack.c.l.b16 %v3147
        %v3564 = vunpack.c.l.b16 %v3148
        %v3565 = vunpack.c.l.b16 %v3149
        %v3566 = vunpack.c.l.b16 %v3150
        %v3567 = vunpack.c.l.b16 %v3151
        %v3568 = vunpack.c.l.b16 %v3152
        %v3569 = vunpack.c.l.b16 %v3153
        %v3570 = vunpack.c.l.b16 %v3154
        %v3571 = vunpack.c.l.b16 %v3155
        %v3572 = vunpack.c.l.b16 %v3156
        %v3573 = vunpack.c.l.b16 %v3157
        %v3574 = vunpack.c.l.b16 %v3158
        %v3575 = vunpack.c.l.b16 %v3159
        %v3576 = vunpack.c.l.b16 %v3160
        %v3577 = vunpack.c.l.b16 %v3161
        %v3578 = vunpack.c.l.b16 %v3162
        %v3579 = vunpack.c.l.b16 %v3163
        %v3580 = vunpack.c.l.b16 %v3164
        %v3581 = vunpack.c.l.b16 %v3165
        %v3582 = vunpack.c.l.b16 %v3166
        %v3583 = vunpack.c.l.b16 %v3167
        %v3584 = vpack.c.b16 %v3457, %v3456
        %v3585 = vpack.c.b16 %v3459, %v3458
        %v3586 = vpack.c.b16 %v3461, %v3460
        %v3587 = vpack.c.b16 %v3463, %v3462
        %v3588 = vpack.c.b16 %v3465, %v3464
        %v3589 = vpack.c.b16 %v3467, %v3466
        %v3590 = vpack.c.b16 %v3469, %v3468
        %v3591 = vpack.c.b16 %v3471, %v3470
        %v3592 = vpack.c.b16 %v3473, %v3472
        %v3593 = vpack.c.b16 %v3475, %v3474
        %v3594 = vpack.c.b16 %v3477, %v3476
        %v3595 = vpack.c.b16 %v3479, %v3478
        %v3596 = vpack.c.b16 %v3481, %v3480
        %v3597 = vpack.c.b16 %v3483, %v3482
        %v3598 = vpack.c.b16 %v3485, %v3484
        %v3599 = vpack.c.b16 %v3487, %v3486
        %v3600 = vpack.c.b16 %v3489, %v3488
        %v3601 = vpack.c.b16 %v3491, %v3490
        %v3602 = vpack.c.b16 %v3493, %v3492
        %v3603 = vpack.c.b16 %v3495, %v3494
        %v3604 = vpack.c.b16 %v3497, %v3496
        %v3605 = vpack.c.b16 %v3499, %v3498
        %v3606 = vpack.c.b16 %v3501, %v3500
        %v3607 = vpack.c.b16 %v3503, %v3502
        %v3608 = vpack.c.b16 %v3505, %v3504
        %v3609 = vpack.c.b16 %v3507, %v3506
        %v3610 = vpack.c.b16 %v3509, %v3508
        %v3611 = vpack.c.b16 %v3511, %v3510
        %v3612 = vpack.c.b16 %v3513, %v3512
        %v3613 = vpack.c.b16 %v3515, %v3514
        %v3614 = vpack.c.b16 %v3517, %v3516
        %v3615 = vpack.c.b16 %v3519, %v3518
        %v3616 = vpack.c.b16 %v3521, %v3520
        %v3617 = vpack.c.b16 %v3523, %v3522
        %v3618 = vpack.c.b16 %v3525, %v3524
        %v3619 = vpack.c.b16 %v3527, %v3526
        %v3620 = vpack.c.b16 %v3529, %v3528
        %v3621 = vpack.c.b16 %v3531, %v3530
        %v3622 = vpack.c.b16 %v3533, %v3532
        %v3623 = vpack.c.b16 %v3535, %v3534
        %v3624 = vpack.c.b16 %v3537, %v3536
        %v3625 = vpack.c.b16 %v3539, %v3538
        %v3626 = vpack.c.b16 %v3541, %v3540
        %v3627 = vpack.c.b16 %v3543, %v3542
        %v3628 = vpack.c.b16 %v3545, %v3544
        %v3629 = vpack.c.b16 %v3547, %v3546
        %v3630 = vpack.c.b16 %v3549, %v3548
        %v3631 = vpack.c.b16 %v3551, %v3550
        %v3632 = vpack.c.b16 %v3553, %v3552
        %v3633 = vpack.c.b16 %v3555, %v3554
        %v3634 = vpack.c.b16 %v3557, %v3556
        %v3635 = vpack.c.b16 %v3559, %v3558
        %v3636 = vpack.c.b16 %v3561, %v3560
        %v3637 = vpack.c.b16 %v3563, %v3562
        %v3638 = vpack.c.b16 %v3565, %v3564
        %v3639 = vpack.c.b16 %v3567, %v3566
        %v3640 = vpack.c.b16 %v3569, %v3568
        %v3641 = vpack.c.b16 %v3571, %v3570
        %v3642 = vpack.c.b16 %v3573, %v3572
        %v3643 = vpack.c.b16 %v3575, %v3574
        %v3644 = vpack.c.b16 %v3577, %v3576
        %v3645 = vpack.c.b16 %v3579, %v3578
        %v3646 = vpack.c.b16 %v3581, %v3580
        %v3647 = vpack.c.b16 %v3583, %v3582
        %3712 = vmatprep.subr.bf16.mxu0 0
        %3713 = vmatpush1.bf16.msra.mxu0 %v3584
        %3714 = vmatprep.subr.bf16.mxu0 0
        %3715 = vmatpush1.bf16.msra.mxu0 %v3585
        %3716 = vmatprep.subr.bf16.mxu0 0
        %3717 = vmatpush1.bf16.msra.mxu0 %v3586
        %3718 = vmatprep.subr.bf16.mxu0 0
        %3719 = vmatpush1.bf16.msra.mxu0 %v3587
        %3720 = vmatprep.subr.bf16.mxu0 0
        %3721 = vmatpush1.bf16.msra.mxu0 %v3588
        %3722 = vmatprep.subr.bf16.mxu0 0
        %3723 = vmatpush1.bf16.msra.mxu0 %v3589
        %3724 = vmatprep.subr.bf16.mxu0 0
        %3725 = vmatpush1.bf16.msra.mxu0 %v3590
        %3726 = vmatprep.subr.bf16.mxu0 0
        %3727 = vmatpush1.bf16.msra.mxu0 %v3591
        %3728 = vmatprep.subr.bf16.mxu0 0
        %3729 = vmatpush1.bf16.msra.mxu0 %v3592
        %3730 = vmatprep.subr.bf16.mxu0 0
        %3731 = vmatpush1.bf16.msra.mxu0 %v3593
        %3732 = vmatprep.subr.bf16.mxu0 0
        %3733 = vmatpush1.bf16.msra.mxu0 %v3594
        %3734 = vmatprep.subr.bf16.mxu0 0
        %3735 = vmatpush1.bf16.msra.mxu0 %v3595
        %3736 = vmatprep.subr.bf16.mxu0 0
        %3737 = vmatpush1.bf16.msra.mxu0 %v3596
        %3738 = vmatprep.subr.bf16.mxu0 0
        %3739 = vmatpush1.bf16.msra.mxu0 %v3597
        %3740 = vmatprep.subr.bf16.mxu0 0
        %3741 = vmatpush1.bf16.msra.mxu0 %v3598
        %3742 = vmatprep.subr.bf16.mxu0 0
        %3743 = vmatpush1.bf16.msra.mxu0 %v3599
        %3744 = vmatprep.mubr.bf16.mxu0 %v3265
        %3745 = vmatmul.mubr.bf16.gmra.mrb[0].mxu0 %v3264
        %v3746 = vpop.f32.mrb[0].mxu0
        %v3747 = vadd.f32 0.0, %v3746
        %v3748 = vpop.f32.mrb[0].mxu0
        %v3749 = vpop.f32.mrb[0].mxu0
        %v3750 = vadd.f32 0.0, %v3749
        %v3751 = vpop.f32.mrb[0].mxu0
        %3752 = vmatprep.mubr.bf16.mxu0 %v3273
        %3753 = vmatmul.mubr.bf16.gmra.mrb[0].mxu0 %v3272
        %v3754 = vpop.f32.mrb[0].mxu0
        %v3755 = vadd.f32 0.0, %v3754
        %v3756 = vpop.f32.mrb[0].mxu0
        %v3757 = vpop.f32.mrb[0].mxu0
        %v3758 = vadd.f32 0.0, %v3757
        %v3759 = vpop.f32.mrb[0].mxu0
        %3760 = vmatprep.mubr.bf16.mxu0 %v3281
        %3761 = vmatmul.mubr.bf16.gmra.mrb[0].mxu0 %v3280
        %v3762 = vpop.f32.mrb[0].mxu0
        %v3763 = vadd.f32 0.0, %v3762
        %v3764 = vpop.f32.mrb[0].mxu0
        %v3765 = vpop.f32.mrb[0].mxu0
        %v3766 = vadd.f32 0.0, %v3765
        %v3767 = vpop.f32.mrb[0].mxu0
        %3768 = vmatprep.mubr.bf16.mxu0 %v3289
        %3769 = vmatmul.mubr.bf16.gmra.mrb[0].mxu0 %v3288
        %v3770 = vpop.f32.mrb[0].mxu0
        %v3771 = vadd.f32 0.0, %v3770
        %v3772 = vpop.f32.mrb[0].mxu0
        %v3773 = vpop.f32.mrb[0].mxu0
        %v3774 = vadd.f32 0.0, %v3773
        %v3775 = vpop.f32.mrb[0].mxu0
        %3776 = vdwg.mxu0
        %3777 = vmatprep.subr.bf16.mxu0 0
        %3778 = vmatpush1.bf16.msra.mxu0 %v3600
        %3779 = vmatprep.subr.bf16.mxu0 0
        %3780 = vmatpush1.bf16.msra.mxu0 %v3601
        %3781 = vmatprep.subr.bf16.mxu0 0
        %3782 = vmatpush1.bf16.msra.mxu0 %v3602
        %3783 = vmatprep.subr.bf16.mxu0 0
        %3784 = vmatpush1.bf16.msra.mxu0 %v3603
        %3785 = vmatprep.subr.bf16.mxu0 0
        %3786 = vmatpush1.bf16.msra.mxu0 %v3604
        %3787 = vmatprep.subr.bf16.mxu0 0
        %3788 = vmatpush1.bf16.msra.mxu0 %v3605
        %3789 = vmatprep.subr.bf16.mxu0 0
        %3790 = vmatpush1.bf16.msra.mxu0 %v3606
        %3791 = vmatprep.subr.bf16.mxu0 0
        %3792 = vmatpush1.bf16.msra.mxu0 %v3607
        %3793 = vmatprep.subr.bf16.mxu0 0
        %3794 = vmatpush1.bf16.msra.mxu0 %v3608
        %3795 = vmatprep.subr.bf16.mxu0 0
        %3796 = vmatpush1.bf16.msra.mxu0 %v3609
        %3797 = vmatprep.subr.bf16.mxu0 0
        %3798 = vmatpush1.bf16.msra.mxu0 %v3610
        %3799 = vmatprep.subr.bf16.mxu0 0
        %3800 = vmatpush1.bf16.msra.mxu0 %v3611
        %3801 = vmatprep.subr.bf16.mxu0 0
        %3802 = vmatpush1.bf16.msra.mxu0 %v3612
        %3803 = vmatprep.subr.bf16.mxu0 0
        %3804 = vmatpush1.bf16.msra.mxu0 %v3613
        %3805 = vmatprep.subr.bf16.mxu0 0
        %3806 = vmatpush1.bf16.msra.mxu0 %v3614
        %3807 = vmatprep.subr.bf16.mxu0 0
        %3808 = vmatpush1.bf16.msra.mxu0 %v3615
        %3809 = vmatprep.mubr.bf16.mxu0 %v3267
        %3810 = vmatmul.mubr.bf16.gmra.mrb[0].mxu0 %v3266
        %v3811 = vpop.f32.mrb[0].mxu0
        %v3812 = vadd.f32 %v3747, %v3811
        %v3813 = vpop.f32.mrb[0].mxu0
        %v3814 = vpop.f32.mrb[0].mxu0
        %v3815 = vadd.f32 %v3750, %v3814
        %v3816 = vpop.f32.mrb[0].mxu0
        %3817 = vmatprep.mubr.bf16.mxu0 %v3275
        %3818 = vmatmul.mubr.bf16.gmra.mrb[0].mxu0 %v3274
        %v3819 = vpop.f32.mrb[0].mxu0
        %v3820 = vadd.f32 %v3755, %v3819
        %v3821 = vpop.f32.mrb[0].mxu0
        %v3822 = vpop.f32.mrb[0].mxu0
        %v3823 = vadd.f32 %v3758, %v3822
        %v3824 = vpop.f32.mrb[0].mxu0
        %3825 = vmatprep.mubr.bf16.mxu0 %v3283
        %3826 = vmatmul.mubr.bf16.gmra.mrb[0].mxu0 %v3282
        %v3827 = vpop.f32.mrb[0].mxu0
        %v3828 = vadd.f32 %v3763, %v3827
        %v3829 = vpop.f32.mrb[0].mxu0
        %v3830 = vpop.f32.mrb[0].mxu0
        %v3831 = vadd.f32 %v3766, %v3830
        %v3832 = vpop.f32.mrb[0].mxu0
        %3833 = vmatprep.mubr.bf16.mxu0 %v3291
        %3834 = vmatmul.mubr.bf16.gmra.mrb[0].mxu0 %v3290
        %v3835 = vpop.f32.mrb[0].mxu0
        %v3836 = vadd.f32 %v3771, %v3835
        %v3837 = vpop.f32.mrb[0].mxu0
        %v3838 = vpop.f32.mrb[0].mxu0
        %v3839 = vadd.f32 %v3774, %v3838
        %v3840 = vpop.f32.mrb[0].mxu0
        %3841 = vdwg.mxu0
        %3842 = vmatprep.subr.bf16.mxu0 0
        %3843 = vmatpush1.bf16.msra.mxu0 %v3616
        %3844 = vmatprep.subr.bf16.mxu0 0
        %3845 = vmatpush1.bf16.msra.mxu0 %v3617
        %3846 = vmatprep.subr.bf16.mxu0 0
        %3847 = vmatpush1.bf16.msra.mxu0 %v3618
        %3848 = vmatprep.subr.bf16.mxu0 0
        %3849 = vmatpush1.bf16.msra.mxu0 %v3619
        %3850 = vmatprep.subr.bf16.mxu0 0
        %3851 = vmatpush1.bf16.msra.mxu0 %v3620
        %3852 = vmatprep.subr.bf16.mxu0 0
        %3853 = vmatpush1.bf16.msra.mxu0 %v3621
        %3854 = vmatprep.subr.bf16.mxu0 0
        %3855 = vmatpush1.bf16.msra.mxu0 %v3622
        %3856 = vmatprep.subr.bf16.mxu0 0
        %3857 = vmatpush1.bf16.msra.mxu0 %v3623
        %3858 = vmatprep.subr.bf16.mxu0 0
        %3859 = vmatpush1.bf16.msra.mxu0 %v3624
        %3860 = vmatprep.subr.bf16.mxu0 0
        %3861 = vmatpush1.bf16.msra.mxu0 %v3625
        %3862 = vmatprep.subr.bf16.mxu0 0
        %3863 = vmatpush1.bf16.msra.mxu0 %v3626
        %3864 = vmatprep.subr.bf16.mxu0 0
        %3865 = vmatpush1.bf16.msra.mxu0 %v3627
        %3866 = vmatprep.subr.bf16.mxu0 0
        %3867 = vmatpush1.bf16.msra.mxu0 %v3628
        %3868 = vmatprep.subr.bf16.mxu0 0
        %3869 = vmatpush1.bf16.msra.mxu0 %v3629
        %3870 = vmatprep.subr.bf16.mxu0 0
        %3871 = vmatpush1.bf16.msra.mxu0 %v3630
        %3872 = vmatprep.subr.bf16.mxu0 0
        %3873 = vmatpush1.bf16.msra.mxu0 %v3631
        %3874 = vmatprep.mubr.bf16.mxu0 %v3269
        %3875 = vmatmul.mubr.bf16.gmra.mrb[0].mxu0 %v3268
        %v3876 = vpop.f32.mrb[0].mxu0
        %v3877 = vadd.f32 %v3812, %v3876
        %v3878 = vpop.f32.mrb[0].mxu0
        %v3879 = vpop.f32.mrb[0].mxu0
        %v3880 = vadd.f32 %v3815, %v3879
        %v3881 = vpop.f32.mrb[0].mxu0
        %3882 = vmatprep.mubr.bf16.mxu0 %v3277
        %3883 = vmatmul.mubr.bf16.gmra.mrb[0].mxu0 %v3276
        %v3884 = vpop.f32.mrb[0].mxu0
        %v3885 = vadd.f32 %v3820, %v3884
        %v3886 = vpop.f32.mrb[0].mxu0
        %v3887 = vpop.f32.mrb[0].mxu0
        %v3888 = vadd.f32 %v3823, %v3887
        %v3889 = vpop.f32.mrb[0].mxu0
        %3890 = vmatprep.mubr.bf16.mxu0 %v3285
        %3891 = vmatmul.mubr.bf16.gmra.mrb[0].mxu0 %v3284
        %v3892 = vpop.f32.mrb[0].mxu0
        %v3893 = vadd.f32 %v3828, %v3892
        %v3894 = vpop.f32.mrb[0].mxu0
        %v3895 = vpop.f32.mrb[0].mxu0
        %v3896 = vadd.f32 %v3831, %v3895
        %v3897 = vpop.f32.mrb[0].mxu0
        %3898 = vmatprep.mubr.bf16.mxu0 %v3293
        %3899 = vmatmul.mubr.bf16.gmra.mrb[0].mxu0 %v3292
        %v3900 = vpop.f32.mrb[0].mxu0
        %v3901 = vadd.f32 %v3836, %v3900
        %v3902 = vpop.f32.mrb[0].mxu0
        %v3903 = vpop.f32.mrb[0].mxu0
        %v3904 = vadd.f32 %v3839, %v3903
        %v3905 = vpop.f32.mrb[0].mxu0
        %3906 = vdwg.mxu0
        %3907 = vmatprep.subr.bf16.mxu0 0
        %3908 = vmatpush1.bf16.msra.mxu0 %v3632
        %3909 = vmatprep.subr.bf16.mxu0 0
        %3910 = vmatpush1.bf16.msra.mxu0 %v3633
        %3911 = vmatprep.subr.bf16.mxu0 0
        %3912 = vmatpush1.bf16.msra.mxu0 %v3634
        %3913 = vmatprep.subr.bf16.mxu0 0
        %3914 = vmatpush1.bf16.msra.mxu0 %v3635
        %3915 = vmatprep.subr.bf16.mxu0 0
        %3916 = vmatpush1.bf16.msra.mxu0 %v3636
        %3917 = vmatprep.subr.bf16.mxu0 0
        %3918 = vmatpush1.bf16.msra.mxu0 %v3637
        %3919 = vmatprep.subr.bf16.mxu0 0
        %3920 = vmatpush1.bf16.msra.mxu0 %v3638
        %3921 = vmatprep.subr.bf16.mxu0 0
        %3922 = vmatpush1.bf16.msra.mxu0 %v3639
        %3923 = vmatprep.subr.bf16.mxu0 0
        %3924 = vmatpush1.bf16.msra.mxu0 %v3640
        %3925 = vmatprep.subr.bf16.mxu0 0
        %3926 = vmatpush1.bf16.msra.mxu0 %v3641
        %3927 = vmatprep.subr.bf16.mxu0 0
        %3928 = vmatpush1.bf16.msra.mxu0 %v3642
        %3929 = vmatprep.subr.bf16.mxu0 0
        %3930 = vmatpush1.bf16.msra.mxu0 %v3643
        %3931 = vmatprep.subr.bf16.mxu0 0
        %3932 = vmatpush1.bf16.msra.mxu0 %v3644
        %3933 = vmatprep.subr.bf16.mxu0 0
        %3934 = vmatpush1.bf16.msra.mxu0 %v3645
        %3935 = vmatprep.subr.bf16.mxu0 0
        %3936 = vmatpush1.bf16.msra.mxu0 %v3646
        %3937 = vmatprep.subr.bf16.mxu0 0
        %3938 = vmatpush1.bf16.msra.mxu0 %v3647
        %3939 = vmatprep.mubr.bf16.mxu0 %v3271
        %3940 = vmatmul.mubr.bf16.gmra.mrb[0].mxu0 %v3270
        %v3941 = vpop.f32.mrb[0].mxu0
        %v3942 = vadd.f32 %v3877, %v3941
        %v3943 = vpop.f32.mrb[0].mxu0
        %v3944 = vpop.f32.mrb[0].mxu0
        %v3945 = vadd.f32 %v3880, %v3944
        %v3946 = vpop.f32.mrb[0].mxu0
        %3947 = vmatprep.mubr.bf16.mxu0 %v3279
        %3948 = vmatmul.mubr.bf16.gmra.mrb[0].mxu0 %v3278
        %v3949 = vpop.f32.mrb[0].mxu0
        %v3950 = vadd.f32 %v3885, %v3949
        %v3951 = vpop.f32.mrb[0].mxu0
        %v3952 = vpop.f32.mrb[0].mxu0
        %v3953 = vadd.f32 %v3888, %v3952
        %v3954 = vpop.f32.mrb[0].mxu0
        %3955 = vmatprep.mubr.bf16.mxu0 %v3287
        %3956 = vmatmul.mubr.bf16.gmra.mrb[0].mxu0 %v3286
        %v3957 = vpop.f32.mrb[0].mxu0
        %v3958 = vadd.f32 %v3893, %v3957
        %v3959 = vpop.f32.mrb[0].mxu0
        %v3960 = vpop.f32.mrb[0].mxu0
        %v3961 = vadd.f32 %v3896, %v3960
        %v3962 = vpop.f32.mrb[0].mxu0
        %3963 = vmatprep.mubr.bf16.mxu0 %v3295
        %3964 = vmatmul.mubr.bf16.gmra.mrb[0].mxu0 %v3294
        %v3965 = vpop.f32.mrb[0].mxu0
        %v3966 = vadd.f32 %v3901, %v3965
        %v3967 = vpop.f32.mrb[0].mxu0
        %v3968 = vpop.f32.mrb[0].mxu0
        %v3969 = vadd.f32 %v3904, %v3968
        %v3970 = vpop.f32.mrb[0].mxu0
        %3971 = vdwg.mxu0
        %v3972 = vadd.f32 %v2999, %v3942
        %v3973 = vadd.f32 %v3000, %v3945
        %v3974 = vadd.f32 %v3001, %v3950
        %v3975 = vadd.f32 %v3002, %v3953
        %v3976 = vadd.f32 %v3003, %v3958
        %v3977 = vadd.f32 %v3004, %v3961
        %v3978 = vadd.f32 %v3005, %v3966
        %v3979 = vadd.f32 %v3006, %v3969
        %v3980 = vld [vmem:[%s181 + $0x80] sm:$0xff]
        %v3981 = vld [vmem:[%s181 + $0x88] sm:$0xff]
        %v3982 = vld [vmem:[%s181 + $0x90] sm:$0xff]
        %v3983 = vld [vmem:[%s181 + $0x98] sm:$0xff]
        %v3984 = vld [vmem:[%s181 + $0xa0] sm:$0xff]
        %v3985 = vld [vmem:[%s181 + $0xa8] sm:$0xff]
        %v3986 = vld [vmem:[%s181 + $0xb0] sm:$0xff]
        %v3987 = vld [vmem:[%s181 + $0xb8] sm:$0xff]
        %v3988 = vld [vmem:[%s181 + $0xc0] sm:$0xff]
        %v3989 = vld [vmem:[%s181 + $0xc8] sm:$0xff]
        %v3990 = vld [vmem:[%s181 + $0xd0] sm:$0xff]
        %v3991 = vld [vmem:[%s181 + $0xd8] sm:$0xff]
        %v3992 = vld [vmem:[%s181 + $0xe0] sm:$0xff]
        %v3993 = vld [vmem:[%s181 + $0xe8] sm:$0xff]
        %v3994 = vld [vmem:[%s181 + $0xf0] sm:$0xff]
        %v3995 = vld [vmem:[%s181 + $0xf8] sm:$0xff]
        %v3996 = vld [vmem:[%s181 + $0x100] sm:$0xff]
        %v3997 = vld [vmem:[%s181 + $0x108] sm:$0xff]
        %v3998 = vld [vmem:[%s181 + $0x110] sm:$0xff]
        %v3999 = vld [vmem:[%s181 + $0x118] sm:$0xff]
        %v4000 = vld [vmem:[%s181 + $0x120] sm:$0xff]
        %v4001 = vld [vmem:[%s181 + $0x128] sm:$0xff]
        %v4002 = vld [vmem:[%s181 + $0x130] sm:$0xff]
        %v4003 = vld [vmem:[%s181 + $0x138] sm:$0xff]
        %v4004 = vld [vmem:[%s181 + $0x140] sm:$0xff]
        %v4005 = vld [vmem:[%s181 + $0x148] sm:$0xff]
        %v4006 = vld [vmem:[%s181 + $0x150] sm:$0xff]
        %v4007 = vld [vmem:[%s181 + $0x158] sm:$0xff]
        %v4008 = vld [vmem:[%s181 + $0x160] sm:$0xff]
        %v4009 = vld [vmem:[%s181 + $0x168] sm:$0xff]
        %v4010 = vld [vmem:[%s181 + $0x170] sm:$0xff]
        %v4011 = vld [vmem:[%s181 + $0x178] sm:$0xff]
        %s4012 = scalar_lea.vmem %s190, 2048 [#allocation5]
        %v4013 = vld [vmem:[%s4012] sm:$0xf]
        %v4014 = vld [vmem:[%s4012 + $0x4] sm:$0xf]
        %v4015 = vld [vmem:[%s4012 + $0x8] sm:$0xf]
        %v4016 = vld [vmem:[%s4012 + $0xc] sm:$0xf]
        %v4017 = vld [vmem:[%s4012 + $0x10] sm:$0xf]
        %v4018 = vld [vmem:[%s4012 + $0x14] sm:$0xf]
        %v4019 = vld [vmem:[%s4012 + $0x18] sm:$0xf]
        %v4020 = vld [vmem:[%s4012 + $0x1c] sm:$0xf]
        %v4021 = vld [vmem:[%s4012 + $0x20] sm:$0xf]
        %v4022 = vld [vmem:[%s4012 + $0x24] sm:$0xf]
        %v4023 = vld [vmem:[%s4012 + $0x28] sm:$0xf]
        %v4024 = vld [vmem:[%s4012 + $0x2c] sm:$0xf]
        %v4025 = vld [vmem:[%s4012 + $0x30] sm:$0xf]
        %v4026 = vld [vmem:[%s4012 + $0x34] sm:$0xf]
        %v4027 = vld [vmem:[%s4012 + $0x38] sm:$0xf]
        %v4028 = vld [vmem:[%s4012 + $0x3c] sm:$0xf]
        %v4029 = vld [vmem:[%s4012 + $0x40] sm:$0xf]
        %v4030 = vld [vmem:[%s4012 + $0x44] sm:$0xf]
        %v4031 = vld [vmem:[%s4012 + $0x48] sm:$0xf]
        %v4032 = vld [vmem:[%s4012 + $0x4c] sm:$0xf]
        %v4033 = vld [vmem:[%s4012 + $0x50] sm:$0xf]
        %v4034 = vld [vmem:[%s4012 + $0x54] sm:$0xf]
        %v4035 = vld [vmem:[%s4012 + $0x58] sm:$0xf]
        %v4036 = vld [vmem:[%s4012 + $0x5c] sm:$0xf]
        %v4037 = vld [vmem:[%s4012 + $0x60] sm:$0xf]
        %v4038 = vld [vmem:[%s4012 + $0x64] sm:$0xf]
        %v4039 = vld [vmem:[%s4012 + $0x68] sm:$0xf]
        %v4040 = vld [vmem:[%s4012 + $0x6c] sm:$0xf]
        %v4041 = vld [vmem:[%s4012 + $0x70] sm:$0xf]
        %v4042 = vld [vmem:[%s4012 + $0x74] sm:$0xf]
        %v4043 = vld [vmem:[%s4012 + $0x78] sm:$0xf]
        %v4044 = vld [vmem:[%s4012 + $0x7c] sm:$0xf]
        %v4045 = vld [vmem:[%s4012 + $0x80] sm:$0xf]
        %v4046 = vld [vmem:[%s4012 + $0x84] sm:$0xf]
        %v4047 = vld [vmem:[%s4012 + $0x88] sm:$0xf]
        %v4048 = vld [vmem:[%s4012 + $0x8c] sm:$0xf]
        %v4049 = vld [vmem:[%s4012 + $0x90] sm:$0xf]
        %v4050 = vld [vmem:[%s4012 + $0x94] sm:$0xf]
        %v4051 = vld [vmem:[%s4012 + $0x98] sm:$0xf]
        %v4052 = vld [vmem:[%s4012 + $0x9c] sm:$0xf]
        %v4053 = vld [vmem:[%s4012 + $0xa0] sm:$0xf]
        %v4054 = vld [vmem:[%s4012 + $0xa4] sm:$0xf]
        %v4055 = vld [vmem:[%s4012 + $0xa8] sm:$0xf]
        %v4056 = vld [vmem:[%s4012 + $0xac] sm:$0xf]
        %v4057 = vld [vmem:[%s4012 + $0xb0] sm:$0xf]
        %v4058 = vld [vmem:[%s4012 + $0xb4] sm:$0xf]
        %v4059 = vld [vmem:[%s4012 + $0xb8] sm:$0xf]
        %v4060 = vld [vmem:[%s4012 + $0xbc] sm:$0xf]
        %v4061 = vld [vmem:[%s4012 + $0xc0] sm:$0xf]
        %v4062 = vld [vmem:[%s4012 + $0xc4] sm:$0xf]
        %v4063 = vld [vmem:[%s4012 + $0xc8] sm:$0xf]
        %v4064 = vld [vmem:[%s4012 + $0xcc] sm:$0xf]
        %v4065 = vld [vmem:[%s4012 + $0xd0] sm:$0xf]
        %v4066 = vld [vmem:[%s4012 + $0xd4] sm:$0xf]
        %v4067 = vld [vmem:[%s4012 + $0xd8] sm:$0xf]
        %v4068 = vld [vmem:[%s4012 + $0xdc] sm:$0xf]
        %v4069 = vld [vmem:[%s4012 + $0xe0] sm:$0xf]
        %v4070 = vld [vmem:[%s4012 + $0xe4] sm:$0xf]
        %v4071 = vld [vmem:[%s4012 + $0xe8] sm:$0xf]
        %v4072 = vld [vmem:[%s4012 + $0xec] sm:$0xf]
        %v4073 = vld [vmem:[%s4012 + $0xf0] sm:$0xf]
        %v4074 = vld [vmem:[%s4012 + $0xf4] sm:$0xf]
        %v4075 = vld [vmem:[%s4012 + $0xf8] sm:$0xf]
        %v4076 = vld [vmem:[%s4012 + $0xfc] sm:$0xf]
        %v4077 = vld [vmem:[%s4012 + $0x100] sm:$0xf]
        %v4078 = vld [vmem:[%s4012 + $0x104] sm:$0xf]
        %v4079 = vld [vmem:[%s4012 + $0x108] sm:$0xf]
        %v4080 = vld [vmem:[%s4012 + $0x10c] sm:$0xf]
        %v4081 = vld [vmem:[%s4012 + $0x110] sm:$0xf]
        %v4082 = vld [vmem:[%s4012 + $0x114] sm:$0xf]
        %v4083 = vld [vmem:[%s4012 + $0x118] sm:$0xf]
        %v4084 = vld [vmem:[%s4012 + $0x11c] sm:$0xf]
        %v4085 = vld [vmem:[%s4012 + $0x120] sm:$0xf]
        %v4086 = vld [vmem:[%s4012 + $0x124] sm:$0xf]
        %v4087 = vld [vmem:[%s4012 + $0x128] sm:$0xf]
        %v4088 = vld [vmem:[%s4012 + $0x12c] sm:$0xf]
        %v4089 = vld [vmem:[%s4012 + $0x130] sm:$0xf]
        %v4090 = vld [vmem:[%s4012 + $0x134] sm:$0xf]
        %v4091 = vld [vmem:[%s4012 + $0x138] sm:$0xf]
        %v4092 = vld [vmem:[%s4012 + $0x13c] sm:$0xf]
        %v4093 = vld [vmem:[%s4012 + $0x140] sm:$0xf]
        %v4094 = vld [vmem:[%s4012 + $0x144] sm:$0xf]
        %v4095 = vld [vmem:[%s4012 + $0x148] sm:$0xf]
        %v4096 = vld [vmem:[%s4012 + $0x14c] sm:$0xf]
        %v4097 = vld [vmem:[%s4012 + $0x150] sm:$0xf]
        %v4098 = vld [vmem:[%s4012 + $0x154] sm:$0xf]
        %v4099 = vld [vmem:[%s4012 + $0x158] sm:$0xf]
        %v4100 = vld [vmem:[%s4012 + $0x15c] sm:$0xf]
        %v4101 = vld [vmem:[%s4012 + $0x160] sm:$0xf]
        %v4102 = vld [vmem:[%s4012 + $0x164] sm:$0xf]
        %v4103 = vld [vmem:[%s4012 + $0x168] sm:$0xf]
        %v4104 = vld [vmem:[%s4012 + $0x16c] sm:$0xf]
        %v4105 = vld [vmem:[%s4012 + $0x170] sm:$0xf]
        %v4106 = vld [vmem:[%s4012 + $0x174] sm:$0xf]
        %v4107 = vld [vmem:[%s4012 + $0x178] sm:$0xf]
        %v4108 = vld [vmem:[%s4012 + $0x17c] sm:$0xf]
        %v4109 = vld [vmem:[%s4012 + $0x180] sm:$0xf]
        %v4110 = vld [vmem:[%s4012 + $0x184] sm:$0xf]
        %v4111 = vld [vmem:[%s4012 + $0x188] sm:$0xf]
        %v4112 = vld [vmem:[%s4012 + $0x18c] sm:$0xf]
        %v4113 = vld [vmem:[%s4012 + $0x190] sm:$0xf]
        %v4114 = vld [vmem:[%s4012 + $0x194] sm:$0xf]
        %v4115 = vld [vmem:[%s4012 + $0x198] sm:$0xf]
        %v4116 = vld [vmem:[%s4012 + $0x19c] sm:$0xf]
        %v4117 = vld [vmem:[%s4012 + $0x1a0] sm:$0xf]
        %v4118 = vld [vmem:[%s4012 + $0x1a4] sm:$0xf]
        %v4119 = vld [vmem:[%s4012 + $0x1a8] sm:$0xf]
        %v4120 = vld [vmem:[%s4012 + $0x1ac] sm:$0xf]
        %v4121 = vld [vmem:[%s4012 + $0x1b0] sm:$0xf]
        %v4122 = vld [vmem:[%s4012 + $0x1b4] sm:$0xf]
        %v4123 = vld [vmem:[%s4012 + $0x1b8] sm:$0xf]
        %v4124 = vld [vmem:[%s4012 + $0x1bc] sm:$0xf]
        %v4125 = vld [vmem:[%s4012 + $0x1c0] sm:$0xf]
        %v4126 = vld [vmem:[%s4012 + $0x1c4] sm:$0xf]
        %v4127 = vld [vmem:[%s4012 + $0x1c8] sm:$0xf]
        %v4128 = vld [vmem:[%s4012 + $0x1cc] sm:$0xf]
        %v4129 = vld [vmem:[%s4012 + $0x1d0] sm:$0xf]
        %v4130 = vld [vmem:[%s4012 + $0x1d4] sm:$0xf]
        %v4131 = vld [vmem:[%s4012 + $0x1d8] sm:$0xf]
        %v4132 = vld [vmem:[%s4012 + $0x1dc] sm:$0xf]
        %v4133 = vld [vmem:[%s4012 + $0x1e0] sm:$0xf]
        %v4134 = vld [vmem:[%s4012 + $0x1e4] sm:$0xf]
        %v4135 = vld [vmem:[%s4012 + $0x1e8] sm:$0xf]
        %v4136 = vld [vmem:[%s4012 + $0x1ec] sm:$0xf]
        %v4137 = vld [vmem:[%s4012 + $0x1f0] sm:$0xf]
        %v4138 = vld [vmem:[%s4012 + $0x1f4] sm:$0xf]
        %v4139 = vld [vmem:[%s4012 + $0x1f8] sm:$0xf]
        %v4140 = vld [vmem:[%s4012 + $0x1fc] sm:$0xf]
        %v4173 = vunpack.c.l.b16 %v3980
        %v4174 = vunpack.c.h.b16 %v3980
        %v4175 = vunpack.c.l.b16 %v3981
        %v4176 = vunpack.c.h.b16 %v3981
        %v4177 = vunpack.c.l.b16 %v3982
        %v4178 = vunpack.c.h.b16 %v3982
        %v4179 = vunpack.c.l.b16 %v3983
        %v4180 = vunpack.c.h.b16 %v3983
        %v4181 = vunpack.c.l.b16 %v3984
        %v4182 = vunpack.c.h.b16 %v3984
        %v4183 = vunpack.c.l.b16 %v3985
        %v4184 = vunpack.c.h.b16 %v3985
        %v4185 = vunpack.c.l.b16 %v3986
        %v4186 = vunpack.c.h.b16 %v3986
        %v4187 = vunpack.c.l.b16 %v3987
        %v4188 = vunpack.c.h.b16 %v3987
        %v4189 = vunpack.c.l.b16 %v3988
        %v4190 = vunpack.c.h.b16 %v3988
        %v4191 = vunpack.c.l.b16 %v3989
        %v4192 = vunpack.c.h.b16 %v3989
        %v4193 = vunpack.c.l.b16 %v3990
        %v4194 = vunpack.c.h.b16 %v3990
        %v4195 = vunpack.c.l.b16 %v3991
        %v4196 = vunpack.c.h.b16 %v3991
        %v4197 = vunpack.c.l.b16 %v3992
        %v4198 = vunpack.c.h.b16 %v3992
        %v4199 = vunpack.c.l.b16 %v3993
        %v4200 = vunpack.c.h.b16 %v3993
        %v4201 = vunpack.c.l.b16 %v3994
        %v4202 = vunpack.c.h.b16 %v3994
        %v4203 = vunpack.c.l.b16 %v3995
        %v4204 = vunpack.c.h.b16 %v3995
        %v4205 = vunpack.c.l.b16 %v3996
        %v4206 = vunpack.c.h.b16 %v3996
        %v4207 = vunpack.c.l.b16 %v3997
        %v4208 = vunpack.c.h.b16 %v3997
        %v4209 = vunpack.c.l.b16 %v3998
        %v4210 = vunpack.c.h.b16 %v3998
        %v4211 = vunpack.c.l.b16 %v3999
        %v4212 = vunpack.c.h.b16 %v3999
        %v4213 = vunpack.c.l.b16 %v4000
        %v4214 = vunpack.c.h.b16 %v4000
        %v4215 = vunpack.c.l.b16 %v4001
        %v4216 = vunpack.c.h.b16 %v4001
        %v4217 = vunpack.c.l.b16 %v4002
        %v4218 = vunpack.c.h.b16 %v4002
        %v4219 = vunpack.c.l.b16 %v4003
        %v4220 = vunpack.c.h.b16 %v4003
        %v4221 = vunpack.c.l.b16 %v4004
        %v4222 = vunpack.c.h.b16 %v4004
        %v4223 = vunpack.c.l.b16 %v4005
        %v4224 = vunpack.c.h.b16 %v4005
        %v4225 = vunpack.c.l.b16 %v4006
        %v4226 = vunpack.c.h.b16 %v4006
        %v4227 = vunpack.c.l.b16 %v4007
        %v4228 = vunpack.c.h.b16 %v4007
        %v4229 = vunpack.c.l.b16 %v4008
        %v4230 = vunpack.c.h.b16 %v4008
        %v4231 = vunpack.c.l.b16 %v4009
        %v4232 = vunpack.c.h.b16 %v4009
        %v4233 = vunpack.c.l.b16 %v4010
        %v4234 = vunpack.c.h.b16 %v4010
        %v4235 = vunpack.c.l.b16 %v4011
        %v4236 = vunpack.c.h.b16 %v4011
        %v4237 = vpack.c.b16 %v4181, %v4173
        %v4238 = vpack.c.b16 %v4182, %v4174
        %v4239 = vpack.c.b16 %v4183, %v4175
        %v4240 = vpack.c.b16 %v4184, %v4176
        %v4241 = vpack.c.b16 %v4185, %v4177
        %v4242 = vpack.c.b16 %v4186, %v4178
        %v4243 = vpack.c.b16 %v4187, %v4179
        %v4244 = vpack.c.b16 %v4188, %v4180
        %v4245 = vpack.c.b16 %v4197, %v4189
        %v4246 = vpack.c.b16 %v4198, %v4190
        %v4247 = vpack.c.b16 %v4199, %v4191
        %v4248 = vpack.c.b16 %v4200, %v4192
        %v4249 = vpack.c.b16 %v4201, %v4193
        %v4250 = vpack.c.b16 %v4202, %v4194
        %v4251 = vpack.c.b16 %v4203, %v4195
        %v4252 = vpack.c.b16 %v4204, %v4196
        %v4253 = vpack.c.b16 %v4213, %v4205
        %v4254 = vpack.c.b16 %v4214, %v4206
        %v4255 = vpack.c.b16 %v4215, %v4207
        %v4256 = vpack.c.b16 %v4216, %v4208
        %v4257 = vpack.c.b16 %v4217, %v4209
        %v4258 = vpack.c.b16 %v4218, %v4210
        %v4259 = vpack.c.b16 %v4219, %v4211
        %v4260 = vpack.c.b16 %v4220, %v4212
        %v4261 = vpack.c.b16 %v4229, %v4221
        %v4262 = vpack.c.b16 %v4230, %v4222
        %v4263 = vpack.c.b16 %v4231, %v4223
        %v4264 = vpack.c.b16 %v4232, %v4224
        %v4265 = vpack.c.b16 %v4233, %v4225
        %v4266 = vpack.c.b16 %v4234, %v4226
        %v4267 = vpack.c.b16 %v4235, %v4227
        %v4268 = vpack.c.b16 %v4236, %v4228
        %v4429 = vunpack.c.l.b16 %v4013
        %v4430 = vunpack.c.l.b16 %v4014
        %v4431 = vunpack.c.l.b16 %v4015
        %v4432 = vunpack.c.l.b16 %v4016
        %v4433 = vunpack.c.l.b16 %v4017
        %v4434 = vunpack.c.l.b16 %v4018
        %v4435 = vunpack.c.l.b16 %v4019
        %v4436 = vunpack.c.l.b16 %v4020
        %v4437 = vunpack.c.l.b16 %v4021
        %v4438 = vunpack.c.l.b16 %v4022
        %v4439 = vunpack.c.l.b16 %v4023
        %v4440 = vunpack.c.l.b16 %v4024
        %v4441 = vunpack.c.l.b16 %v4025
        %v4442 = vunpack.c.l.b16 %v4026
        %v4443 = vunpack.c.l.b16 %v4027
        %v4444 = vunpack.c.l.b16 %v4028
        %v4445 = vunpack.c.l.b16 %v4029
        %v4446 = vunpack.c.l.b16 %v4030
        %v4447 = vunpack.c.l.b16 %v4031
        %v4448 = vunpack.c.l.b16 %v4032
        %v4449 = vunpack.c.l.b16 %v4033
        %v4450 = vunpack.c.l.b16 %v4034
        %v4451 = vunpack.c.l.b16 %v4035
        %v4452 = vunpack.c.l.b16 %v4036
        %v4453 = vunpack.c.l.b16 %v4037
        %v4454 = vunpack.c.l.b16 %v4038
        %v4455 = vunpack.c.l.b16 %v4039
        %v4456 = vunpack.c.l.b16 %v4040
        %v4457 = vunpack.c.l.b16 %v4041
        %v4458 = vunpack.c.l.b16 %v4042
        %v4459 = vunpack.c.l.b16 %v4043
        %v4460 = vunpack.c.l.b16 %v4044
        %v4461 = vunpack.c.l.b16 %v4045
        %v4462 = vunpack.c.l.b16 %v4046
        %v4463 = vunpack.c.l.b16 %v4047
        %v4464 = vunpack.c.l.b16 %v4048
        %v4465 = vunpack.c.l.b16 %v4049
        %v4466 = vunpack.c.l.b16 %v4050
        %v4467 = vunpack.c.l.b16 %v4051
        %v4468 = vunpack.c.l.b16 %v4052
        %v4469 = vunpack.c.l.b16 %v4053
        %v4470 = vunpack.c.l.b16 %v4054
        %v4471 = vunpack.c.l.b16 %v4055
        %v4472 = vunpack.c.l.b16 %v4056
        %v4473 = vunpack.c.l.b16 %v4057
        %v4474 = vunpack.c.l.b16 %v4058
        %v4475 = vunpack.c.l.b16 %v4059
        %v4476 = vunpack.c.l.b16 %v4060
        %v4477 = vunpack.c.l.b16 %v4061
        %v4478 = vunpack.c.l.b16 %v4062
        %v4479 = vunpack.c.l.b16 %v4063
        %v4480 = vunpack.c.l.b16 %v4064
        %v4481 = vunpack.c.l.b16 %v4065
        %v4482 = vunpack.c.l.b16 %v4066
        %v4483 = vunpack.c.l.b16 %v4067
        %v4484 = vunpack.c.l.b16 %v4068
        %v4485 = vunpack.c.l.b16 %v4069
        %v4486 = vunpack.c.l.b16 %v4070
        %v4487 = vunpack.c.l.b16 %v4071
        %v4488 = vunpack.c.l.b16 %v4072
        %v4489 = vunpack.c.l.b16 %v4073
        %v4490 = vunpack.c.l.b16 %v4074
        %v4491 = vunpack.c.l.b16 %v4075
        %v4492 = vunpack.c.l.b16 %v4076
        %v4493 = vunpack.c.l.b16 %v4077
        %v4494 = vunpack.c.l.b16 %v4078
        %v4495 = vunpack.c.l.b16 %v4079
        %v4496 = vunpack.c.l.b16 %v4080
        %v4497 = vunpack.c.l.b16 %v4081
        %v4498 = vunpack.c.l.b16 %v4082
        %v4499 = vunpack.c.l.b16 %v4083
        %v4500 = vunpack.c.l.b16 %v4084
        %v4501 = vunpack.c.l.b16 %v4085
        %v4502 = vunpack.c.l.b16 %v4086
        %v4503 = vunpack.c.l.b16 %v4087
        %v4504 = vunpack.c.l.b16 %v4088
        %v4505 = vunpack.c.l.b16 %v4089
        %v4506 = vunpack.c.l.b16 %v4090
        %v4507 = vunpack.c.l.b16 %v4091
        %v4508 = vunpack.c.l.b16 %v4092
        %v4509 = vunpack.c.l.b16 %v4093
        %v4510 = vunpack.c.l.b16 %v4094
        %v4511 = vunpack.c.l.b16 %v4095
        %v4512 = vunpack.c.l.b16 %v4096
        %v4513 = vunpack.c.l.b16 %v4097
        %v4514 = vunpack.c.l.b16 %v4098
        %v4515 = vunpack.c.l.b16 %v4099
        %v4516 = vunpack.c.l.b16 %v4100
        %v4517 = vunpack.c.l.b16 %v4101
        %v4518 = vunpack.c.l.b16 %v4102
        %v4519 = vunpack.c.l.b16 %v4103
        %v4520 = vunpack.c.l.b16 %v4104
        %v4521 = vunpack.c.l.b16 %v4105
        %v4522 = vunpack.c.l.b16 %v4106
        %v4523 = vunpack.c.l.b16 %v4107
        %v4524 = vunpack.c.l.b16 %v4108
        %v4525 = vunpack.c.l.b16 %v4109
        %v4526 = vunpack.c.l.b16 %v4110
        %v4527 = vunpack.c.l.b16 %v4111
        %v4528 = vunpack.c.l.b16 %v4112
        %v4529 = vunpack.c.l.b16 %v4113
        %v4530 = vunpack.c.l.b16 %v4114
        %v4531 = vunpack.c.l.b16 %v4115
        %v4532 = vunpack.c.l.b16 %v4116
        %v4533 = vunpack.c.l.b16 %v4117
        %v4534 = vunpack.c.l.b16 %v4118
        %v4535 = vunpack.c.l.b16 %v4119
        %v4536 = vunpack.c.l.b16 %v4120
        %v4537 = vunpack.c.l.b16 %v4121
        %v4538 = vunpack.c.l.b16 %v4122
        %v4539 = vunpack.c.l.b16 %v4123
        %v4540 = vunpack.c.l.b16 %v4124
        %v4541 = vunpack.c.l.b16 %v4125
        %v4542 = vunpack.c.l.b16 %v4126
        %v4543 = vunpack.c.l.b16 %v4127
        %v4544 = vunpack.c.l.b16 %v4128
        %v4545 = vunpack.c.l.b16 %v4129
        %v4546 = vunpack.c.l.b16 %v4130
        %v4547 = vunpack.c.l.b16 %v4131
        %v4548 = vunpack.c.l.b16 %v4132
        %v4549 = vunpack.c.l.b16 %v4133
        %v4550 = vunpack.c.l.b16 %v4134
        %v4551 = vunpack.c.l.b16 %v4135
        %v4552 = vunpack.c.l.b16 %v4136
        %v4553 = vunpack.c.l.b16 %v4137
        %v4554 = vunpack.c.l.b16 %v4138
        %v4555 = vunpack.c.l.b16 %v4139
        %v4556 = vunpack.c.l.b16 %v4140
        %v4557 = vpack.c.b16 %v4430, %v4429
        %v4558 = vpack.c.b16 %v4432, %v4431
        %v4559 = vpack.c.b16 %v4434, %v4433
        %v4560 = vpack.c.b16 %v4436, %v4435
        %v4561 = vpack.c.b16 %v4438, %v4437
        %v4562 = vpack.c.b16 %v4440, %v4439
        %v4563 = vpack.c.b16 %v4442, %v4441
        %v4564 = vpack.c.b16 %v4444, %v4443
        %v4565 = vpack.c.b16 %v4446, %v4445
        %v4566 = vpack.c.b16 %v4448, %v4447
        %v4567 = vpack.c.b16 %v4450, %v4449
        %v4568 = vpack.c.b16 %v4452, %v4451
        %v4569 = vpack.c.b16 %v4454, %v4453
        %v4570 = vpack.c.b16 %v4456, %v4455
        %v4571 = vpack.c.b16 %v4458, %v4457
        %v4572 = vpack.c.b16 %v4460, %v4459
        %v4573 = vpack.c.b16 %v4462, %v4461
        %v4574 = vpack.c.b16 %v4464, %v4463
        %v4575 = vpack.c.b16 %v4466, %v4465
        %v4576 = vpack.c.b16 %v4468, %v4467
        %v4577 = vpack.c.b16 %v4470, %v4469
        %v4578 = vpack.c.b16 %v4472, %v4471
        %v4579 = vpack.c.b16 %v4474, %v4473
        %v4580 = vpack.c.b16 %v4476, %v4475
        %v4581 = vpack.c.b16 %v4478, %v4477
        %v4582 = vpack.c.b16 %v4480, %v4479
        %v4583 = vpack.c.b16 %v4482, %v4481
        %v4584 = vpack.c.b16 %v4484, %v4483
        %v4585 = vpack.c.b16 %v4486, %v4485
        %v4586 = vpack.c.b16 %v4488, %v4487
        %v4587 = vpack.c.b16 %v4490, %v4489
        %v4588 = vpack.c.b16 %v4492, %v4491
        %v4589 = vpack.c.b16 %v4494, %v4493
        %v4590 = vpack.c.b16 %v4496, %v4495
        %v4591 = vpack.c.b16 %v4498, %v4497
        %v4592 = vpack.c.b16 %v4500, %v4499
        %v4593 = vpack.c.b16 %v4502, %v4501
        %v4594 = vpack.c.b16 %v4504, %v4503
        %v4595 = vpack.c.b16 %v4506, %v4505
        %v4596 = vpack.c.b16 %v4508, %v4507
        %v4597 = vpack.c.b16 %v4510, %v4509
        %v4598 = vpack.c.b16 %v4512, %v4511
        %v4599 = vpack.c.b16 %v4514, %v4513
        %v4600 = vpack.c.b16 %v4516, %v4515
        %v4601 = vpack.c.b16 %v4518, %v4517
        %v4602 = vpack.c.b16 %v4520, %v4519
        %v4603 = vpack.c.b16 %v4522, %v4521
        %v4604 = vpack.c.b16 %v4524, %v4523
        %v4605 = vpack.c.b16 %v4526, %v4525
        %v4606 = vpack.c.b16 %v4528, %v4527
        %v4607 = vpack.c.b16 %v4530, %v4529
        %v4608 = vpack.c.b16 %v4532, %v4531
        %v4609 = vpack.c.b16 %v4534, %v4533
        %v4610 = vpack.c.b16 %v4536, %v4535
        %v4611 = vpack.c.b16 %v4538, %v4537
        %v4612 = vpack.c.b16 %v4540, %v4539
        %v4613 = vpack.c.b16 %v4542, %v4541
        %v4614 = vpack.c.b16 %v4544, %v4543
        %v4615 = vpack.c.b16 %v4546, %v4545
        %v4616 = vpack.c.b16 %v4548, %v4547
        %v4617 = vpack.c.b16 %v4550, %v4549
        %v4618 = vpack.c.b16 %v4552, %v4551
        %v4619 = vpack.c.b16 %v4554, %v4553
        %v4620 = vpack.c.b16 %v4556, %v4555
        %4685 = vmatprep.subr.bf16.mxu0 0
        %4686 = vmatpush1.bf16.msra.mxu0 %v4557
        %4687 = vmatprep.subr.bf16.mxu0 0
        %4688 = vmatpush1.bf16.msra.mxu0 %v4558
        %4689 = vmatprep.subr.bf16.mxu0 0
        %4690 = vmatpush1.bf16.msra.mxu0 %v4559
        %4691 = vmatprep.subr.bf16.mxu0 0
        %4692 = vmatpush1.bf16.msra.mxu0 %v4560
        %4693 = vmatprep.subr.bf16.mxu0 0
        %4694 = vmatpush1.bf16.msra.mxu0 %v4561
        %4695 = vmatprep.subr.bf16.mxu0 0
        %4696 = vmatpush1.bf16.msra.mxu0 %v4562
        %4697 = vmatprep.subr.bf16.mxu0 0
        %4698 = vmatpush1.bf16.msra.mxu0 %v4563
        %4699 = vmatprep.subr.bf16.mxu0 0
        %4700 = vmatpush1.bf16.msra.mxu0 %v4564
        %4701 = vmatprep.subr.bf16.mxu0 0
        %4702 = vmatpush1.bf16.msra.mxu0 %v4565
        %4703 = vmatprep.subr.bf16.mxu0 0
        %4704 = vmatpush1.bf16.msra.mxu0 %v4566
        %4705 = vmatprep.subr.bf16.mxu0 0
        %4706 = vmatpush1.bf16.msra.mxu0 %v4567
        %4707 = vmatprep.subr.bf16.mxu0 0
        %4708 = vmatpush1.bf16.msra.mxu0 %v4568
        %4709 = vmatprep.subr.bf16.mxu0 0
        %4710 = vmatpush1.bf16.msra.mxu0 %v4569
        %4711 = vmatprep.subr.bf16.mxu0 0
        %4712 = vmatpush1.bf16.msra.mxu0 %v4570
        %4713 = vmatprep.subr.bf16.mxu0 0
        %4714 = vmatpush1.bf16.msra.mxu0 %v4571
        %4715 = vmatprep.subr.bf16.mxu0 0
        %4716 = vmatpush1.bf16.msra.mxu0 %v4572
        %4717 = vmatprep.mubr.bf16.mxu0 %v4238
        %4718 = vmatmul.mubr.bf16.gmra.mrb[0].mxu0 %v4237
        %v4719 = vpop.f32.mrb[0].mxu0
        %v4720 = vadd.f32 0.0, %v4719
        %v4721 = vpop.f32.mrb[0].mxu0
        %v4722 = vpop.f32.mrb[0].mxu0
        %v4723 = vadd.f32 0.0, %v4722
        %v4724 = vpop.f32.mrb[0].mxu0
        %4725 = vmatprep.mubr.bf16.mxu0 %v4246
        %4726 = vmatmul.mubr.bf16.gmra.mrb[0].mxu0 %v4245
        %v4727 = vpop.f32.mrb[0].mxu0
        %v4728 = vadd.f32 0.0, %v4727
        %v4729 = vpop.f32.mrb[0].mxu0
        %v4730 = vpop.f32.mrb[0].mxu0
        %v4731 = vadd.f32 0.0, %v4730
        %v4732 = vpop.f32.mrb[0].mxu0
        %4733 = vmatprep.mubr.bf16.mxu0 %v4254
        %4734 = vmatmul.mubr.bf16.gmra.mrb[0].mxu0 %v4253
        %v4735 = vpop.f32.mrb[0].mxu0
        %v4736 = vadd.f32 0.0, %v4735
        %v4737 = vpop.f32.mrb[0].mxu0
        %v4738 = vpop.f32.mrb[0].mxu0
        %v4739 = vadd.f32 0.0, %v4738
        %v4740 = vpop.f32.mrb[0].mxu0
        %4741 = vmatprep.mubr.bf16.mxu0 %v4262
        %4742 = vmatmul.mubr.bf16.gmra.mrb[0].mxu0 %v4261
        %v4743 = vpop.f32.mrb[0].mxu0
        %v4744 = vadd.f32 0.0, %v4743
        %v4745 = vpop.f32.mrb[0].mxu0
        %v4746 = vpop.f32.mrb[0].mxu0
        %v4747 = vadd.f32 0.0, %v4746
        %v4748 = vpop.f32.mrb[0].mxu0
        %4749 = vdwg.mxu0
        %4750 = vmatprep.subr.bf16.mxu0 0
        %4751 = vmatpush1.bf16.msra.mxu0 %v4573
        %4752 = vmatprep.subr.bf16.mxu0 0
        %4753 = vmatpush1.bf16.msra.mxu0 %v4574
        %4754 = vmatprep.subr.bf16.mxu0 0
        %4755 = vmatpush1.bf16.msra.mxu0 %v4575
        %4756 = vmatprep.subr.bf16.mxu0 0
        %4757 = vmatpush1.bf16.msra.mxu0 %v4576
        %4758 = vmatprep.subr.bf16.mxu0 0
        %4759 = vmatpush1.bf16.msra.mxu0 %v4577
        %4760 = vmatprep.subr.bf16.mxu0 0
        %4761 = vmatpush1.bf16.msra.mxu0 %v4578
        %4762 = vmatprep.subr.bf16.mxu0 0
        %4763 = vmatpush1.bf16.msra.mxu0 %v4579
        %4764 = vmatprep.subr.bf16.mxu0 0
        %4765 = vmatpush1.bf16.msra.mxu0 %v4580
        %4766 = vmatprep.subr.bf16.mxu0 0
        %4767 = vmatpush1.bf16.msra.mxu0 %v4581
        %4768 = vmatprep.subr.bf16.mxu0 0
        %4769 = vmatpush1.bf16.msra.mxu0 %v4582
        %4770 = vmatprep.subr.bf16.mxu0 0
        %4771 = vmatpush1.bf16.msra.mxu0 %v4583
        %4772 = vmatprep.subr.bf16.mxu0 0
        %4773 = vmatpush1.bf16.msra.mxu0 %v4584
        %4774 = vmatprep.subr.bf16.mxu0 0
        %4775 = vmatpush1.bf16.msra.mxu0 %v4585
        %4776 = vmatprep.subr.bf16.mxu0 0
        %4777 = vmatpush1.bf16.msra.mxu0 %v4586
        %4778 = vmatprep.subr.bf16.mxu0 0
        %4779 = vmatpush1.bf16.msra.mxu0 %v4587
        %4780 = vmatprep.subr.bf16.mxu0 0
        %4781 = vmatpush1.bf16.msra.mxu0 %v4588
        %4782 = vmatprep.mubr.bf16.mxu0 %v4240
        %4783 = vmatmul.mubr.bf16.gmra.mrb[0].mxu0 %v4239
        %v4784 = vpop.f32.mrb[0].mxu0
        %v4785 = vadd.f32 %v4720, %v4784
        %v4786 = vpop.f32.mrb[0].mxu0
        %v4787 = vpop.f32.mrb[0].mxu0
        %v4788 = vadd.f32 %v4723, %v4787
        %v4789 = vpop.f32.mrb[0].mxu0
        %4790 = vmatprep.mubr.bf16.mxu0 %v4248
        %4791 = vmatmul.mubr.bf16.gmra.mrb[0].mxu0 %v4247
        %v4792 = vpop.f32.mrb[0].mxu0
        %v4793 = vadd.f32 %v4728, %v4792
        %v4794 = vpop.f32.mrb[0].mxu0
        %v4795 = vpop.f32.mrb[0].mxu0
        %v4796 = vadd.f32 %v4731, %v4795
        %v4797 = vpop.f32.mrb[0].mxu0
        %4798 = vmatprep.mubr.bf16.mxu0 %v4256
        %4799 = vmatmul.mubr.bf16.gmra.mrb[0].mxu0 %v4255
        %v4800 = vpop.f32.mrb[0].mxu0
        %v4801 = vadd.f32 %v4736, %v4800
        %v4802 = vpop.f32.mrb[0].mxu0
        %v4803 = vpop.f32.mrb[0].mxu0
        %v4804 = vadd.f32 %v4739, %v4803
        %v4805 = vpop.f32.mrb[0].mxu0
        %4806 = vmatprep.mubr.bf16.mxu0 %v4264
        %4807 = vmatmul.mubr.bf16.gmra.mrb[0].mxu0 %v4263
        %v4808 = vpop.f32.mrb[0].mxu0
        %v4809 = vadd.f32 %v4744, %v4808
        %v4810 = vpop.f32.mrb[0].mxu0
        %v4811 = vpop.f32.mrb[0].mxu0
        %v4812 = vadd.f32 %v4747, %v4811
        %v4813 = vpop.f32.mrb[0].mxu0
        %4814 = vdwg.mxu0
        %4815 = vmatprep.subr.bf16.mxu0 0
        %4816 = vmatpush1.bf16.msra.mxu0 %v4589
        %4817 = vmatprep.subr.bf16.mxu0 0
        %4818 = vmatpush1.bf16.msra.mxu0 %v4590
        %4819 = vmatprep.subr.bf16.mxu0 0
        %4820 = vmatpush1.bf16.msra.mxu0 %v4591
        %4821 = vmatprep.subr.bf16.mxu0 0
        %4822 = vmatpush1.bf16.msra.mxu0 %v4592
        %4823 = vmatprep.subr.bf16.mxu0 0
        %4824 = vmatpush1.bf16.msra.mxu0 %v4593
        %4825 = vmatprep.subr.bf16.mxu0 0
        %4826 = vmatpush1.bf16.msra.mxu0 %v4594
        %4827 = vmatprep.subr.bf16.mxu0 0
        %4828 = vmatpush1.bf16.msra.mxu0 %v4595
        %4829 = vmatprep.subr.bf16.mxu0 0
        %4830 = vmatpush1.bf16.msra.mxu0 %v4596
        %4831 = vmatprep.subr.bf16.mxu0 0
        %4832 = vmatpush1.bf16.msra.mxu0 %v4597
        %4833 = vmatprep.subr.bf16.mxu0 0
        %4834 = vmatpush1.bf16.msra.mxu0 %v4598
        %4835 = vmatprep.subr.bf16.mxu0 0
        %4836 = vmatpush1.bf16.msra.mxu0 %v4599
        %4837 = vmatprep.subr.bf16.mxu0 0
        %4838 = vmatpush1.bf16.msra.mxu0 %v4600
        %4839 = vmatprep.subr.bf16.mxu0 0
        %4840 = vmatpush1.bf16.msra.mxu0 %v4601
        %4841 = vmatprep.subr.bf16.mxu0 0
        %4842 = vmatpush1.bf16.msra.mxu0 %v4602
        %4843 = vmatprep.subr.bf16.mxu0 0
        %4844 = vmatpush1.bf16.msra.mxu0 %v4603
        %4845 = vmatprep.subr.bf16.mxu0 0
        %4846 = vmatpush1.bf16.msra.mxu0 %v4604
        %4847 = vmatprep.mubr.bf16.mxu0 %v4242
        %4848 = vmatmul.mubr.bf16.gmra.mrb[0].mxu0 %v4241
        %v4849 = vpop.f32.mrb[0].mxu0
        %v4850 = vadd.f32 %v4785, %v4849
        %v4851 = vpop.f32.mrb[0].mxu0
        %v4852 = vpop.f32.mrb[0].mxu0
        %v4853 = vadd.f32 %v4788, %v4852
        %v4854 = vpop.f32.mrb[0].mxu0
        %4855 = vmatprep.mubr.bf16.mxu0 %v4250
        %4856 = vmatmul.mubr.bf16.gmra.mrb[0].mxu0 %v4249
        %v4857 = vpop.f32.mrb[0].mxu0
        %v4858 = vadd.f32 %v4793, %v4857
        %v4859 = vpop.f32.mrb[0].mxu0
        %v4860 = vpop.f32.mrb[0].mxu0
        %v4861 = vadd.f32 %v4796, %v4860
        %v4862 = vpop.f32.mrb[0].mxu0
        %4863 = vmatprep.mubr.bf16.mxu0 %v4258
        %4864 = vmatmul.mubr.bf16.gmra.mrb[0].mxu0 %v4257
        %v4865 = vpop.f32.mrb[0].mxu0
        %v4866 = vadd.f32 %v4801, %v4865
        %v4867 = vpop.f32.mrb[0].mxu0
        %v4868 = vpop.f32.mrb[0].mxu0
        %v4869 = vadd.f32 %v4804, %v4868
        %v4870 = vpop.f32.mrb[0].mxu0
        %4871 = vmatprep.mubr.bf16.mxu0 %v4266
        %4872 = vmatmul.mubr.bf16.gmra.mrb[0].mxu0 %v4265
        %v4873 = vpop.f32.mrb[0].mxu0
        %v4874 = vadd.f32 %v4809, %v4873
        %v4875 = vpop.f32.mrb[0].mxu0
        %v4876 = vpop.f32.mrb[0].mxu0
        %v4877 = vadd.f32 %v4812, %v4876
        %v4878 = vpop.f32.mrb[0].mxu0
        %4879 = vdwg.mxu0
        %4880 = vmatprep.subr.bf16.mxu0 0
        %4881 = vmatpush1.bf16.msra.mxu0 %v4605
        %4882 = vmatprep.subr.bf16.mxu0 0
        %4883 = vmatpush1.bf16.msra.mxu0 %v4606
        %4884 = vmatprep.subr.bf16.mxu0 0
        %4885 = vmatpush1.bf16.msra.mxu0 %v4607
        %4886 = vmatprep.subr.bf16.mxu0 0
        %4887 = vmatpush1.bf16.msra.mxu0 %v4608
        %4888 = vmatprep.subr.bf16.mxu0 0
        %4889 = vmatpush1.bf16.msra.mxu0 %v4609
        %4890 = vmatprep.subr.bf16.mxu0 0
        %4891 = vmatpush1.bf16.msra.mxu0 %v4610
        %4892 = vmatprep.subr.bf16.mxu0 0
        %4893 = vmatpush1.bf16.msra.mxu0 %v4611
        %4894 = vmatprep.subr.bf16.mxu0 0
        %4895 = vmatpush1.bf16.msra.mxu0 %v4612
        %4896 = vmatprep.subr.bf16.mxu0 0
        %4897 = vmatpush1.bf16.msra.mxu0 %v4613
        %4898 = vmatprep.subr.bf16.mxu0 0
        %4899 = vmatpush1.bf16.msra.mxu0 %v4614
        %4900 = vmatprep.subr.bf16.mxu0 0
        %4901 = vmatpush1.bf16.msra.mxu0 %v4615
        %4902 = vmatprep.subr.bf16.mxu0 0
        %4903 = vmatpush1.bf16.msra.mxu0 %v4616
        %4904 = vmatprep.subr.bf16.mxu0 0
        %4905 = vmatpush1.bf16.msra.mxu0 %v4617
        %4906 = vmatprep.subr.bf16.mxu0 0
        %4907 = vmatpush1.bf16.msra.mxu0 %v4618
        %4908 = vmatprep.subr.bf16.mxu0 0
        %4909 = vmatpush1.bf16.msra.mxu0 %v4619
        %4910 = vmatprep.subr.bf16.mxu0 0
        %4911 = vmatpush1.bf16.msra.mxu0 %v4620
        %4912 = vmatprep.mubr.bf16.mxu0 %v4244
        %4913 = vmatmul.mubr.bf16.gmra.mrb[0].mxu0 %v4243
        %v4914 = vpop.f32.mrb[0].mxu0
        %v4915 = vadd.f32 %v4850, %v4914
        %v4916 = vpop.f32.mrb[0].mxu0
        %v4917 = vpop.f32.mrb[0].mxu0
        %v4918 = vadd.f32 %v4853, %v4917
        %v4919 = vpop.f32.mrb[0].mxu0
        %4920 = vmatprep.mubr.bf16.mxu0 %v4252
        %4921 = vmatmul.mubr.bf16.gmra.mrb[0].mxu0 %v4251
        %v4922 = vpop.f32.mrb[0].mxu0
        %v4923 = vadd.f32 %v4858, %v4922
        %v4924 = vpop.f32.mrb[0].mxu0
        %v4925 = vpop.f32.mrb[0].mxu0
        %v4926 = vadd.f32 %v4861, %v4925
        %v4927 = vpop.f32.mrb[0].mxu0
        %4928 = vmatprep.mubr.bf16.mxu0 %v4260
        %4929 = vmatmul.mubr.bf16.gmra.mrb[0].mxu0 %v4259
        %v4930 = vpop.f32.mrb[0].mxu0
        %v4931 = vadd.f32 %v4866, %v4930
        %v4932 = vpop.f32.mrb[0].mxu0
        %v4933 = vpop.f32.mrb[0].mxu0
        %v4934 = vadd.f32 %v4869, %v4933
        %v4935 = vpop.f32.mrb[0].mxu0
        %4936 = vmatprep.mubr.bf16.mxu0 %v4268
        %4937 = vmatmul.mubr.bf16.gmra.mrb[0].mxu0 %v4267
        %v4938 = vpop.f32.mrb[0].mxu0
        %v4939 = vadd.f32 %v4874, %v4938
        %v4940 = vpop.f32.mrb[0].mxu0
        %v4941 = vpop.f32.mrb[0].mxu0
        %v4942 = vadd.f32 %v4877, %v4941
        %v4943 = vpop.f32.mrb[0].mxu0
        %4944 = vdwg.mxu0
        %v4945 = vadd.f32 %v3972, %v4915
        %v4946 = vadd.f32 %v3973, %v4918
        %v4947 = vadd.f32 %v3974, %v4923
        %v4948 = vadd.f32 %v3975, %v4926
        %v4949 = vadd.f32 %v3976, %v4931
        %v4950 = vadd.f32 %v3977, %v4934
        %v4951 = vadd.f32 %v3978, %v4939
        %v4952 = vadd.f32 %v3979, %v4942
        %v4953 = vld [vmem:[%s181 + $0xa0] sm:$0xff]
        %v4954 = vld [vmem:[%s181 + $0xa8] sm:$0xff]
        %v4955 = vld [vmem:[%s181 + $0xb0] sm:$0xff]
        %v4956 = vld [vmem:[%s181 + $0xb8] sm:$0xff]
        %v4957 = vld [vmem:[%s181 + $0xc0] sm:$0xff]
        %v4958 = vld [vmem:[%s181 + $0xc8] sm:$0xff]
        %v4959 = vld [vmem:[%s181 + $0xd0] sm:$0xff]
        %v4960 = vld [vmem:[%s181 + $0xd8] sm:$0xff]
        %v4961 = vld [vmem:[%s181 + $0xe0] sm:$0xff]
        %v4962 = vld [vmem:[%s181 + $0xe8] sm:$0xff]
        %v4963 = vld [vmem:[%s181 + $0xf0] sm:$0xff]
        %v4964 = vld [vmem:[%s181 + $0xf8] sm:$0xff]
        %v4965 = vld [vmem:[%s181 + $0x100] sm:$0xff]
        %v4966 = vld [vmem:[%s181 + $0x108] sm:$0xff]
        %v4967 = vld [vmem:[%s181 + $0x110] sm:$0xff]
        %v4968 = vld [vmem:[%s181 + $0x118] sm:$0xff]
        %v4969 = vld [vmem:[%s181 + $0x120] sm:$0xff]
        %v4970 = vld [vmem:[%s181 + $0x128] sm:$0xff]
        %v4971 = vld [vmem:[%s181 + $0x130] sm:$0xff]
        %v4972 = vld [vmem:[%s181 + $0x138] sm:$0xff]
        %v4973 = vld [vmem:[%s181 + $0x140] sm:$0xff]
        %v4974 = vld [vmem:[%s181 + $0x148] sm:$0xff]
        %v4975 = vld [vmem:[%s181 + $0x150] sm:$0xff]
        %v4976 = vld [vmem:[%s181 + $0x158] sm:$0xff]
        %v4977 = vld [vmem:[%s181 + $0x160] sm:$0xff]
        %v4978 = vld [vmem:[%s181 + $0x168] sm:$0xff]
        %v4979 = vld [vmem:[%s181 + $0x170] sm:$0xff]
        %v4980 = vld [vmem:[%s181 + $0x178] sm:$0xff]
        %v4981 = vld [vmem:[%s181 + $0x180] sm:$0xff]
        %v4982 = vld [vmem:[%s181 + $0x188] sm:$0xff]
        %v4983 = vld [vmem:[%s181 + $0x190] sm:$0xff]
        %v4984 = vld [vmem:[%s181 + $0x198] sm:$0xff]
        %s4985 = scalar_lea.vmem %s190, 2560 [#allocation5]
        %v4986 = vld [vmem:[%s4985] sm:$0xf]
        %v4987 = vld [vmem:[%s4985 + $0x4] sm:$0xf]
        %v4988 = vld [vmem:[%s4985 + $0x8] sm:$0xf]
        %v4989 = vld [vmem:[%s4985 + $0xc] sm:$0xf]
        %v4990 = vld [vmem:[%s4985 + $0x10] sm:$0xf]
        %v4991 = vld [vmem:[%s4985 + $0x14] sm:$0xf]
        %v4992 = vld [vmem:[%s4985 + $0x18] sm:$0xf]
        %v4993 = vld [vmem:[%s4985 + $0x1c] sm:$0xf]
        %v4994 = vld [vmem:[%s4985 + $0x20] sm:$0xf]
        %v4995 = vld [vmem:[%s4985 + $0x24] sm:$0xf]
        %v4996 = vld [vmem:[%s4985 + $0x28] sm:$0xf]
        %v4997 = vld [vmem:[%s4985 + $0x2c] sm:$0xf]
        %v4998 = vld [vmem:[%s4985 + $0x30] sm:$0xf]
        %v4999 = vld [vmem:[%s4985 + $0x34] sm:$0xf]
        %v5000 = vld [vmem:[%s4985 + $0x38] sm:$0xf]
        %v5001 = vld [vmem:[%s4985 + $0x3c] sm:$0xf]
        %v5002 = vld [vmem:[%s4985 + $0x40] sm:$0xf]
        %v5003 = vld [vmem:[%s4985 + $0x44] sm:$0xf]
        %v5004 = vld [vmem:[%s4985 + $0x48] sm:$0xf]
        %v5005 = vld [vmem:[%s4985 + $0x4c] sm:$0xf]
        %v5006 = vld [vmem:[%s4985 + $0x50] sm:$0xf]
        %v5007 = vld [vmem:[%s4985 + $0x54] sm:$0xf]
        %v5008 = vld [vmem:[%s4985 + $0x58] sm:$0xf]
        %v5009 = vld [vmem:[%s4985 + $0x5c] sm:$0xf]
        %v5010 = vld [vmem:[%s4985 + $0x60] sm:$0xf]
        %v5011 = vld [vmem:[%s4985 + $0x64] sm:$0xf]
        %v5012 = vld [vmem:[%s4985 + $0x68] sm:$0xf]
        %v5013 = vld [vmem:[%s4985 + $0x6c] sm:$0xf]
        %v5014 = vld [vmem:[%s4985 + $0x70] sm:$0xf]
        %v5015 = vld [vmem:[%s4985 + $0x74] sm:$0xf]
        %v5016 = vld [vmem:[%s4985 + $0x78] sm:$0xf]
        %v5017 = vld [vmem:[%s4985 + $0x7c] sm:$0xf]
        %v5018 = vld [vmem:[%s4985 + $0x80] sm:$0xf]
        %v5019 = vld [vmem:[%s4985 + $0x84] sm:$0xf]
        %v5020 = vld [vmem:[%s4985 + $0x88] sm:$0xf]
        %v5021 = vld [vmem:[%s4985 + $0x8c] sm:$0xf]
        %v5022 = vld [vmem:[%s4985 + $0x90] sm:$0xf]
        %v5023 = vld [vmem:[%s4985 + $0x94] sm:$0xf]
        %v5024 = vld [vmem:[%s4985 + $0x98] sm:$0xf]
        %v5025 = vld [vmem:[%s4985 + $0x9c] sm:$0xf]
        %v5026 = vld [vmem:[%s4985 + $0xa0] sm:$0xf]
        %v5027 = vld [vmem:[%s4985 + $0xa4] sm:$0xf]
        %v5028 = vld [vmem:[%s4985 + $0xa8] sm:$0xf]
        %v5029 = vld [vmem:[%s4985 + $0xac] sm:$0xf]
        %v5030 = vld [vmem:[%s4985 + $0xb0] sm:$0xf]
        %v5031 = vld [vmem:[%s4985 + $0xb4] sm:$0xf]
        %v5032 = vld [vmem:[%s4985 + $0xb8] sm:$0xf]
        %v5033 = vld [vmem:[%s4985 + $0xbc] sm:$0xf]
        %v5034 = vld [vmem:[%s4985 + $0xc0] sm:$0xf]
        %v5035 = vld [vmem:[%s4985 + $0xc4] sm:$0xf]
        %v5036 = vld [vmem:[%s4985 + $0xc8] sm:$0xf]
        %v5037 = vld [vmem:[%s4985 + $0xcc] sm:$0xf]
        %v5038 = vld [vmem:[%s4985 + $0xd0] sm:$0xf]
        %v5039 = vld [vmem:[%s4985 + $0xd4] sm:$0xf]
        %v5040 = vld [vmem:[%s4985 + $0xd8] sm:$0xf]
        %v5041 = vld [vmem:[%s4985 + $0xdc] sm:$0xf]
        %v5042 = vld [vmem:[%s4985 + $0xe0] sm:$0xf]
        %v5043 = vld [vmem:[%s4985 + $0xe4] sm:$0xf]
        %v5044 = vld [vmem:[%s4985 + $0xe8] sm:$0xf]
        %v5045 = vld [vmem:[%s4985 + $0xec] sm:$0xf]
        %v5046 = vld [vmem:[%s4985 + $0xf0] sm:$0xf]
        %v5047 = vld [vmem:[%s4985 + $0xf4] sm:$0xf]
        %v5048 = vld [vmem:[%s4985 + $0xf8] sm:$0xf]
        %v5049 = vld [vmem:[%s4985 + $0xfc] sm:$0xf]
        %v5050 = vld [vmem:[%s4985 + $0x100] sm:$0xf]
        %v5051 = vld [vmem:[%s4985 + $0x104] sm:$0xf]
        %v5052 = vld [vmem:[%s4985 + $0x108] sm:$0xf]
        %v5053 = vld [vmem:[%s4985 + $0x10c] sm:$0xf]
        %v5054 = vld [vmem:[%s4985 + $0x110] sm:$0xf]
        %v5055 = vld [vmem:[%s4985 + $0x114] sm:$0xf]
        %v5056 = vld [vmem:[%s4985 + $0x118] sm:$0xf]
        %v5057 = vld [vmem:[%s4985 + $0x11c] sm:$0xf]
        %v5058 = vld [vmem:[%s4985 + $0x120] sm:$0xf]
        %v5059 = vld [vmem:[%s4985 + $0x124] sm:$0xf]
        %v5060 = vld [vmem:[%s4985 + $0x128] sm:$0xf]
        %v5061 = vld [vmem:[%s4985 + $0x12c] sm:$0xf]
        %v5062 = vld [vmem:[%s4985 + $0x130] sm:$0xf]
        %v5063 = vld [vmem:[%s4985 + $0x134] sm:$0xf]
        %v5064 = vld [vmem:[%s4985 + $0x138] sm:$0xf]
        %v5065 = vld [vmem:[%s4985 + $0x13c] sm:$0xf]
        %v5066 = vld [vmem:[%s4985 + $0x140] sm:$0xf]
        %v5067 = vld [vmem:[%s4985 + $0x144] sm:$0xf]
        %v5068 = vld [vmem:[%s4985 + $0x148] sm:$0xf]
        %v5069 = vld [vmem:[%s4985 + $0x14c] sm:$0xf]
        %v5070 = vld [vmem:[%s4985 + $0x150] sm:$0xf]
        %v5071 = vld [vmem:[%s4985 + $0x154] sm:$0xf]
        %v5072 = vld [vmem:[%s4985 + $0x158] sm:$0xf]
        %v5073 = vld [vmem:[%s4985 + $0x15c] sm:$0xf]
        %v5074 = vld [vmem:[%s4985 + $0x160] sm:$0xf]
        %v5075 = vld [vmem:[%s4985 + $0x164] sm:$0xf]
        %v5076 = vld [vmem:[%s4985 + $0x168] sm:$0xf]
        %v5077 = vld [vmem:[%s4985 + $0x16c] sm:$0xf]
        %v5078 = vld [vmem:[%s4985 + $0x170] sm:$0xf]
        %v5079 = vld [vmem:[%s4985 + $0x174] sm:$0xf]
        %v5080 = vld [vmem:[%s4985 + $0x178] sm:$0xf]
        %v5081 = vld [vmem:[%s4985 + $0x17c] sm:$0xf]
        %v5082 = vld [vmem:[%s4985 + $0x180] sm:$0xf]
        %v5083 = vld [vmem:[%s4985 + $0x184] sm:$0xf]
        %v5084 = vld [vmem:[%s4985 + $0x188] sm:$0xf]
        %v5085 = vld [vmem:[%s4985 + $0x18c] sm:$0xf]
        %v5086 = vld [vmem:[%s4985 + $0x190] sm:$0xf]
        %v5087 = vld [vmem:[%s4985 + $0x194] sm:$0xf]
        %v5088 = vld [vmem:[%s4985 + $0x198] sm:$0xf]
        %v5089 = vld [vmem:[%s4985 + $0x19c] sm:$0xf]
        %v5090 = vld [vmem:[%s4985 + $0x1a0] sm:$0xf]
        %v5091 = vld [vmem:[%s4985 + $0x1a4] sm:$0xf]
        %v5092 = vld [vmem:[%s4985 + $0x1a8] sm:$0xf]
        %v5093 = vld [vmem:[%s4985 + $0x1ac] sm:$0xf]
        %v5094 = vld [vmem:[%s4985 + $0x1b0] sm:$0xf]
        %v5095 = vld [vmem:[%s4985 + $0x1b4] sm:$0xf]
        %v5096 = vld [vmem:[%s4985 + $0x1b8] sm:$0xf]
        %v5097 = vld [vmem:[%s4985 + $0x1bc] sm:$0xf]
        %v5098 = vld [vmem:[%s4985 + $0x1c0] sm:$0xf]
        %v5099 = vld [vmem:[%s4985 + $0x1c4] sm:$0xf]
        %v5100 = vld [vmem:[%s4985 + $0x1c8] sm:$0xf]
        %v5101 = vld [vmem:[%s4985 + $0x1cc] sm:$0xf]
        %v5102 = vld [vmem:[%s4985 + $0x1d0] sm:$0xf]
        %v5103 = vld [vmem:[%s4985 + $0x1d4] sm:$0xf]
        %v5104 = vld [vmem:[%s4985 + $0x1d8] sm:$0xf]
        %v5105 = vld [vmem:[%s4985 + $0x1dc] sm:$0xf]
        %v5106 = vld [vmem:[%s4985 + $0x1e0] sm:$0xf]
        %v5107 = vld [vmem:[%s4985 + $0x1e4] sm:$0xf]
        %v5108 = vld [vmem:[%s4985 + $0x1e8] sm:$0xf]
        %v5109 = vld [vmem:[%s4985 + $0x1ec] sm:$0xf]
        %v5110 = vld [vmem:[%s4985 + $0x1f0] sm:$0xf]
        %v5111 = vld [vmem:[%s4985 + $0x1f4] sm:$0xf]
        %v5112 = vld [vmem:[%s4985 + $0x1f8] sm:$0xf]
        %v5113 = vld [vmem:[%s4985 + $0x1fc] sm:$0xf]
        %v5146 = vunpack.c.l.b16 %v4953
        %v5147 = vunpack.c.h.b16 %v4953
        %v5148 = vunpack.c.l.b16 %v4954
        %v5149 = vunpack.c.h.b16 %v4954
        %v5150 = vunpack.c.l.b16 %v4955
        %v5151 = vunpack.c.h.b16 %v4955
        %v5152 = vunpack.c.l.b16 %v4956
        %v5153 = vunpack.c.h.b16 %v4956
        %v5154 = vunpack.c.l.b16 %v4957
        %v5155 = vunpack.c.h.b16 %v4957
        %v5156 = vunpack.c.l.b16 %v4958
        %v5157 = vunpack.c.h.b16 %v4958
        %v5158 = vunpack.c.l.b16 %v4959
        %v5159 = vunpack.c.h.b16 %v4959
        %v5160 = vunpack.c.l.b16 %v4960
        %v5161 = vunpack.c.h.b16 %v4960
        %v5162 = vunpack.c.l.b16 %v4961
        %v5163 = vunpack.c.h.b16 %v4961
        %v5164 = vunpack.c.l.b16 %v4962
        %v5165 = vunpack.c.h.b16 %v4962
        %v5166 = vunpack.c.l.b16 %v4963
        %v5167 = vunpack.c.h.b16 %v4963
        %v5168 = vunpack.c.l.b16 %v4964
        %v5169 = vunpack.c.h.b16 %v4964
        %v5170 = vunpack.c.l.b16 %v4965
        %v5171 = vunpack.c.h.b16 %v4965
        %v5172 = vunpack.c.l.b16 %v4966
        %v5173 = vunpack.c.h.b16 %v4966
        %v5174 = vunpack.c.l.b16 %v4967
        %v5175 = vunpack.c.h.b16 %v4967
        %v5176 = vunpack.c.l.b16 %v4968
        %v5177 = vunpack.c.h.b16 %v4968
        %v5178 = vunpack.c.l.b16 %v4969
        %v5179 = vunpack.c.h.b16 %v4969
        %v5180 = vunpack.c.l.b16 %v4970
        %v5181 = vunpack.c.h.b16 %v4970
        %v5182 = vunpack.c.l.b16 %v4971
        %v5183 = vunpack.c.h.b16 %v4971
        %v5184 = vunpack.c.l.b16 %v4972
        %v5185 = vunpack.c.h.b16 %v4972
        %v5186 = vunpack.c.l.b16 %v4973
        %v5187 = vunpack.c.h.b16 %v4973
        %v5188 = vunpack.c.l.b16 %v4974
        %v5189 = vunpack.c.h.b16 %v4974
        %v5190 = vunpack.c.l.b16 %v4975
        %v5191 = vunpack.c.h.b16 %v4975
        %v5192 = vunpack.c.l.b16 %v4976
        %v5193 = vunpack.c.h.b16 %v4976
        %v5194 = vunpack.c.l.b16 %v4977
        %v5195 = vunpack.c.h.b16 %v4977
        %v5196 = vunpack.c.l.b16 %v4978
        %v5197 = vunpack.c.h.b16 %v4978
        %v5198 = vunpack.c.l.b16 %v4979
        %v5199 = vunpack.c.h.b16 %v4979
        %v5200 = vunpack.c.l.b16 %v4980
        %v5201 = vunpack.c.h.b16 %v4980
        %v5202 = vunpack.c.l.b16 %v4981
        %v5203 = vunpack.c.h.b16 %v4981
        %v5204 = vunpack.c.l.b16 %v4982
        %v5205 = vunpack.c.h.b16 %v4982
        %v5206 = vunpack.c.l.b16 %v4983
        %v5207 = vunpack.c.h.b16 %v4983
        %v5208 = vunpack.c.l.b16 %v4984
        %v5209 = vunpack.c.h.b16 %v4984
        %v5210 = vpack.c.b16 %v5154, %v5146
        %v5211 = vpack.c.b16 %v5155, %v5147
        %v5212 = vpack.c.b16 %v5156, %v5148
        %v5213 = vpack.c.b16 %v5157, %v5149
        %v5214 = vpack.c.b16 %v5158, %v5150
        %v5215 = vpack.c.b16 %v5159, %v5151
        %v5216 = vpack.c.b16 %v5160, %v5152
        %v5217 = vpack.c.b16 %v5161, %v5153
        %v5218 = vpack.c.b16 %v5170, %v5162
        %v5219 = vpack.c.b16 %v5171, %v5163
        %v5220 = vpack.c.b16 %v5172, %v5164
        %v5221 = vpack.c.b16 %v5173, %v5165
        %v5222 = vpack.c.b16 %v5174, %v5166
        %v5223 = vpack.c.b16 %v5175, %v5167
        %v5224 = vpack.c.b16 %v5176, %v5168
        %v5225 = vpack.c.b16 %v5177, %v5169
        %v5226 = vpack.c.b16 %v5186, %v5178
        %v5227 = vpack.c.b16 %v5187, %v5179
        %v5228 = vpack.c.b16 %v5188, %v5180
        %v5229 = vpack.c.b16 %v5189, %v5181
        %v5230 = vpack.c.b16 %v5190, %v5182
        %v5231 = vpack.c.b16 %v5191, %v5183
        %v5232 = vpack.c.b16 %v5192, %v5184
        %v5233 = vpack.c.b16 %v5193, %v5185
        %v5234 = vpack.c.b16 %v5202, %v5194
        %v5235 = vpack.c.b16 %v5203, %v5195
        %v5236 = vpack.c.b16 %v5204, %v5196
        %v5237 = vpack.c.b16 %v5205, %v5197
        %v5238 = vpack.c.b16 %v5206, %v5198
        %v5239 = vpack.c.b16 %v5207, %v5199
        %v5240 = vpack.c.b16 %v5208, %v5200
        %v5241 = vpack.c.b16 %v5209, %v5201
        %v5402 = vunpack.c.l.b16 %v4986
        %v5403 = vunpack.c.l.b16 %v4987
        %v5404 = vunpack.c.l.b16 %v4988
        %v5405 = vunpack.c.l.b16 %v4989
        %v5406 = vunpack.c.l.b16 %v4990
        %v5407 = vunpack.c.l.b16 %v4991
        %v5408 = vunpack.c.l.b16 %v4992
        %v5409 = vunpack.c.l.b16 %v4993
        %v5410 = vunpack.c.l.b16 %v4994
        %v5411 = vunpack.c.l.b16 %v4995
        %v5412 = vunpack.c.l.b16 %v4996
        %v5413 = vunpack.c.l.b16 %v4997
        %v5414 = vunpack.c.l.b16 %v4998
        %v5415 = vunpack.c.l.b16 %v4999
        %v5416 = vunpack.c.l.b16 %v5000
        %v5417 = vunpack.c.l.b16 %v5001
        %v5418 = vunpack.c.l.b16 %v5002
        %v5419 = vunpack.c.l.b16 %v5003
        %v5420 = vunpack.c.l.b16 %v5004
        %v5421 = vunpack.c.l.b16 %v5005
        %v5422 = vunpack.c.l.b16 %v5006
        %v5423 = vunpack.c.l.b16 %v5007
        %v5424 = vunpack.c.l.b16 %v5008
        %v5425 = vunpack.c.l.b16 %v5009
        %v5426 = vunpack.c.l.b16 %v5010
        %v5427 = vunpack.c.l.b16 %v5011
        %v5428 = vunpack.c.l.b16 %v5012
        %v5429 = vunpack.c.l.b16 %v5013
        %v5430 = vunpack.c.l.b16 %v5014
        %v5431 = vunpack.c.l.b16 %v5015
        %v5432 = vunpack.c.l.b16 %v5016
        %v5433 = vunpack.c.l.b16 %v5017
        %v5434 = vunpack.c.l.b16 %v5018
        %v5435 = vunpack.c.l.b16 %v5019
        %v5436 = vunpack.c.l.b16 %v5020
        %v5437 = vunpack.c.l.b16 %v5021
        %v5438 = vunpack.c.l.b16 %v5022
        %v5439 = vunpack.c.l.b16 %v5023
        %v5440 = vunpack.c.l.b16 %v5024
        %v5441 = vunpack.c.l.b16 %v5025
        %v5442 = vunpack.c.l.b16 %v5026
        %v5443 = vunpack.c.l.b16 %v5027
        %v5444 = vunpack.c.l.b16 %v5028
        %v5445 = vunpack.c.l.b16 %v5029
        %v5446 = vunpack.c.l.b16 %v5030
        %v5447 = vunpack.c.l.b16 %v5031
        %v5448 = vunpack.c.l.b16 %v5032
        %v5449 = vunpack.c.l.b16 %v5033
        %v5450 = vunpack.c.l.b16 %v5034
        %v5451 = vunpack.c.l.b16 %v5035
        %v5452 = vunpack.c.l.b16 %v5036
        %v5453 = vunpack.c.l.b16 %v5037
        %v5454 = vunpack.c.l.b16 %v5038
        %v5455 = vunpack.c.l.b16 %v5039
        %v5456 = vunpack.c.l.b16 %v5040
        %v5457 = vunpack.c.l.b16 %v5041
        %v5458 = vunpack.c.l.b16 %v5042
        %v5459 = vunpack.c.l.b16 %v5043
        %v5460 = vunpack.c.l.b16 %v5044
        %v5461 = vunpack.c.l.b16 %v5045
        %v5462 = vunpack.c.l.b16 %v5046
        %v5463 = vunpack.c.l.b16 %v5047
        %v5464 = vunpack.c.l.b16 %v5048
        %v5465 = vunpack.c.l.b16 %v5049
        %v5466 = vunpack.c.l.b16 %v5050
        %v5467 = vunpack.c.l.b16 %v5051
        %v5468 = vunpack.c.l.b16 %v5052
        %v5469 = vunpack.c.l.b16 %v5053
        %v5470 = vunpack.c.l.b16 %v5054
        %v5471 = vunpack.c.l.b16 %v5055
        %v5472 = vunpack.c.l.b16 %v5056
        %v5473 = vunpack.c.l.b16 %v5057
        %v5474 = vunpack.c.l.b16 %v5058
        %v5475 = vunpack.c.l.b16 %v5059
        %v5476 = vunpack.c.l.b16 %v5060
        %v5477 = vunpack.c.l.b16 %v5061
        %v5478 = vunpack.c.l.b16 %v5062
        %v5479 = vunpack.c.l.b16 %v5063
        %v5480 = vunpack.c.l.b16 %v5064
        %v5481 = vunpack.c.l.b16 %v5065
        %v5482 = vunpack.c.l.b16 %v5066
        %v5483 = vunpack.c.l.b16 %v5067
        %v5484 = vunpack.c.l.b16 %v5068
        %v5485 = vunpack.c.l.b16 %v5069
        %v5486 = vunpack.c.l.b16 %v5070
        %v5487 = vunpack.c.l.b16 %v5071
        %v5488 = vunpack.c.l.b16 %v5072
        %v5489 = vunpack.c.l.b16 %v5073
        %v5490 = vunpack.c.l.b16 %v5074
        %v5491 = vunpack.c.l.b16 %v5075
        %v5492 = vunpack.c.l.b16 %v5076
        %v5493 = vunpack.c.l.b16 %v5077
        %v5494 = vunpack.c.l.b16 %v5078
        %v5495 = vunpack.c.l.b16 %v5079
        %v5496 = vunpack.c.l.b16 %v5080
        %v5497 = vunpack.c.l.b16 %v5081
        %v5498 = vunpack.c.l.b16 %v5082
        %v5499 = vunpack.c.l.b16 %v5083
        %v5500 = vunpack.c.l.b16 %v5084
        %v5501 = vunpack.c.l.b16 %v5085
        %v5502 = vunpack.c.l.b16 %v5086
        %v5503 = vunpack.c.l.b16 %v5087
        %v5504 = vunpack.c.l.b16 %v5088
        %v5505 = vunpack.c.l.b16 %v5089
        %v5506 = vunpack.c.l.b16 %v5090
        %v5507 = vunpack.c.l.b16 %v5091
        %v5508 = vunpack.c.l.b16 %v5092
        %v5509 = vunpack.c.l.b16 %v5093
        %v5510 = vunpack.c.l.b16 %v5094
        %v5511 = vunpack.c.l.b16 %v5095
        %v5512 = vunpack.c.l.b16 %v5096
        %v5513 = vunpack.c.l.b16 %v5097
        %v5514 = vunpack.c.l.b16 %v5098
        %v5515 = vunpack.c.l.b16 %v5099
        %v5516 = vunpack.c.l.b16 %v5100
        %v5517 = vunpack.c.l.b16 %v5101
        %v5518 = vunpack.c.l.b16 %v5102
        %v5519 = vunpack.c.l.b16 %v5103
        %v5520 = vunpack.c.l.b16 %v5104
        %v5521 = vunpack.c.l.b16 %v5105
        %v5522 = vunpack.c.l.b16 %v5106
        %v5523 = vunpack.c.l.b16 %v5107
        %v5524 = vunpack.c.l.b16 %v5108
        %v5525 = vunpack.c.l.b16 %v5109
        %v5526 = vunpack.c.l.b16 %v5110
        %v5527 = vunpack.c.l.b16 %v5111
        %v5528 = vunpack.c.l.b16 %v5112
        %v5529 = vunpack.c.l.b16 %v5113
        %v5530 = vpack.c.b16 %v5403, %v5402
        %v5531 = vpack.c.b16 %v5405, %v5404
        %v5532 = vpack.c.b16 %v5407, %v5406
        %v5533 = vpack.c.b16 %v5409, %v5408
        %v5534 = vpack.c.b16 %v5411, %v5410
        %v5535 = vpack.c.b16 %v5413, %v5412
        %v5536 = vpack.c.b16 %v5415, %v5414
        %v5537 = vpack.c.b16 %v5417, %v5416
        %v5538 = vpack.c.b16 %v5419, %v5418
        %v5539 = vpack.c.b16 %v5421, %v5420
        %v5540 = vpack.c.b16 %v5423, %v5422
        %v5541 = vpack.c.b16 %v5425, %v5424
        %v5542 = vpack.c.b16 %v5427, %v5426
        %v5543 = vpack.c.b16 %v5429, %v5428
        %v5544 = vpack.c.b16 %v5431, %v5430
        %v5545 = vpack.c.b16 %v5433, %v5432
        %v5546 = vpack.c.b16 %v5435, %v5434
        %v5547 = vpack.c.b16 %v5437, %v5436
        %v5548 = vpack.c.b16 %v5439, %v5438
        %v5549 = vpack.c.b16 %v5441, %v5440
        %v5550 = vpack.c.b16 %v5443, %v5442
        %v5551 = vpack.c.b16 %v5445, %v5444
        %v5552 = vpack.c.b16 %v5447, %v5446
        %v5553 = vpack.c.b16 %v5449, %v5448
        %v5554 = vpack.c.b16 %v5451, %v5450
        %v5555 = vpack.c.b16 %v5453, %v5452
        %v5556 = vpack.c.b16 %v5455, %v5454
        %v5557 = vpack.c.b16 %v5457, %v5456
        %v5558 = vpack.c.b16 %v5459, %v5458
        %v5559 = vpack.c.b16 %v5461, %v5460
        %v5560 = vpack.c.b16 %v5463, %v5462
        %v5561 = vpack.c.b16 %v5465, %v5464
        %v5562 = vpack.c.b16 %v5467, %v5466
        %v5563 = vpack.c.b16 %v5469, %v5468
        %v5564 = vpack.c.b16 %v5471, %v5470
        %v5565 = vpack.c.b16 %v5473, %v5472
        %v5566 = vpack.c.b16 %v5475, %v5474
        %v5567 = vpack.c.b16 %v5477, %v5476
        %v5568 = vpack.c.b16 %v5479, %v5478
        %v5569 = vpack.c.b16 %v5481, %v5480
        %v5570 = vpack.c.b16 %v5483, %v5482
        %v5571 = vpack.c.b16 %v5485, %v5484
        %v5572 = vpack.c.b16 %v5487, %v5486
        %v5573 = vpack.c.b16 %v5489, %v5488
        %v5574 = vpack.c.b16 %v5491, %v5490
        %v5575 = vpack.c.b16 %v5493, %v5492
        %v5576 = vpack.c.b16 %v5495, %v5494
        %v5577 = vpack.c.b16 %v5497, %v5496
        %v5578 = vpack.c.b16 %v5499, %v5498
        %v5579 = vpack.c.b16 %v5501, %v5500
        %v5580 = vpack.c.b16 %v5503, %v5502
        %v5581 = vpack.c.b16 %v5505, %v5504
        %v5582 = vpack.c.b16 %v5507, %v5506
        %v5583 = vpack.c.b16 %v5509, %v5508
        %v5584 = vpack.c.b16 %v5511, %v5510
        %v5585 = vpack.c.b16 %v5513, %v5512
        %v5586 = vpack.c.b16 %v5515, %v5514
        %v5587 = vpack.c.b16 %v5517, %v5516
        %v5588 = vpack.c.b16 %v5519, %v5518
        %v5589 = vpack.c.b16 %v5521, %v5520
        %v5590 = vpack.c.b16 %v5523, %v5522
        %v5591 = vpack.c.b16 %v5525, %v5524
        %v5592 = vpack.c.b16 %v5527, %v5526
        %v5593 = vpack.c.b16 %v5529, %v5528
        %5658 = vmatprep.subr.bf16.mxu0 0
        %5659 = vmatpush1.bf16.msra.mxu0 %v5530
        %5660 = vmatprep.subr.bf16.mxu0 0
        %5661 = vmatpush1.bf16.msra.mxu0 %v5531
        %5662 = vmatprep.subr.bf16.mxu0 0
        %5663 = vmatpush1.bf16.msra.mxu0 %v5532
        %5664 = vmatprep.subr.bf16.mxu0 0
        %5665 = vmatpush1.bf16.msra.mxu0 %v5533
        %5666 = vmatprep.subr.bf16.mxu0 0
        %5667 = vmatpush1.bf16.msra.mxu0 %v5534
        %5668 = vmatprep.subr.bf16.mxu0 0
        %5669 = vmatpush1.bf16.msra.mxu0 %v5535
        %5670 = vmatprep.subr.bf16.mxu0 0
        %5671 = vmatpush1.bf16.msra.mxu0 %v5536
        %5672 = vmatprep.subr.bf16.mxu0 0
        %5673 = vmatpush1.bf16.msra.mxu0 %v5537
        %5674 = vmatprep.subr.bf16.mxu0 0
        %5675 = vmatpush1.bf16.msra.mxu0 %v5538
        %5676 = vmatprep.subr.bf16.mxu0 0
        %5677 = vmatpush1.bf16.msra.mxu0 %v5539
        %5678 = vmatprep.subr.bf16.mxu0 0
        %5679 = vmatpush1.bf16.msra.mxu0 %v5540
        %5680 = vmatprep.subr.bf16.mxu0 0
        %5681 = vmatpush1.bf16.msra.mxu0 %v5541
        %5682 = vmatprep.subr.bf16.mxu0 0
        %5683 = vmatpush1.bf16.msra.mxu0 %v5542
        %5684 = vmatprep.subr.bf16.mxu0 0
        %5685 = vmatpush1.bf16.msra.mxu0 %v5543
        %5686 = vmatprep.subr.bf16.mxu0 0
        %5687 = vmatpush1.bf16.msra.mxu0 %v5544
        %5688 = vmatprep.subr.bf16.mxu0 0
        %5689 = vmatpush1.bf16.msra.mxu0 %v5545
        %5690 = vmatprep.mubr.bf16.mxu0 %v5211
        %5691 = vmatmul.mubr.bf16.gmra.mrb[0].mxu0 %v5210
        %v5692 = vpop.f32.mrb[0].mxu0
        %v5693 = vadd.f32 0.0, %v5692
        %v5694 = vpop.f32.mrb[0].mxu0
        %v5695 = vpop.f32.mrb[0].mxu0
        %v5696 = vadd.f32 0.0, %v5695
        %v5697 = vpop.f32.mrb[0].mxu0
        %5698 = vmatprep.mubr.bf16.mxu0 %v5219
        %5699 = vmatmul.mubr.bf16.gmra.mrb[0].mxu0 %v5218
        %v5700 = vpop.f32.mrb[0].mxu0
        %v5701 = vadd.f32 0.0, %v5700
        %v5702 = vpop.f32.mrb[0].mxu0
        %v5703 = vpop.f32.mrb[0].mxu0
        %v5704 = vadd.f32 0.0, %v5703
        %v5705 = vpop.f32.mrb[0].mxu0
        %5706 = vmatprep.mubr.bf16.mxu0 %v5227
        %5707 = vmatmul.mubr.bf16.gmra.mrb[0].mxu0 %v5226
        %v5708 = vpop.f32.mrb[0].mxu0
        %v5709 = vadd.f32 0.0, %v5708
        %v5710 = vpop.f32.mrb[0].mxu0
        %v5711 = vpop.f32.mrb[0].mxu0
        %v5712 = vadd.f32 0.0, %v5711
        %v5713 = vpop.f32.mrb[0].mxu0
        %5714 = vmatprep.mubr.bf16.mxu0 %v5235
        %5715 = vmatmul.mubr.bf16.gmra.mrb[0].mxu0 %v5234
        %v5716 = vpop.f32.mrb[0].mxu0
        %v5717 = vadd.f32 0.0, %v5716
        %v5718 = vpop.f32.mrb[0].mxu0
        %v5719 = vpop.f32.mrb[0].mxu0
        %v5720 = vadd.f32 0.0, %v5719
        %v5721 = vpop.f32.mrb[0].mxu0
        %5722 = vdwg.mxu0
        %5723 = vmatprep.subr.bf16.mxu0 0
        %5724 = vmatpush1.bf16.msra.mxu0 %v5546
        %5725 = vmatprep.subr.bf16.mxu0 0
        %5726 = vmatpush1.bf16.msra.mxu0 %v5547
        %5727 = vmatprep.subr.bf16.mxu0 0
        %5728 = vmatpush1.bf16.msra.mxu0 %v5548
        %5729 = vmatprep.subr.bf16.mxu0 0
        %5730 = vmatpush1.bf16.msra.mxu0 %v5549
        %5731 = vmatprep.subr.bf16.mxu0 0
        %5732 = vmatpush1.bf16.msra.mxu0 %v5550
        %5733 = vmatprep.subr.bf16.mxu0 0
        %5734 = vmatpush1.bf16.msra.mxu0 %v5551
        %5735 = vmatprep.subr.bf16.mxu0 0
        %5736 = vmatpush1.bf16.msra.mxu0 %v5552
        %5737 = vmatprep.subr.bf16.mxu0 0
        %5738 = vmatpush1.bf16.msra.mxu0 %v5553
        %5739 = vmatprep.subr.bf16.mxu0 0
        %5740 = vmatpush1.bf16.msra.mxu0 %v5554
        %5741 = vmatprep.subr.bf16.mxu0 0
        %5742 = vmatpush1.bf16.msra.mxu0 %v5555
        %5743 = vmatprep.subr.bf16.mxu0 0
        %5744 = vmatpush1.bf16.msra.mxu0 %v5556
        %5745 = vmatprep.subr.bf16.mxu0 0
        %5746 = vmatpush1.bf16.msra.mxu0 %v5557
        %5747 = vmatprep.subr.bf16.mxu0 0
        %5748 = vmatpush1.bf16.msra.mxu0 %v5558
        %5749 = vmatprep.subr.bf16.mxu0 0
        %5750 = vmatpush1.bf16.msra.mxu0 %v5559
        %5751 = vmatprep.subr.bf16.mxu0 0
        %5752 = vmatpush1.bf16.msra.mxu0 %v5560
        %5753 = vmatprep.subr.bf16.mxu0 0
        %5754 = vmatpush1.bf16.msra.mxu0 %v5561
        %5755 = vmatprep.mubr.bf16.mxu0 %v5213
        %5756 = vmatmul.mubr.bf16.gmra.mrb[0].mxu0 %v5212
        %v5757 = vpop.f32.mrb[0].mxu0
        %v5758 = vadd.f32 %v5693, %v5757
        %v5759 = vpop.f32.mrb[0].mxu0
        %v5760 = vpop.f32.mrb[0].mxu0
        %v5761 = vadd.f32 %v5696, %v5760
        %v5762 = vpop.f32.mrb[0].mxu0
        %5763 = vmatprep.mubr.bf16.mxu0 %v5221
        %5764 = vmatmul.mubr.bf16.gmra.mrb[0].mxu0 %v5220
        %v5765 = vpop.f32.mrb[0].mxu0
        %v5766 = vadd.f32 %v5701, %v5765
        %v5767 = vpop.f32.mrb[0].mxu0
        %v5768 = vpop.f32.mrb[0].mxu0
        %v5769 = vadd.f32 %v5704, %v5768
        %v5770 = vpop.f32.mrb[0].mxu0
        %5771 = vmatprep.mubr.bf16.mxu0 %v5229
        %5772 = vmatmul.mubr.bf16.gmra.mrb[0].mxu0 %v5228
        %v5773 = vpop.f32.mrb[0].mxu0
        %v5774 = vadd.f32 %v5709, %v5773
        %v5775 = vpop.f32.mrb[0].mxu0
        %v5776 = vpop.f32.mrb[0].mxu0
        %v5777 = vadd.f32 %v5712, %v5776
        %v5778 = vpop.f32.mrb[0].mxu0
        %5779 = vmatprep.mubr.bf16.mxu0 %v5237
        %5780 = vmatmul.mubr.bf16.gmra.mrb[0].mxu0 %v5236
        %v5781 = vpop.f32.mrb[0].mxu0
        %v5782 = vadd.f32 %v5717, %v5781
        %v5783 = vpop.f32.mrb[0].mxu0
        %v5784 = vpop.f32.mrb[0].mxu0
        %v5785 = vadd.f32 %v5720, %v5784
        %v5786 = vpop.f32.mrb[0].mxu0
        %5787 = vdwg.mxu0
        %5788 = vmatprep.subr.bf16.mxu0 0
        %5789 = vmatpush1.bf16.msra.mxu0 %v5562
        %5790 = vmatprep.subr.bf16.mxu0 0
        %5791 = vmatpush1.bf16.msra.mxu0 %v5563
        %5792 = vmatprep.subr.bf16.mxu0 0
        %5793 = vmatpush1.bf16.msra.mxu0 %v5564
        %5794 = vmatprep.subr.bf16.mxu0 0
        %5795 = vmatpush1.bf16.msra.mxu0 %v5565
        %5796 = vmatprep.subr.bf16.mxu0 0
        %5797 = vmatpush1.bf16.msra.mxu0 %v5566
        %5798 = vmatprep.subr.bf16.mxu0 0
        %5799 = vmatpush1.bf16.msra.mxu0 %v5567
        %5800 = vmatprep.subr.bf16.mxu0 0
        %5801 = vmatpush1.bf16.msra.mxu0 %v5568
        %5802 = vmatprep.subr.bf16.mxu0 0
        %5803 = vmatpush1.bf16.msra.mxu0 %v5569
        %5804 = vmatprep.subr.bf16.mxu0 0
        %5805 = vmatpush1.bf16.msra.mxu0 %v5570
        %5806 = vmatprep.subr.bf16.mxu0 0
        %5807 = vmatpush1.bf16.msra.mxu0 %v5571
        %5808 = vmatprep.subr.bf16.mxu0 0
        %5809 = vmatpush1.bf16.msra.mxu0 %v5572
        %5810 = vmatprep.subr.bf16.mxu0 0
        %5811 = vmatpush1.bf16.msra.mxu0 %v5573
        %5812 = vmatprep.subr.bf16.mxu0 0
        %5813 = vmatpush1.bf16.msra.mxu0 %v5574
        %5814 = vmatprep.subr.bf16.mxu0 0
        %5815 = vmatpush1.bf16.msra.mxu0 %v5575
        %5816 = vmatprep.subr.bf16.mxu0 0
        %5817 = vmatpush1.bf16.msra.mxu0 %v5576
        %5818 = vmatprep.subr.bf16.mxu0 0
        %5819 = vmatpush1.bf16.msra.mxu0 %v5577
        %5820 = vmatprep.mubr.bf16.mxu0 %v5215
        %5821 = vmatmul.mubr.bf16.gmra.mrb[0].mxu0 %v5214
        %v5822 = vpop.f32.mrb[0].mxu0
        %v5823 = vadd.f32 %v5758, %v5822
        %v5824 = vpop.f32.mrb[0].mxu0
        %v5825 = vpop.f32.mrb[0].mxu0
        %v5826 = vadd.f32 %v5761, %v5825
        %v5827 = vpop.f32.mrb[0].mxu0
        %5828 = vmatprep.mubr.bf16.mxu0 %v5223
        %5829 = vmatmul.mubr.bf16.gmra.mrb[0].mxu0 %v5222
        %v5830 = vpop.f32.mrb[0].mxu0
        %v5831 = vadd.f32 %v5766, %v5830
        %v5832 = vpop.f32.mrb[0].mxu0
        %v5833 = vpop.f32.mrb[0].mxu0
        %v5834 = vadd.f32 %v5769, %v5833
        %v5835 = vpop.f32.mrb[0].mxu0
        %5836 = vmatprep.mubr.bf16.mxu0 %v5231
        %5837 = vmatmul.mubr.bf16.gmra.mrb[0].mxu0 %v5230
        %v5838 = vpop.f32.mrb[0].mxu0
        %v5839 = vadd.f32 %v5774, %v5838
        %v5840 = vpop.f32.mrb[0].mxu0
        %v5841 = vpop.f32.mrb[0].mxu0
        %v5842 = vadd.f32 %v5777, %v5841
        %v5843 = vpop.f32.mrb[0].mxu0
        %5844 = vmatprep.mubr.bf16.mxu0 %v5239
        %5845 = vmatmul.mubr.bf16.gmra.mrb[0].mxu0 %v5238
        %v5846 = vpop.f32.mrb[0].mxu0
        %v5847 = vadd.f32 %v5782, %v5846
        %v5848 = vpop.f32.mrb[0].mxu0
        %v5849 = vpop.f32.mrb[0].mxu0
        %v5850 = vadd.f32 %v5785, %v5849
        %v5851 = vpop.f32.mrb[0].mxu0
        %5852 = vdwg.mxu0
        %5853 = vmatprep.subr.bf16.mxu0 0
        %5854 = vmatpush1.bf16.msra.mxu0 %v5578
        %5855 = vmatprep.subr.bf16.mxu0 0
        %5856 = vmatpush1.bf16.msra.mxu0 %v5579
        %5857 = vmatprep.subr.bf16.mxu0 0
        %5858 = vmatpush1.bf16.msra.mxu0 %v5580
        %5859 = vmatprep.subr.bf16.mxu0 0
        %5860 = vmatpush1.bf16.msra.mxu0 %v5581
        %5861 = vmatprep.subr.bf16.mxu0 0
        %5862 = vmatpush1.bf16.msra.mxu0 %v5582
        %5863 = vmatprep.subr.bf16.mxu0 0
        %5864 = vmatpush1.bf16.msra.mxu0 %v5583
        %5865 = vmatprep.subr.bf16.mxu0 0
        %5866 = vmatpush1.bf16.msra.mxu0 %v5584
        %5867 = vmatprep.subr.bf16.mxu0 0
        %5868 = vmatpush1.bf16.msra.mxu0 %v5585
        %5869 = vmatprep.subr.bf16.mxu0 0
        %5870 = vmatpush1.bf16.msra.mxu0 %v5586
        %5871 = vmatprep.subr.bf16.mxu0 0
        %5872 = vmatpush1.bf16.msra.mxu0 %v5587
        %5873 = vmatprep.subr.bf16.mxu0 0
        %5874 = vmatpush1.bf16.msra.mxu0 %v5588
        %5875 = vmatprep.subr.bf16.mxu0 0
        %5876 = vmatpush1.bf16.msra.mxu0 %v5589
        %5877 = vmatprep.subr.bf16.mxu0 0
        %5878 = vmatpush1.bf16.msra.mxu0 %v5590
        %5879 = vmatprep.subr.bf16.mxu0 0
        %5880 = vmatpush1.bf16.msra.mxu0 %v5591
        %5881 = vmatprep.subr.bf16.mxu0 0
        %5882 = vmatpush1.bf16.msra.mxu0 %v5592
        %5883 = vmatprep.subr.bf16.mxu0 0
        %5884 = vmatpush1.bf16.msra.mxu0 %v5593
        %5885 = vmatprep.mubr.bf16.mxu0 %v5217
        %5886 = vmatmul.mubr.bf16.gmra.mrb[0].mxu0 %v5216
        %v5887 = vpop.f32.mrb[0].mxu0
        %v5888 = vadd.f32 %v5823, %v5887
        %v5889 = vpop.f32.mrb[0].mxu0
        %v5890 = vpop.f32.mrb[0].mxu0
        %v5891 = vadd.f32 %v5826, %v5890
        %v5892 = vpop.f32.mrb[0].mxu0
        %5893 = vmatprep.mubr.bf16.mxu0 %v5225
        %5894 = vmatmul.mubr.bf16.gmra.mrb[0].mxu0 %v5224
        %v5895 = vpop.f32.mrb[0].mxu0
        %v5896 = vadd.f32 %v5831, %v5895
        %v5897 = vpop.f32.mrb[0].mxu0
        %v5898 = vpop.f32.mrb[0].mxu0
        %v5899 = vadd.f32 %v5834, %v5898
        %v5900 = vpop.f32.mrb[0].mxu0
        %5901 = vmatprep.mubr.bf16.mxu0 %v5233
        %5902 = vmatmul.mubr.bf16.gmra.mrb[0].mxu0 %v5232
        %v5903 = vpop.f32.mrb[0].mxu0
        %v5904 = vadd.f32 %v5839, %v5903
        %v5905 = vpop.f32.mrb[0].mxu0
        %v5906 = vpop.f32.mrb[0].mxu0
        %v5907 = vadd.f32 %v5842, %v5906
        %v5908 = vpop.f32.mrb[0].mxu0
        %5909 = vmatprep.mubr.bf16.mxu0 %v5241
        %5910 = vmatmul.mubr.bf16.gmra.mrb[0].mxu0 %v5240
        %v5911 = vpop.f32.mrb[0].mxu0
        %v5912 = vadd.f32 %v5847, %v5911
        %v5913 = vpop.f32.mrb[0].mxu0
        %v5914 = vpop.f32.mrb[0].mxu0
        %v5915 = vadd.f32 %v5850, %v5914
        %v5916 = vpop.f32.mrb[0].mxu0
        %5917 = vdwg.mxu0
        %v5918 = vadd.f32 %v4945, %v5888
        %v5919 = vadd.f32 %v4946, %v5891
        %v5920 = vadd.f32 %v4947, %v5896
        %v5921 = vadd.f32 %v4948, %v5899
        %v5922 = vadd.f32 %v4949, %v5904
        %v5923 = vadd.f32 %v4950, %v5907
        %v5924 = vadd.f32 %v4951, %v5912
        %v5925 = vadd.f32 %v4952, %v5915
        %v5926 = vld [vmem:[%s181 + $0xc0] sm:$0xff]
        %v5927 = vld [vmem:[%s181 + $0xc8] sm:$0xff]
        %v5928 = vld [vmem:[%s181 + $0xd0] sm:$0xff]
        %v5929 = vld [vmem:[%s181 + $0xd8] sm:$0xff]
        %v5930 = vld [vmem:[%s181 + $0xe0] sm:$0xff]
        %v5931 = vld [vmem:[%s181 + $0xe8] sm:$0xff]
        %v5932 = vld [vmem:[%s181 + $0xf0] sm:$0xff]
        %v5933 = vld [vmem:[%s181 + $0xf8] sm:$0xff]
        %v5934 = vld [vmem:[%s181 + $0x100] sm:$0xff]
        %v5935 = vld [vmem:[%s181 + $0x108] sm:$0xff]
        %v5936 = vld [vmem:[%s181 + $0x110] sm:$0xff]
        %v5937 = vld [vmem:[%s181 + $0x118] sm:$0xff]
        %v5938 = vld [vmem:[%s181 + $0x120] sm:$0xff]
        %v5939 = vld [vmem:[%s181 + $0x128] sm:$0xff]
        %v5940 = vld [vmem:[%s181 + $0x130] sm:$0xff]
        %v5941 = vld [vmem:[%s181 + $0x138] sm:$0xff]
        %v5942 = vld [vmem:[%s181 + $0x140] sm:$0xff]
        %v5943 = vld [vmem:[%s181 + $0x148] sm:$0xff]
        %v5944 = vld [vmem:[%s181 + $0x150] sm:$0xff]
        %v5945 = vld [vmem:[%s181 + $0x158] sm:$0xff]
        %v5946 = vld [vmem:[%s181 + $0x160] sm:$0xff]
        %v5947 = vld [vmem:[%s181 + $0x168] sm:$0xff]
        %v5948 = vld [vmem:[%s181 + $0x170] sm:$0xff]
        %v5949 = vld [vmem:[%s181 + $0x178] sm:$0xff]
        %v5950 = vld [vmem:[%s181 + $0x180] sm:$0xff]
        %v5951 = vld [vmem:[%s181 + $0x188] sm:$0xff]
        %v5952 = vld [vmem:[%s181 + $0x190] sm:$0xff]
        %v5953 = vld [vmem:[%s181 + $0x198] sm:$0xff]
        %v5954 = vld [vmem:[%s181 + $0x1a0] sm:$0xff]
        %v5955 = vld [vmem:[%s181 + $0x1a8] sm:$0xff]
        %v5956 = vld [vmem:[%s181 + $0x1b0] sm:$0xff]
        %v5957 = vld [vmem:[%s181 + $0x1b8] sm:$0xff]
        %s5958 = scalar_lea.vmem %s190, 3072 [#allocation5]
        %v5959 = vld [vmem:[%s5958] sm:$0xf]
        %v5960 = vld [vmem:[%s5958 + $0x4] sm:$0xf]
        %v5961 = vld [vmem:[%s5958 + $0x8] sm:$0xf]
        %v5962 = vld [vmem:[%s5958 + $0xc] sm:$0xf]
        %v5963 = vld [vmem:[%s5958 + $0x10] sm:$0xf]
        %v5964 = vld [vmem:[%s5958 + $0x14] sm:$0xf]
        %v5965 = vld [vmem:[%s5958 + $0x18] sm:$0xf]
        %v5966 = vld [vmem:[%s5958 + $0x1c] sm:$0xf]
        %v5967 = vld [vmem:[%s5958 + $0x20] sm:$0xf]
        %v5968 = vld [vmem:[%s5958 + $0x24] sm:$0xf]
        %v5969 = vld [vmem:[%s5958 + $0x28] sm:$0xf]
        %v5970 = vld [vmem:[%s5958 + $0x2c] sm:$0xf]
        %v5971 = vld [vmem:[%s5958 + $0x30] sm:$0xf]
        %v5972 = vld [vmem:[%s5958 + $0x34] sm:$0xf]
        %v5973 = vld [vmem:[%s5958 + $0x38] sm:$0xf]
        %v5974 = vld [vmem:[%s5958 + $0x3c] sm:$0xf]
        %v5975 = vld [vmem:[%s5958 + $0x40] sm:$0xf]
        %v5976 = vld [vmem:[%s5958 + $0x44] sm:$0xf]
        %v5977 = vld [vmem:[%s5958 + $0x48] sm:$0xf]
        %v5978 = vld [vmem:[%s5958 + $0x4c] sm:$0xf]
        %v5979 = vld [vmem:[%s5958 + $0x50] sm:$0xf]
        %v5980 = vld [vmem:[%s5958 + $0x54] sm:$0xf]
        %v5981 = vld [vmem:[%s5958 + $0x58] sm:$0xf]
        %v5982 = vld [vmem:[%s5958 + $0x5c] sm:$0xf]
        %v5983 = vld [vmem:[%s5958 + $0x60] sm:$0xf]
        %v5984 = vld [vmem:[%s5958 + $0x64] sm:$0xf]
        %v5985 = vld [vmem:[%s5958 + $0x68] sm:$0xf]
        %v5986 = vld [vmem:[%s5958 + $0x6c] sm:$0xf]
        %v5987 = vld [vmem:[%s5958 + $0x70] sm:$0xf]
        %v5988 = vld [vmem:[%s5958 + $0x74] sm:$0xf]
        %v5989 = vld [vmem:[%s5958 + $0x78] sm:$0xf]
        %v5990 = vld [vmem:[%s5958 + $0x7c] sm:$0xf]
        %v5991 = vld [vmem:[%s5958 + $0x80] sm:$0xf]
        %v5992 = vld [vmem:[%s5958 + $0x84] sm:$0xf]
        %v5993 = vld [vmem:[%s5958 + $0x88] sm:$0xf]
        %v5994 = vld [vmem:[%s5958 + $0x8c] sm:$0xf]
        %v5995 = vld [vmem:[%s5958 + $0x90] sm:$0xf]
        %v5996 = vld [vmem:[%s5958 + $0x94] sm:$0xf]
        %v5997 = vld [vmem:[%s5958 + $0x98] sm:$0xf]
        %v5998 = vld [vmem:[%s5958 + $0x9c] sm:$0xf]
        %v5999 = vld [vmem:[%s5958 + $0xa0] sm:$0xf]
        %v6000 = vld [vmem:[%s5958 + $0xa4] sm:$0xf]
        %v6001 = vld [vmem:[%s5958 + $0xa8] sm:$0xf]
        %v6002 = vld [vmem:[%s5958 + $0xac] sm:$0xf]
        %v6003 = vld [vmem:[%s5958 + $0xb0] sm:$0xf]
        %v6004 = vld [vmem:[%s5958 + $0xb4] sm:$0xf]
        %v6005 = vld [vmem:[%s5958 + $0xb8] sm:$0xf]
        %v6006 = vld [vmem:[%s5958 + $0xbc] sm:$0xf]
        %v6007 = vld [vmem:[%s5958 + $0xc0] sm:$0xf]
        %v6008 = vld [vmem:[%s5958 + $0xc4] sm:$0xf]
        %v6009 = vld [vmem:[%s5958 + $0xc8] sm:$0xf]
        %v6010 = vld [vmem:[%s5958 + $0xcc] sm:$0xf]
        %v6011 = vld [vmem:[%s5958 + $0xd0] sm:$0xf]
        %v6012 = vld [vmem:[%s5958 + $0xd4] sm:$0xf]
        %v6013 = vld [vmem:[%s5958 + $0xd8] sm:$0xf]
        %v6014 = vld [vmem:[%s5958 + $0xdc] sm:$0xf]
        %v6015 = vld [vmem:[%s5958 + $0xe0] sm:$0xf]
        %v6016 = vld [vmem:[%s5958 + $0xe4] sm:$0xf]
        %v6017 = vld [vmem:[%s5958 + $0xe8] sm:$0xf]
        %v6018 = vld [vmem:[%s5958 + $0xec] sm:$0xf]
        %v6019 = vld [vmem:[%s5958 + $0xf0] sm:$0xf]
        %v6020 = vld [vmem:[%s5958 + $0xf4] sm:$0xf]
        %v6021 = vld [vmem:[%s5958 + $0xf8] sm:$0xf]
        %v6022 = vld [vmem:[%s5958 + $0xfc] sm:$0xf]
        %v6023 = vld [vmem:[%s5958 + $0x100] sm:$0xf]
        %v6024 = vld [vmem:[%s5958 + $0x104] sm:$0xf]
        %v6025 = vld [vmem:[%s5958 + $0x108] sm:$0xf]
        %v6026 = vld [vmem:[%s5958 + $0x10c] sm:$0xf]
        %v6027 = vld [vmem:[%s5958 + $0x110] sm:$0xf]
        %v6028 = vld [vmem:[%s5958 + $0x114] sm:$0xf]
        %v6029 = vld [vmem:[%s5958 + $0x118] sm:$0xf]
        %v6030 = vld [vmem:[%s5958 + $0x11c] sm:$0xf]
        %v6031 = vld [vmem:[%s5958 + $0x120] sm:$0xf]
        %v6032 = vld [vmem:[%s5958 + $0x124] sm:$0xf]
        %v6033 = vld [vmem:[%s5958 + $0x128] sm:$0xf]
        %v6034 = vld [vmem:[%s5958 + $0x12c] sm:$0xf]
        %v6035 = vld [vmem:[%s5958 + $0x130] sm:$0xf]
        %v6036 = vld [vmem:[%s5958 + $0x134] sm:$0xf]
        %v6037 = vld [vmem:[%s5958 + $0x138] sm:$0xf]
        %v6038 = vld [vmem:[%s5958 + $0x13c] sm:$0xf]
        %v6039 = vld [vmem:[%s5958 + $0x140] sm:$0xf]
        %v6040 = vld [vmem:[%s5958 + $0x144] sm:$0xf]
        %v6041 = vld [vmem:[%s5958 + $0x148] sm:$0xf]
        %v6042 = vld [vmem:[%s5958 + $0x14c] sm:$0xf]
        %v6043 = vld [vmem:[%s5958 + $0x150] sm:$0xf]
        %v6044 = vld [vmem:[%s5958 + $0x154] sm:$0xf]
        %v6045 = vld [vmem:[%s5958 + $0x158] sm:$0xf]
        %v6046 = vld [vmem:[%s5958 + $0x15c] sm:$0xf]
        %v6047 = vld [vmem:[%s5958 + $0x160] sm:$0xf]
        %v6048 = vld [vmem:[%s5958 + $0x164] sm:$0xf]
        %v6049 = vld [vmem:[%s5958 + $0x168] sm:$0xf]
        %v6050 = vld [vmem:[%s5958 + $0x16c] sm:$0xf]
        %v6051 = vld [vmem:[%s5958 + $0x170] sm:$0xf]
        %v6052 = vld [vmem:[%s5958 + $0x174] sm:$0xf]
        %v6053 = vld [vmem:[%s5958 + $0x178] sm:$0xf]
        %v6054 = vld [vmem:[%s5958 + $0x17c] sm:$0xf]
        %v6055 = vld [vmem:[%s5958 + $0x180] sm:$0xf]
        %v6056 = vld [vmem:[%s5958 + $0x184] sm:$0xf]
        %v6057 = vld [vmem:[%s5958 + $0x188] sm:$0xf]
        %v6058 = vld [vmem:[%s5958 + $0x18c] sm:$0xf]
        %v6059 = vld [vmem:[%s5958 + $0x190] sm:$0xf]
        %v6060 = vld [vmem:[%s5958 + $0x194] sm:$0xf]
        %v6061 = vld [vmem:[%s5958 + $0x198] sm:$0xf]
        %v6062 = vld [vmem:[%s5958 + $0x19c] sm:$0xf]
        %v6063 = vld [vmem:[%s5958 + $0x1a0] sm:$0xf]
        %v6064 = vld [vmem:[%s5958 + $0x1a4] sm:$0xf]
        %v6065 = vld [vmem:[%s5958 + $0x1a8] sm:$0xf]
        %v6066 = vld [vmem:[%s5958 + $0x1ac] sm:$0xf]
        %v6067 = vld [vmem:[%s5958 + $0x1b0] sm:$0xf]
        %v6068 = vld [vmem:[%s5958 + $0x1b4] sm:$0xf]
        %v6069 = vld [vmem:[%s5958 + $0x1b8] sm:$0xf]
        %v6070 = vld [vmem:[%s5958 + $0x1bc] sm:$0xf]
        %v6071 = vld [vmem:[%s5958 + $0x1c0] sm:$0xf]
        %v6072 = vld [vmem:[%s5958 + $0x1c4] sm:$0xf]
        %v6073 = vld [vmem:[%s5958 + $0x1c8] sm:$0xf]
        %v6074 = vld [vmem:[%s5958 + $0x1cc] sm:$0xf]
        %v6075 = vld [vmem:[%s5958 + $0x1d0] sm:$0xf]
        %v6076 = vld [vmem:[%s5958 + $0x1d4] sm:$0xf]
        %v6077 = vld [vmem:[%s5958 + $0x1d8] sm:$0xf]
        %v6078 = vld [vmem:[%s5958 + $0x1dc] sm:$0xf]
        %v6079 = vld [vmem:[%s5958 + $0x1e0] sm:$0xf]
        %v6080 = vld [vmem:[%s5958 + $0x1e4] sm:$0xf]
        %v6081 = vld [vmem:[%s5958 + $0x1e8] sm:$0xf]
        %v6082 = vld [vmem:[%s5958 + $0x1ec] sm:$0xf]
        %v6083 = vld [vmem:[%s5958 + $0x1f0] sm:$0xf]
        %v6084 = vld [vmem:[%s5958 + $0x1f4] sm:$0xf]
        %v6085 = vld [vmem:[%s5958 + $0x1f8] sm:$0xf]
        %v6086 = vld [vmem:[%s5958 + $0x1fc] sm:$0xf]
        %v6119 = vunpack.c.l.b16 %v5926
        %v6120 = vunpack.c.h.b16 %v5926
        %v6121 = vunpack.c.l.b16 %v5927
        %v6122 = vunpack.c.h.b16 %v5927
        %v6123 = vunpack.c.l.b16 %v5928
        %v6124 = vunpack.c.h.b16 %v5928
        %v6125 = vunpack.c.l.b16 %v5929
        %v6126 = vunpack.c.h.b16 %v5929
        %v6127 = vunpack.c.l.b16 %v5930
        %v6128 = vunpack.c.h.b16 %v5930
        %v6129 = vunpack.c.l.b16 %v5931
        %v6130 = vunpack.c.h.b16 %v5931
        %v6131 = vunpack.c.l.b16 %v5932
        %v6132 = vunpack.c.h.b16 %v5932
        %v6133 = vunpack.c.l.b16 %v5933
        %v6134 = vunpack.c.h.b16 %v5933
        %v6135 = vunpack.c.l.b16 %v5934
        %v6136 = vunpack.c.h.b16 %v5934
        %v6137 = vunpack.c.l.b16 %v5935
        %v6138 = vunpack.c.h.b16 %v5935
        %v6139 = vunpack.c.l.b16 %v5936
        %v6140 = vunpack.c.h.b16 %v5936
        %v6141 = vunpack.c.l.b16 %v5937
        %v6142 = vunpack.c.h.b16 %v5937
        %v6143 = vunpack.c.l.b16 %v5938
        %v6144 = vunpack.c.h.b16 %v5938
        %v6145 = vunpack.c.l.b16 %v5939
        %v6146 = vunpack.c.h.b16 %v5939
        %v6147 = vunpack.c.l.b16 %v5940
        %v6148 = vunpack.c.h.b16 %v5940
        %v6149 = vunpack.c.l.b16 %v5941
        %v6150 = vunpack.c.h.b16 %v5941
        %v6151 = vunpack.c.l.b16 %v5942
        %v6152 = vunpack.c.h.b16 %v5942
        %v6153 = vunpack.c.l.b16 %v5943
        %v6154 = vunpack.c.h.b16 %v5943
        %v6155 = vunpack.c.l.b16 %v5944
        %v6156 = vunpack.c.h.b16 %v5944
        %v6157 = vunpack.c.l.b16 %v5945
        %v6158 = vunpack.c.h.b16 %v5945
        %v6159 = vunpack.c.l.b16 %v5946
        %v6160 = vunpack.c.h.b16 %v5946
        %v6161 = vunpack.c.l.b16 %v5947
        %v6162 = vunpack.c.h.b16 %v5947
        %v6163 = vunpack.c.l.b16 %v5948
        %v6164 = vunpack.c.h.b16 %v5948
        %v6165 = vunpack.c.l.b16 %v5949
        %v6166 = vunpack.c.h.b16 %v5949
        %v6167 = vunpack.c.l.b16 %v5950
        %v6168 = vunpack.c.h.b16 %v5950
        %v6169 = vunpack.c.l.b16 %v5951
        %v6170 = vunpack.c.h.b16 %v5951
        %v6171 = vunpack.c.l.b16 %v5952
        %v6172 = vunpack.c.h.b16 %v5952
        %v6173 = vunpack.c.l.b16 %v5953
        %v6174 = vunpack.c.h.b16 %v5953
        %v6175 = vunpack.c.l.b16 %v5954
        %v6176 = vunpack.c.h.b16 %v5954
        %v6177 = vunpack.c.l.b16 %v5955
        %v6178 = vunpack.c.h.b16 %v5955
        %v6179 = vunpack.c.l.b16 %v5956
        %v6180 = vunpack.c.h.b16 %v5956
        %v6181 = vunpack.c.l.b16 %v5957
        %v6182 = vunpack.c.h.b16 %v5957
        %v6183 = vpack.c.b16 %v6127, %v6119
        %v6184 = vpack.c.b16 %v6128, %v6120
        %v6185 = vpack.c.b16 %v6129, %v6121
        %v6186 = vpack.c.b16 %v6130, %v6122
        %v6187 = vpack.c.b16 %v6131, %v6123
        %v6188 = vpack.c.b16 %v6132, %v6124
        %v6189 = vpack.c.b16 %v6133, %v6125
        %v6190 = vpack.c.b16 %v6134, %v6126
        %v6191 = vpack.c.b16 %v6143, %v6135
        %v6192 = vpack.c.b16 %v6144, %v6136
        %v6193 = vpack.c.b16 %v6145, %v6137
        %v6194 = vpack.c.b16 %v6146, %v6138
        %v6195 = vpack.c.b16 %v6147, %v6139
        %v6196 = vpack.c.b16 %v6148, %v6140
        %v6197 = vpack.c.b16 %v6149, %v6141
        %v6198 = vpack.c.b16 %v6150, %v6142
        %v6199 = vpack.c.b16 %v6159, %v6151
        %v6200 = vpack.c.b16 %v6160, %v6152
        %v6201 = vpack.c.b16 %v6161, %v6153
        %v6202 = vpack.c.b16 %v6162, %v6154
        %v6203 = vpack.c.b16 %v6163, %v6155
        %v6204 = vpack.c.b16 %v6164, %v6156
        %v6205 = vpack.c.b16 %v6165, %v6157
        %v6206 = vpack.c.b16 %v6166, %v6158
        %v6207 = vpack.c.b16 %v6175, %v6167
        %v6208 = vpack.c.b16 %v6176, %v6168
        %v6209 = vpack.c.b16 %v6177, %v6169
        %v6210 = vpack.c.b16 %v6178, %v6170
        %v6211 = vpack.c.b16 %v6179, %v6171
        %v6212 = vpack.c.b16 %v6180, %v6172
        %v6213 = vpack.c.b16 %v6181, %v6173
        %v6214 = vpack.c.b16 %v6182, %v6174
        %v6375 = vunpack.c.l.b16 %v5959
        %v6376 = vunpack.c.l.b16 %v5960
        %v6377 = vunpack.c.l.b16 %v5961
        %v6378 = vunpack.c.l.b16 %v5962
        %v6379 = vunpack.c.l.b16 %v5963
        %v6380 = vunpack.c.l.b16 %v5964
        %v6381 = vunpack.c.l.b16 %v5965
        %v6382 = vunpack.c.l.b16 %v5966
        %v6383 = vunpack.c.l.b16 %v5967
        %v6384 = vunpack.c.l.b16 %v5968
        %v6385 = vunpack.c.l.b16 %v5969
        %v6386 = vunpack.c.l.b16 %v5970
        %v6387 = vunpack.c.l.b16 %v5971
        %v6388 = vunpack.c.l.b16 %v5972
        %v6389 = vunpack.c.l.b16 %v5973
        %v6390 = vunpack.c.l.b16 %v5974
        %v6391 = vunpack.c.l.b16 %v5975
        %v6392 = vunpack.c.l.b16 %v5976
        %v6393 = vunpack.c.l.b16 %v5977
        %v6394 = vunpack.c.l.b16 %v5978
        %v6395 = vunpack.c.l.b16 %v5979
        %v6396 = vunpack.c.l.b16 %v5980
        %v6397 = vunpack.c.l.b16 %v5981
        %v6398 = vunpack.c.l.b16 %v5982
        %v6399 = vunpack.c.l.b16 %v5983
        %v6400 = vunpack.c.l.b16 %v5984
        %v6401 = vunpack.c.l.b16 %v5985
        %v6402 = vunpack.c.l.b16 %v5986
        %v6403 = vunpack.c.l.b16 %v5987
        %v6404 = vunpack.c.l.b16 %v5988
        %v6405 = vunpack.c.l.b16 %v5989
        %v6406 = vunpack.c.l.b16 %v5990
        %v6407 = vunpack.c.l.b16 %v5991
        %v6408 = vunpack.c.l.b16 %v5992
        %v6409 = vunpack.c.l.b16 %v5993
        %v6410 = vunpack.c.l.b16 %v5994
        %v6411 = vunpack.c.l.b16 %v5995
        %v6412 = vunpack.c.l.b16 %v5996
        %v6413 = vunpack.c.l.b16 %v5997
        %v6414 = vunpack.c.l.b16 %v5998
        %v6415 = vunpack.c.l.b16 %v5999
        %v6416 = vunpack.c.l.b16 %v6000
        %v6417 = vunpack.c.l.b16 %v6001
        %v6418 = vunpack.c.l.b16 %v6002
        %v6419 = vunpack.c.l.b16 %v6003
        %v6420 = vunpack.c.l.b16 %v6004
        %v6421 = vunpack.c.l.b16 %v6005
        %v6422 = vunpack.c.l.b16 %v6006
        %v6423 = vunpack.c.l.b16 %v6007
        %v6424 = vunpack.c.l.b16 %v6008
        %v6425 = vunpack.c.l.b16 %v6009
        %v6426 = vunpack.c.l.b16 %v6010
        %v6427 = vunpack.c.l.b16 %v6011
        %v6428 = vunpack.c.l.b16 %v6012
        %v6429 = vunpack.c.l.b16 %v6013
        %v6430 = vunpack.c.l.b16 %v6014
        %v6431 = vunpack.c.l.b16 %v6015
        %v6432 = vunpack.c.l.b16 %v6016
        %v6433 = vunpack.c.l.b16 %v6017
        %v6434 = vunpack.c.l.b16 %v6018
        %v6435 = vunpack.c.l.b16 %v6019
        %v6436 = vunpack.c.l.b16 %v6020
        %v6437 = vunpack.c.l.b16 %v6021
        %v6438 = vunpack.c.l.b16 %v6022
        %v6439 = vunpack.c.l.b16 %v6023
        %v6440 = vunpack.c.l.b16 %v6024
        %v6441 = vunpack.c.l.b16 %v6025
        %v6442 = vunpack.c.l.b16 %v6026
        %v6443 = vunpack.c.l.b16 %v6027
        %v6444 = vunpack.c.l.b16 %v6028
        %v6445 = vunpack.c.l.b16 %v6029
        %v6446 = vunpack.c.l.b16 %v6030
        %v6447 = vunpack.c.l.b16 %v6031
        %v6448 = vunpack.c.l.b16 %v6032
        %v6449 = vunpack.c.l.b16 %v6033
        %v6450 = vunpack.c.l.b16 %v6034
        %v6451 = vunpack.c.l.b16 %v6035
        %v6452 = vunpack.c.l.b16 %v6036
        %v6453 = vunpack.c.l.b16 %v6037
        %v6454 = vunpack.c.l.b16 %v6038
        %v6455 = vunpack.c.l.b16 %v6039
        %v6456 = vunpack.c.l.b16 %v6040
        %v6457 = vunpack.c.l.b16 %v6041
        %v6458 = vunpack.c.l.b16 %v6042
        %v6459 = vunpack.c.l.b16 %v6043
        %v6460 = vunpack.c.l.b16 %v6044
        %v6461 = vunpack.c.l.b16 %v6045
        %v6462 = vunpack.c.l.b16 %v6046
        %v6463 = vunpack.c.l.b16 %v6047
        %v6464 = vunpack.c.l.b16 %v6048
        %v6465 = vunpack.c.l.b16 %v6049
        %v6466 = vunpack.c.l.b16 %v6050
        %v6467 = vunpack.c.l.b16 %v6051
        %v6468 = vunpack.c.l.b16 %v6052
        %v6469 = vunpack.c.l.b16 %v6053
        %v6470 = vunpack.c.l.b16 %v6054
        %v6471 = vunpack.c.l.b16 %v6055
        %v6472 = vunpack.c.l.b16 %v6056
        %v6473 = vunpack.c.l.b16 %v6057
        %v6474 = vunpack.c.l.b16 %v6058
        %v6475 = vunpack.c.l.b16 %v6059
        %v6476 = vunpack.c.l.b16 %v6060
        %v6477 = vunpack.c.l.b16 %v6061
        %v6478 = vunpack.c.l.b16 %v6062
        %v6479 = vunpack.c.l.b16 %v6063
        %v6480 = vunpack.c.l.b16 %v6064
        %v6481 = vunpack.c.l.b16 %v6065
        %v6482 = vunpack.c.l.b16 %v6066
        %v6483 = vunpack.c.l.b16 %v6067
        %v6484 = vunpack.c.l.b16 %v6068
        %v6485 = vunpack.c.l.b16 %v6069
        %v6486 = vunpack.c.l.b16 %v6070
        %v6487 = vunpack.c.l.b16 %v6071
        %v6488 = vunpack.c.l.b16 %v6072
        %v6489 = vunpack.c.l.b16 %v6073
        %v6490 = vunpack.c.l.b16 %v6074
        %v6491 = vunpack.c.l.b16 %v6075
        %v6492 = vunpack.c.l.b16 %v6076
        %v6493 = vunpack.c.l.b16 %v6077
        %v6494 = vunpack.c.l.b16 %v6078
        %v6495 = vunpack.c.l.b16 %v6079
        %v6496 = vunpack.c.l.b16 %v6080
        %v6497 = vunpack.c.l.b16 %v6081
        %v6498 = vunpack.c.l.b16 %v6082
        %v6499 = vunpack.c.l.b16 %v6083
        %v6500 = vunpack.c.l.b16 %v6084
        %v6501 = vunpack.c.l.b16 %v6085
        %v6502 = vunpack.c.l.b16 %v6086
        %v6503 = vpack.c.b16 %v6376, %v6375
        %v6504 = vpack.c.b16 %v6378, %v6377
        %v6505 = vpack.c.b16 %v6380, %v6379
        %v6506 = vpack.c.b16 %v6382, %v6381
        %v6507 = vpack.c.b16 %v6384, %v6383
        %v6508 = vpack.c.b16 %v6386, %v6385
        %v6509 = vpack.c.b16 %v6388, %v6387
        %v6510 = vpack.c.b16 %v6390, %v6389
        %v6511 = vpack.c.b16 %v6392, %v6391
        %v6512 = vpack.c.b16 %v6394, %v6393
        %v6513 = vpack.c.b16 %v6396, %v6395
        %v6514 = vpack.c.b16 %v6398, %v6397
        %v6515 = vpack.c.b16 %v6400, %v6399
        %v6516 = vpack.c.b16 %v6402, %v6401
        %v6517 = vpack.c.b16 %v6404, %v6403
        %v6518 = vpack.c.b16 %v6406, %v6405
        %v6519 = vpack.c.b16 %v6408, %v6407
        %v6520 = vpack.c.b16 %v6410, %v6409
        %v6521 = vpack.c.b16 %v6412, %v6411
        %v6522 = vpack.c.b16 %v6414, %v6413
        %v6523 = vpack.c.b16 %v6416, %v6415
        %v6524 = vpack.c.b16 %v6418, %v6417
        %v6525 = vpack.c.b16 %v6420, %v6419
        %v6526 = vpack.c.b16 %v6422, %v6421
        %v6527 = vpack.c.b16 %v6424, %v6423
        %v6528 = vpack.c.b16 %v6426, %v6425
        %v6529 = vpack.c.b16 %v6428, %v6427
        %v6530 = vpack.c.b16 %v6430, %v6429
        %v6531 = vpack.c.b16 %v6432, %v6431
        %v6532 = vpack.c.b16 %v6434, %v6433
        %v6533 = vpack.c.b16 %v6436, %v6435
        %v6534 = vpack.c.b16 %v6438, %v6437
        %v6535 = vpack.c.b16 %v6440, %v6439
        %v6536 = vpack.c.b16 %v6442, %v6441
        %v6537 = vpack.c.b16 %v6444, %v6443
        %v6538 = vpack.c.b16 %v6446, %v6445
        %v6539 = vpack.c.b16 %v6448, %v6447
        %v6540 = vpack.c.b16 %v6450, %v6449
        %v6541 = vpack.c.b16 %v6452, %v6451
        %v6542 = vpack.c.b16 %v6454, %v6453
        %v6543 = vpack.c.b16 %v6456, %v6455
        %v6544 = vpack.c.b16 %v6458, %v6457
        %v6545 = vpack.c.b16 %v6460, %v6459
        %v6546 = vpack.c.b16 %v6462, %v6461
        %v6547 = vpack.c.b16 %v6464, %v6463
        %v6548 = vpack.c.b16 %v6466, %v6465
        %v6549 = vpack.c.b16 %v6468, %v6467
        %v6550 = vpack.c.b16 %v6470, %v6469
        %v6551 = vpack.c.b16 %v6472, %v6471
        %v6552 = vpack.c.b16 %v6474, %v6473
        %v6553 = vpack.c.b16 %v6476, %v6475
        %v6554 = vpack.c.b16 %v6478, %v6477
        %v6555 = vpack.c.b16 %v6480, %v6479
        %v6556 = vpack.c.b16 %v6482, %v6481
        %v6557 = vpack.c.b16 %v6484, %v6483
        %v6558 = vpack.c.b16 %v6486, %v6485
        %v6559 = vpack.c.b16 %v6488, %v6487
        %v6560 = vpack.c.b16 %v6490, %v6489
        %v6561 = vpack.c.b16 %v6492, %v6491
        %v6562 = vpack.c.b16 %v6494, %v6493
        %v6563 = vpack.c.b16 %v6496, %v6495
        %v6564 = vpack.c.b16 %v6498, %v6497
        %v6565 = vpack.c.b16 %v6500, %v6499
        %v6566 = vpack.c.b16 %v6502, %v6501
        %6631 = vmatprep.subr.bf16.mxu0 0
        %6632 = vmatpush1.bf16.msra.mxu0 %v6503
        %6633 = vmatprep.subr.bf16.mxu0 0
        %6634 = vmatpush1.bf16.msra.mxu0 %v6504
        %6635 = vmatprep.subr.bf16.mxu0 0
        %6636 = vmatpush1.bf16.msra.mxu0 %v6505
        %6637 = vmatprep.subr.bf16.mxu0 0
        %6638 = vmatpush1.bf16.msra.mxu0 %v6506
        %6639 = vmatprep.subr.bf16.mxu0 0
        %6640 = vmatpush1.bf16.msra.mxu0 %v6507
        %6641 = vmatprep.subr.bf16.mxu0 0
        %6642 = vmatpush1.bf16.msra.mxu0 %v6508
        %6643 = vmatprep.subr.bf16.mxu0 0
        %6644 = vmatpush1.bf16.msra.mxu0 %v6509
        %6645 = vmatprep.subr.bf16.mxu0 0
        %6646 = vmatpush1.bf16.msra.mxu0 %v6510
        %6647 = vmatprep.subr.bf16.mxu0 0
        %6648 = vmatpush1.bf16.msra.mxu0 %v6511
        %6649 = vmatprep.subr.bf16.mxu0 0
        %6650 = vmatpush1.bf16.msra.mxu0 %v6512
        %6651 = vmatprep.subr.bf16.mxu0 0
        %6652 = vmatpush1.bf16.msra.mxu0 %v6513
        %6653 = vmatprep.subr.bf16.mxu0 0
        %6654 = vmatpush1.bf16.msra.mxu0 %v6514
        %6655 = vmatprep.subr.bf16.mxu0 0
        %6656 = vmatpush1.bf16.msra.mxu0 %v6515
        %6657 = vmatprep.subr.bf16.mxu0 0
        %6658 = vmatpush1.bf16.msra.mxu0 %v6516
        %6659 = vmatprep.subr.bf16.mxu0 0
        %6660 = vmatpush1.bf16.msra.mxu0 %v6517
        %6661 = vmatprep.subr.bf16.mxu0 0
        %6662 = vmatpush1.bf16.msra.mxu0 %v6518
        %6663 = vmatprep.mubr.bf16.mxu0 %v6184
        %6664 = vmatmul.mubr.bf16.gmra.mrb[0].mxu0 %v6183
        %v6665 = vpop.f32.mrb[0].mxu0
        %v6666 = vadd.f32 0.0, %v6665
        %v6667 = vpop.f32.mrb[0].mxu0
        %v6668 = vpop.f32.mrb[0].mxu0
        %v6669 = vadd.f32 0.0, %v6668
        %v6670 = vpop.f32.mrb[0].mxu0
        %6671 = vmatprep.mubr.bf16.mxu0 %v6192
        %6672 = vmatmul.mubr.bf16.gmra.mrb[0].mxu0 %v6191
        %v6673 = vpop.f32.mrb[0].mxu0
        %v6674 = vadd.f32 0.0, %v6673
        %v6675 = vpop.f32.mrb[0].mxu0
        %v6676 = vpop.f32.mrb[0].mxu0
        %v6677 = vadd.f32 0.0, %v6676
        %v6678 = vpop.f32.mrb[0].mxu0
        %6679 = vmatprep.mubr.bf16.mxu0 %v6200
        %6680 = vmatmul.mubr.bf16.gmra.mrb[0].mxu0 %v6199
        %v6681 = vpop.f32.mrb[0].mxu0
        %v6682 = vadd.f32 0.0, %v6681
        %v6683 = vpop.f32.mrb[0].mxu0
        %v6684 = vpop.f32.mrb[0].mxu0
        %v6685 = vadd.f32 0.0, %v6684
        %v6686 = vpop.f32.mrb[0].mxu0
        %6687 = vmatprep.mubr.bf16.mxu0 %v6208
        %6688 = vmatmul.mubr.bf16.gmra.mrb[0].mxu0 %v6207
        %v6689 = vpop.f32.mrb[0].mxu0
        %v6690 = vadd.f32 0.0, %v6689
        %v6691 = vpop.f32.mrb[0].mxu0
        %v6692 = vpop.f32.mrb[0].mxu0
        %v6693 = vadd.f32 0.0, %v6692
        %v6694 = vpop.f32.mrb[0].mxu0
        %6695 = vdwg.mxu0
        %6696 = vmatprep.subr.bf16.mxu0 0
        %6697 = vmatpush1.bf16.msra.mxu0 %v6519
        %6698 = vmatprep.subr.bf16.mxu0 0
        %6699 = vmatpush1.bf16.msra.mxu0 %v6520
        %6700 = vmatprep.subr.bf16.mxu0 0
        %6701 = vmatpush1.bf16.msra.mxu0 %v6521
        %6702 = vmatprep.subr.bf16.mxu0 0
        %6703 = vmatpush1.bf16.msra.mxu0 %v6522
        %6704 = vmatprep.subr.bf16.mxu0 0
        %6705 = vmatpush1.bf16.msra.mxu0 %v6523
        %6706 = vmatprep.subr.bf16.mxu0 0
        %6707 = vmatpush1.bf16.msra.mxu0 %v6524
        %6708 = vmatprep.subr.bf16.mxu0 0
        %6709 = vmatpush1.bf16.msra.mxu0 %v6525
        %6710 = vmatprep.subr.bf16.mxu0 0
        %6711 = vmatpush1.bf16.msra.mxu0 %v6526
        %6712 = vmatprep.subr.bf16.mxu0 0
        %6713 = vmatpush1.bf16.msra.mxu0 %v6527
        %6714 = vmatprep.subr.bf16.mxu0 0
        %6715 = vmatpush1.bf16.msra.mxu0 %v6528
        %6716 = vmatprep.subr.bf16.mxu0 0
        %6717 = vmatpush1.bf16.msra.mxu0 %v6529
        %6718 = vmatprep.subr.bf16.mxu0 0
        %6719 = vmatpush1.bf16.msra.mxu0 %v6530
        %6720 = vmatprep.subr.bf16.mxu0 0
        %6721 = vmatpush1.bf16.msra.mxu0 %v6531
        %6722 = vmatprep.subr.bf16.mxu0 0
        %6723 = vmatpush1.bf16.msra.mxu0 %v6532
        %6724 = vmatprep.subr.bf16.mxu0 0
        %6725 = vmatpush1.bf16.msra.mxu0 %v6533
        %6726 = vmatprep.subr.bf16.mxu0 0
        %6727 = vmatpush1.bf16.msra.mxu0 %v6534
        %6728 = vmatprep.mubr.bf16.mxu0 %v6186
        %6729 = vmatmul.mubr.bf16.gmra.mrb[0].mxu0 %v6185
        %v6730 = vpop.f32.mrb[0].mxu0
        %v6731 = vadd.f32 %v6666, %v6730
        %v6732 = vpop.f32.mrb[0].mxu0
        %v6733 = vpop.f32.mrb[0].mxu0
        %v6734 = vadd.f32 %v6669, %v6733
        %v6735 = vpop.f32.mrb[0].mxu0
        %6736 = vmatprep.mubr.bf16.mxu0 %v6194
        %6737 = vmatmul.mubr.bf16.gmra.mrb[0].mxu0 %v6193
        %v6738 = vpop.f32.mrb[0].mxu0
        %v6739 = vadd.f32 %v6674, %v6738
        %v6740 = vpop.f32.mrb[0].mxu0
        %v6741 = vpop.f32.mrb[0].mxu0
        %v6742 = vadd.f32 %v6677, %v6741
        %v6743 = vpop.f32.mrb[0].mxu0
        %6744 = vmatprep.mubr.bf16.mxu0 %v6202
        %6745 = vmatmul.mubr.bf16.gmra.mrb[0].mxu0 %v6201
        %v6746 = vpop.f32.mrb[0].mxu0
        %v6747 = vadd.f32 %v6682, %v6746
        %v6748 = vpop.f32.mrb[0].mxu0
        %v6749 = vpop.f32.mrb[0].mxu0
        %v6750 = vadd.f32 %v6685, %v6749
        %v6751 = vpop.f32.mrb[0].mxu0
        %6752 = vmatprep.mubr.bf16.mxu0 %v6210
        %6753 = vmatmul.mubr.bf16.gmra.mrb[0].mxu0 %v6209
        %v6754 = vpop.f32.mrb[0].mxu0
        %v6755 = vadd.f32 %v6690, %v6754
        %v6756 = vpop.f32.mrb[0].mxu0
        %v6757 = vpop.f32.mrb[0].mxu0
        %v6758 = vadd.f32 %v6693, %v6757
        %v6759 = vpop.f32.mrb[0].mxu0
        %6760 = vdwg.mxu0
        %6761 = vmatprep.subr.bf16.mxu0 0
        %6762 = vmatpush1.bf16.msra.mxu0 %v6535
        %6763 = vmatprep.subr.bf16.mxu0 0
        %6764 = vmatpush1.bf16.msra.mxu0 %v6536
        %6765 = vmatprep.subr.bf16.mxu0 0
        %6766 = vmatpush1.bf16.msra.mxu0 %v6537
        %6767 = vmatprep.subr.bf16.mxu0 0
        %6768 = vmatpush1.bf16.msra.mxu0 %v6538
        %6769 = vmatprep.subr.bf16.mxu0 0
        %6770 = vmatpush1.bf16.msra.mxu0 %v6539
        %6771 = vmatprep.subr.bf16.mxu0 0
        %6772 = vmatpush1.bf16.msra.mxu0 %v6540
        %6773 = vmatprep.subr.bf16.mxu0 0
        %6774 = vmatpush1.bf16.msra.mxu0 %v6541
        %6775 = vmatprep.subr.bf16.mxu0 0
        %6776 = vmatpush1.bf16.msra.mxu0 %v6542
        %6777 = vmatprep.subr.bf16.mxu0 0
        %6778 = vmatpush1.bf16.msra.mxu0 %v6543
        %6779 = vmatprep.subr.bf16.mxu0 0
        %6780 = vmatpush1.bf16.msra.mxu0 %v6544
        %6781 = vmatprep.subr.bf16.mxu0 0
        %6782 = vmatpush1.bf16.msra.mxu0 %v6545
        %6783 = vmatprep.subr.bf16.mxu0 0
        %6784 = vmatpush1.bf16.msra.mxu0 %v6546
        %6785 = vmatprep.subr.bf16.mxu0 0
        %6786 = vmatpush1.bf16.msra.mxu0 %v6547
        %6787 = vmatprep.subr.bf16.mxu0 0
        %6788 = vmatpush1.bf16.msra.mxu0 %v6548
        %6789 = vmatprep.subr.bf16.mxu0 0
        %6790 = vmatpush1.bf16.msra.mxu0 %v6549
        %6791 = vmatprep.subr.bf16.mxu0 0
        %6792 = vmatpush1.bf16.msra.mxu0 %v6550
        %6793 = vmatprep.mubr.bf16.mxu0 %v6188
        %6794 = vmatmul.mubr.bf16.gmra.mrb[0].mxu0 %v6187
        %v6795 = vpop.f32.mrb[0].mxu0
        %v6796 = vadd.f32 %v6731, %v6795
        %v6797 = vpop.f32.mrb[0].mxu0
        %v6798 = vpop.f32.mrb[0].mxu0
        %v6799 = vadd.f32 %v6734, %v6798
        %v6800 = vpop.f32.mrb[0].mxu0
        %6801 = vmatprep.mubr.bf16.mxu0 %v6196
        %6802 = vmatmul.mubr.bf16.gmra.mrb[0].mxu0 %v6195
        %v6803 = vpop.f32.mrb[0].mxu0
        %v6804 = vadd.f32 %v6739, %v6803
        %v6805 = vpop.f32.mrb[0].mxu0
        %v6806 = vpop.f32.mrb[0].mxu0
        %v6807 = vadd.f32 %v6742, %v6806
        %v6808 = vpop.f32.mrb[0].mxu0
        %6809 = vmatprep.mubr.bf16.mxu0 %v6204
        %6810 = vmatmul.mubr.bf16.gmra.mrb[0].mxu0 %v6203
        %v6811 = vpop.f32.mrb[0].mxu0
        %v6812 = vadd.f32 %v6747, %v6811
        %v6813 = vpop.f32.mrb[0].mxu0
        %v6814 = vpop.f32.mrb[0].mxu0
        %v6815 = vadd.f32 %v6750, %v6814
        %v6816 = vpop.f32.mrb[0].mxu0
        %6817 = vmatprep.mubr.bf16.mxu0 %v6212
        %6818 = vmatmul.mubr.bf16.gmra.mrb[0].mxu0 %v6211
        %v6819 = vpop.f32.mrb[0].mxu0
        %v6820 = vadd.f32 %v6755, %v6819
        %v6821 = vpop.f32.mrb[0].mxu0
        %v6822 = vpop.f32.mrb[0].mxu0
        %v6823 = vadd.f32 %v6758, %v6822
        %v6824 = vpop.f32.mrb[0].mxu0
        %6825 = vdwg.mxu0
        %6826 = vmatprep.subr.bf16.mxu0 0
        %6827 = vmatpush1.bf16.msra.mxu0 %v6551
        %6828 = vmatprep.subr.bf16.mxu0 0
        %6829 = vmatpush1.bf16.msra.mxu0 %v6552
        %6830 = vmatprep.subr.bf16.mxu0 0
        %6831 = vmatpush1.bf16.msra.mxu0 %v6553
        %6832 = vmatprep.subr.bf16.mxu0 0
        %6833 = vmatpush1.bf16.msra.mxu0 %v6554
        %6834 = vmatprep.subr.bf16.mxu0 0
        %6835 = vmatpush1.bf16.msra.mxu0 %v6555
        %6836 = vmatprep.subr.bf16.mxu0 0
        %6837 = vmatpush1.bf16.msra.mxu0 %v6556
        %6838 = vmatprep.subr.bf16.mxu0 0
        %6839 = vmatpush1.bf16.msra.mxu0 %v6557
        %6840 = vmatprep.subr.bf16.mxu0 0
        %6841 = vmatpush1.bf16.msra.mxu0 %v6558
        %6842 = vmatprep.subr.bf16.mxu0 0
        %6843 = vmatpush1.bf16.msra.mxu0 %v6559
        %6844 = vmatprep.subr.bf16.mxu0 0
        %6845 = vmatpush1.bf16.msra.mxu0 %v6560
        %6846 = vmatprep.subr.bf16.mxu0 0
        %6847 = vmatpush1.bf16.msra.mxu0 %v6561
        %6848 = vmatprep.subr.bf16.mxu0 0
        %6849 = vmatpush1.bf16.msra.mxu0 %v6562
        %6850 = vmatprep.subr.bf16.mxu0 0
        %6851 = vmatpush1.bf16.msra.mxu0 %v6563
        %6852 = vmatprep.subr.bf16.mxu0 0
        %6853 = vmatpush1.bf16.msra.mxu0 %v6564
        %6854 = vmatprep.subr.bf16.mxu0 0
        %6855 = vmatpush1.bf16.msra.mxu0 %v6565
        %6856 = vmatprep.subr.bf16.mxu0 0
        %6857 = vmatpush1.bf16.msra.mxu0 %v6566
        %6858 = vmatprep.mubr.bf16.mxu0 %v6190
        %6859 = vmatmul.mubr.bf16.gmra.mrb[0].mxu0 %v6189
        %v6860 = vpop.f32.mrb[0].mxu0
        %v6861 = vadd.f32 %v6796, %v6860
        %v6862 = vpop.f32.mrb[0].mxu0
        %v6863 = vpop.f32.mrb[0].mxu0
        %v6864 = vadd.f32 %v6799, %v6863
        %v6865 = vpop.f32.mrb[0].mxu0
        %6866 = vmatprep.mubr.bf16.mxu0 %v6198
        %6867 = vmatmul.mubr.bf16.gmra.mrb[0].mxu0 %v6197
        %v6868 = vpop.f32.mrb[0].mxu0
        %v6869 = vadd.f32 %v6804, %v6868
        %v6870 = vpop.f32.mrb[0].mxu0
        %v6871 = vpop.f32.mrb[0].mxu0
        %v6872 = vadd.f32 %v6807, %v6871
        %v6873 = vpop.f32.mrb[0].mxu0
        %6874 = vmatprep.mubr.bf16.mxu0 %v6206
        %6875 = vmatmul.mubr.bf16.gmra.mrb[0].mxu0 %v6205
        %v6876 = vpop.f32.mrb[0].mxu0
        %v6877 = vadd.f32 %v6812, %v6876
        %v6878 = vpop.f32.mrb[0].mxu0
        %v6879 = vpop.f32.mrb[0].mxu0
        %v6880 = vadd.f32 %v6815, %v6879
        %v6881 = vpop.f32.mrb[0].mxu0
        %6882 = vmatprep.mubr.bf16.mxu0 %v6214
        %6883 = vmatmul.mubr.bf16.gmra.mrb[0].mxu0 %v6213
        %v6884 = vpop.f32.mrb[0].mxu0
        %v6885 = vadd.f32 %v6820, %v6884
        %v6886 = vpop.f32.mrb[0].mxu0
        %v6887 = vpop.f32.mrb[0].mxu0
        %v6888 = vadd.f32 %v6823, %v6887
        %v6889 = vpop.f32.mrb[0].mxu0
        %6890 = vdwg.mxu0
        %v6891 = vadd.f32 %v5918, %v6861
        %v6892 = vadd.f32 %v5919, %v6864
        %v6893 = vadd.f32 %v5920, %v6869
        %v6894 = vadd.f32 %v5921, %v6872
        %v6895 = vadd.f32 %v5922, %v6877
        %v6896 = vadd.f32 %v5923, %v6880
        %v6897 = vadd.f32 %v5924, %v6885
        %v6898 = vadd.f32 %v5925, %v6888
        %v6899 = vld [vmem:[%s181 + $0xe0] sm:$0xff]
        %v6900 = vld [vmem:[%s181 + $0xe8] sm:$0xff]
        %v6901 = vld [vmem:[%s181 + $0xf0] sm:$0xff]
        %v6902 = vld [vmem:[%s181 + $0xf8] sm:$0xff]
        %v6903 = vld [vmem:[%s181 + $0x100] sm:$0xff]
        %v6904 = vld [vmem:[%s181 + $0x108] sm:$0xff]
        %v6905 = vld [vmem:[%s181 + $0x110] sm:$0xff]
        %v6906 = vld [vmem:[%s181 + $0x118] sm:$0xff]
        %v6907 = vld [vmem:[%s181 + $0x120] sm:$0xff]
        %v6908 = vld [vmem:[%s181 + $0x128] sm:$0xff]
        %v6909 = vld [vmem:[%s181 + $0x130] sm:$0xff]
        %v6910 = vld [vmem:[%s181 + $0x138] sm:$0xff]
        %v6911 = vld [vmem:[%s181 + $0x140] sm:$0xff]
        %v6912 = vld [vmem:[%s181 + $0x148] sm:$0xff]
        %v6913 = vld [vmem:[%s181 + $0x150] sm:$0xff]
        %v6914 = vld [vmem:[%s181 + $0x158] sm:$0xff]
        %v6915 = vld [vmem:[%s181 + $0x160] sm:$0xff]
        %v6916 = vld [vmem:[%s181 + $0x168] sm:$0xff]
        %v6917 = vld [vmem:[%s181 + $0x170] sm:$0xff]
        %v6918 = vld [vmem:[%s181 + $0x178] sm:$0xff]
        %v6919 = vld [vmem:[%s181 + $0x180] sm:$0xff]
        %v6920 = vld [vmem:[%s181 + $0x188] sm:$0xff]
        %v6921 = vld [vmem:[%s181 + $0x190] sm:$0xff]
        %v6922 = vld [vmem:[%s181 + $0x198] sm:$0xff]
        %v6923 = vld [vmem:[%s181 + $0x1a0] sm:$0xff]
        %v6924 = vld [vmem:[%s181 + $0x1a8] sm:$0xff]
        %v6925 = vld [vmem:[%s181 + $0x1b0] sm:$0xff]
        %v6926 = vld [vmem:[%s181 + $0x1b8] sm:$0xff]
        %v6927 = vld [vmem:[%s181 + $0x1c0] sm:$0xff]
        %v6928 = vld [vmem:[%s181 + $0x1c8] sm:$0xff]
        %v6929 = vld [vmem:[%s181 + $0x1d0] sm:$0xff]
        %v6930 = vld [vmem:[%s181 + $0x1d8] sm:$0xff]
        %s6931 = scalar_lea.vmem %s190, 3584 [#allocation5]
        %v6932 = vld [vmem:[%s6931] sm:$0xf]
        %v6933 = vld [vmem:[%s6931 + $0x4] sm:$0xf]
        %v6934 = vld [vmem:[%s6931 + $0x8] sm:$0xf]
        %v6935 = vld [vmem:[%s6931 + $0xc] sm:$0xf]
        %v6936 = vld [vmem:[%s6931 + $0x10] sm:$0xf]
        %v6937 = vld [vmem:[%s6931 + $0x14] sm:$0xf]
        %v6938 = vld [vmem:[%s6931 + $0x18] sm:$0xf]
        %v6939 = vld [vmem:[%s6931 + $0x1c] sm:$0xf]
        %v6940 = vld [vmem:[%s6931 + $0x20] sm:$0xf]
        %v6941 = vld [vmem:[%s6931 + $0x24] sm:$0xf]
        %v6942 = vld [vmem:[%s6931 + $0x28] sm:$0xf]
        %v6943 = vld [vmem:[%s6931 + $0x2c] sm:$0xf]
        %v6944 = vld [vmem:[%s6931 + $0x30] sm:$0xf]
        %v6945 = vld [vmem:[%s6931 + $0x34] sm:$0xf]
        %v6946 = vld [vmem:[%s6931 + $0x38] sm:$0xf]
        %v6947 = vld [vmem:[%s6931 + $0x3c] sm:$0xf]
        %v6948 = vld [vmem:[%s6931 + $0x40] sm:$0xf]
        %v6949 = vld [vmem:[%s6931 + $0x44] sm:$0xf]
        %v6950 = vld [vmem:[%s6931 + $0x48] sm:$0xf]
        %v6951 = vld [vmem:[%s6931 + $0x4c] sm:$0xf]
        %v6952 = vld [vmem:[%s6931 + $0x50] sm:$0xf]
        %v6953 = vld [vmem:[%s6931 + $0x54] sm:$0xf]
        %v6954 = vld [vmem:[%s6931 + $0x58] sm:$0xf]
        %v6955 = vld [vmem:[%s6931 + $0x5c] sm:$0xf]
        %v6956 = vld [vmem:[%s6931 + $0x60] sm:$0xf]
        %v6957 = vld [vmem:[%s6931 + $0x64] sm:$0xf]
        %v6958 = vld [vmem:[%s6931 + $0x68] sm:$0xf]
        %v6959 = vld [vmem:[%s6931 + $0x6c] sm:$0xf]
        %v6960 = vld [vmem:[%s6931 + $0x70] sm:$0xf]
        %v6961 = vld [vmem:[%s6931 + $0x74] sm:$0xf]
        %v6962 = vld [vmem:[%s6931 + $0x78] sm:$0xf]
        %v6963 = vld [vmem:[%s6931 + $0x7c] sm:$0xf]
        %v6964 = vld [vmem:[%s6931 + $0x80] sm:$0xf]
        %v6965 = vld [vmem:[%s6931 + $0x84] sm:$0xf]
        %v6966 = vld [vmem:[%s6931 + $0x88] sm:$0xf]
        %v6967 = vld [vmem:[%s6931 + $0x8c] sm:$0xf]
        %v6968 = vld [vmem:[%s6931 + $0x90] sm:$0xf]
        %v6969 = vld [vmem:[%s6931 + $0x94] sm:$0xf]
        %v6970 = vld [vmem:[%s6931 + $0x98] sm:$0xf]
        %v6971 = vld [vmem:[%s6931 + $0x9c] sm:$0xf]
        %v6972 = vld [vmem:[%s6931 + $0xa0] sm:$0xf]
        %v6973 = vld [vmem:[%s6931 + $0xa4] sm:$0xf]
        %v6974 = vld [vmem:[%s6931 + $0xa8] sm:$0xf]
        %v6975 = vld [vmem:[%s6931 + $0xac] sm:$0xf]
        %v6976 = vld [vmem:[%s6931 + $0xb0] sm:$0xf]
        %v6977 = vld [vmem:[%s6931 + $0xb4] sm:$0xf]
        %v6978 = vld [vmem:[%s6931 + $0xb8] sm:$0xf]
        %v6979 = vld [vmem:[%s6931 + $0xbc] sm:$0xf]
        %v6980 = vld [vmem:[%s6931 + $0xc0] sm:$0xf]
        %v6981 = vld [vmem:[%s6931 + $0xc4] sm:$0xf]
        %v6982 = vld [vmem:[%s6931 + $0xc8] sm:$0xf]
        %v6983 = vld [vmem:[%s6931 + $0xcc] sm:$0xf]
        %v6984 = vld [vmem:[%s6931 + $0xd0] sm:$0xf]
        %v6985 = vld [vmem:[%s6931 + $0xd4] sm:$0xf]
        %v6986 = vld [vmem:[%s6931 + $0xd8] sm:$0xf]
        %v6987 = vld [vmem:[%s6931 + $0xdc] sm:$0xf]
        %v6988 = vld [vmem:[%s6931 + $0xe0] sm:$0xf]
        %v6989 = vld [vmem:[%s6931 + $0xe4] sm:$0xf]
        %v6990 = vld [vmem:[%s6931 + $0xe8] sm:$0xf]
        %v6991 = vld [vmem:[%s6931 + $0xec] sm:$0xf]
        %v6992 = vld [vmem:[%s6931 + $0xf0] sm:$0xf]
        %v6993 = vld [vmem:[%s6931 + $0xf4] sm:$0xf]
        %v6994 = vld [vmem:[%s6931 + $0xf8] sm:$0xf]
        %v6995 = vld [vmem:[%s6931 + $0xfc] sm:$0xf]
        %v6996 = vld [vmem:[%s6931 + $0x100] sm:$0xf]
        %v6997 = vld [vmem:[%s6931 + $0x104] sm:$0xf]
        %v6998 = vld [vmem:[%s6931 + $0x108] sm:$0xf]
        %v6999 = vld [vmem:[%s6931 + $0x10c] sm:$0xf]
        %v7000 = vld [vmem:[%s6931 + $0x110] sm:$0xf]
        %v7001 = vld [vmem:[%s6931 + $0x114] sm:$0xf]
        %v7002 = vld [vmem:[%s6931 + $0x118] sm:$0xf]
        %v7003 = vld [vmem:[%s6931 + $0x11c] sm:$0xf]
        %v7004 = vld [vmem:[%s6931 + $0x120] sm:$0xf]
        %v7005 = vld [vmem:[%s6931 + $0x124] sm:$0xf]
        %v7006 = vld [vmem:[%s6931 + $0x128] sm:$0xf]
        %v7007 = vld [vmem:[%s6931 + $0x12c] sm:$0xf]
        %v7008 = vld [vmem:[%s6931 + $0x130] sm:$0xf]
        %v7009 = vld [vmem:[%s6931 + $0x134] sm:$0xf]
        %v7010 = vld [vmem:[%s6931 + $0x138] sm:$0xf]
        %v7011 = vld [vmem:[%s6931 + $0x13c] sm:$0xf]
        %v7012 = vld [vmem:[%s6931 + $0x140] sm:$0xf]
        %v7013 = vld [vmem:[%s6931 + $0x144] sm:$0xf]
        %v7014 = vld [vmem:[%s6931 + $0x148] sm:$0xf]
        %v7015 = vld [vmem:[%s6931 + $0x14c] sm:$0xf]
        %v7016 = vld [vmem:[%s6931 + $0x150] sm:$0xf]
        %v7017 = vld [vmem:[%s6931 + $0x154] sm:$0xf]
        %v7018 = vld [vmem:[%s6931 + $0x158] sm:$0xf]
        %v7019 = vld [vmem:[%s6931 + $0x15c] sm:$0xf]
        %v7020 = vld [vmem:[%s6931 + $0x160] sm:$0xf]
        %v7021 = vld [vmem:[%s6931 + $0x164] sm:$0xf]
        %v7022 = vld [vmem:[%s6931 + $0x168] sm:$0xf]
        %v7023 = vld [vmem:[%s6931 + $0x16c] sm:$0xf]
        %v7024 = vld [vmem:[%s6931 + $0x170] sm:$0xf]
        %v7025 = vld [vmem:[%s6931 + $0x174] sm:$0xf]
        %v7026 = vld [vmem:[%s6931 + $0x178] sm:$0xf]
        %v7027 = vld [vmem:[%s6931 + $0x17c] sm:$0xf]
        %v7028 = vld [vmem:[%s6931 + $0x180] sm:$0xf]
        %v7029 = vld [vmem:[%s6931 + $0x184] sm:$0xf]
        %v7030 = vld [vmem:[%s6931 + $0x188] sm:$0xf]
        %v7031 = vld [vmem:[%s6931 + $0x18c] sm:$0xf]
        %v7032 = vld [vmem:[%s6931 + $0x190] sm:$0xf]
        %v7033 = vld [vmem:[%s6931 + $0x194] sm:$0xf]
        %v7034 = vld [vmem:[%s6931 + $0x198] sm:$0xf]
        %v7035 = vld [vmem:[%s6931 + $0x19c] sm:$0xf]
        %v7036 = vld [vmem:[%s6931 + $0x1a0] sm:$0xf]
        %v7037 = vld [vmem:[%s6931 + $0x1a4] sm:$0xf]
        %v7038 = vld [vmem:[%s6931 + $0x1a8] sm:$0xf]
        %v7039 = vld [vmem:[%s6931 + $0x1ac] sm:$0xf]
        %v7040 = vld [vmem:[%s6931 + $0x1b0] sm:$0xf]
        %v7041 = vld [vmem:[%s6931 + $0x1b4] sm:$0xf]
        %v7042 = vld [vmem:[%s6931 + $0x1b8] sm:$0xf]
        %v7043 = vld [vmem:[%s6931 + $0x1bc] sm:$0xf]
        %v7044 = vld [vmem:[%s6931 + $0x1c0] sm:$0xf]
        %v7045 = vld [vmem:[%s6931 + $0x1c4] sm:$0xf]
        %v7046 = vld [vmem:[%s6931 + $0x1c8] sm:$0xf]
        %v7047 = vld [vmem:[%s6931 + $0x1cc] sm:$0xf]
        %v7048 = vld [vmem:[%s6931 + $0x1d0] sm:$0xf]
        %v7049 = vld [vmem:[%s6931 + $0x1d4] sm:$0xf]
        %v7050 = vld [vmem:[%s6931 + $0x1d8] sm:$0xf]
        %v7051 = vld [vmem:[%s6931 + $0x1dc] sm:$0xf]
        %v7052 = vld [vmem:[%s6931 + $0x1e0] sm:$0xf]
        %v7053 = vld [vmem:[%s6931 + $0x1e4] sm:$0xf]
        %v7054 = vld [vmem:[%s6931 + $0x1e8] sm:$0xf]
        %v7055 = vld [vmem:[%s6931 + $0x1ec] sm:$0xf]
        %v7056 = vld [vmem:[%s6931 + $0x1f0] sm:$0xf]
        %v7057 = vld [vmem:[%s6931 + $0x1f4] sm:$0xf]
        %v7058 = vld [vmem:[%s6931 + $0x1f8] sm:$0xf]
        %v7059 = vld [vmem:[%s6931 + $0x1fc] sm:$0xf]
        %v7092 = vunpack.c.l.b16 %v6899
        %v7093 = vunpack.c.h.b16 %v6899
        %v7094 = vunpack.c.l.b16 %v6900
        %v7095 = vunpack.c.h.b16 %v6900
        %v7096 = vunpack.c.l.b16 %v6901
        %v7097 = vunpack.c.h.b16 %v6901
        %v7098 = vunpack.c.l.b16 %v6902
        %v7099 = vunpack.c.h.b16 %v6902
        %v7100 = vunpack.c.l.b16 %v6903
        %v7101 = vunpack.c.h.b16 %v6903
        %v7102 = vunpack.c.l.b16 %v6904
        %v7103 = vunpack.c.h.b16 %v6904
        %v7104 = vunpack.c.l.b16 %v6905
        %v7105 = vunpack.c.h.b16 %v6905
        %v7106 = vunpack.c.l.b16 %v6906
        %v7107 = vunpack.c.h.b16 %v6906
        %v7108 = vunpack.c.l.b16 %v6907
        %v7109 = vunpack.c.h.b16 %v6907
        %v7110 = vunpack.c.l.b16 %v6908
        %v7111 = vunpack.c.h.b16 %v6908
        %v7112 = vunpack.c.l.b16 %v6909
        %v7113 = vunpack.c.h.b16 %v6909
        %v7114 = vunpack.c.l.b16 %v6910
        %v7115 = vunpack.c.h.b16 %v6910
        %v7116 = vunpack.c.l.b16 %v6911
        %v7117 = vunpack.c.h.b16 %v6911
        %v7118 = vunpack.c.l.b16 %v6912
        %v7119 = vunpack.c.h.b16 %v6912
        %v7120 = vunpack.c.l.b16 %v6913
        %v7121 = vunpack.c.h.b16 %v6913
        %v7122 = vunpack.c.l.b16 %v6914
        %v7123 = vunpack.c.h.b16 %v6914
        %v7124 = vunpack.c.l.b16 %v6915
        %v7125 = vunpack.c.h.b16 %v6915
        %v7126 = vunpack.c.l.b16 %v6916
        %v7127 = vunpack.c.h.b16 %v6916
        %v7128 = vunpack.c.l.b16 %v6917
        %v7129 = vunpack.c.h.b16 %v6917
        %v7130 = vunpack.c.l.b16 %v6918
        %v7131 = vunpack.c.h.b16 %v6918
        %v7132 = vunpack.c.l.b16 %v6919
        %v7133 = vunpack.c.h.b16 %v6919
        %v7134 = vunpack.c.l.b16 %v6920
        %v7135 = vunpack.c.h.b16 %v6920
        %v7136 = vunpack.c.l.b16 %v6921
        %v7137 = vunpack.c.h.b16 %v6921
        %v7138 = vunpack.c.l.b16 %v6922
        %v7139 = vunpack.c.h.b16 %v6922
        %v7140 = vunpack.c.l.b16 %v6923
        %v7141 = vunpack.c.h.b16 %v6923
        %v7142 = vunpack.c.l.b16 %v6924
        %v7143 = vunpack.c.h.b16 %v6924
        %v7144 = vunpack.c.l.b16 %v6925
        %v7145 = vunpack.c.h.b16 %v6925
        %v7146 = vunpack.c.l.b16 %v6926
        %v7147 = vunpack.c.h.b16 %v6926
        %v7148 = vunpack.c.l.b16 %v6927
        %v7149 = vunpack.c.h.b16 %v6927
        %v7150 = vunpack.c.l.b16 %v6928
        %v7151 = vunpack.c.h.b16 %v6928
        %v7152 = vunpack.c.l.b16 %v6929
        %v7153 = vunpack.c.h.b16 %v6929
        %v7154 = vunpack.c.l.b16 %v6930
        %v7155 = vunpack.c.h.b16 %v6930
        %v7156 = vpack.c.b16 %v7100, %v7092
        %v7157 = vpack.c.b16 %v7101, %v7093
        %v7158 = vpack.c.b16 %v7102, %v7094
        %v7159 = vpack.c.b16 %v7103, %v7095
        %v7160 = vpack.c.b16 %v7104, %v7096
        %v7161 = vpack.c.b16 %v7105, %v7097
        %v7162 = vpack.c.b16 %v7106, %v7098
        %v7163 = vpack.c.b16 %v7107, %v7099
        %v7164 = vpack.c.b16 %v7116, %v7108
        %v7165 = vpack.c.b16 %v7117, %v7109
        %v7166 = vpack.c.b16 %v7118, %v7110
        %v7167 = vpack.c.b16 %v7119, %v7111
        %v7168 = vpack.c.b16 %v7120, %v7112
        %v7169 = vpack.c.b16 %v7121, %v7113
        %v7170 = vpack.c.b16 %v7122, %v7114
        %v7171 = vpack.c.b16 %v7123, %v7115
        %v7172 = vpack.c.b16 %v7132, %v7124
        %v7173 = vpack.c.b16 %v7133, %v7125
        %v7174 = vpack.c.b16 %v7134, %v7126
        %v7175 = vpack.c.b16 %v7135, %v7127
        %v7176 = vpack.c.b16 %v7136, %v7128
        %v7177 = vpack.c.b16 %v7137, %v7129
        %v7178 = vpack.c.b16 %v7138, %v7130
        %v7179 = vpack.c.b16 %v7139, %v7131
        %v7180 = vpack.c.b16 %v7148, %v7140
        %v7181 = vpack.c.b16 %v7149, %v7141
        %v7182 = vpack.c.b16 %v7150, %v7142
        %v7183 = vpack.c.b16 %v7151, %v7143
        %v7184 = vpack.c.b16 %v7152, %v7144
        %v7185 = vpack.c.b16 %v7153, %v7145
        %v7186 = vpack.c.b16 %v7154, %v7146
        %v7187 = vpack.c.b16 %v7155, %v7147
        %v7348 = vunpack.c.l.b16 %v6932
        %v7349 = vunpack.c.l.b16 %v6933
        %v7350 = vunpack.c.l.b16 %v6934
        %v7351 = vunpack.c.l.b16 %v6935
        %v7352 = vunpack.c.l.b16 %v6936
        %v7353 = vunpack.c.l.b16 %v6937
        %v7354 = vunpack.c.l.b16 %v6938
        %v7355 = vunpack.c.l.b16 %v6939
        %v7356 = vunpack.c.l.b16 %v6940
        %v7357 = vunpack.c.l.b16 %v6941
        %v7358 = vunpack.c.l.b16 %v6942
        %v7359 = vunpack.c.l.b16 %v6943
        %v7360 = vunpack.c.l.b16 %v6944
        %v7361 = vunpack.c.l.b16 %v6945
        %v7362 = vunpack.c.l.b16 %v6946
        %v7363 = vunpack.c.l.b16 %v6947
        %v7364 = vunpack.c.l.b16 %v6948
        %v7365 = vunpack.c.l.b16 %v6949
        %v7366 = vunpack.c.l.b16 %v6950
        %v7367 = vunpack.c.l.b16 %v6951
        %v7368 = vunpack.c.l.b16 %v6952
        %v7369 = vunpack.c.l.b16 %v6953
        %v7370 = vunpack.c.l.b16 %v6954
        %v7371 = vunpack.c.l.b16 %v6955
        %v7372 = vunpack.c.l.b16 %v6956
        %v7373 = vunpack.c.l.b16 %v6957
        %v7374 = vunpack.c.l.b16 %v6958
        %v7375 = vunpack.c.l.b16 %v6959
        %v7376 = vunpack.c.l.b16 %v6960
        %v7377 = vunpack.c.l.b16 %v6961
        %v7378 = vunpack.c.l.b16 %v6962
        %v7379 = vunpack.c.l.b16 %v6963
        %v7380 = vunpack.c.l.b16 %v6964
        %v7381 = vunpack.c.l.b16 %v6965
        %v7382 = vunpack.c.l.b16 %v6966
        %v7383 = vunpack.c.l.b16 %v6967
        %v7384 = vunpack.c.l.b16 %v6968
        %v7385 = vunpack.c.l.b16 %v6969
        %v7386 = vunpack.c.l.b16 %v6970
        %v7387 = vunpack.c.l.b16 %v6971
        %v7388 = vunpack.c.l.b16 %v6972
        %v7389 = vunpack.c.l.b16 %v6973
        %v7390 = vunpack.c.l.b16 %v6974
        %v7391 = vunpack.c.l.b16 %v6975
        %v7392 = vunpack.c.l.b16 %v6976
        %v7393 = vunpack.c.l.b16 %v6977
        %v7394 = vunpack.c.l.b16 %v6978
        %v7395 = vunpack.c.l.b16 %v6979
        %v7396 = vunpack.c.l.b16 %v6980
        %v7397 = vunpack.c.l.b16 %v6981
        %v7398 = vunpack.c.l.b16 %v6982
        %v7399 = vunpack.c.l.b16 %v6983
        %v7400 = vunpack.c.l.b16 %v6984
        %v7401 = vunpack.c.l.b16 %v6985
        %v7402 = vunpack.c.l.b16 %v6986
        %v7403 = vunpack.c.l.b16 %v6987
        %v7404 = vunpack.c.l.b16 %v6988
        %v7405 = vunpack.c.l.b16 %v6989
        %v7406 = vunpack.c.l.b16 %v6990
        %v7407 = vunpack.c.l.b16 %v6991
        %v7408 = vunpack.c.l.b16 %v6992
        %v7409 = vunpack.c.l.b16 %v6993
        %v7410 = vunpack.c.l.b16 %v6994
        %v7411 = vunpack.c.l.b16 %v6995
        %v7412 = vunpack.c.l.b16 %v6996
        %v7413 = vunpack.c.l.b16 %v6997
        %v7414 = vunpack.c.l.b16 %v6998
        %v7415 = vunpack.c.l.b16 %v6999
        %v7416 = vunpack.c.l.b16 %v7000
        %v7417 = vunpack.c.l.b16 %v7001
        %v7418 = vunpack.c.l.b16 %v7002
        %v7419 = vunpack.c.l.b16 %v7003
        %v7420 = vunpack.c.l.b16 %v7004
        %v7421 = vunpack.c.l.b16 %v7005
        %v7422 = vunpack.c.l.b16 %v7006
        %v7423 = vunpack.c.l.b16 %v7007
        %v7424 = vunpack.c.l.b16 %v7008
        %v7425 = vunpack.c.l.b16 %v7009
        %v7426 = vunpack.c.l.b16 %v7010
        %v7427 = vunpack.c.l.b16 %v7011
        %v7428 = vunpack.c.l.b16 %v7012
        %v7429 = vunpack.c.l.b16 %v7013
        %v7430 = vunpack.c.l.b16 %v7014
        %v7431 = vunpack.c.l.b16 %v7015
        %v7432 = vunpack.c.l.b16 %v7016
        %v7433 = vunpack.c.l.b16 %v7017
        %v7434 = vunpack.c.l.b16 %v7018
        %v7435 = vunpack.c.l.b16 %v7019
        %v7436 = vunpack.c.l.b16 %v7020
        %v7437 = vunpack.c.l.b16 %v7021
        %v7438 = vunpack.c.l.b16 %v7022
        %v7439 = vunpack.c.l.b16 %v7023
        %v7440 = vunpack.c.l.b16 %v7024
        %v7441 = vunpack.c.l.b16 %v7025
        %v7442 = vunpack.c.l.b16 %v7026
        %v7443 = vunpack.c.l.b16 %v7027
        %v7444 = vunpack.c.l.b16 %v7028
        %v7445 = vunpack.c.l.b16 %v7029
        %v7446 = vunpack.c.l.b16 %v7030
        %v7447 = vunpack.c.l.b16 %v7031
        %v7448 = vunpack.c.l.b16 %v7032
        %v7449 = vunpack.c.l.b16 %v7033
        %v7450 = vunpack.c.l.b16 %v7034
        %v7451 = vunpack.c.l.b16 %v7035
        %v7452 = vunpack.c.l.b16 %v7036
        %v7453 = vunpack.c.l.b16 %v7037
        %v7454 = vunpack.c.l.b16 %v7038
        %v7455 = vunpack.c.l.b16 %v7039
        %v7456 = vunpack.c.l.b16 %v7040
        %v7457 = vunpack.c.l.b16 %v7041
        %v7458 = vunpack.c.l.b16 %v7042
        %v7459 = vunpack.c.l.b16 %v7043
        %v7460 = vunpack.c.l.b16 %v7044
        %v7461 = vunpack.c.l.b16 %v7045
        %v7462 = vunpack.c.l.b16 %v7046
        %v7463 = vunpack.c.l.b16 %v7047
        %v7464 = vunpack.c.l.b16 %v7048
        %v7465 = vunpack.c.l.b16 %v7049
        %v7466 = vunpack.c.l.b16 %v7050
        %v7467 = vunpack.c.l.b16 %v7051
        %v7468 = vunpack.c.l.b16 %v7052
        %v7469 = vunpack.c.l.b16 %v7053
        %v7470 = vunpack.c.l.b16 %v7054
        %v7471 = vunpack.c.l.b16 %v7055
        %v7472 = vunpack.c.l.b16 %v7056
        %v7473 = vunpack.c.l.b16 %v7057
        %v7474 = vunpack.c.l.b16 %v7058
        %v7475 = vunpack.c.l.b16 %v7059
        %v7476 = vpack.c.b16 %v7349, %v7348
        %v7477 = vpack.c.b16 %v7351, %v7350
        %v7478 = vpack.c.b16 %v7353, %v7352
        %v7479 = vpack.c.b16 %v7355, %v7354
        %v7480 = vpack.c.b16 %v7357, %v7356
        %v7481 = vpack.c.b16 %v7359, %v7358
        %v7482 = vpack.c.b16 %v7361, %v7360
        %v7483 = vpack.c.b16 %v7363, %v7362
        %v7484 = vpack.c.b16 %v7365, %v7364
        %v7485 = vpack.c.b16 %v7367, %v7366
        %v7486 = vpack.c.b16 %v7369, %v7368
        %v7487 = vpack.c.b16 %v7371, %v7370
        %v7488 = vpack.c.b16 %v7373, %v7372
        %v7489 = vpack.c.b16 %v7375, %v7374
        %v7490 = vpack.c.b16 %v7377, %v7376
        %v7491 = vpack.c.b16 %v7379, %v7378
        %v7492 = vpack.c.b16 %v7381, %v7380
        %v7493 = vpack.c.b16 %v7383, %v7382
        %v7494 = vpack.c.b16 %v7385, %v7384
        %v7495 = vpack.c.b16 %v7387, %v7386
        %v7496 = vpack.c.b16 %v7389, %v7388
        %v7497 = vpack.c.b16 %v7391, %v7390
        %v7498 = vpack.c.b16 %v7393, %v7392
        %v7499 = vpack.c.b16 %v7395, %v7394
        %v7500 = vpack.c.b16 %v7397, %v7396
        %v7501 = vpack.c.b16 %v7399, %v7398
        %v7502 = vpack.c.b16 %v7401, %v7400
        %v7503 = vpack.c.b16 %v7403, %v7402
        %v7504 = vpack.c.b16 %v7405, %v7404
        %v7505 = vpack.c.b16 %v7407, %v7406
        %v7506 = vpack.c.b16 %v7409, %v7408
        %v7507 = vpack.c.b16 %v7411, %v7410
        %v7508 = vpack.c.b16 %v7413, %v7412
        %v7509 = vpack.c.b16 %v7415, %v7414
        %v7510 = vpack.c.b16 %v7417, %v7416
        %v7511 = vpack.c.b16 %v7419, %v7418
        %v7512 = vpack.c.b16 %v7421, %v7420
        %v7513 = vpack.c.b16 %v7423, %v7422
        %v7514 = vpack.c.b16 %v7425, %v7424
        %v7515 = vpack.c.b16 %v7427, %v7426
        %v7516 = vpack.c.b16 %v7429, %v7428
        %v7517 = vpack.c.b16 %v7431, %v7430
        %v7518 = vpack.c.b16 %v7433, %v7432
        %v7519 = vpack.c.b16 %v7435, %v7434
        %v7520 = vpack.c.b16 %v7437, %v7436
        %v7521 = vpack.c.b16 %v7439, %v7438
        %v7522 = vpack.c.b16 %v7441, %v7440
        %v7523 = vpack.c.b16 %v7443, %v7442
        %v7524 = vpack.c.b16 %v7445, %v7444
        %v7525 = vpack.c.b16 %v7447, %v7446
        %v7526 = vpack.c.b16 %v7449, %v7448
        %v7527 = vpack.c.b16 %v7451, %v7450
        %v7528 = vpack.c.b16 %v7453, %v7452
        %v7529 = vpack.c.b16 %v7455, %v7454
        %v7530 = vpack.c.b16 %v7457, %v7456
        %v7531 = vpack.c.b16 %v7459, %v7458
        %v7532 = vpack.c.b16 %v7461, %v7460
        %v7533 = vpack.c.b16 %v7463, %v7462
        %v7534 = vpack.c.b16 %v7465, %v7464
        %v7535 = vpack.c.b16 %v7467, %v7466
        %v7536 = vpack.c.b16 %v7469, %v7468
        %v7537 = vpack.c.b16 %v7471, %v7470
        %v7538 = vpack.c.b16 %v7473, %v7472
        %v7539 = vpack.c.b16 %v7475, %v7474
        %7604 = vmatprep.subr.bf16.mxu0 0
        %7605 = vmatpush1.bf16.msra.mxu0 %v7476
        %7606 = vmatprep.subr.bf16.mxu0 0
        %7607 = vmatpush1.bf16.msra.mxu0 %v7477
        %7608 = vmatprep.subr.bf16.mxu0 0
        %7609 = vmatpush1.bf16.msra.mxu0 %v7478
        %7610 = vmatprep.subr.bf16.mxu0 0
        %7611 = vmatpush1.bf16.msra.mxu0 %v7479
        %7612 = vmatprep.subr.bf16.mxu0 0
        %7613 = vmatpush1.bf16.msra.mxu0 %v7480
        %7614 = vmatprep.subr.bf16.mxu0 0
        %7615 = vmatpush1.bf16.msra.mxu0 %v7481
        %7616 = vmatprep.subr.bf16.mxu0 0
        %7617 = vmatpush1.bf16.msra.mxu0 %v7482
        %7618 = vmatprep.subr.bf16.mxu0 0
        %7619 = vmatpush1.bf16.msra.mxu0 %v7483
        %7620 = vmatprep.subr.bf16.mxu0 0
        %7621 = vmatpush1.bf16.msra.mxu0 %v7484
        %7622 = vmatprep.subr.bf16.mxu0 0
        %7623 = vmatpush1.bf16.msra.mxu0 %v7485
        %7624 = vmatprep.subr.bf16.mxu0 0
        %7625 = vmatpush1.bf16.msra.mxu0 %v7486
        %7626 = vmatprep.subr.bf16.mxu0 0
        %7627 = vmatpush1.bf16.msra.mxu0 %v7487
        %7628 = vmatprep.subr.bf16.mxu0 0
        %7629 = vmatpush1.bf16.msra.mxu0 %v7488
        %7630 = vmatprep.subr.bf16.mxu0 0
        %7631 = vmatpush1.bf16.msra.mxu0 %v7489
        %7632 = vmatprep.subr.bf16.mxu0 0
        %7633 = vmatpush1.bf16.msra.mxu0 %v7490
        %7634 = vmatprep.subr.bf16.mxu0 0
        %7635 = vmatpush1.bf16.msra.mxu0 %v7491
        %7636 = vmatprep.mubr.bf16.mxu0 %v7157
        %7637 = vmatmul.mubr.bf16.gmra.mrb[0].mxu0 %v7156
        %v7638 = vpop.f32.mrb[0].mxu0
        %v7639 = vadd.f32 0.0, %v7638
        %v7640 = vpop.f32.mrb[0].mxu0
        %v7641 = vpop.f32.mrb[0].mxu0
        %v7642 = vadd.f32 0.0, %v7641
        %v7643 = vpop.f32.mrb[0].mxu0
        %7644 = vmatprep.mubr.bf16.mxu0 %v7165
        %7645 = vmatmul.mubr.bf16.gmra.mrb[0].mxu0 %v7164
        %v7646 = vpop.f32.mrb[0].mxu0
        %v7647 = vadd.f32 0.0, %v7646
        %v7648 = vpop.f32.mrb[0].mxu0
        %v7649 = vpop.f32.mrb[0].mxu0
        %v7650 = vadd.f32 0.0, %v7649
        %v7651 = vpop.f32.mrb[0].mxu0
        %7652 = vmatprep.mubr.bf16.mxu0 %v7173
        %7653 = vmatmul.mubr.bf16.gmra.mrb[0].mxu0 %v7172
        %v7654 = vpop.f32.mrb[0].mxu0
        %v7655 = vadd.f32 0.0, %v7654
        %v7656 = vpop.f32.mrb[0].mxu0
        %v7657 = vpop.f32.mrb[0].mxu0
        %v7658 = vadd.f32 0.0, %v7657
        %v7659 = vpop.f32.mrb[0].mxu0
        %7660 = vmatprep.mubr.bf16.mxu0 %v7181
        %7661 = vmatmul.mubr.bf16.gmra.mrb[0].mxu0 %v7180
        %v7662 = vpop.f32.mrb[0].mxu0
        %v7663 = vadd.f32 0.0, %v7662
        %v7664 = vpop.f32.mrb[0].mxu0
        %v7665 = vpop.f32.mrb[0].mxu0
        %v7666 = vadd.f32 0.0, %v7665
        %v7667 = vpop.f32.mrb[0].mxu0
        %7668 = vdwg.mxu0
        %7669 = vmatprep.subr.bf16.mxu0 0
        %7670 = vmatpush1.bf16.msra.mxu0 %v7492
        %7671 = vmatprep.subr.bf16.mxu0 0
        %7672 = vmatpush1.bf16.msra.mxu0 %v7493
        %7673 = vmatprep.subr.bf16.mxu0 0
        %7674 = vmatpush1.bf16.msra.mxu0 %v7494
        %7675 = vmatprep.subr.bf16.mxu0 0
        %7676 = vmatpush1.bf16.msra.mxu0 %v7495
        %7677 = vmatprep.subr.bf16.mxu0 0
        %7678 = vmatpush1.bf16.msra.mxu0 %v7496
        %7679 = vmatprep.subr.bf16.mxu0 0
        %7680 = vmatpush1.bf16.msra.mxu0 %v7497
        %7681 = vmatprep.subr.bf16.mxu0 0
        %7682 = vmatpush1.bf16.msra.mxu0 %v7498
        %7683 = vmatprep.subr.bf16.mxu0 0
        %7684 = vmatpush1.bf16.msra.mxu0 %v7499
        %7685 = vmatprep.subr.bf16.mxu0 0
        %7686 = vmatpush1.bf16.msra.mxu0 %v7500
        %7687 = vmatprep.subr.bf16.mxu0 0
        %7688 = vmatpush1.bf16.msra.mxu0 %v7501
        %7689 = vmatprep.subr.bf16.mxu0 0
        %7690 = vmatpush1.bf16.msra.mxu0 %v7502
        %7691 = vmatprep.subr.bf16.mxu0 0
        %7692 = vmatpush1.bf16.msra.mxu0 %v7503
        %7693 = vmatprep.subr.bf16.mxu0 0
        %7694 = vmatpush1.bf16.msra.mxu0 %v7504
        %7695 = vmatprep.subr.bf16.mxu0 0
        %7696 = vmatpush1.bf16.msra.mxu0 %v7505
        %7697 = vmatprep.subr.bf16.mxu0 0
        %7698 = vmatpush1.bf16.msra.mxu0 %v7506
        %7699 = vmatprep.subr.bf16.mxu0 0
        %7700 = vmatpush1.bf16.msra.mxu0 %v7507
        %7701 = vmatprep.mubr.bf16.mxu0 %v7159
        %7702 = vmatmul.mubr.bf16.gmra.mrb[0].mxu0 %v7158
        %v7703 = vpop.f32.mrb[0].mxu0
        %v7704 = vadd.f32 %v7639, %v7703
        %v7705 = vpop.f32.mrb[0].mxu0
        %v7706 = vpop.f32.mrb[0].mxu0
        %v7707 = vadd.f32 %v7642, %v7706
        %v7708 = vpop.f32.mrb[0].mxu0
        %7709 = vmatprep.mubr.bf16.mxu0 %v7167
        %7710 = vmatmul.mubr.bf16.gmra.mrb[0].mxu0 %v7166
        %v7711 = vpop.f32.mrb[0].mxu0
        %v7712 = vadd.f32 %v7647, %v7711
        %v7713 = vpop.f32.mrb[0].mxu0
        %v7714 = vpop.f32.mrb[0].mxu0
        %v7715 = vadd.f32 %v7650, %v7714
        %v7716 = vpop.f32.mrb[0].mxu0
        %7717 = vmatprep.mubr.bf16.mxu0 %v7175
        %7718 = vmatmul.mubr.bf16.gmra.mrb[0].mxu0 %v7174
        %v7719 = vpop.f32.mrb[0].mxu0
        %v7720 = vadd.f32 %v7655, %v7719
        %v7721 = vpop.f32.mrb[0].mxu0
        %v7722 = vpop.f32.mrb[0].mxu0
        %v7723 = vadd.f32 %v7658, %v7722
        %v7724 = vpop.f32.mrb[0].mxu0
        %7725 = vmatprep.mubr.bf16.mxu0 %v7183
        %7726 = vmatmul.mubr.bf16.gmra.mrb[0].mxu0 %v7182
        %v7727 = vpop.f32.mrb[0].mxu0
        %v7728 = vadd.f32 %v7663, %v7727
        %v7729 = vpop.f32.mrb[0].mxu0
        %v7730 = vpop.f32.mrb[0].mxu0
        %v7731 = vadd.f32 %v7666, %v7730
        %v7732 = vpop.f32.mrb[0].mxu0
        %7733 = vdwg.mxu0
        %7734 = vmatprep.subr.bf16.mxu0 0
        %7735 = vmatpush1.bf16.msra.mxu0 %v7508
        %7736 = vmatprep.subr.bf16.mxu0 0
        %7737 = vmatpush1.bf16.msra.mxu0 %v7509
        %7738 = vmatprep.subr.bf16.mxu0 0
        %7739 = vmatpush1.bf16.msra.mxu0 %v7510
        %7740 = vmatprep.subr.bf16.mxu0 0
        %7741 = vmatpush1.bf16.msra.mxu0 %v7511
        %7742 = vmatprep.subr.bf16.mxu0 0
        %7743 = vmatpush1.bf16.msra.mxu0 %v7512
        %7744 = vmatprep.subr.bf16.mxu0 0
        %7745 = vmatpush1.bf16.msra.mxu0 %v7513
        %7746 = vmatprep.subr.bf16.mxu0 0
        %7747 = vmatpush1.bf16.msra.mxu0 %v7514
        %7748 = vmatprep.subr.bf16.mxu0 0
        %7749 = vmatpush1.bf16.msra.mxu0 %v7515
        %7750 = vmatprep.subr.bf16.mxu0 0
        %7751 = vmatpush1.bf16.msra.mxu0 %v7516
        %7752 = vmatprep.subr.bf16.mxu0 0
        %7753 = vmatpush1.bf16.msra.mxu0 %v7517
        %7754 = vmatprep.subr.bf16.mxu0 0
        %7755 = vmatpush1.bf16.msra.mxu0 %v7518
        %7756 = vmatprep.subr.bf16.mxu0 0
        %7757 = vmatpush1.bf16.msra.mxu0 %v7519
        %7758 = vmatprep.subr.bf16.mxu0 0
        %7759 = vmatpush1.bf16.msra.mxu0 %v7520
        %7760 = vmatprep.subr.bf16.mxu0 0
        %7761 = vmatpush1.bf16.msra.mxu0 %v7521
        %7762 = vmatprep.subr.bf16.mxu0 0
        %7763 = vmatpush1.bf16.msra.mxu0 %v7522
        %7764 = vmatprep.subr.bf16.mxu0 0
        %7765 = vmatpush1.bf16.msra.mxu0 %v7523
        %7766 = vmatprep.mubr.bf16.mxu0 %v7161
        %7767 = vmatmul.mubr.bf16.gmra.mrb[0].mxu0 %v7160
        %v7768 = vpop.f32.mrb[0].mxu0
        %v7769 = vadd.f32 %v7704, %v7768
        %v7770 = vpop.f32.mrb[0].mxu0
        %v7771 = vpop.f32.mrb[0].mxu0
        %v7772 = vadd.f32 %v7707, %v7771
        %v7773 = vpop.f32.mrb[0].mxu0
        %7774 = vmatprep.mubr.bf16.mxu0 %v7169
        %7775 = vmatmul.mubr.bf16.gmra.mrb[0].mxu0 %v7168
        %v7776 = vpop.f32.mrb[0].mxu0
        %v7777 = vadd.f32 %v7712, %v7776
        %v7778 = vpop.f32.mrb[0].mxu0
        %v7779 = vpop.f32.mrb[0].mxu0
        %v7780 = vadd.f32 %v7715, %v7779
        %v7781 = vpop.f32.mrb[0].mxu0
        %7782 = vmatprep.mubr.bf16.mxu0 %v7177
        %7783 = vmatmul.mubr.bf16.gmra.mrb[0].mxu0 %v7176
        %v7784 = vpop.f32.mrb[0].mxu0
        %v7785 = vadd.f32 %v7720, %v7784
        %v7786 = vpop.f32.mrb[0].mxu0
        %v7787 = vpop.f32.mrb[0].mxu0
        %v7788 = vadd.f32 %v7723, %v7787
        %v7789 = vpop.f32.mrb[0].mxu0
        %7790 = vmatprep.mubr.bf16.mxu0 %v7185
        %7791 = vmatmul.mubr.bf16.gmra.mrb[0].mxu0 %v7184
        %v7792 = vpop.f32.mrb[0].mxu0
        %v7793 = vadd.f32 %v7728, %v7792
        %v7794 = vpop.f32.mrb[0].mxu0
        %v7795 = vpop.f32.mrb[0].mxu0
        %v7796 = vadd.f32 %v7731, %v7795
        %v7797 = vpop.f32.mrb[0].mxu0
        %7798 = vdwg.mxu0
        %7799 = vmatprep.subr.bf16.mxu0 0
        %7800 = vmatpush1.bf16.msra.mxu0 %v7524
        %7801 = vmatprep.subr.bf16.mxu0 0
        %7802 = vmatpush1.bf16.msra.mxu0 %v7525
        %7803 = vmatprep.subr.bf16.mxu0 0
        %7804 = vmatpush1.bf16.msra.mxu0 %v7526
        %7805 = vmatprep.subr.bf16.mxu0 0
        %7806 = vmatpush1.bf16.msra.mxu0 %v7527
        %7807 = vmatprep.subr.bf16.mxu0 0
        %7808 = vmatpush1.bf16.msra.mxu0 %v7528
        %7809 = vmatprep.subr.bf16.mxu0 0
        %7810 = vmatpush1.bf16.msra.mxu0 %v7529
        %7811 = vmatprep.subr.bf16.mxu0 0
        %7812 = vmatpush1.bf16.msra.mxu0 %v7530
        %7813 = vmatprep.subr.bf16.mxu0 0
        %7814 = vmatpush1.bf16.msra.mxu0 %v7531
        %7815 = vmatprep.subr.bf16.mxu0 0
        %7816 = vmatpush1.bf16.msra.mxu0 %v7532
        %7817 = vmatprep.subr.bf16.mxu0 0
        %7818 = vmatpush1.bf16.msra.mxu0 %v7533
        %7819 = vmatprep.subr.bf16.mxu0 0
        %7820 = vmatpush1.bf16.msra.mxu0 %v7534
        %7821 = vmatprep.subr.bf16.mxu0 0
        %7822 = vmatpush1.bf16.msra.mxu0 %v7535
        %7823 = vmatprep.subr.bf16.mxu0 0
        %7824 = vmatpush1.bf16.msra.mxu0 %v7536
        %7825 = vmatprep.subr.bf16.mxu0 0
        %7826 = vmatpush1.bf16.msra.mxu0 %v7537
        %7827 = vmatprep.subr.bf16.mxu0 0
        %7828 = vmatpush1.bf16.msra.mxu0 %v7538
        %7829 = vmatprep.subr.bf16.mxu0 0
        %7830 = vmatpush1.bf16.msra.mxu0 %v7539
        %7831 = vmatprep.mubr.bf16.mxu0 %v7163
        %7832 = vmatmul.mubr.bf16.gmra.mrb[0].mxu0 %v7162
        %v7833 = vpop.f32.mrb[0].mxu0
        %v7834 = vadd.f32 %v7769, %v7833
        %v7835 = vpop.f32.mrb[0].mxu0
        %v7836 = vpop.f32.mrb[0].mxu0
        %v7837 = vadd.f32 %v7772, %v7836
        %v7838 = vpop.f32.mrb[0].mxu0
        %7839 = vmatprep.mubr.bf16.mxu0 %v7171
        %7840 = vmatmul.mubr.bf16.gmra.mrb[0].mxu0 %v7170
        %v7841 = vpop.f32.mrb[0].mxu0
        %v7842 = vadd.f32 %v7777, %v7841
        %v7843 = vpop.f32.mrb[0].mxu0
        %v7844 = vpop.f32.mrb[0].mxu0
        %v7845 = vadd.f32 %v7780, %v7844
        %v7846 = vpop.f32.mrb[0].mxu0
        %7847 = vmatprep.mubr.bf16.mxu0 %v7179
        %7848 = vmatmul.mubr.bf16.gmra.mrb[0].mxu0 %v7178
        %v7849 = vpop.f32.mrb[0].mxu0
        %v7850 = vadd.f32 %v7785, %v7849
        %v7851 = vpop.f32.mrb[0].mxu0
        %v7852 = vpop.f32.mrb[0].mxu0
        %v7853 = vadd.f32 %v7788, %v7852
        %v7854 = vpop.f32.mrb[0].mxu0
        %7855 = vmatprep.mubr.bf16.mxu0 %v7187
        %7856 = vmatmul.mubr.bf16.gmra.mrb[0].mxu0 %v7186
        %v7857 = vpop.f32.mrb[0].mxu0
        %v7858 = vadd.f32 %v7793, %v7857
        %v7859 = vpop.f32.mrb[0].mxu0
        %v7860 = vpop.f32.mrb[0].mxu0
        %v7861 = vadd.f32 %v7796, %v7860
        %v7862 = vpop.f32.mrb[0].mxu0
        %7863 = vdwg.mxu0
        %v7864 = vadd.f32 %v6891, %v7834
        %v7865 = vadd.f32 %v6892, %v7837
        %v7866 = vadd.f32 %v6893, %v7842
        %v7867 = vadd.f32 %v6894, %v7845
        %v7868 = vadd.f32 %v6895, %v7850
        %v7869 = vadd.f32 %v6896, %v7853
        %v7870 = vadd.f32 %v6897, %v7858
        %v7871 = vadd.f32 %v6898, %v7861
        %v7872 = vand.u32 2147483647, %v7864
        %v7873 = vand.u32 2147483647, %v7865
        %v7874 = vand.u32 2147483647, %v7866
        %v7875 = vand.u32 2147483647, %v7867
        %v7876 = vand.u32 2147483647, %v7868
        %v7877 = vand.u32 2147483647, %v7869
        %v7878 = vand.u32 2147483647, %v7870
        %v7879 = vand.u32 2147483647, %v7871
        %v7880 = vmul.f32 %v7872, 1.442695
        %v7881 = vpow.pop %v7880
        %v7882 = vmul.f32 %v7873, 1.442695
        %v7883 = vpow.pop %v7882
        %v7884 = vmul.f32 %v7874, 1.442695
        %v7885 = vpow.pop %v7884
        %v7886 = vmul.f32 %v7875, 1.442695
        %v7887 = vpow.pop %v7886
        %v7888 = vmul.f32 %v7876, 1.442695
        %v7889 = vpow.pop %v7888
        %v7890 = vmul.f32 %v7877, 1.442695
        %v7891 = vpow.pop %v7890
        %v7892 = vmul.f32 %v7878, 1.442695
        %v7893 = vpow.pop %v7892
        %v7894 = vmul.f32 %v7879, 1.442695
        %v7895 = vpow.pop %v7894
        %v7896 = vrcp.pop %v7881
        %v7897 = vrcp.pop %v7883
        %v7898 = vrcp.pop %v7885
        %v7899 = vrcp.pop %v7887
        %v7900 = vrcp.pop %v7889
        %v7901 = vrcp.pop %v7891
        %v7902 = vrcp.pop %v7893
        %v7903 = vrcp.pop %v7895
        %v7904 = vsub.f32 %v7881, %v7896
        %v7905 = vsub.f32 %v7883, %v7897
        %v7906 = vsub.f32 %v7885, %v7898
        %v7907 = vsub.f32 %v7887, %v7899
        %v7908 = vsub.f32 %v7889, %v7900
        %v7909 = vsub.f32 %v7891, %v7901
        %v7910 = vsub.f32 %v7893, %v7902
        %v7911 = vsub.f32 %v7895, %v7903
        %v7912 = vmul.f32 %v7904, 0.5
        %v7913 = vmul.f32 %v7905, 0.5
        %v7914 = vmul.f32 %v7906, 0.5
        %v7915 = vmul.f32 %v7907, 0.5
        %v7916 = vmul.f32 %v7908, 0.5
        %v7917 = vmul.f32 %v7909, 0.5
        %v7918 = vmul.f32 %v7910, 0.5
        %v7919 = vmul.f32 %v7911, 0.5
        %vm7920 = vcmp.ge.f32.partialorder %v7864, 0.0
        %vm7921 = vcmp.ge.f32.partialorder %v7865, 0.0
        %vm7922 = vcmp.ge.f32.partialorder %v7866, 0.0
        %vm7923 = vcmp.ge.f32.partialorder %v7867, 0.0
        %vm7924 = vcmp.ge.f32.partialorder %v7868, 0.0
        %vm7925 = vcmp.ge.f32.partialorder %v7869, 0.0
        %vm7926 = vcmp.ge.f32.partialorder %v7870, 0.0
        %vm7927 = vcmp.ge.f32.partialorder %v7871, 0.0
        %v7928 = vsub.f32 0.0, %v7912
        %v7929 = vsub.f32 0.0, %v7913
        %v7930 = vsub.f32 0.0, %v7914
        %v7931 = vsub.f32 0.0, %v7915
        %v7932 = vsub.f32 0.0, %v7916
        %v7933 = vsub.f32 0.0, %v7917
        %v7934 = vsub.f32 0.0, %v7918
        %v7935 = vsub.f32 0.0, %v7919
        %v7936 = vsel %vm7920, %v7912, %v7928
        %v7937 = vsel %vm7921, %v7913, %v7929
        %v7938 = vsel %vm7922, %v7914, %v7930
        %v7939 = vsel %vm7923, %v7915, %v7931
        %v7940 = vsel %vm7924, %v7916, %v7932
        %v7941 = vsel %vm7925, %v7917, %v7933
        %v7942 = vsel %vm7926, %v7918, %v7934
        %v7943 = vsel %vm7927, %v7919, %v7935
        %v7944 = vmul.f32 %v7864, %v7864
        %v7945 = vmul.f32 %v7865, %v7865
        %v7946 = vmul.f32 %v7866, %v7866
        %v7947 = vmul.f32 %v7867, %v7867
        %v7948 = vmul.f32 %v7868, %v7868
        %v7949 = vmul.f32 %v7869, %v7869
        %v7950 = vmul.f32 %v7870, %v7870
        %v7951 = vmul.f32 %v7871, %v7871
        %v7952 = vmul.f32 %v7944, 0.0001984127
        %v7953 = vmul.f32 %v7945, 0.0001984127
        %v7954 = vmul.f32 %v7946, 0.0001984127
        %v7955 = vmul.f32 %v7947, 0.0001984127
        %v7956 = vmul.f32 %v7948, 0.0001984127
        %v7957 = vmul.f32 %v7949, 0.0001984127
        %v7958 = vmul.f32 %v7950, 0.0001984127
        %v7959 = vmul.f32 %v7951, 0.0001984127
        %v7960 = vadd.f32 %v7952, 0.008333334
        %v7961 = vadd.f32 %v7953, 0.008333334
        %v7962 = vadd.f32 %v7954, 0.008333334
        %v7963 = vadd.f32 %v7955, 0.008333334
        %v7964 = vadd.f32 %v7956, 0.008333334
        %v7965 = vadd.f32 %v7957, 0.008333334
        %v7966 = vadd.f32 %v7958, 0.008333334
        %v7967 = vadd.f32 %v7959, 0.008333334
        %v7968 = vmul.f32 %v7944, %v7960
        %v7969 = vmul.f32 %v7945, %v7961
        %v7970 = vmul.f32 %v7946, %v7962
        %v7971 = vmul.f32 %v7947, %v7963
        %v7972 = vmul.f32 %v7948, %v7964
        %v7973 = vmul.f32 %v7949, %v7965
        %v7974 = vmul.f32 %v7950, %v7966
        %v7975 = vmul.f32 %v7951, %v7967
        %v7976 = vadd.f32 %v7968, 0.16666667
        %v7977 = vadd.f32 %v7969, 0.16666667
        %v7978 = vadd.f32 %v7970, 0.16666667
        %v7979 = vadd.f32 %v7971, 0.16666667
        %v7980 = vadd.f32 %v7972, 0.16666667
        %v7981 = vadd.f32 %v7973, 0.16666667
        %v7982 = vadd.f32 %v7974, 0.16666667
        %v7983 = vadd.f32 %v7975, 0.16666667
        %v7984 = vmul.f32 %v7944, %v7976
        %v7985 = vmul.f32 %v7945, %v7977
        %v7986 = vmul.f32 %v7946, %v7978
        %v7987 = vmul.f32 %v7947, %v7979
        %v7988 = vmul.f32 %v7948, %v7980
        %v7989 = vmul.f32 %v7949, %v7981
        %v7990 = vmul.f32 %v7950, %v7982
        %v7991 = vmul.f32 %v7951, %v7983
        %v7992 = vadd.f32 %v7984, 1.0
        %v7993 = vadd.f32 %v7985, 1.0
        %v7994 = vadd.f32 %v7986, 1.0
        %v7995 = vadd.f32 %v7987, 1.0
        %v7996 = vadd.f32 %v7988, 1.0
        %v7997 = vadd.f32 %v7989, 1.0
        %v7998 = vadd.f32 %v7990, 1.0
        %v7999 = vadd.f32 %v7991, 1.0
        %v8000 = vmul.f32 %v7864, %v7992
        %v8001 = vmul.f32 %v7865, %v7993
        %v8002 = vmul.f32 %v7866, %v7994
        %v8003 = vmul.f32 %v7867, %v7995
        %v8004 = vmul.f32 %v7868, %v7996
        %v8005 = vmul.f32 %v7869, %v7997
        %v8006 = vmul.f32 %v7870, %v7998
        %v8007 = vmul.f32 %v7871, %v7999
        %vm8008 = vcmp.lt.f32.partialorder %v7872, 0.5
        %vm8009 = vcmp.lt.f32.partialorder %v7873, 0.5
        %vm8010 = vcmp.lt.f32.partialorder %v7874, 0.5
        %vm8011 = vcmp.lt.f32.partialorder %v7875, 0.5
        %vm8012 = vcmp.lt.f32.partialorder %v7876, 0.5
        %vm8013 = vcmp.lt.f32.partialorder %v7877, 0.5
        %vm8014 = vcmp.lt.f32.partialorder %v7878, 0.5
        %vm8015 = vcmp.lt.f32.partialorder %v7879, 0.5
        %v8016 = vsel %vm8008, %v8000, %v7936
        %v8017 = vsel %vm8009, %v8001, %v7937
        %v8018 = vsel %vm8010, %v8002, %v7938
        %v8019 = vsel %vm8011, %v8003, %v7939
        %v8020 = vsel %vm8012, %v8004, %v7940
        %v8021 = vsel %vm8013, %v8005, %v7941
        %v8022 = vsel %vm8014, %v8006, %v7942
        %v8023 = vsel %vm8015, %v8007, %v7943
        %8024 = vst [vmem:[%s215] sm:$0xff] %v8016
        %8025 = vst [vmem:[%s215 + $0x8] sm:$0xff] %v8017
        %8026 = vst [vmem:[%s215 + $0x10] sm:$0xff] %v8018
        %8027 = vst [vmem:[%s215 + $0x18] sm:$0xff] %v8019
        %8028 = vst [vmem:[%s215 + $0x20] sm:$0xff] %v8020
        %8029 = vst [vmem:[%s215 + $0x28] sm:$0xff] %v8021
        %8030 = vst [vmem:[%s215 + $0x30] sm:$0xff] %v8022
        %8031 = vst [vmem:[%s215 + $0x38] sm:$0xff] %v8023
        %s8032 = sand.u32 %s96, 1
        %s8033 = scalar_lea.sflag [#allocation4], %s8032
        %s8034 = sand.u32 %s96, 1
        %s8035 = smul.addr %s8034, 64
        %s8036 = scalar_lea.vmem [#allocation7], %s8035
        // Predicated region
        $region37: #{tpu_custom_call.1} parent=27 // pred_check
          %p8037 = pneg %p106
        $region38: #{tpu_custom_call.1} parent=27 // pred_check_branch
          %8039 = sbr.rel (%p8037) target = $region40
        $region39: #{tpu_custom_call.1} parent=27 // pred_region
          %s8041 = ssub.s32 1024, 1024
          %8042 = vsyncadd %s8033, %s8041
          %s8043 = smul.addr %s27, 8
          %s8044 = smul.addr %s26, 16
          %s8045 = sadd.s32 %s8043, %s8044
          %s8046 = smul.addr %s8045, 128
          %s8047 = scalar_lea.hbm %s2, %s8046
          %s8048 = sshll.u32 %s8036, 4
          %s8049 = int_to_ptr.vmem [resolvable:$true] %s8048
          %8054 = dma.vmem_to_hbm [thread:$0]  %s8049, 1024, %s8047, %s8033, 128, 128, 8
        $region40: #{tpu_custom_call.1} parent=27 // pred_fallthru
          _
      $region28: #{tpu_custom_call.1} parent=5 // pred_fallthru
        _
      %p8055 = scmp.le.s32.totalorder 2, %s17
      // Predicated region
      $region41: #{tpu_custom_call.1} parent=5 // pred_check
        %p8056 = pneg %p8055
      $region42: #{tpu_custom_call.1} parent=5 // pred_check_branch
        %8058 = sbr.rel (%p8056) target = $region44
      $region43: #{tpu_custom_call.1} parent=5 // pred_region
        %s8059 = ssub.s32 %s17, 2
        // Predicated region
        $region45: #{tpu_custom_call.1} parent=43 // pred_check
          %p8060 = pneg %p112
        $region46: #{tpu_custom_call.1} parent=43 // pred_check_branch
          %8062 = sbr.rel (%p8060) target = $region48
        $region47: #{tpu_custom_call.1} parent=43 // pred_region
          %s8063 = sand.u32 %s97, 1
          %s8064 = scalar_lea.sflag [#allocation4], %s8063
          %s8065 = sand.u32 %s97, 1
          %s8066 = smul.addr %s8065, 64
          %s8067 = scalar_lea.vmem [#allocation7], %s8066
          %8068 = dma.done %s8064, 1024
        $region48: #{tpu_custom_call.1} parent=43 // pred_fallthru
          _
      $region44: #{tpu_custom_call.1} parent=5 // pred_fallthru
        _
    $region6: #{tpu_custom_call.1} parent=1 // loop_footer
      %s21 = sadd.s32 1, %s17
    $region7: #{tpu_custom_call.1} parent=1 // loop_footer_branch
      %16 = sbr.rel target = $region3
    $region8: #{tpu_custom_call.1} parent=1 // loop_exit
      _
    %8069 = vsyncpa [#allocation3], 1
    %s8070 = scalar_lea.sflag [#allocation3], 1
    %8071 = vsyncpa %s8070, 1
    %8072 = vsyncpa [#allocation6], 1
    %s8073 = scalar_lea.sflag [#allocation6], 1
    %8074 = vsyncpa %s8073, 1
    %8075 = vsyncpa [#allocation4], 1
    %s8076 = scalar_lea.sflag [#allocation4], 1
    %8077 = vsyncpa %s8076, 1

</llo_original>
